<compile_context>
chip_gen: v6e
topology: v6e:2x2x1
jax: 0.10.0
libtpu: 0.0.40
codegen_flags: <defaults>
</compile_context>

<pallas_src>
import functools

import jax
import jax.numpy as jnp
from jax.experimental import pallas as pl
from jax.experimental.pallas import tpu as pltpu

LATENT = 50
LATENT_PAD = 64          # pad K so z loads / w1 sublanes are aligned (zero rows contribute 0)
HIDDEN = 1024
OUT = 784
OUT_PAD = 896            # 7 * 128 -> lane-dense, unmasked output stores
BN_EPS = 1e-5
_TARGET_ROWS = 256       # MXU M-tile target (2x256x256 on v6e/v7x; >=128 already fills v5e)


def generator_kernel(z_ref, w1_ref, b1_ref, w2_ref, b2_ref, w3_ref, b3_ref, o_ref):
    gt, b, k = z_ref.shape               # (group_tile, rows_per_group, LATENT_PAD)
    m = gt * b                           # MXU M dimension for this grid step

    # ---- Linear(64 -> 1024) + ReLU.  bf16 MXU operands, f32 accumulation. ----
    z = z_ref[...].reshape(m, k).astype(jnp.bfloat16)
    h1 = jnp.dot(z, w1_ref[...], preferred_element_type=jnp.float32) + b1_ref[...]
    h1 = jnp.maximum(h1, 0.0)

    # ---- Linear(1024 -> 1024) ----
    h2 = jnp.dot(h1.astype(jnp.bfloat16), w2_ref[...],
                 preferred_element_type=jnp.float32) + b2_ref[...]

    # ---- BatchNorm1d(1024, affine=False), training-mode semantics: per-group batch mean,
    #      biased variance.  One-pass stats; clamp var >= 0 so f32 round-off can't feed a
    #      negative number into rsqrt. ----
    h2g = h2.reshape(gt, b, HIDDEN)
    mean = jnp.mean(h2g, axis=1, keepdims=True)
    var = jnp.mean(h2g * h2g, axis=1, keepdims=True) - mean * mean
    var = jnp.maximum(var, 0.0)
    h3 = jnp.maximum((h2g - mean) * jax.lax.rsqrt(var + BN_EPS), 0.0)

    # ---- Linear(1024 -> 896 padded) + Sigmoid ----
    logits = jnp.dot(h3.reshape(m, HIDDEN).astype(jnp.bfloat16), w3_ref[...],
                     preferred_element_type=jnp.float32) + b3_ref[...]
    o_ref[...] = jax.nn.sigmoid(logits).reshape(gt, b, OUT_PAD).astype(o_ref.dtype)


def _resident_spec(shape):
    """Grid-invariant operand: constant index map keeps it VMEM-resident across the grid.
    Single-buffered -- its block never changes, so a second pipeline buffer would only
    double the weight VMEM footprint."""
    try:
        return pl.BlockSpec(shape, lambda g: (0, 0), pipeline_mode=pl.Buffered(1))
    except TypeError:                       # older JAX without pipeline_mode: default buffering
        return pl.BlockSpec(shape, lambda g: (0, 0))


def prepare_params(params):
    """One-time host-side prep (hoisted out of the hot path): pad latent 50->64 and output
    784->896, cast MXU weight operands to bf16.  Call once, keep the result around."""
    w1, b1, w2, b2, w3, b3 = params
    w1_p = jnp.zeros((LATENT_PAD, HIDDEN), jnp.float32).at[:LATENT].set(w1).astype(jnp.bfloat16)
    w2_p = jnp.asarray(w2, jnp.bfloat16)
    w3_p = jnp.zeros((HIDDEN, OUT_PAD), jnp.float32).at[:, :OUT].set(w3).astype(jnp.bfloat16)
    b1_p = jnp.asarray(b1, jnp.float32).reshape(1, HIDDEN)
    b2_p = jnp.asarray(b2, jnp.float32).reshape(1, HIDDEN)
    b3_p = jnp.zeros((1, OUT_PAD), jnp.float32).at[:, :OUT].set(jnp.asarray(b3).reshape(1, OUT))
    return (w1_p, b1_p, w2_p, b2_p, w3_p, b3_p)


def _choose_group_tile(G, B):
    """Groups per grid step: fill ~256 MXU rows, keep >= 2 grid steps when G >= 2 so v7x's
    two TensorCores both get work, and require the tile to divide G exactly."""
    gt = max(1, min(G, _TARGET_ROWS // max(B, 1)))
    if G >= 2:
        gt = max(1, min(gt, G // 2))
    while G % gt:
        gt -= 1
    return gt


@functools.partial(jax.jit, static_argnames=("group_tile",))
def _forward_groups_padded(z_groups, prepared, *, group_tile):
    G, B, _ = z_groups.shape
    w1, b1, w2, b2, w3, b3 = prepared
    # Only per-call data prep: pad latent 50 -> 64 (kept f32; cast to bf16 inside the kernel).
    z_p = jnp.pad(z_groups, ((0, 0), (0, 0), (0, LATENT_PAD - LATENT)))

    return pl.pallas_call(
        generator_kernel,
        out_shape=jax.ShapeDtypeStruct((G, B, OUT_PAD), jnp.float32),
        grid=(G // group_tile,),
        in_specs=[
            pl.BlockSpec((group_tile, B, LATENT_PAD), lambda g: (g, 0, 0)),  # z tile
            _resident_spec(w1.shape), _resident_spec(b1.shape),
            _resident_spec(w2.shape), _resident_spec(b2.shape),
            _resident_spec(w3.shape), _resident_spec(b3.shape),
        ],
        out_specs=pl.BlockSpec((group_tile, B, OUT_PAD), lambda g: (g, 0, 0)),
        compiler_params=pltpu.CompilerParams(
            dimension_semantics=("parallel",),    # grid steps split across v7x's 2 TCs
            vmem_limit_bytes=32 * 1024 * 1024,    # ~9 MiB used @ 256 rows; valid on v5e/v6e/v7x
        ),
    )(z_p, w1, b1, w2, b2, w3, b3)


def generator_forward_groups(z_groups, prepared):
    """z_groups: (G, B, 50) f32 -> (G, B, 784) f32.  Each group of B rows is an independent
    BatchNorm batch (PyTorch training-mode statistics)."""
    G, B, _ = z_groups.shape
    gt = _choose_group_tile(G, B)
    out = _forward_groups_padded(z_groups, prepared, group_tile=gt)
    return out[..., :OUT]   # consumers that tolerate the 896-lane slab can skip this slice


def generator_forward(z, prepared):
    """z: (B, 50) -> (B, 784); BatchNorm over the whole batch, like the PyTorch module."""
    return generator_forward_groups(z[None], prepared)[0]


def init_params(key):
    """PyTorch Linear default init: U(-1/sqrt(fan_in), +1/sqrt(fan_in)).
    Weights stored as (in_features, out_features); biases as (1, out_features)."""
    ks = jax.random.split(key, 6)

    def linear(kw, kb, fan_in, fan_out):
        bound = 1.0 / jnp.sqrt(fan_in)
        w = jax.random.uniform(kw, (fan_in, fan_out), jnp.float32, -bound, bound)
        b = jax.random.uniform(kb, (1, fan_out), jnp.float32, -bound, bound)
        return w, b

    w1, b1 = linear(ks[0], ks[1], LATENT, HIDDEN)
    w2, b2 = linear(ks[2], ks[3], HIDDEN, HIDDEN)
    w3, b3 = linear(ks[4], ks[5], HIDDEN, OUT)
    return (w1, b1, w2, b2, w3, b3)


def reference_forward(z, params):
    """Pure-JAX reference with the same bf16-input / f32-accumulate precision.
    (Deliberate precision tradeoff vs. pure f32 PyTorch; 3e-3 tolerance documents it.)"""
    w1, b1, w2, b2, w3, b3 = params
    bdot = lambda a, b: jnp.dot(a.astype(jnp.bfloat16), b.astype(jnp.bfloat16),
                                preferred_element_type=jnp.float32)
    h1 = jnp.maximum(bdot(z, w1) + b1, 0.0)
    h2 = bdot(h1, w2) + b2
    mean = jnp.mean(h2, axis=0, keepdims=True)
    var = jnp.maximum(jnp.mean(h2 * h2, axis=0, keepdims=True) - mean * mean, 0.0)
    h3 = jnp.maximum((h2 - mean) * jax.lax.rsqrt(var + BN_EPS), 0.0)
    return jax.nn.sigmoid(bdot(h3, w3) + b3)


if __name__ == "__main__":
    key = jax.random.PRNGKey(0)
    k_param, k_z, k_zg = jax.random.split(key, 3)
    params = init_params(k_param)
    prepared = jax.block_until_ready(prepare_params(params))   # hoisted: pad/cast once

    # Single batch (one BN group), matching a direct PyTorch forward call.
    B = 8
    z = jax.random.normal(k_z, (B, LATENT), jnp.float32)
    out = jax.block_until_ready(generator_forward(z, prepared))
    ref = reference_forward(z, params)
    assert out.shape == (B, OUT), out.shape
    assert float(jnp.max(jnp.abs(out - ref))) < 3e-3, "mismatch vs reference (single batch)"

    # Multiple independent BN groups in one call: here 2 groups per grid step -> a 2-step
    # grid, exercising the group-blocked matmuls, per-group BN reshape, and megacore split.
    G = 4
    zg = jax.random.normal(k_zg, (G, B, LATENT), jnp.float32)
    outg = jax.block_until_ready(generator_forward_groups(zg, prepared))
    refg = jnp.stack([reference_forward(zg[g], params) for g in range(G)])
    assert outg.shape == (G, B, OUT), outg.shape
    assert float(jnp.max(jnp.abs(outg - refg))) < 3e-3, "mismatch vs reference (grouped)"

    print("KERNEL_OK")
</pallas_src>

<mosaic_0001>
module attributes {stable_mosaic.version = 11 : i64} {
  func.func @generator_kernel(%arg0: i32, %arg1: memref<1x8x64xf32, #tpu.memory_space<vmem>>, %arg2: memref<64x1024xbf16, #tpu.memory_space<vmem>>, %arg3: memref<1x1024xf32, #tpu.memory_space<vmem>>, %arg4: memref<1024x1024xbf16, #tpu.memory_space<vmem>>, %arg5: memref<1x1024xf32, #tpu.memory_space<vmem>>, %arg6: memref<1024x896xbf16, #tpu.memory_space<vmem>>, %arg7: memref<1x896xf32, #tpu.memory_space<vmem>>, %arg8: memref<1x8x896xf32, #tpu.memory_space<vmem>>) attributes {dimension_semantics = [#tpu.dimension_semantics<parallel>], iteration_bounds = array<i64: 1>, scalar_prefetch = 0 : i64, scratch_operands = 0 : i64, tpu.core_type = #tpu.core_type<tc>, window_params = [{transform_indices = @transform_0, window_bounds = array<i64: 1, 8, 64>}, {pipeline_mode = #tpu.pipeline_mode<synchronous>, transform_indices = @transform_1, window_bounds = array<i64: 64, 1024>}, {pipeline_mode = #tpu.pipeline_mode<synchronous>, transform_indices = @transform_2, window_bounds = array<i64: 1, 1024>}, {pipeline_mode = #tpu.pipeline_mode<synchronous>, transform_indices = @transform_3, window_bounds = array<i64: 1024, 1024>}, {pipeline_mode = #tpu.pipeline_mode<synchronous>, transform_indices = @transform_4, window_bounds = array<i64: 1, 1024>}, {pipeline_mode = #tpu.pipeline_mode<synchronous>, transform_indices = @transform_5, window_bounds = array<i64: 1024, 896>}, {pipeline_mode = #tpu.pipeline_mode<synchronous>, transform_indices = @transform_6, window_bounds = array<i64: 1, 896>}, {transform_indices = @transform_7, window_bounds = array<i64: 1, 8, 896>}]} {
    %c0 = arith.constant 0 : index
    %c0_0 = arith.constant 0 : index
    %c0_1 = arith.constant 0 : index
    %0 = vector.load %arg1[%c0, %c0_0, %c0_1] : memref<1x8x64xf32, #tpu.memory_space<vmem>>, vector<1x8x64xf32>
    %1 = vector.shape_cast %0 : vector<1x8x64xf32> to vector<8x64xf32>
    %2 = arith.truncf %1 : vector<8x64xf32> to vector<8x64xbf16>
    %c0_2 = arith.constant 0 : index
    %c0_3 = arith.constant 0 : index
    %3 = vector.load %arg2[%c0_2, %c0_3] : memref<64x1024xbf16, #tpu.memory_space<vmem>>, vector<64x1024xbf16>
    %cst = arith.constant dense<0.000000e+00> : vector<8x1024xf32>
    %4 = tpu.matmul %2, %3, %cst {dimension_numbers = #tpu.dot_dimension_numbers<[1], [0], [0], [1], [0, 0, 1, 1], [], []>} : vector<8x64xbf16>, vector<64x1024xbf16>, vector<8x1024xf32> -> vector<8x1024xf32>
    %c0_4 = arith.constant 0 : index
    %c0_5 = arith.constant 0 : index
    %5 = vector.load %arg3[%c0_4, %c0_5] : memref<1x1024xf32, #tpu.memory_space<vmem>>, vector<1x1024xf32>
    %6 = vector.broadcast %5 : vector<1x1024xf32> to vector<8x1024xf32>
    %7 = arith.addf %4, %6 : vector<8x1024xf32>
    %cst_6 = arith.constant 0.000000e+00 : f32
    %8 = vector.broadcast %cst_6 : f32 to vector<8x1024xf32>
    %9 = arith.maximumf %7, %8 : vector<8x1024xf32>
    %10 = arith.truncf %9 : vector<8x1024xf32> to vector<8x1024xbf16>
    %c0_7 = arith.constant 0 : index
    %c0_8 = arith.constant 0 : index
    %11 = vector.load %arg4[%c0_7, %c0_8] : memref<1024x1024xbf16, #tpu.memory_space<vmem>>, vector<1024x1024xbf16>
    %cst_9 = arith.constant dense<0.000000e+00> : vector<8x1024xf32>
    %12 = tpu.matmul %10, %11, %cst_9 {dimension_numbers = #tpu.dot_dimension_numbers<[1], [0], [0], [1], [0, 0, 1, 1], [], []>} : vector<8x1024xbf16>, vector<1024x1024xbf16>, vector<8x1024xf32> -> vector<8x1024xf32>
    %c0_10 = arith.constant 0 : index
    %c0_11 = arith.constant 0 : index
    %13 = vector.load %arg5[%c0_10, %c0_11] : memref<1x1024xf32, #tpu.memory_space<vmem>>, vector<1x1024xf32>
    %14 = vector.broadcast %13 : vector<1x1024xf32> to vector<8x1024xf32>
    %15 = arith.addf %12, %14 : vector<8x1024xf32>
    %16 = vector.shape_cast %15 : vector<8x1024xf32> to vector<1x8x1024xf32>
    %cst_12 = arith.constant dense<0.000000e+00> : vector<1x1024xf32>
    %17 = vector.multi_reduction <add>, %16, %cst_12 [1] : vector<1x8x1024xf32> to vector<1x1024xf32>
    %18 = vector.shape_cast %17 : vector<1x1024xf32> to vector<1x1x1024xf32>
    %cst_13 = arith.constant 8.000000e+00 : f32
    %19 = vector.broadcast %cst_13 : f32 to vector<1x1x1024xf32>
    %20 = arith.divf %18, %19 : vector<1x1x1024xf32>
    %21 = arith.mulf %16, %16 : vector<1x8x1024xf32>
    %cst_14 = arith.constant dense<0.000000e+00> : vector<1x1024xf32>
    %22 = vector.multi_reduction <add>, %21, %cst_14 [1] : vector<1x8x1024xf32> to vector<1x1024xf32>
    %23 = vector.shape_cast %22 : vector<1x1024xf32> to vector<1x1x1024xf32>
    %cst_15 = arith.constant 8.000000e+00 : f32
    %24 = vector.broadcast %cst_15 : f32 to vector<1x1x1024xf32>
    %25 = arith.divf %23, %24 : vector<1x1x1024xf32>
    %26 = arith.mulf %20, %20 : vector<1x1x1024xf32>
    %27 = arith.subf %25, %26 : vector<1x1x1024xf32>
    %cst_16 = arith.constant 0.000000e+00 : f32
    %28 = vector.broadcast %cst_16 : f32 to vector<1x1x1024xf32>
    %29 = arith.maximumf %27, %28 : vector<1x1x1024xf32>
    %30 = vector.broadcast %20 : vector<1x1x1024xf32> to vector<1x8x1024xf32>
    %31 = arith.subf %16, %30 : vector<1x8x1024xf32>
    %cst_17 = arith.constant 9.99999974E-6 : f32
    %32 = vector.broadcast %cst_17 : f32 to vector<1x1x1024xf32>
    %33 = arith.addf %29, %32 : vector<1x1x1024xf32>
    %34 = math.rsqrt %33 : vector<1x1x1024xf32>
    %35 = vector.broadcast %34 : vector<1x1x1024xf32> to vector<1x8x1024xf32>
    %36 = arith.mulf %31, %35 : vector<1x8x1024xf32>
    %cst_18 = arith.constant 0.000000e+00 : f32
    %37 = vector.broadcast %cst_18 : f32 to vector<1x8x1024xf32>
    %38 = arith.maximumf %36, %37 : vector<1x8x1024xf32>
    %39 = vector.shape_cast %38 : vector<1x8x1024xf32> to vector<8x1024xf32>
    %40 = arith.truncf %39 : vector<8x1024xf32> to vector<8x1024xbf16>
    %c0_19 = arith.constant 0 : index
    %c0_20 = arith.constant 0 : index
    %41 = vector.load %arg6[%c0_19, %c0_20] : memref<1024x896xbf16, #tpu.memory_space<vmem>>, vector<1024x896xbf16>
    %cst_21 = arith.constant dense<0.000000e+00> : vector<8x896xf32>
    %42 = tpu.matmul %40, %41, %cst_21 {dimension_numbers = #tpu.dot_dimension_numbers<[1], [0], [0], [1], [0, 0, 1, 1], [], []>} : vector<8x1024xbf16>, vector<1024x896xbf16>, vector<8x896xf32> -> vector<8x896xf32>
    %c0_22 = arith.constant 0 : index
    %c0_23 = arith.constant 0 : index
    %43 = vector.load %arg7[%c0_22, %c0_23] : memref<1x896xf32, #tpu.memory_space<vmem>>, vector<1x896xf32>
    %44 = vector.broadcast %43 : vector<1x896xf32> to vector<8x896xf32>
    %45 = arith.addf %42, %44 : vector<8x896xf32>
    %46 = arith.negf %45 : vector<8x896xf32>
    %47 = math.exp %46 : vector<8x896xf32>
    %cst_24 = arith.constant 1.000000e+00 : f32
    %48 = vector.broadcast %cst_24 : f32 to vector<8x896xf32>
    %49 = arith.addf %48, %47 : vector<8x896xf32>
    %50 = arith.divf %48, %49 : vector<8x896xf32>
    %51 = vector.shape_cast %50 : vector<8x896xf32> to vector<1x8x896xf32>
    %c0_25 = arith.constant 0 : index
    %c0_26 = arith.constant 0 : index
    %c0_27 = arith.constant 0 : index
    %52 = vector.load %arg8[%c0_25, %c0_26, %c0_27] : memref<1x8x896xf32, #tpu.memory_space<vmem>>, vector<1x8x896xf32>
    tpu.vector_store %arg8[%c0_25, %c0_26, %c0_27], %51 {strides = array<i32>} : memref<1x8x896xf32, #tpu.memory_space<vmem>>, vector<1x8x896xf32>,
    return
  }
  func.func @transform_0(%arg0: i32) -> (i32, i32, i32) {
    %c0_i32 = arith.constant 0 : i32
    %c0_i32_0 = arith.constant 0 : i32
    %c0_i32_1 = arith.constant 0 : i32
    return %arg0, %c0_i32, %c0_i32_0 : i32, i32, i32
  }
  func.func @transform_1(%arg0: i32) -> (i32, i32) {
    %c0_i32 = arith.constant 0 : i32
    %c0_i32_0 = arith.constant 0 : i32
    %c0_i32_1 = arith.constant 0 : i32
    return %c0_i32, %c0_i32_0 : i32, i32
  }
  func.func @transform_2(%arg0: i32) -> (i32, i32) {
    %c0_i32 = arith.constant 0 : i32
    %c0_i32_0 = arith.constant 0 : i32
    %c0_i32_1 = arith.constant 0 : i32
    return %c0_i32, %c0_i32_0 : i32, i32
  }
  func.func @transform_3(%arg0: i32) -> (i32, i32) {
    %c0_i32 = arith.constant 0 : i32
    %c0_i32_0 = arith.constant 0 : i32
    %c0_i32_1 = arith.constant 0 : i32
    return %c0_i32, %c0_i32_0 : i32, i32
  }
  func.func @transform_4(%arg0: i32) -> (i32, i32) {
    %c0_i32 = arith.constant 0 : i32
    %c0_i32_0 = arith.constant 0 : i32
    %c0_i32_1 = arith.constant 0 : i32
    return %c0_i32, %c0_i32_0 : i32, i32
  }
  func.func @transform_5(%arg0: i32) -> (i32, i32) {
    %c0_i32 = arith.constant 0 : i32
    %c0_i32_0 = arith.constant 0 : i32
    %c0_i32_1 = arith.constant 0 : i32
    return %c0_i32, %c0_i32_0 : i32, i32
  }
  func.func @transform_6(%arg0: i32) -> (i32, i32) {
    %c0_i32 = arith.constant 0 : i32
    %c0_i32_0 = arith.constant 0 : i32
    %c0_i32_1 = arith.constant 0 : i32
    return %c0_i32, %c0_i32_0 : i32, i32
  }
  func.func @transform_7(%arg0: i32) -> (i32, i32, i32) {
    %c0_i32 = arith.constant 0 : i32
    %c0_i32_0 = arith.constant 0 : i32
    %c0_i32_1 = arith.constant 0 : i32
    return %arg0, %c0_i32, %c0_i32_0 : i32, i32, i32
  }
}

</mosaic_0001>

<llo_original>
// kernel: _forward_groups_padded.1
$region0: #{_forward_groups_padded.1}
  #allocation0 [shape = 'u32[]', space=smem, size = 0x4, offset = 0x4, fixed_abs, tag = 'smem constant byte address 0x4 - core index']
  #allocation1 [shape = 'u32[144,128]{1,0:T(1,128)}', space=vmem, size = 0x12000, scoped, tag = 'internal scratch']
  %s0 = inlined_call_operand.vmem [shape: f32[1,8,64], index: 0, kind: input, shape index: {}]
  %s1 = inlined_call_operand.hbm [shape: bf16[64,1024], index: 1, kind: input, shape index: {}]
  %s2 = inlined_call_operand.hbm [shape: f32[1,1024], index: 2, kind: input, shape index: {}]
  %s3 = inlined_call_operand.hbm [shape: bf16[1024,1024], index: 3, kind: input, shape index: {}]
  %s4 = inlined_call_operand.hbm [shape: f32[1,1024], index: 4, kind: input, shape index: {}]
  %s5 = inlined_call_operand.hbm [shape: bf16[1024,896], index: 5, kind: input, shape index: {}]
  %s6 = inlined_call_operand.hbm [shape: f32[1,896], index: 6, kind: input, shape index: {}]
  %s7 = inlined_call_operand.hbm [shape: f32[1,8,896], index: 7, kind: output, shape index: {}]
  %s8 = sld [smem:[#allocation0]]
  $region62: #{_forward_groups_padded.1} parent=0
    _
  %s10 = ssub.s32 1, %s8
  %s11 = scalar_select 0, %s10, %s8
  $region1: #{_forward_groups_padded.1} parent=0
    #allocation2 [shape = 'u8[131072]{0}', space=vmem, size = 0x20000, scoped, tag = 'input window, operand 1, single buffered']
    #allocation3 [shape = 's32[1]{0}', space=sflag, size = 0x4, scoped, tag = 'scoped memory for _forward_groups_padded.1']
    #allocation4 [shape = 's32[1]{0}', space=sflag, size = 0x4, scoped, tag = 'scoped memory for _forward_groups_padded.1']
    #allocation5 [shape = 'u8[4096]{0}', space=vmem, size = 0x1000, scoped, tag = 'input window, operand 2, single buffered']
    #allocation6 [shape = 's32[1]{0}', space=sflag, size = 0x4, scoped, tag = 'scoped memory for _forward_groups_padded.1']
    #allocation7 [shape = 'u8[2097152]{0}', space=vmem, size = 0x200000, scoped, tag = 'input window, operand 3, single buffered']
    #allocation8 [shape = 'u8[4096]{0}', space=vmem, size = 0x1000, scoped, tag = 'input window, operand 4, single buffered']
    #allocation9 [shape = 's32[1]{0}', space=sflag, size = 0x4, scoped, tag = 'scoped memory for _forward_groups_padded.1']
    #allocation10 [shape = 'u8[1835008]{0}', space=vmem, size = 0x1c0000, scoped, tag = 'input window, operand 5, single buffered']
    #allocation11 [shape = 'u8[3584]{0}', space=vmem, size = 0x1000, scoped, tag = 'input window, operand 6, single buffered']
    #allocation12 [shape = 's32[1]{0}', space=sflag, size = 0x4, scoped, tag = 'scoped memory for _forward_groups_padded.1']
    #allocation13 [shape = 'u8[28672]{0}', space=vmem, size = 0x7000, scoped, tag = 'output window, operand 0, single buffered']
    %12 = vsyncpa [#allocation3], 0
    %13 = vsyncpa [#allocation6], 0
    %14 = vsyncpa [#allocation9], 0
    %15 = vsyncpa [#allocation12], 0
    %16 = vsyncpa [#allocation4], 0
    // Predicated region
    $region2: #{_forward_groups_padded.1} parent=1 // pred_check
      _
    $region3: #{_forward_groups_padded.1} parent=1 // pred_check_branch
      %18 = sbr.rel (0) target = $region5
    $region4: #{_forward_groups_padded.1} parent=1 // pred_region
      _
    $region5: #{_forward_groups_padded.1} parent=1 // pred_fallthru
      _
    // Predicated region
    $region6: #{_forward_groups_padded.1} parent=1 // pred_check
      _
    $region7: #{_forward_groups_padded.1} parent=1 // pred_check_branch
      %20 = sbr.rel (0) target = $region9
    $region8: #{_forward_groups_padded.1} parent=1 // pred_region
      %s22 = ssub.s32 4096, 4096
      %23 = vsyncadd [#allocation3], %s22
      %s24 = sshll.u32 [#allocation2], 4
      %s25 = int_to_ptr.vmem [resolvable:$true] %s24
      %30 = dma.hbm_to_vmem [thread:$0]  %s1, 4096, %s25, [#allocation3], 512, 512, 32
    $region9: #{_forward_groups_padded.1} parent=1 // pred_fallthru
      _
    // Predicated region
    $region10: #{_forward_groups_padded.1} parent=1 // pred_check
      _
    $region11: #{_forward_groups_padded.1} parent=1 // pred_check_branch
      %32 = sbr.rel (0) target = $region13
    $region12: #{_forward_groups_padded.1} parent=1 // pred_region
      %s34 = ssub.s32 128, 128
      %35 = vsyncadd [#allocation6], %s34
      %s37 = sshll.u32 [#allocation5], 4
      %s38 = int_to_ptr.vmem [resolvable:$true] %s37
      %40 = dma.hbm_to_vmem [thread:$0]  %s2, 128, %s38, [#allocation6]
    $region13: #{_forward_groups_padded.1} parent=1 // pred_fallthru
      _
    // Predicated region
    $region14: #{_forward_groups_padded.1} parent=1 // pred_check
      _
    $region15: #{_forward_groups_padded.1} parent=1 // pred_check_branch
      %42 = sbr.rel (0) target = $region17
    $region16: #{_forward_groups_padded.1} parent=1 // pred_region
      %s44 = ssub.s32 65536, 65536
      %45 = vsyncadd [#allocation6], %s44
      %s46 = sshll.u32 [#allocation7], 4
      %s47 = int_to_ptr.vmem [resolvable:$true] %s46
      %52 = dma.hbm_to_vmem [thread:$0]  %s3, 65536, %s47, [#allocation6], 512, 512, 32
    $region17: #{_forward_groups_padded.1} parent=1 // pred_fallthru
      _
    // Predicated region
    $region18: #{_forward_groups_padded.1} parent=1 // pred_check
      _
    $region19: #{_forward_groups_padded.1} parent=1 // pred_check_branch
      %54 = sbr.rel (0) target = $region21
    $region20: #{_forward_groups_padded.1} parent=1 // pred_region
      %s56 = ssub.s32 128, 128
      %57 = vsyncadd [#allocation9], %s56
      %s59 = sshll.u32 [#allocation8], 4
      %s60 = int_to_ptr.vmem [resolvable:$true] %s59
      %62 = dma.hbm_to_vmem [thread:$0]  %s4, 128, %s60, [#allocation9]
    $region21: #{_forward_groups_padded.1} parent=1 // pred_fallthru
      _
    // Predicated region
    $region22: #{_forward_groups_padded.1} parent=1 // pred_check
      _
    $region23: #{_forward_groups_padded.1} parent=1 // pred_check_branch
      %64 = sbr.rel (0) target = $region25
    $region24: #{_forward_groups_padded.1} parent=1 // pred_region
      %s66 = ssub.s32 57344, 57344
      %67 = vsyncadd [#allocation9], %s66
      %s68 = sshll.u32 [#allocation10], 4
      %s69 = int_to_ptr.vmem [resolvable:$true] %s68
      %74 = dma.hbm_to_vmem [thread:$0]  %s5, 57344, %s69, [#allocation9], 448, 448, 28
    $region25: #{_forward_groups_padded.1} parent=1 // pred_fallthru
      _
    // Predicated region
    $region26: #{_forward_groups_padded.1} parent=1 // pred_check
      _
    $region27: #{_forward_groups_padded.1} parent=1 // pred_check_branch
      %76 = sbr.rel (0) target = $region29
    $region28: #{_forward_groups_padded.1} parent=1 // pred_region
      %s78 = ssub.s32 112, 112
      %79 = vsyncadd [#allocation12], %s78
      %s81 = sshll.u32 [#allocation11], 4
      %s82 = int_to_ptr.vmem [resolvable:$true] %s81
      %84 = dma.hbm_to_vmem [thread:$0]  %s6, 112, %s82, [#allocation12]
    $region29: #{_forward_groups_padded.1} parent=1 // pred_fallthru
      _
    // Predicated region
    $region30: #{_forward_groups_padded.1} parent=1 // pred_check
      _
    $region31: #{_forward_groups_padded.1} parent=1 // pred_check_branch
      %86 = sbr.rel (0) target = $region33
    $region32: #{_forward_groups_padded.1} parent=1 // pred_region
      %87 = dma.done [#allocation3], 4096
    $region33: #{_forward_groups_padded.1} parent=1 // pred_fallthru
      _
    // Predicated region
    $region34: #{_forward_groups_padded.1} parent=1 // pred_check
      _
    $region35: #{_forward_groups_padded.1} parent=1 // pred_check_branch
      %89 = sbr.rel (0) target = $region37
    $region36: #{_forward_groups_padded.1} parent=1 // pred_region
      %90 = dma.done [#allocation6], 128
    $region37: #{_forward_groups_padded.1} parent=1 // pred_fallthru
      _
    // Predicated region
    $region38: #{_forward_groups_padded.1} parent=1 // pred_check
      _
    $region39: #{_forward_groups_padded.1} parent=1 // pred_check_branch
      %92 = sbr.rel (0) target = $region41
    $region40: #{_forward_groups_padded.1} parent=1 // pred_region
      %93 = dma.done [#allocation6], 65536
    $region41: #{_forward_groups_padded.1} parent=1 // pred_fallthru
      _
    // Predicated region
    $region42: #{_forward_groups_padded.1} parent=1 // pred_check
      _
    $region43: #{_forward_groups_padded.1} parent=1 // pred_check_branch
      %95 = sbr.rel (0) target = $region45
    $region44: #{_forward_groups_padded.1} parent=1 // pred_region
      %96 = dma.done [#allocation9], 128
    $region45: #{_forward_groups_padded.1} parent=1 // pred_fallthru
      _
    // Predicated region
    $region46: #{_forward_groups_padded.1} parent=1 // pred_check
      _
    $region47: #{_forward_groups_padded.1} parent=1 // pred_check_branch
      %98 = sbr.rel (0) target = $region49
    $region48: #{_forward_groups_padded.1} parent=1 // pred_region
      %99 = dma.done [#allocation9], 57344
    $region49: #{_forward_groups_padded.1} parent=1 // pred_fallthru
      _
    // Predicated region
    $region50: #{_forward_groups_padded.1} parent=1 // pred_check
      _
    $region51: #{_forward_groups_padded.1} parent=1 // pred_check_branch
      %101 = sbr.rel (0) target = $region53
    $region52: #{_forward_groups_padded.1} parent=1 // pred_region
      %102 = dma.done [#allocation12], 112
    $region53: #{_forward_groups_padded.1} parent=1 // pred_fallthru
      _
    %v104 = vld [vmem:[%s0] sm:$0xff]
    %v105 = vpack.c.bf16 %v104, %v104
    %v106 = vld [vmem:[#allocation2] sm:$0xff]
    %v107 = vld [vmem:[#allocation2 + $0x8] sm:$0xff]
    %v108 = vld [vmem:[#allocation2 + $0x10] sm:$0xff]
    %v109 = vld [vmem:[#allocation2 + $0x18] sm:$0xff]
    %v110 = vld [vmem:[#allocation2 + $0x20] sm:$0xff]
    %v111 = vld [vmem:[#allocation2 + $0x28] sm:$0xff]
    %v112 = vld [vmem:[#allocation2 + $0x30] sm:$0xff]
    %v113 = vld [vmem:[#allocation2 + $0x38] sm:$0xff]
    %v114 = vld [vmem:[#allocation2 + $0x40] sm:$0xff]
    %v115 = vld [vmem:[#allocation2 + $0x48] sm:$0xff]
    %v116 = vld [vmem:[#allocation2 + $0x50] sm:$0xff]
    %v117 = vld [vmem:[#allocation2 + $0x58] sm:$0xff]
    %v118 = vld [vmem:[#allocation2 + $0x60] sm:$0xff]
    %v119 = vld [vmem:[#allocation2 + $0x68] sm:$0xff]
    %v120 = vld [vmem:[#allocation2 + $0x70] sm:$0xff]
    %v121 = vld [vmem:[#allocation2 + $0x78] sm:$0xff]
    %v122 = vld [vmem:[#allocation2 + $0x80] sm:$0xff]
    %v123 = vld [vmem:[#allocation2 + $0x88] sm:$0xff]
    %v124 = vld [vmem:[#allocation2 + $0x90] sm:$0xff]
    %v125 = vld [vmem:[#allocation2 + $0x98] sm:$0xff]
    %v126 = vld [vmem:[#allocation2 + $0xa0] sm:$0xff]
    %v127 = vld [vmem:[#allocation2 + $0xa8] sm:$0xff]
    %v128 = vld [vmem:[#allocation2 + $0xb0] sm:$0xff]
    %v129 = vld [vmem:[#allocation2 + $0xb8] sm:$0xff]
    %v130 = vld [vmem:[#allocation2 + $0xc0] sm:$0xff]
    %v131 = vld [vmem:[#allocation2 + $0xc8] sm:$0xff]
    %v132 = vld [vmem:[#allocation2 + $0xd0] sm:$0xff]
    %v133 = vld [vmem:[#allocation2 + $0xd8] sm:$0xff]
    %v134 = vld [vmem:[#allocation2 + $0xe0] sm:$0xff]
    %v135 = vld [vmem:[#allocation2 + $0xe8] sm:$0xff]
    %v136 = vld [vmem:[#allocation2 + $0xf0] sm:$0xff]
    %v137 = vld [vmem:[#allocation2 + $0xf8] sm:$0xff]
    %v138 = vld [vmem:[#allocation5] sm:$0xff]
    %v140 = vlaneseq
    %v141 = vshrl.u32 %v140, 7
    %v142 = vsub.s32 0, %v141
    %v143 = vrot.slane %v138, %v142
    %v144 = vlaneseq
    %v145 = vshrl.u32 %v144, 7
    %v146 = vsub.s32 1, %v145
    %v147 = vrot.slane %v138, %v146
    %v148 = vlaneseq
    %v149 = vshrl.u32 %v148, 7
    %v150 = vsub.s32 2, %v149
    %v151 = vrot.slane %v138, %v150
    %v152 = vlaneseq
    %v153 = vshrl.u32 %v152, 7
    %v154 = vsub.s32 3, %v153
    %v155 = vrot.slane %v138, %v154
    %v156 = vlaneseq
    %v157 = vshrl.u32 %v156, 7
    %v158 = vsub.s32 4, %v157
    %v159 = vrot.slane %v138, %v158
    %v160 = vlaneseq
    %v161 = vshrl.u32 %v160, 7
    %v162 = vsub.s32 5, %v161
    %v163 = vrot.slane %v138, %v162
    %v164 = vlaneseq
    %v165 = vshrl.u32 %v164, 7
    %v166 = vsub.s32 6, %v165
    %v167 = vrot.slane %v138, %v166
    %v168 = vlaneseq
    %v169 = vshrl.u32 %v168, 7
    %v170 = vsub.s32 7, %v169
    %v171 = vrot.slane %v138, %v170
    %v212 = vunpack.c.l.b16 %v106
    %v213 = vunpack.c.h.b16 %v106
    %v214 = vunpack.c.l.b16 %v107
    %v215 = vunpack.c.h.b16 %v107
    %v216 = vunpack.c.l.b16 %v108
    %v217 = vunpack.c.h.b16 %v108
    %v218 = vunpack.c.l.b16 %v109
    %v219 = vunpack.c.h.b16 %v109
    %v220 = vunpack.c.l.b16 %v110
    %v221 = vunpack.c.h.b16 %v110
    %v222 = vunpack.c.l.b16 %v111
    %v223 = vunpack.c.h.b16 %v111
    %v224 = vunpack.c.l.b16 %v112
    %v225 = vunpack.c.h.b16 %v112
    %v226 = vunpack.c.l.b16 %v113
    %v227 = vunpack.c.h.b16 %v113
    %v228 = vunpack.c.l.b16 %v114
    %v229 = vunpack.c.h.b16 %v114
    %v230 = vunpack.c.l.b16 %v115
    %v231 = vunpack.c.h.b16 %v115
    %v232 = vunpack.c.l.b16 %v116
    %v233 = vunpack.c.h.b16 %v116
    %v234 = vunpack.c.l.b16 %v117
    %v235 = vunpack.c.h.b16 %v117
    %v236 = vunpack.c.l.b16 %v118
    %v237 = vunpack.c.h.b16 %v118
    %v238 = vunpack.c.l.b16 %v119
    %v239 = vunpack.c.h.b16 %v119
    %v240 = vunpack.c.l.b16 %v120
    %v241 = vunpack.c.h.b16 %v120
    %v242 = vunpack.c.l.b16 %v121
    %v243 = vunpack.c.h.b16 %v121
    %v244 = vunpack.c.l.b16 %v122
    %v245 = vunpack.c.h.b16 %v122
    %v246 = vunpack.c.l.b16 %v123
    %v247 = vunpack.c.h.b16 %v123
    %v248 = vunpack.c.l.b16 %v124
    %v249 = vunpack.c.h.b16 %v124
    %v250 = vunpack.c.l.b16 %v125
    %v251 = vunpack.c.h.b16 %v125
    %v252 = vunpack.c.l.b16 %v126
    %v253 = vunpack.c.h.b16 %v126
    %v254 = vunpack.c.l.b16 %v127
    %v255 = vunpack.c.h.b16 %v127
    %v256 = vunpack.c.l.b16 %v128
    %v257 = vunpack.c.h.b16 %v128
    %v258 = vunpack.c.l.b16 %v129
    %v259 = vunpack.c.h.b16 %v129
    %v260 = vunpack.c.l.b16 %v130
    %v261 = vunpack.c.h.b16 %v130
    %v262 = vunpack.c.l.b16 %v131
    %v263 = vunpack.c.h.b16 %v131
    %v264 = vunpack.c.l.b16 %v132
    %v265 = vunpack.c.h.b16 %v132
    %v266 = vunpack.c.l.b16 %v133
    %v267 = vunpack.c.h.b16 %v133
    %v268 = vunpack.c.l.b16 %v134
    %v269 = vunpack.c.h.b16 %v134
    %v270 = vunpack.c.l.b16 %v135
    %v271 = vunpack.c.h.b16 %v135
    %v272 = vunpack.c.l.b16 %v136
    %v273 = vunpack.c.h.b16 %v136
    %v274 = vunpack.c.l.b16 %v137
    %v275 = vunpack.c.h.b16 %v137
    %v276 = vpack.c.b16 %v220, %v212
    %v277 = vpack.c.b16 %v221, %v213
    %v278 = vpack.c.b16 %v222, %v214
    %v279 = vpack.c.b16 %v223, %v215
    %v280 = vpack.c.b16 %v224, %v216
    %v281 = vpack.c.b16 %v225, %v217
    %v282 = vpack.c.b16 %v226, %v218
    %v283 = vpack.c.b16 %v227, %v219
    %v284 = vpack.c.b16 %v236, %v228
    %v285 = vpack.c.b16 %v237, %v229
    %v286 = vpack.c.b16 %v238, %v230
    %v287 = vpack.c.b16 %v239, %v231
    %v288 = vpack.c.b16 %v240, %v232
    %v289 = vpack.c.b16 %v241, %v233
    %v290 = vpack.c.b16 %v242, %v234
    %v291 = vpack.c.b16 %v243, %v235
    %v292 = vpack.c.b16 %v252, %v244
    %v293 = vpack.c.b16 %v253, %v245
    %v294 = vpack.c.b16 %v254, %v246
    %v295 = vpack.c.b16 %v255, %v247
    %v296 = vpack.c.b16 %v256, %v248
    %v297 = vpack.c.b16 %v257, %v249
    %v298 = vpack.c.b16 %v258, %v250
    %v299 = vpack.c.b16 %v259, %v251
    %v300 = vpack.c.b16 %v268, %v260
    %v301 = vpack.c.b16 %v269, %v261
    %v302 = vpack.c.b16 %v270, %v262
    %v303 = vpack.c.b16 %v271, %v263
    %v304 = vpack.c.b16 %v272, %v264
    %v305 = vpack.c.b16 %v273, %v265
    %v306 = vpack.c.b16 %v274, %v266
    %v307 = vpack.c.b16 %v275, %v267
    %vm340 = vcmask 523264
    %v342 = vsel %vm340, %v105, 0
    %344 = vmatprep.subr.bf16.mxu0 0
    %345 = vmatpush1.bf16.msra.mxu0 0
    %346 = vmatprep.subr.bf16.mxu0 0
    %347 = vmatpush1.bf16.msra.mxu0 0
    %348 = vmatprep.subr.bf16.mxu0 0
    %349 = vmatpush1.bf16.msra.mxu0 0
    %350 = vmatprep.subr.bf16.mxu0 0
    %351 = vmatpush1.bf16.msra.mxu0 0
    %352 = vmatprep.subr.bf16.mxu0 %v301
    %353 = vmatpush1.bf16.msra.mxu0 %v300
    %354 = vmatprep.subr.bf16.mxu0 %v293
    %355 = vmatpush1.bf16.msra.mxu0 %v292
    %356 = vmatprep.subr.bf16.mxu0 %v285
    %357 = vmatpush1.bf16.msra.mxu0 %v284
    %358 = vmatprep.subr.bf16.mxu0 %v277
    %359 = vmatpush1.bf16.msra.mxu0 %v276
    %360 = vmatprep.subr.bf16.mxu0 0
    %361 = vmatpush2.bf16.msra.mxu0 0
    %362 = vmatprep.subr.bf16.mxu0 0
    %363 = vmatpush2.bf16.msra.mxu0 0
    %364 = vmatprep.subr.bf16.mxu0 0
    %365 = vmatpush2.bf16.msra.mxu0 0
    %366 = vmatprep.subr.bf16.mxu0 0
    %367 = vmatpush2.bf16.msra.mxu0 0
    %368 = vmatprep.subr.bf16.mxu0 0
    %369 = vmatpush2.bf16.msra.mxu0 0
    %370 = vmatprep.subr.bf16.mxu0 0
    %371 = vmatpush2.bf16.msra.mxu0 0
    %372 = vmatprep.subr.bf16.mxu0 0
    %373 = vmatpush2.bf16.msra.mxu0 0
    %374 = vmatprep.subr.bf16.mxu0 0
    %375 = vmatpush2.bf16.msra.mxu0 0
    %376 = vmatprep.mubr.bf16.mxu0 0
    %377 = vmatmul.mubr.bf16.gmra.mxu0 %v342
    %v378 = vpop.f32.mrf.mxu0
    %v379 = vadd.f32 %v143, %v378
    %v380 = vpop.f32.mrf.mxu0
    %v381 = vadd.f32 %v147, %v380
    %v382 = vpop.f32.mrf.mxu0
    %v383 = vpop.f32.mrf.mxu0
    %384 = vdwg.mxu0
    %385 = vmatprep.subr.bf16.mxu0 0
    %386 = vmatpush1.bf16.msra.mxu0 0
    %387 = vmatprep.subr.bf16.mxu0 0
    %388 = vmatpush1.bf16.msra.mxu0 0
    %389 = vmatprep.subr.bf16.mxu0 0
    %390 = vmatpush1.bf16.msra.mxu0 0
    %391 = vmatprep.subr.bf16.mxu0 0
    %392 = vmatpush1.bf16.msra.mxu0 0
    %393 = vmatprep.subr.bf16.mxu0 %v303
    %394 = vmatpush1.bf16.msra.mxu0 %v302
    %395 = vmatprep.subr.bf16.mxu0 %v295
    %396 = vmatpush1.bf16.msra.mxu0 %v294
    %397 = vmatprep.subr.bf16.mxu0 %v287
    %398 = vmatpush1.bf16.msra.mxu0 %v286
    %399 = vmatprep.subr.bf16.mxu0 %v279
    %400 = vmatpush1.bf16.msra.mxu0 %v278
    %401 = vmatprep.subr.bf16.mxu0 0
    %402 = vmatpush2.bf16.msra.mxu0 0
    %403 = vmatprep.subr.bf16.mxu0 0
    %404 = vmatpush2.bf16.msra.mxu0 0
    %405 = vmatprep.subr.bf16.mxu0 0
    %406 = vmatpush2.bf16.msra.mxu0 0
    %407 = vmatprep.subr.bf16.mxu0 0
    %408 = vmatpush2.bf16.msra.mxu0 0
    %409 = vmatprep.subr.bf16.mxu0 0
    %410 = vmatpush2.bf16.msra.mxu0 0
    %411 = vmatprep.subr.bf16.mxu0 0
    %412 = vmatpush2.bf16.msra.mxu0 0
    %413 = vmatprep.subr.bf16.mxu0 0
    %414 = vmatpush2.bf16.msra.mxu0 0
    %415 = vmatprep.subr.bf16.mxu0 0
    %416 = vmatpush2.bf16.msra.mxu0 0
    %417 = vmatprep.mubr.bf16.mxu0 0
    %418 = vmatmul.mubr.bf16.gmra.mxu0 %v342
    %v419 = vpop.f32.mrf.mxu0
    %v420 = vadd.f32 %v151, %v419
    %v421 = vpop.f32.mrf.mxu0
    %v422 = vadd.f32 %v155, %v421
    %v423 = vpop.f32.mrf.mxu0
    %v424 = vpop.f32.mrf.mxu0
    %425 = vdwg.mxu0
    %426 = vmatprep.subr.bf16.mxu0 0
    %427 = vmatpush1.bf16.msra.mxu0 0
    %428 = vmatprep.subr.bf16.mxu0 0
    %429 = vmatpush1.bf16.msra.mxu0 0
    %430 = vmatprep.subr.bf16.mxu0 0
    %431 = vmatpush1.bf16.msra.mxu0 0
    %432 = vmatprep.subr.bf16.mxu0 0
    %433 = vmatpush1.bf16.msra.mxu0 0
    %434 = vmatprep.subr.bf16.mxu0 %v305
    %435 = vmatpush1.bf16.msra.mxu0 %v304
    %436 = vmatprep.subr.bf16.mxu0 %v297
    %437 = vmatpush1.bf16.msra.mxu0 %v296
    %438 = vmatprep.subr.bf16.mxu0 %v289
    %439 = vmatpush1.bf16.msra.mxu0 %v288
    %440 = vmatprep.subr.bf16.mxu0 %v281
    %441 = vmatpush1.bf16.msra.mxu0 %v280
    %442 = vmatprep.subr.bf16.mxu0 0
    %443 = vmatpush2.bf16.msra.mxu0 0
    %444 = vmatprep.subr.bf16.mxu0 0
    %445 = vmatpush2.bf16.msra.mxu0 0
    %446 = vmatprep.subr.bf16.mxu0 0
    %447 = vmatpush2.bf16.msra.mxu0 0
    %448 = vmatprep.subr.bf16.mxu0 0
    %449 = vmatpush2.bf16.msra.mxu0 0
    %450 = vmatprep.subr.bf16.mxu0 0
    %451 = vmatpush2.bf16.msra.mxu0 0
    %452 = vmatprep.subr.bf16.mxu0 0
    %453 = vmatpush2.bf16.msra.mxu0 0
    %454 = vmatprep.subr.bf16.mxu0 0
    %455 = vmatpush2.bf16.msra.mxu0 0
    %456 = vmatprep.subr.bf16.mxu0 0
    %457 = vmatpush2.bf16.msra.mxu0 0
    %458 = vmatprep.mubr.bf16.mxu0 0
    %459 = vmatmul.mubr.bf16.gmra.mxu0 %v342
    %v460 = vpop.f32.mrf.mxu0
    %v461 = vadd.f32 %v159, %v460
    %v462 = vpop.f32.mrf.mxu0
    %v463 = vadd.f32 %v163, %v462
    %v464 = vpop.f32.mrf.mxu0
    %v465 = vpop.f32.mrf.mxu0
    %466 = vdwg.mxu0
    %467 = vmatprep.subr.bf16.mxu0 0
    %468 = vmatpush1.bf16.msra.mxu0 0
    %469 = vmatprep.subr.bf16.mxu0 0
    %470 = vmatpush1.bf16.msra.mxu0 0
    %471 = vmatprep.subr.bf16.mxu0 0
    %472 = vmatpush1.bf16.msra.mxu0 0
    %473 = vmatprep.subr.bf16.mxu0 0
    %474 = vmatpush1.bf16.msra.mxu0 0
    %475 = vmatprep.subr.bf16.mxu0 %v307
    %476 = vmatpush1.bf16.msra.mxu0 %v306
    %477 = vmatprep.subr.bf16.mxu0 %v299
    %478 = vmatpush1.bf16.msra.mxu0 %v298
    %479 = vmatprep.subr.bf16.mxu0 %v291
    %480 = vmatpush1.bf16.msra.mxu0 %v290
    %481 = vmatprep.subr.bf16.mxu0 %v283
    %482 = vmatpush1.bf16.msra.mxu0 %v282
    %483 = vmatprep.subr.bf16.mxu0 0
    %484 = vmatpush2.bf16.msra.mxu0 0
    %485 = vmatprep.subr.bf16.mxu0 0
    %486 = vmatpush2.bf16.msra.mxu0 0
    %487 = vmatprep.subr.bf16.mxu0 0
    %488 = vmatpush2.bf16.msra.mxu0 0
    %489 = vmatprep.subr.bf16.mxu0 0
    %490 = vmatpush2.bf16.msra.mxu0 0
    %491 = vmatprep.subr.bf16.mxu0 0
    %492 = vmatpush2.bf16.msra.mxu0 0
    %493 = vmatprep.subr.bf16.mxu0 0
    %494 = vmatpush2.bf16.msra.mxu0 0
    %495 = vmatprep.subr.bf16.mxu0 0
    %496 = vmatpush2.bf16.msra.mxu0 0
    %497 = vmatprep.subr.bf16.mxu0 0
    %498 = vmatpush2.bf16.msra.mxu0 0
    %499 = vmatprep.mubr.bf16.mxu0 0
    %500 = vmatmul.mubr.bf16.gmra.mxu0 %v342
    %v501 = vpop.f32.mrf.mxu0
    %v502 = vadd.f32 %v167, %v501
    %v503 = vpop.f32.mrf.mxu0
    %v504 = vadd.f32 %v171, %v503
    %v505 = vpop.f32.mrf.mxu0
    %v506 = vpop.f32.mrf.mxu0
    %507 = vdwg.mxu0
    %v508 = vmax.f32 %v379, 0.0
    %v509 = vmax.f32 %v381, 0.0
    %v510 = vmax.f32 %v420, 0.0
    %v511 = vmax.f32 %v422, 0.0
    %v512 = vmax.f32 %v461, 0.0
    %v513 = vmax.f32 %v463, 0.0
    %v514 = vmax.f32 %v502, 0.0
    %v515 = vmax.f32 %v504, 0.0
    %v516 = vpack.c.bf16 %v508, %v508
    %v517 = vpack.c.bf16 %v509, %v509
    %v518 = vpack.c.bf16 %v510, %v510
    %v519 = vpack.c.bf16 %v511, %v511
    %v520 = vpack.c.bf16 %v512, %v512
    %v521 = vpack.c.bf16 %v513, %v513
    %v522 = vpack.c.bf16 %v514, %v514
    %v523 = vpack.c.bf16 %v515, %v515
    %v524 = vld [vmem:[#allocation7] sm:$0xff]
    %v525 = vld [vmem:[#allocation7 + $0x8] sm:$0xff]
    %v526 = vld [vmem:[#allocation7 + $0x10] sm:$0xff]
    %v527 = vld [vmem:[#allocation7 + $0x18] sm:$0xff]
    %v528 = vld [vmem:[#allocation7 + $0x20] sm:$0xff]
    %v529 = vld [vmem:[#allocation7 + $0x28] sm:$0xff]
    %v530 = vld [vmem:[#allocation7 + $0x30] sm:$0xff]
    %v531 = vld [vmem:[#allocation7 + $0x38] sm:$0xff]
    %v532 = vld [vmem:[#allocation7 + $0x40] sm:$0xff]
    %v533 = vld [vmem:[#allocation7 + $0x48] sm:$0xff]
    %v534 = vld [vmem:[#allocation7 + $0x50] sm:$0xff]
    %v535 = vld [vmem:[#allocation7 + $0x58] sm:$0xff]
    %v536 = vld [vmem:[#allocation7 + $0x60] sm:$0xff]
    %v537 = vld [vmem:[#allocation7 + $0x68] sm:$0xff]
    %v538 = vld [vmem:[#allocation7 + $0x70] sm:$0xff]
    %v539 = vld [vmem:[#allocation7 + $0x78] sm:$0xff]
    %v540 = vld [vmem:[#allocation7 + $0x80] sm:$0xff]
    %v541 = vld [vmem:[#allocation7 + $0x88] sm:$0xff]
    %v542 = vld [vmem:[#allocation7 + $0x90] sm:$0xff]
    %v543 = vld [vmem:[#allocation7 + $0x98] sm:$0xff]
    %v544 = vld [vmem:[#allocation7 + $0xa0] sm:$0xff]
    %v545 = vld [vmem:[#allocation7 + $0xa8] sm:$0xff]
    %v546 = vld [vmem:[#allocation7 + $0xb0] sm:$0xff]
    %v547 = vld [vmem:[#allocation7 + $0xb8] sm:$0xff]
    %v548 = vld [vmem:[#allocation7 + $0xc0] sm:$0xff]
    %v549 = vld [vmem:[#allocation7 + $0xc8] sm:$0xff]
    %v550 = vld [vmem:[#allocation7 + $0xd0] sm:$0xff]
    %v551 = vld [vmem:[#allocation7 + $0xd8] sm:$0xff]
    %v552 = vld [vmem:[#allocation7 + $0xe0] sm:$0xff]
    %v553 = vld [vmem:[#allocation7 + $0xe8] sm:$0xff]
    %v554 = vld [vmem:[#allocation7 + $0xf0] sm:$0xff]
    %v555 = vld [vmem:[#allocation7 + $0xf8] sm:$0xff]
    %v556 = vld [vmem:[#allocation7 + $0x100] sm:$0xff]
    %v557 = vld [vmem:[#allocation7 + $0x108] sm:$0xff]
    %v558 = vld [vmem:[#allocation7 + $0x110] sm:$0xff]
    %v559 = vld [vmem:[#allocation7 + $0x118] sm:$0xff]
    %v560 = vld [vmem:[#allocation7 + $0x120] sm:$0xff]
    %v561 = vld [vmem:[#allocation7 + $0x128] sm:$0xff]
    %v562 = vld [vmem:[#allocation7 + $0x130] sm:$0xff]
    %v563 = vld [vmem:[#allocation7 + $0x138] sm:$0xff]
    %v564 = vld [vmem:[#allocation7 + $0x140] sm:$0xff]
    %v565 = vld [vmem:[#allocation7 + $0x148] sm:$0xff]
    %v566 = vld [vmem:[#allocation7 + $0x150] sm:$0xff]
    %v567 = vld [vmem:[#allocation7 + $0x158] sm:$0xff]
    %v568 = vld [vmem:[#allocation7 + $0x160] sm:$0xff]
    %v569 = vld [vmem:[#allocation7 + $0x168] sm:$0xff]
    %v570 = vld [vmem:[#allocation7 + $0x170] sm:$0xff]
    %v571 = vld [vmem:[#allocation7 + $0x178] sm:$0xff]
    %v572 = vld [vmem:[#allocation7 + $0x180] sm:$0xff]
    %v573 = vld [vmem:[#allocation7 + $0x188] sm:$0xff]
    %v574 = vld [vmem:[#allocation7 + $0x190] sm:$0xff]
    %v575 = vld [vmem:[#allocation7 + $0x198] sm:$0xff]
    %v576 = vld [vmem:[#allocation7 + $0x1a0] sm:$0xff]
    %v577 = vld [vmem:[#allocation7 + $0x1a8] sm:$0xff]
    %v578 = vld [vmem:[#allocation7 + $0x1b0] sm:$0xff]
    %v579 = vld [vmem:[#allocation7 + $0x1b8] sm:$0xff]
    %v580 = vld [vmem:[#allocation7 + $0x1c0] sm:$0xff]
    %v581 = vld [vmem:[#allocation7 + $0x1c8] sm:$0xff]
    %v582 = vld [vmem:[#allocation7 + $0x1d0] sm:$0xff]
    %v583 = vld [vmem:[#allocation7 + $0x1d8] sm:$0xff]
    %v584 = vld [vmem:[#allocation7 + $0x1e0] sm:$0xff]
    %v585 = vld [vmem:[#allocation7 + $0x1e8] sm:$0xff]
    %v586 = vld [vmem:[#allocation7 + $0x1f0] sm:$0xff]
    %v587 = vld [vmem:[#allocation7 + $0x1f8] sm:$0xff]
    %v588 = vld [vmem:[#allocation7 + $0x200] sm:$0xff]
    %v589 = vld [vmem:[#allocation7 + $0x208] sm:$0xff]
    %v590 = vld [vmem:[#allocation7 + $0x210] sm:$0xff]
    %v591 = vld [vmem:[#allocation7 + $0x218] sm:$0xff]
    %v592 = vld [vmem:[#allocation7 + $0x220] sm:$0xff]
    %v593 = vld [vmem:[#allocation7 + $0x228] sm:$0xff]
    %v594 = vld [vmem:[#allocation7 + $0x230] sm:$0xff]
    %v595 = vld [vmem:[#allocation7 + $0x238] sm:$0xff]
    %v596 = vld [vmem:[#allocation7 + $0x240] sm:$0xff]
    %v597 = vld [vmem:[#allocation7 + $0x248] sm:$0xff]
    %v598 = vld [vmem:[#allocation7 + $0x250] sm:$0xff]
    %v599 = vld [vmem:[#allocation7 + $0x258] sm:$0xff]
    %v600 = vld [vmem:[#allocation7 + $0x260] sm:$0xff]
    %v601 = vld [vmem:[#allocation7 + $0x268] sm:$0xff]
    %v602 = vld [vmem:[#allocation7 + $0x270] sm:$0xff]
    %v603 = vld [vmem:[#allocation7 + $0x278] sm:$0xff]
    %v604 = vld [vmem:[#allocation7 + $0x280] sm:$0xff]
    %v605 = vld [vmem:[#allocation7 + $0x288] sm:$0xff]
    %v606 = vld [vmem:[#allocation7 + $0x290] sm:$0xff]
    %v607 = vld [vmem:[#allocation7 + $0x298] sm:$0xff]
    %v608 = vld [vmem:[#allocation7 + $0x2a0] sm:$0xff]
    %v609 = vld [vmem:[#allocation7 + $0x2a8] sm:$0xff]
    %v610 = vld [vmem:[#allocation7 + $0x2b0] sm:$0xff]
    %v611 = vld [vmem:[#allocation7 + $0x2b8] sm:$0xff]
    %v612 = vld [vmem:[#allocation7 + $0x2c0] sm:$0xff]
    %v613 = vld [vmem:[#allocation7 + $0x2c8] sm:$0xff]
    %v614 = vld [vmem:[#allocation7 + $0x2d0] sm:$0xff]
    %v615 = vld [vmem:[#allocation7 + $0x2d8] sm:$0xff]
    %v616 = vld [vmem:[#allocation7 + $0x2e0] sm:$0xff]
    %v617 = vld [vmem:[#allocation7 + $0x2e8] sm:$0xff]
    %v618 = vld [vmem:[#allocation7 + $0x2f0] sm:$0xff]
    %v619 = vld [vmem:[#allocation7 + $0x2f8] sm:$0xff]
    %v620 = vld [vmem:[#allocation7 + $0x300] sm:$0xff]
    %v621 = vld [vmem:[#allocation7 + $0x308] sm:$0xff]
    %v622 = vld [vmem:[#allocation7 + $0x310] sm:$0xff]
    %v623 = vld [vmem:[#allocation7 + $0x318] sm:$0xff]
    %v624 = vld [vmem:[#allocation7 + $0x320] sm:$0xff]
    %v625 = vld [vmem:[#allocation7 + $0x328] sm:$0xff]
    %v626 = vld [vmem:[#allocation7 + $0x330] sm:$0xff]
    %v627 = vld [vmem:[#allocation7 + $0x338] sm:$0xff]
    %v628 = vld [vmem:[#allocation7 + $0x340] sm:$0xff]
    %v629 = vld [vmem:[#allocation7 + $0x348] sm:$0xff]
    %v630 = vld [vmem:[#allocation7 + $0x350] sm:$0xff]
    %v631 = vld [vmem:[#allocation7 + $0x358] sm:$0xff]
    %v632 = vld [vmem:[#allocation7 + $0x360] sm:$0xff]
    %v633 = vld [vmem:[#allocation7 + $0x368] sm:$0xff]
    %v634 = vld [vmem:[#allocation7 + $0x370] sm:$0xff]
    %v635 = vld [vmem:[#allocation7 + $0x378] sm:$0xff]
    %v636 = vld [vmem:[#allocation7 + $0x380] sm:$0xff]
    %v637 = vld [vmem:[#allocation7 + $0x388] sm:$0xff]
    %v638 = vld [vmem:[#allocation7 + $0x390] sm:$0xff]
    %v639 = vld [vmem:[#allocation7 + $0x398] sm:$0xff]
    %v640 = vld [vmem:[#allocation7 + $0x3a0] sm:$0xff]
    %v641 = vld [vmem:[#allocation7 + $0x3a8] sm:$0xff]
    %v642 = vld [vmem:[#allocation7 + $0x3b0] sm:$0xff]
    %v643 = vld [vmem:[#allocation7 + $0x3b8] sm:$0xff]
    %v644 = vld [vmem:[#allocation7 + $0x3c0] sm:$0xff]
    %v645 = vld [vmem:[#allocation7 + $0x3c8] sm:$0xff]
    %v646 = vld [vmem:[#allocation7 + $0x3d0] sm:$0xff]
    %v647 = vld [vmem:[#allocation7 + $0x3d8] sm:$0xff]
    %v648 = vld [vmem:[#allocation7 + $0x3e0] sm:$0xff]
    %v649 = vld [vmem:[#allocation7 + $0x3e8] sm:$0xff]
    %v650 = vld [vmem:[#allocation7 + $0x3f0] sm:$0xff]
    %v651 = vld [vmem:[#allocation7 + $0x3f8] sm:$0xff]
    %v652 = vld [vmem:[#allocation7 + $0x400] sm:$0xff]
    %v653 = vld [vmem:[#allocation7 + $0x408] sm:$0xff]
    %v654 = vld [vmem:[#allocation7 + $0x410] sm:$0xff]
    %v655 = vld [vmem:[#allocation7 + $0x418] sm:$0xff]
    %v656 = vld [vmem:[#allocation7 + $0x420] sm:$0xff]
    %v657 = vld [vmem:[#allocation7 + $0x428] sm:$0xff]
    %v658 = vld [vmem:[#allocation7 + $0x430] sm:$0xff]
    %v659 = vld [vmem:[#allocation7 + $0x438] sm:$0xff]
    %v660 = vld [vmem:[#allocation7 + $0x440] sm:$0xff]
    %v661 = vld [vmem:[#allocation7 + $0x448] sm:$0xff]
    %v662 = vld [vmem:[#allocation7 + $0x450] sm:$0xff]
    %v663 = vld [vmem:[#allocation7 + $0x458] sm:$0xff]
    %v664 = vld [vmem:[#allocation7 + $0x460] sm:$0xff]
    %v665 = vld [vmem:[#allocation7 + $0x468] sm:$0xff]
    %v666 = vld [vmem:[#allocation7 + $0x470] sm:$0xff]
    %v667 = vld [vmem:[#allocation7 + $0x478] sm:$0xff]
    %v668 = vld [vmem:[#allocation7 + $0x480] sm:$0xff]
    %v669 = vld [vmem:[#allocation7 + $0x488] sm:$0xff]
    %v670 = vld [vmem:[#allocation7 + $0x490] sm:$0xff]
    %v671 = vld [vmem:[#allocation7 + $0x498] sm:$0xff]
    %v672 = vld [vmem:[#allocation7 + $0x4a0] sm:$0xff]
    %v673 = vld [vmem:[#allocation7 + $0x4a8] sm:$0xff]
    %v674 = vld [vmem:[#allocation7 + $0x4b0] sm:$0xff]
    %v675 = vld [vmem:[#allocation7 + $0x4b8] sm:$0xff]
    %v676 = vld [vmem:[#allocation7 + $0x4c0] sm:$0xff]
    %v677 = vld [vmem:[#allocation7 + $0x4c8] sm:$0xff]
    %v678 = vld [vmem:[#allocation7 + $0x4d0] sm:$0xff]
    %v679 = vld [vmem:[#allocation7 + $0x4d8] sm:$0xff]
    %v680 = vld [vmem:[#allocation7 + $0x4e0] sm:$0xff]
    %v681 = vld [vmem:[#allocation7 + $0x4e8] sm:$0xff]
    %v682 = vld [vmem:[#allocation7 + $0x4f0] sm:$0xff]
    %v683 = vld [vmem:[#allocation7 + $0x4f8] sm:$0xff]
    %v684 = vld [vmem:[#allocation7 + $0x500] sm:$0xff]
    %v685 = vld [vmem:[#allocation7 + $0x508] sm:$0xff]
    %v686 = vld [vmem:[#allocation7 + $0x510] sm:$0xff]
    %v687 = vld [vmem:[#allocation7 + $0x518] sm:$0xff]
    %v688 = vld [vmem:[#allocation7 + $0x520] sm:$0xff]
    %v689 = vld [vmem:[#allocation7 + $0x528] sm:$0xff]
    %v690 = vld [vmem:[#allocation7 + $0x530] sm:$0xff]
    %v691 = vld [vmem:[#allocation7 + $0x538] sm:$0xff]
    %v692 = vld [vmem:[#allocation7 + $0x540] sm:$0xff]
    %v693 = vld [vmem:[#allocation7 + $0x548] sm:$0xff]
    %v694 = vld [vmem:[#allocation7 + $0x550] sm:$0xff]
    %v695 = vld [vmem:[#allocation7 + $0x558] sm:$0xff]
    %v696 = vld [vmem:[#allocation7 + $0x560] sm:$0xff]
    %v697 = vld [vmem:[#allocation7 + $0x568] sm:$0xff]
    %v698 = vld [vmem:[#allocation7 + $0x570] sm:$0xff]
    %v699 = vld [vmem:[#allocation7 + $0x578] sm:$0xff]
    %v700 = vld [vmem:[#allocation7 + $0x580] sm:$0xff]
    %v701 = vld [vmem:[#allocation7 + $0x588] sm:$0xff]
    %v702 = vld [vmem:[#allocation7 + $0x590] sm:$0xff]
    %v703 = vld [vmem:[#allocation7 + $0x598] sm:$0xff]
    %v704 = vld [vmem:[#allocation7 + $0x5a0] sm:$0xff]
    %v705 = vld [vmem:[#allocation7 + $0x5a8] sm:$0xff]
    %v706 = vld [vmem:[#allocation7 + $0x5b0] sm:$0xff]
    %v707 = vld [vmem:[#allocation7 + $0x5b8] sm:$0xff]
    %v708 = vld [vmem:[#allocation7 + $0x5c0] sm:$0xff]
    %v709 = vld [vmem:[#allocation7 + $0x5c8] sm:$0xff]
    %v710 = vld [vmem:[#allocation7 + $0x5d0] sm:$0xff]
    %v711 = vld [vmem:[#allocation7 + $0x5d8] sm:$0xff]
    %v712 = vld [vmem:[#allocation7 + $0x5e0] sm:$0xff]
    %v713 = vld [vmem:[#allocation7 + $0x5e8] sm:$0xff]
    %v714 = vld [vmem:[#allocation7 + $0x5f0] sm:$0xff]
    %v715 = vld [vmem:[#allocation7 + $0x5f8] sm:$0xff]
    %v716 = vld [vmem:[#allocation7 + $0x600] sm:$0xff]
    %v717 = vld [vmem:[#allocation7 + $0x608] sm:$0xff]
    %v718 = vld [vmem:[#allocation7 + $0x610] sm:$0xff]
    %v719 = vld [vmem:[#allocation7 + $0x618] sm:$0xff]
    %v720 = vld [vmem:[#allocation7 + $0x620] sm:$0xff]
    %v721 = vld [vmem:[#allocation7 + $0x628] sm:$0xff]
    %v722 = vld [vmem:[#allocation7 + $0x630] sm:$0xff]
    %v723 = vld [vmem:[#allocation7 + $0x638] sm:$0xff]
    %v724 = vld [vmem:[#allocation7 + $0x640] sm:$0xff]
    %v725 = vld [vmem:[#allocation7 + $0x648] sm:$0xff]
    %v726 = vld [vmem:[#allocation7 + $0x650] sm:$0xff]
    %v727 = vld [vmem:[#allocation7 + $0x658] sm:$0xff]
    %v728 = vld [vmem:[#allocation7 + $0x660] sm:$0xff]
    %v729 = vld [vmem:[#allocation7 + $0x668] sm:$0xff]
    %v730 = vld [vmem:[#allocation7 + $0x670] sm:$0xff]
    %v731 = vld [vmem:[#allocation7 + $0x678] sm:$0xff]
    %v732 = vld [vmem:[#allocation7 + $0x680] sm:$0xff]
    %v733 = vld [vmem:[#allocation7 + $0x688] sm:$0xff]
    %v734 = vld [vmem:[#allocation7 + $0x690] sm:$0xff]
    %v735 = vld [vmem:[#allocation7 + $0x698] sm:$0xff]
    %v736 = vld [vmem:[#allocation7 + $0x6a0] sm:$0xff]
    %v737 = vld [vmem:[#allocation7 + $0x6a8] sm:$0xff]
    %v738 = vld [vmem:[#allocation7 + $0x6b0] sm:$0xff]
    %v739 = vld [vmem:[#allocation7 + $0x6b8] sm:$0xff]
    %v740 = vld [vmem:[#allocation7 + $0x6c0] sm:$0xff]
    %v741 = vld [vmem:[#allocation7 + $0x6c8] sm:$0xff]
    %v742 = vld [vmem:[#allocation7 + $0x6d0] sm:$0xff]
    %v743 = vld [vmem:[#allocation7 + $0x6d8] sm:$0xff]
    %v744 = vld [vmem:[#allocation7 + $0x6e0] sm:$0xff]
    %v745 = vld [vmem:[#allocation7 + $0x6e8] sm:$0xff]
    %v746 = vld [vmem:[#allocation7 + $0x6f0] sm:$0xff]
    %v747 = vld [vmem:[#allocation7 + $0x6f8] sm:$0xff]
    %v748 = vld [vmem:[#allocation7 + $0x700] sm:$0xff]
    %v749 = vld [vmem:[#allocation7 + $0x708] sm:$0xff]
    %v750 = vld [vmem:[#allocation7 + $0x710] sm:$0xff]
    %v751 = vld [vmem:[#allocation7 + $0x718] sm:$0xff]
    %v752 = vld [vmem:[#allocation7 + $0x720] sm:$0xff]
    %v753 = vld [vmem:[#allocation7 + $0x728] sm:$0xff]
    %v754 = vld [vmem:[#allocation7 + $0x730] sm:$0xff]
    %v755 = vld [vmem:[#allocation7 + $0x738] sm:$0xff]
    %v756 = vld [vmem:[#allocation7 + $0x740] sm:$0xff]
    %v757 = vld [vmem:[#allocation7 + $0x748] sm:$0xff]
    %v758 = vld [vmem:[#allocation7 + $0x750] sm:$0xff]
    %v759 = vld [vmem:[#allocation7 + $0x758] sm:$0xff]
    %v760 = vld [vmem:[#allocation7 + $0x760] sm:$0xff]
    %v761 = vld [vmem:[#allocation7 + $0x768] sm:$0xff]
    %v762 = vld [vmem:[#allocation7 + $0x770] sm:$0xff]
    %v763 = vld [vmem:[#allocation7 + $0x778] sm:$0xff]
    %v764 = vld [vmem:[#allocation7 + $0x780] sm:$0xff]
    %v765 = vld [vmem:[#allocation7 + $0x788] sm:$0xff]
    %v766 = vld [vmem:[#allocation7 + $0x790] sm:$0xff]
    %v767 = vld [vmem:[#allocation7 + $0x798] sm:$0xff]
    %v768 = vld [vmem:[#allocation7 + $0x7a0] sm:$0xff]
    %v769 = vld [vmem:[#allocation7 + $0x7a8] sm:$0xff]
    %v770 = vld [vmem:[#allocation7 + $0x7b0] sm:$0xff]
    %v771 = vld [vmem:[#allocation7 + $0x7b8] sm:$0xff]
    %v772 = vld [vmem:[#allocation7 + $0x7c0] sm:$0xff]
    %v773 = vld [vmem:[#allocation7 + $0x7c8] sm:$0xff]
    %v774 = vld [vmem:[#allocation7 + $0x7d0] sm:$0xff]
    %v775 = vld [vmem:[#allocation7 + $0x7d8] sm:$0xff]
    %v776 = vld [vmem:[#allocation7 + $0x7e0] sm:$0xff]
    %v777 = vld [vmem:[#allocation7 + $0x7e8] sm:$0xff]
    %v778 = vld [vmem:[#allocation7 + $0x7f0] sm:$0xff]
    %v779 = vld [vmem:[#allocation7 + $0x7f8] sm:$0xff]
    %v780 = vld [vmem:[#allocation7 + $0x800] sm:$0xff]
    %v781 = vld [vmem:[#allocation7 + $0x808] sm:$0xff]
    %v782 = vld [vmem:[#allocation7 + $0x810] sm:$0xff]
    %v783 = vld [vmem:[#allocation7 + $0x818] sm:$0xff]
    %v784 = vld [vmem:[#allocation7 + $0x820] sm:$0xff]
    %v785 = vld [vmem:[#allocation7 + $0x828] sm:$0xff]
    %v786 = vld [vmem:[#allocation7 + $0x830] sm:$0xff]
    %v787 = vld [vmem:[#allocation7 + $0x838] sm:$0xff]
    %v788 = vld [vmem:[#allocation7 + $0x840] sm:$0xff]
    %v789 = vld [vmem:[#allocation7 + $0x848] sm:$0xff]
    %v790 = vld [vmem:[#allocation7 + $0x850] sm:$0xff]
    %v791 = vld [vmem:[#allocation7 + $0x858] sm:$0xff]
    %v792 = vld [vmem:[#allocation7 + $0x860] sm:$0xff]
    %v793 = vld [vmem:[#allocation7 + $0x868] sm:$0xff]
    %v794 = vld [vmem:[#allocation7 + $0x870] sm:$0xff]
    %v795 = vld [vmem:[#allocation7 + $0x878] sm:$0xff]
    %v796 = vld [vmem:[#allocation7 + $0x880] sm:$0xff]
    %v797 = vld [vmem:[#allocation7 + $0x888] sm:$0xff]
    %v798 = vld [vmem:[#allocation7 + $0x890] sm:$0xff]
    %v799 = vld [vmem:[#allocation7 + $0x898] sm:$0xff]
    %v800 = vld [vmem:[#allocation7 + $0x8a0] sm:$0xff]
    %v801 = vld [vmem:[#allocation7 + $0x8a8] sm:$0xff]
    %v802 = vld [vmem:[#allocation7 + $0x8b0] sm:$0xff]
    %v803 = vld [vmem:[#allocation7 + $0x8b8] sm:$0xff]
    %v804 = vld [vmem:[#allocation7 + $0x8c0] sm:$0xff]
    %v805 = vld [vmem:[#allocation7 + $0x8c8] sm:$0xff]
    %v806 = vld [vmem:[#allocation7 + $0x8d0] sm:$0xff]
    %v807 = vld [vmem:[#allocation7 + $0x8d8] sm:$0xff]
    %v808 = vld [vmem:[#allocation7 + $0x8e0] sm:$0xff]
    %v809 = vld [vmem:[#allocation7 + $0x8e8] sm:$0xff]
    %v810 = vld [vmem:[#allocation7 + $0x8f0] sm:$0xff]
    %v811 = vld [vmem:[#allocation7 + $0x8f8] sm:$0xff]
    %v812 = vld [vmem:[#allocation7 + $0x900] sm:$0xff]
    %v813 = vld [vmem:[#allocation7 + $0x908] sm:$0xff]
    %v814 = vld [vmem:[#allocation7 + $0x910] sm:$0xff]
    %v815 = vld [vmem:[#allocation7 + $0x918] sm:$0xff]
    %v816 = vld [vmem:[#allocation7 + $0x920] sm:$0xff]
    %v817 = vld [vmem:[#allocation7 + $0x928] sm:$0xff]
    %v818 = vld [vmem:[#allocation7 + $0x930] sm:$0xff]
    %v819 = vld [vmem:[#allocation7 + $0x938] sm:$0xff]
    %v820 = vld [vmem:[#allocation7 + $0x940] sm:$0xff]
    %v821 = vld [vmem:[#allocation7 + $0x948] sm:$0xff]
    %v822 = vld [vmem:[#allocation7 + $0x950] sm:$0xff]
    %v823 = vld [vmem:[#allocation7 + $0x958] sm:$0xff]
    %v824 = vld [vmem:[#allocation7 + $0x960] sm:$0xff]
    %v825 = vld [vmem:[#allocation7 + $0x968] sm:$0xff]
    %v826 = vld [vmem:[#allocation7 + $0x970] sm:$0xff]
    %v827 = vld [vmem:[#allocation7 + $0x978] sm:$0xff]
    %v828 = vld [vmem:[#allocation7 + $0x980] sm:$0xff]
    %v829 = vld [vmem:[#allocation7 + $0x988] sm:$0xff]
    %v830 = vld [vmem:[#allocation7 + $0x990] sm:$0xff]
    %v831 = vld [vmem:[#allocation7 + $0x998] sm:$0xff]
    %v832 = vld [vmem:[#allocation7 + $0x9a0] sm:$0xff]
    %v833 = vld [vmem:[#allocation7 + $0x9a8] sm:$0xff]
    %v834 = vld [vmem:[#allocation7 + $0x9b0] sm:$0xff]
    %v835 = vld [vmem:[#allocation7 + $0x9b8] sm:$0xff]
    %v836 = vld [vmem:[#allocation7 + $0x9c0] sm:$0xff]
    %v837 = vld [vmem:[#allocation7 + $0x9c8] sm:$0xff]
    %v838 = vld [vmem:[#allocation7 + $0x9d0] sm:$0xff]
    %v839 = vld [vmem:[#allocation7 + $0x9d8] sm:$0xff]
    %v840 = vld [vmem:[#allocation7 + $0x9e0] sm:$0xff]
    %v841 = vld [vmem:[#allocation7 + $0x9e8] sm:$0xff]
    %v842 = vld [vmem:[#allocation7 + $0x9f0] sm:$0xff]
    %v843 = vld [vmem:[#allocation7 + $0x9f8] sm:$0xff]
    %v844 = vld [vmem:[#allocation7 + $0xa00] sm:$0xff]
    %v845 = vld [vmem:[#allocation7 + $0xa08] sm:$0xff]
    %v846 = vld [vmem:[#allocation7 + $0xa10] sm:$0xff]
    %v847 = vld [vmem:[#allocation7 + $0xa18] sm:$0xff]
    %v848 = vld [vmem:[#allocation7 + $0xa20] sm:$0xff]
    %v849 = vld [vmem:[#allocation7 + $0xa28] sm:$0xff]
    %v850 = vld [vmem:[#allocation7 + $0xa30] sm:$0xff]
    %v851 = vld [vmem:[#allocation7 + $0xa38] sm:$0xff]
    %v852 = vld [vmem:[#allocation7 + $0xa40] sm:$0xff]
    %v853 = vld [vmem:[#allocation7 + $0xa48] sm:$0xff]
    %v854 = vld [vmem:[#allocation7 + $0xa50] sm:$0xff]
    %v855 = vld [vmem:[#allocation7 + $0xa58] sm:$0xff]
    %v856 = vld [vmem:[#allocation7 + $0xa60] sm:$0xff]
    %v857 = vld [vmem:[#allocation7 + $0xa68] sm:$0xff]
    %v858 = vld [vmem:[#allocation7 + $0xa70] sm:$0xff]
    %v859 = vld [vmem:[#allocation7 + $0xa78] sm:$0xff]
    %v860 = vld [vmem:[#allocation7 + $0xa80] sm:$0xff]
    %v861 = vld [vmem:[#allocation7 + $0xa88] sm:$0xff]
    %v862 = vld [vmem:[#allocation7 + $0xa90] sm:$0xff]
    %v863 = vld [vmem:[#allocation7 + $0xa98] sm:$0xff]
    %v864 = vld [vmem:[#allocation7 + $0xaa0] sm:$0xff]
    %v865 = vld [vmem:[#allocation7 + $0xaa8] sm:$0xff]
    %v866 = vld [vmem:[#allocation7 + $0xab0] sm:$0xff]
    %v867 = vld [vmem:[#allocation7 + $0xab8] sm:$0xff]
    %v868 = vld [vmem:[#allocation7 + $0xac0] sm:$0xff]
    %v869 = vld [vmem:[#allocation7 + $0xac8] sm:$0xff]
    %v870 = vld [vmem:[#allocation7 + $0xad0] sm:$0xff]
    %v871 = vld [vmem:[#allocation7 + $0xad8] sm:$0xff]
    %v872 = vld [vmem:[#allocation7 + $0xae0] sm:$0xff]
    %v873 = vld [vmem:[#allocation7 + $0xae8] sm:$0xff]
    %v874 = vld [vmem:[#allocation7 + $0xaf0] sm:$0xff]
    %v875 = vld [vmem:[#allocation7 + $0xaf8] sm:$0xff]
    %v876 = vld [vmem:[#allocation7 + $0xb00] sm:$0xff]
    %v877 = vld [vmem:[#allocation7 + $0xb08] sm:$0xff]
    %v878 = vld [vmem:[#allocation7 + $0xb10] sm:$0xff]
    %v879 = vld [vmem:[#allocation7 + $0xb18] sm:$0xff]
    %v880 = vld [vmem:[#allocation7 + $0xb20] sm:$0xff]
    %v881 = vld [vmem:[#allocation7 + $0xb28] sm:$0xff]
    %v882 = vld [vmem:[#allocation7 + $0xb30] sm:$0xff]
    %v883 = vld [vmem:[#allocation7 + $0xb38] sm:$0xff]
    %v884 = vld [vmem:[#allocation7 + $0xb40] sm:$0xff]
    %v885 = vld [vmem:[#allocation7 + $0xb48] sm:$0xff]
    %v886 = vld [vmem:[#allocation7 + $0xb50] sm:$0xff]
    %v887 = vld [vmem:[#allocation7 + $0xb58] sm:$0xff]
    %v888 = vld [vmem:[#allocation7 + $0xb60] sm:$0xff]
    %v889 = vld [vmem:[#allocation7 + $0xb68] sm:$0xff]
    %v890 = vld [vmem:[#allocation7 + $0xb70] sm:$0xff]
    %v891 = vld [vmem:[#allocation7 + $0xb78] sm:$0xff]
    %v892 = vld [vmem:[#allocation7 + $0xb80] sm:$0xff]
    %v893 = vld [vmem:[#allocation7 + $0xb88] sm:$0xff]
    %v894 = vld [vmem:[#allocation7 + $0xb90] sm:$0xff]
    %v895 = vld [vmem:[#allocation7 + $0xb98] sm:$0xff]
    %v896 = vld [vmem:[#allocation7 + $0xba0] sm:$0xff]
    %v897 = vld [vmem:[#allocation7 + $0xba8] sm:$0xff]
    %v898 = vld [vmem:[#allocation7 + $0xbb0] sm:$0xff]
    %v899 = vld [vmem:[#allocation7 + $0xbb8] sm:$0xff]
    %v900 = vld [vmem:[#allocation7 + $0xbc0] sm:$0xff]
    %v901 = vld [vmem:[#allocation7 + $0xbc8] sm:$0xff]
    %v902 = vld [vmem:[#allocation7 + $0xbd0] sm:$0xff]
    %v903 = vld [vmem:[#allocation7 + $0xbd8] sm:$0xff]
    %v904 = vld [vmem:[#allocation7 + $0xbe0] sm:$0xff]
    %v905 = vld [vmem:[#allocation7 + $0xbe8] sm:$0xff]
    %v906 = vld [vmem:[#allocation7 + $0xbf0] sm:$0xff]
    %v907 = vld [vmem:[#allocation7 + $0xbf8] sm:$0xff]
    %v908 = vld [vmem:[#allocation7 + $0xc00] sm:$0xff]
    %v909 = vld [vmem:[#allocation7 + $0xc08] sm:$0xff]
    %v910 = vld [vmem:[#allocation7 + $0xc10] sm:$0xff]
    %v911 = vld [vmem:[#allocation7 + $0xc18] sm:$0xff]
    %v912 = vld [vmem:[#allocation7 + $0xc20] sm:$0xff]
    %v913 = vld [vmem:[#allocation7 + $0xc28] sm:$0xff]
    %v914 = vld [vmem:[#allocation7 + $0xc30] sm:$0xff]
    %v915 = vld [vmem:[#allocation7 + $0xc38] sm:$0xff]
    %v916 = vld [vmem:[#allocation7 + $0xc40] sm:$0xff]
    %v917 = vld [vmem:[#allocation7 + $0xc48] sm:$0xff]
    %v918 = vld [vmem:[#allocation7 + $0xc50] sm:$0xff]
    %v919 = vld [vmem:[#allocation7 + $0xc58] sm:$0xff]
    %v920 = vld [vmem:[#allocation7 + $0xc60] sm:$0xff]
    %v921 = vld [vmem:[#allocation7 + $0xc68] sm:$0xff]
    %v922 = vld [vmem:[#allocation7 + $0xc70] sm:$0xff]
    %v923 = vld [vmem:[#allocation7 + $0xc78] sm:$0xff]
    %v924 = vld [vmem:[#allocation7 + $0xc80] sm:$0xff]
    %v925 = vld [vmem:[#allocation7 + $0xc88] sm:$0xff]
    %v926 = vld [vmem:[#allocation7 + $0xc90] sm:$0xff]
    %v927 = vld [vmem:[#allocation7 + $0xc98] sm:$0xff]
    %v928 = vld [vmem:[#allocation7 + $0xca0] sm:$0xff]
    %v929 = vld [vmem:[#allocation7 + $0xca8] sm:$0xff]
    %v930 = vld [vmem:[#allocation7 + $0xcb0] sm:$0xff]
    %v931 = vld [vmem:[#allocation7 + $0xcb8] sm:$0xff]
    %v932 = vld [vmem:[#allocation7 + $0xcc0] sm:$0xff]
    %v933 = vld [vmem:[#allocation7 + $0xcc8] sm:$0xff]
    %v934 = vld [vmem:[#allocation7 + $0xcd0] sm:$0xff]
    %v935 = vld [vmem:[#allocation7 + $0xcd8] sm:$0xff]
    %v936 = vld [vmem:[#allocation7 + $0xce0] sm:$0xff]
    %v937 = vld [vmem:[#allocation7 + $0xce8] sm:$0xff]
    %v938 = vld [vmem:[#allocation7 + $0xcf0] sm:$0xff]
    %v939 = vld [vmem:[#allocation7 + $0xcf8] sm:$0xff]
    %v940 = vld [vmem:[#allocation7 + $0xd00] sm:$0xff]
    %v941 = vld [vmem:[#allocation7 + $0xd08] sm:$0xff]
    %v942 = vld [vmem:[#allocation7 + $0xd10] sm:$0xff]
    %v943 = vld [vmem:[#allocation7 + $0xd18] sm:$0xff]
    %v944 = vld [vmem:[#allocation7 + $0xd20] sm:$0xff]
    %v945 = vld [vmem:[#allocation7 + $0xd28] sm:$0xff]
    %v946 = vld [vmem:[#allocation7 + $0xd30] sm:$0xff]
    %v947 = vld [vmem:[#allocation7 + $0xd38] sm:$0xff]
    %v948 = vld [vmem:[#allocation7 + $0xd40] sm:$0xff]
    %v949 = vld [vmem:[#allocation7 + $0xd48] sm:$0xff]
    %v950 = vld [vmem:[#allocation7 + $0xd50] sm:$0xff]
    %v951 = vld [vmem:[#allocation7 + $0xd58] sm:$0xff]
    %v952 = vld [vmem:[#allocation7 + $0xd60] sm:$0xff]
    %v953 = vld [vmem:[#allocation7 + $0xd68] sm:$0xff]
    %v954 = vld [vmem:[#allocation7 + $0xd70] sm:$0xff]
    %v955 = vld [vmem:[#allocation7 + $0xd78] sm:$0xff]
    %v956 = vld [vmem:[#allocation7 + $0xd80] sm:$0xff]
    %v957 = vld [vmem:[#allocation7 + $0xd88] sm:$0xff]
    %v958 = vld [vmem:[#allocation7 + $0xd90] sm:$0xff]
    %v959 = vld [vmem:[#allocation7 + $0xd98] sm:$0xff]
    %v960 = vld [vmem:[#allocation7 + $0xda0] sm:$0xff]
    %v961 = vld [vmem:[#allocation7 + $0xda8] sm:$0xff]
    %v962 = vld [vmem:[#allocation7 + $0xdb0] sm:$0xff]
    %v963 = vld [vmem:[#allocation7 + $0xdb8] sm:$0xff]
    %v964 = vld [vmem:[#allocation7 + $0xdc0] sm:$0xff]
    %v965 = vld [vmem:[#allocation7 + $0xdc8] sm:$0xff]
    %v966 = vld [vmem:[#allocation7 + $0xdd0] sm:$0xff]
    %v967 = vld [vmem:[#allocation7 + $0xdd8] sm:$0xff]
    %v968 = vld [vmem:[#allocation7 + $0xde0] sm:$0xff]
    %v969 = vld [vmem:[#allocation7 + $0xde8] sm:$0xff]
    %v970 = vld [vmem:[#allocation7 + $0xdf0] sm:$0xff]
    %v971 = vld [vmem:[#allocation7 + $0xdf8] sm:$0xff]
    %v972 = vld [vmem:[#allocation7 + $0xe00] sm:$0xff]
    %v973 = vld [vmem:[#allocation7 + $0xe08] sm:$0xff]
    %v974 = vld [vmem:[#allocation7 + $0xe10] sm:$0xff]
    %v975 = vld [vmem:[#allocation7 + $0xe18] sm:$0xff]
    %v976 = vld [vmem:[#allocation7 + $0xe20] sm:$0xff]
    %v977 = vld [vmem:[#allocation7 + $0xe28] sm:$0xff]
    %v978 = vld [vmem:[#allocation7 + $0xe30] sm:$0xff]
    %v979 = vld [vmem:[#allocation7 + $0xe38] sm:$0xff]
    %v980 = vld [vmem:[#allocation7 + $0xe40] sm:$0xff]
    %v981 = vld [vmem:[#allocation7 + $0xe48] sm:$0xff]
    %v982 = vld [vmem:[#allocation7 + $0xe50] sm:$0xff]
    %v983 = vld [vmem:[#allocation7 + $0xe58] sm:$0xff]
    %v984 = vld [vmem:[#allocation7 + $0xe60] sm:$0xff]
    %v985 = vld [vmem:[#allocation7 + $0xe68] sm:$0xff]
    %v986 = vld [vmem:[#allocation7 + $0xe70] sm:$0xff]
    %v987 = vld [vmem:[#allocation7 + $0xe78] sm:$0xff]
    %v988 = vld [vmem:[#allocation7 + $0xe80] sm:$0xff]
    %v989 = vld [vmem:[#allocation7 + $0xe88] sm:$0xff]
    %v990 = vld [vmem:[#allocation7 + $0xe90] sm:$0xff]
    %v991 = vld [vmem:[#allocation7 + $0xe98] sm:$0xff]
    %v992 = vld [vmem:[#allocation7 + $0xea0] sm:$0xff]
    %v993 = vld [vmem:[#allocation7 + $0xea8] sm:$0xff]
    %v994 = vld [vmem:[#allocation7 + $0xeb0] sm:$0xff]
    %v995 = vld [vmem:[#allocation7 + $0xeb8] sm:$0xff]
    %v996 = vld [vmem:[#allocation7 + $0xec0] sm:$0xff]
    %v997 = vld [vmem:[#allocation7 + $0xec8] sm:$0xff]
    %v998 = vld [vmem:[#allocation7 + $0xed0] sm:$0xff]
    %v999 = vld [vmem:[#allocation7 + $0xed8] sm:$0xff]
    %v1000 = vld [vmem:[#allocation7 + $0xee0] sm:$0xff]
    %v1001 = vld [vmem:[#allocation7 + $0xee8] sm:$0xff]
    %v1002 = vld [vmem:[#allocation7 + $0xef0] sm:$0xff]
    %v1003 = vld [vmem:[#allocation7 + $0xef8] sm:$0xff]
    %v1004 = vld [vmem:[#allocation7 + $0xf00] sm:$0xff]
    %v1005 = vld [vmem:[#allocation7 + $0xf08] sm:$0xff]
    %v1006 = vld [vmem:[#allocation7 + $0xf10] sm:$0xff]
    %v1007 = vld [vmem:[#allocation7 + $0xf18] sm:$0xff]
    %v1008 = vld [vmem:[#allocation7 + $0xf20] sm:$0xff]
    %v1009 = vld [vmem:[#allocation7 + $0xf28] sm:$0xff]
    %v1010 = vld [vmem:[#allocation7 + $0xf30] sm:$0xff]
    %v1011 = vld [vmem:[#allocation7 + $0xf38] sm:$0xff]
    %v1012 = vld [vmem:[#allocation7 + $0xf40] sm:$0xff]
    %v1013 = vld [vmem:[#allocation7 + $0xf48] sm:$0xff]
    %v1014 = vld [vmem:[#allocation7 + $0xf50] sm:$0xff]
    %v1015 = vld [vmem:[#allocation7 + $0xf58] sm:$0xff]
    %v1016 = vld [vmem:[#allocation7 + $0xf60] sm:$0xff]
    %v1017 = vld [vmem:[#allocation7 + $0xf68] sm:$0xff]
    %v1018 = vld [vmem:[#allocation7 + $0xf70] sm:$0xff]
    %v1019 = vld [vmem:[#allocation7 + $0xf78] sm:$0xff]
    %v1020 = vld [vmem:[#allocation7 + $0xf80] sm:$0xff]
    %v1021 = vld [vmem:[#allocation7 + $0xf88] sm:$0xff]
    %v1022 = vld [vmem:[#allocation7 + $0xf90] sm:$0xff]
    %v1023 = vld [vmem:[#allocation7 + $0xf98] sm:$0xff]
    %v1024 = vld [vmem:[#allocation7 + $0xfa0] sm:$0xff]
    %v1025 = vld [vmem:[#allocation7 + $0xfa8] sm:$0xff]
    %v1026 = vld [vmem:[#allocation7 + $0xfb0] sm:$0xff]
    %v1027 = vld [vmem:[#allocation7 + $0xfb8] sm:$0xff]
    %v1028 = vld [vmem:[#allocation7 + $0xfc0] sm:$0xff]
    %v1029 = vld [vmem:[#allocation7 + $0xfc8] sm:$0xff]
    %v1030 = vld [vmem:[#allocation7 + $0xfd0] sm:$0xff]
    %v1031 = vld [vmem:[#allocation7 + $0xfd8] sm:$0xff]
    %v1032 = vld [vmem:[#allocation7 + $0xfe0] sm:$0xff]
    %v1033 = vld [vmem:[#allocation7 + $0xfe8] sm:$0xff]
    %v1034 = vld [vmem:[#allocation7 + $0xff0] sm:$0xff]
    %v1035 = vld [vmem:[#allocation7 + $0xff8] sm:$0xff]
    %v1036 = vld [vmem:[#allocation8] sm:$0xff]
    %v1038 = vlaneseq
    %v1039 = vshrl.u32 %v1038, 7
    %v1040 = vsub.s32 0, %v1039
    %v1041 = vrot.slane %v1036, %v1040
    %v1042 = vlaneseq
    %v1043 = vshrl.u32 %v1042, 7
    %v1044 = vsub.s32 1, %v1043
    %v1045 = vrot.slane %v1036, %v1044
    %v1046 = vlaneseq
    %v1047 = vshrl.u32 %v1046, 7
    %v1048 = vsub.s32 2, %v1047
    %v1049 = vrot.slane %v1036, %v1048
    %v1050 = vlaneseq
    %v1051 = vshrl.u32 %v1050, 7
    %v1052 = vsub.s32 3, %v1051
    %v1053 = vrot.slane %v1036, %v1052
    %v1054 = vlaneseq
    %v1055 = vshrl.u32 %v1054, 7
    %v1056 = vsub.s32 4, %v1055
    %v1057 = vrot.slane %v1036, %v1056
    %v1058 = vlaneseq
    %v1059 = vshrl.u32 %v1058, 7
    %v1060 = vsub.s32 5, %v1059
    %v1061 = vrot.slane %v1036, %v1060
    %v1062 = vlaneseq
    %v1063 = vshrl.u32 %v1062, 7
    %v1064 = vsub.s32 6, %v1063
    %v1065 = vrot.slane %v1036, %v1064
    %v1066 = vlaneseq
    %v1067 = vshrl.u32 %v1066, 7
    %v1068 = vsub.s32 7, %v1067
    %v1069 = vrot.slane %v1036, %v1068
    %v1590 = vunpack.c.l.b16 %v524
    %v1591 = vunpack.c.h.b16 %v524
    %v1592 = vunpack.c.l.b16 %v525
    %v1593 = vunpack.c.h.b16 %v525
    %v1594 = vunpack.c.l.b16 %v526
    %v1595 = vunpack.c.h.b16 %v526
    %v1596 = vunpack.c.l.b16 %v527
    %v1597 = vunpack.c.h.b16 %v527
    %v1598 = vunpack.c.l.b16 %v528
    %v1599 = vunpack.c.h.b16 %v528
    %v1600 = vunpack.c.l.b16 %v529
    %v1601 = vunpack.c.h.b16 %v529
    %v1602 = vunpack.c.l.b16 %v530
    %v1603 = vunpack.c.h.b16 %v530
    %v1604 = vunpack.c.l.b16 %v531
    %v1605 = vunpack.c.h.b16 %v531
    %v1606 = vunpack.c.l.b16 %v532
    %v1607 = vunpack.c.h.b16 %v532
    %v1608 = vunpack.c.l.b16 %v533
    %v1609 = vunpack.c.h.b16 %v533
    %v1610 = vunpack.c.l.b16 %v534
    %v1611 = vunpack.c.h.b16 %v534
    %v1612 = vunpack.c.l.b16 %v535
    %v1613 = vunpack.c.h.b16 %v535
    %v1614 = vunpack.c.l.b16 %v536
    %v1615 = vunpack.c.h.b16 %v536
    %v1616 = vunpack.c.l.b16 %v537
    %v1617 = vunpack.c.h.b16 %v537
    %v1618 = vunpack.c.l.b16 %v538
    %v1619 = vunpack.c.h.b16 %v538
    %v1620 = vunpack.c.l.b16 %v539
    %v1621 = vunpack.c.h.b16 %v539
    %v1622 = vunpack.c.l.b16 %v540
    %v1623 = vunpack.c.h.b16 %v540
    %v1624 = vunpack.c.l.b16 %v541
    %v1625 = vunpack.c.h.b16 %v541
    %v1626 = vunpack.c.l.b16 %v542
    %v1627 = vunpack.c.h.b16 %v542
    %v1628 = vunpack.c.l.b16 %v543
    %v1629 = vunpack.c.h.b16 %v543
    %v1630 = vunpack.c.l.b16 %v544
    %v1631 = vunpack.c.h.b16 %v544
    %v1632 = vunpack.c.l.b16 %v545
    %v1633 = vunpack.c.h.b16 %v545
    %v1634 = vunpack.c.l.b16 %v546
    %v1635 = vunpack.c.h.b16 %v546
    %v1636 = vunpack.c.l.b16 %v547
    %v1637 = vunpack.c.h.b16 %v547
    %v1638 = vunpack.c.l.b16 %v548
    %v1639 = vunpack.c.h.b16 %v548
    %v1640 = vunpack.c.l.b16 %v549
    %v1641 = vunpack.c.h.b16 %v549
    %v1642 = vunpack.c.l.b16 %v550
    %v1643 = vunpack.c.h.b16 %v550
    %v1644 = vunpack.c.l.b16 %v551
    %v1645 = vunpack.c.h.b16 %v551
    %v1646 = vunpack.c.l.b16 %v552
    %v1647 = vunpack.c.h.b16 %v552
    %v1648 = vunpack.c.l.b16 %v553
    %v1649 = vunpack.c.h.b16 %v553
    %v1650 = vunpack.c.l.b16 %v554
    %v1651 = vunpack.c.h.b16 %v554
    %v1652 = vunpack.c.l.b16 %v555
    %v1653 = vunpack.c.h.b16 %v555
    %v1654 = vunpack.c.l.b16 %v556
    %v1655 = vunpack.c.h.b16 %v556
    %v1656 = vunpack.c.l.b16 %v557
    %v1657 = vunpack.c.h.b16 %v557
    %v1658 = vunpack.c.l.b16 %v558
    %v1659 = vunpack.c.h.b16 %v558
    %v1660 = vunpack.c.l.b16 %v559
    %v1661 = vunpack.c.h.b16 %v559
    %v1662 = vunpack.c.l.b16 %v560
    %v1663 = vunpack.c.h.b16 %v560
    %v1664 = vunpack.c.l.b16 %v561
    %v1665 = vunpack.c.h.b16 %v561
    %v1666 = vunpack.c.l.b16 %v562
    %v1667 = vunpack.c.h.b16 %v562
    %v1668 = vunpack.c.l.b16 %v563
    %v1669 = vunpack.c.h.b16 %v563
    %v1670 = vunpack.c.l.b16 %v564
    %v1671 = vunpack.c.h.b16 %v564
    %v1672 = vunpack.c.l.b16 %v565
    %v1673 = vunpack.c.h.b16 %v565
    %v1674 = vunpack.c.l.b16 %v566
    %v1675 = vunpack.c.h.b16 %v566
    %v1676 = vunpack.c.l.b16 %v567
    %v1677 = vunpack.c.h.b16 %v567
    %v1678 = vunpack.c.l.b16 %v568
    %v1679 = vunpack.c.h.b16 %v568
    %v1680 = vunpack.c.l.b16 %v569
    %v1681 = vunpack.c.h.b16 %v569
    %v1682 = vunpack.c.l.b16 %v570
    %v1683 = vunpack.c.h.b16 %v570
    %v1684 = vunpack.c.l.b16 %v571
    %v1685 = vunpack.c.h.b16 %v571
    %v1686 = vunpack.c.l.b16 %v572
    %v1687 = vunpack.c.h.b16 %v572
    %v1688 = vunpack.c.l.b16 %v573
    %v1689 = vunpack.c.h.b16 %v573
    %v1690 = vunpack.c.l.b16 %v574
    %v1691 = vunpack.c.h.b16 %v574
    %v1692 = vunpack.c.l.b16 %v575
    %v1693 = vunpack.c.h.b16 %v575
    %v1694 = vunpack.c.l.b16 %v576
    %v1695 = vunpack.c.h.b16 %v576
    %v1696 = vunpack.c.l.b16 %v577
    %v1697 = vunpack.c.h.b16 %v577
    %v1698 = vunpack.c.l.b16 %v578
    %v1699 = vunpack.c.h.b16 %v578
    %v1700 = vunpack.c.l.b16 %v579
    %v1701 = vunpack.c.h.b16 %v579
    %v1702 = vunpack.c.l.b16 %v580
    %v1703 = vunpack.c.h.b16 %v580
    %v1704 = vunpack.c.l.b16 %v581
    %v1705 = vunpack.c.h.b16 %v581
    %v1706 = vunpack.c.l.b16 %v582
    %v1707 = vunpack.c.h.b16 %v582
    %v1708 = vunpack.c.l.b16 %v583
    %v1709 = vunpack.c.h.b16 %v583
    %v1710 = vunpack.c.l.b16 %v584
    %v1711 = vunpack.c.h.b16 %v584
    %v1712 = vunpack.c.l.b16 %v585
    %v1713 = vunpack.c.h.b16 %v585
    %v1714 = vunpack.c.l.b16 %v586
    %v1715 = vunpack.c.h.b16 %v586
    %v1716 = vunpack.c.l.b16 %v587
    %v1717 = vunpack.c.h.b16 %v587
    %v1718 = vunpack.c.l.b16 %v588
    %v1719 = vunpack.c.h.b16 %v588
    %v1720 = vunpack.c.l.b16 %v589
    %v1721 = vunpack.c.h.b16 %v589
    %v1722 = vunpack.c.l.b16 %v590
    %v1723 = vunpack.c.h.b16 %v590
    %v1724 = vunpack.c.l.b16 %v591
    %v1725 = vunpack.c.h.b16 %v591
    %v1726 = vunpack.c.l.b16 %v592
    %v1727 = vunpack.c.h.b16 %v592
    %v1728 = vunpack.c.l.b16 %v593
    %v1729 = vunpack.c.h.b16 %v593
    %v1730 = vunpack.c.l.b16 %v594
    %v1731 = vunpack.c.h.b16 %v594
    %v1732 = vunpack.c.l.b16 %v595
    %v1733 = vunpack.c.h.b16 %v595
    %v1734 = vunpack.c.l.b16 %v596
    %v1735 = vunpack.c.h.b16 %v596
    %v1736 = vunpack.c.l.b16 %v597
    %v1737 = vunpack.c.h.b16 %v597
    %v1738 = vunpack.c.l.b16 %v598
    %v1739 = vunpack.c.h.b16 %v598
    %v1740 = vunpack.c.l.b16 %v599
    %v1741 = vunpack.c.h.b16 %v599
    %v1742 = vunpack.c.l.b16 %v600
    %v1743 = vunpack.c.h.b16 %v600
    %v1744 = vunpack.c.l.b16 %v601
    %v1745 = vunpack.c.h.b16 %v601
    %v1746 = vunpack.c.l.b16 %v602
    %v1747 = vunpack.c.h.b16 %v602
    %v1748 = vunpack.c.l.b16 %v603
    %v1749 = vunpack.c.h.b16 %v603
    %v1750 = vunpack.c.l.b16 %v604
    %v1751 = vunpack.c.h.b16 %v604
    %v1752 = vunpack.c.l.b16 %v605
    %v1753 = vunpack.c.h.b16 %v605
    %v1754 = vunpack.c.l.b16 %v606
    %v1755 = vunpack.c.h.b16 %v606
    %v1756 = vunpack.c.l.b16 %v607
    %v1757 = vunpack.c.h.b16 %v607
    %v1758 = vunpack.c.l.b16 %v608
    %v1759 = vunpack.c.h.b16 %v608
    %v1760 = vunpack.c.l.b16 %v609
    %v1761 = vunpack.c.h.b16 %v609
    %v1762 = vunpack.c.l.b16 %v610
    %v1763 = vunpack.c.h.b16 %v610
    %v1764 = vunpack.c.l.b16 %v611
    %v1765 = vunpack.c.h.b16 %v611
    %v1766 = vunpack.c.l.b16 %v612
    %v1767 = vunpack.c.h.b16 %v612
    %v1768 = vunpack.c.l.b16 %v613
    %v1769 = vunpack.c.h.b16 %v613
    %v1770 = vunpack.c.l.b16 %v614
    %v1771 = vunpack.c.h.b16 %v614
    %v1772 = vunpack.c.l.b16 %v615
    %v1773 = vunpack.c.h.b16 %v615
    %v1774 = vunpack.c.l.b16 %v616
    %v1775 = vunpack.c.h.b16 %v616
    %v1776 = vunpack.c.l.b16 %v617
    %v1777 = vunpack.c.h.b16 %v617
    %v1778 = vunpack.c.l.b16 %v618
    %v1779 = vunpack.c.h.b16 %v618
    %v1780 = vunpack.c.l.b16 %v619
    %v1781 = vunpack.c.h.b16 %v619
    %v1782 = vunpack.c.l.b16 %v620
    %v1783 = vunpack.c.h.b16 %v620
    %v1784 = vunpack.c.l.b16 %v621
    %v1785 = vunpack.c.h.b16 %v621
    %v1786 = vunpack.c.l.b16 %v622
    %v1787 = vunpack.c.h.b16 %v622
    %v1788 = vunpack.c.l.b16 %v623
    %v1789 = vunpack.c.h.b16 %v623
    %v1790 = vunpack.c.l.b16 %v624
    %v1791 = vunpack.c.h.b16 %v624
    %v1792 = vunpack.c.l.b16 %v625
    %v1793 = vunpack.c.h.b16 %v625
    %v1794 = vunpack.c.l.b16 %v626
    %v1795 = vunpack.c.h.b16 %v626
    %v1796 = vunpack.c.l.b16 %v627
    %v1797 = vunpack.c.h.b16 %v627
    %v1798 = vunpack.c.l.b16 %v628
    %v1799 = vunpack.c.h.b16 %v628
    %v1800 = vunpack.c.l.b16 %v629
    %v1801 = vunpack.c.h.b16 %v629
    %v1802 = vunpack.c.l.b16 %v630
    %v1803 = vunpack.c.h.b16 %v630
    %v1804 = vunpack.c.l.b16 %v631
    %v1805 = vunpack.c.h.b16 %v631
    %v1806 = vunpack.c.l.b16 %v632
    %v1807 = vunpack.c.h.b16 %v632
    %v1808 = vunpack.c.l.b16 %v633
    %v1809 = vunpack.c.h.b16 %v633
    %v1810 = vunpack.c.l.b16 %v634
    %v1811 = vunpack.c.h.b16 %v634
    %v1812 = vunpack.c.l.b16 %v635
    %v1813 = vunpack.c.h.b16 %v635
    %v1814 = vunpack.c.l.b16 %v636
    %v1815 = vunpack.c.h.b16 %v636
    %v1816 = vunpack.c.l.b16 %v637
    %v1817 = vunpack.c.h.b16 %v637
    %v1818 = vunpack.c.l.b16 %v638
    %v1819 = vunpack.c.h.b16 %v638
    %v1820 = vunpack.c.l.b16 %v639
    %v1821 = vunpack.c.h.b16 %v639
    %v1822 = vunpack.c.l.b16 %v640
    %v1823 = vunpack.c.h.b16 %v640
    %v1824 = vunpack.c.l.b16 %v641
    %v1825 = vunpack.c.h.b16 %v641
    %v1826 = vunpack.c.l.b16 %v642
    %v1827 = vunpack.c.h.b16 %v642
    %v1828 = vunpack.c.l.b16 %v643
    %v1829 = vunpack.c.h.b16 %v643
    %v1830 = vunpack.c.l.b16 %v644
    %v1831 = vunpack.c.h.b16 %v644
    %v1832 = vunpack.c.l.b16 %v645
    %v1833 = vunpack.c.h.b16 %v645
    %v1834 = vunpack.c.l.b16 %v646
    %v1835 = vunpack.c.h.b16 %v646
    %v1836 = vunpack.c.l.b16 %v647
    %v1837 = vunpack.c.h.b16 %v647
    %v1838 = vunpack.c.l.b16 %v648
    %v1839 = vunpack.c.h.b16 %v648
    %v1840 = vunpack.c.l.b16 %v649
    %v1841 = vunpack.c.h.b16 %v649
    %v1842 = vunpack.c.l.b16 %v650
    %v1843 = vunpack.c.h.b16 %v650
    %v1844 = vunpack.c.l.b16 %v651
    %v1845 = vunpack.c.h.b16 %v651
    %v1846 = vunpack.c.l.b16 %v652
    %v1847 = vunpack.c.h.b16 %v652
    %v1848 = vunpack.c.l.b16 %v653
    %v1849 = vunpack.c.h.b16 %v653
    %v1850 = vunpack.c.l.b16 %v654
    %v1851 = vunpack.c.h.b16 %v654
    %v1852 = vunpack.c.l.b16 %v655
    %v1853 = vunpack.c.h.b16 %v655
    %v1854 = vunpack.c.l.b16 %v656
    %v1855 = vunpack.c.h.b16 %v656
    %v1856 = vunpack.c.l.b16 %v657
    %v1857 = vunpack.c.h.b16 %v657
    %v1858 = vunpack.c.l.b16 %v658
    %v1859 = vunpack.c.h.b16 %v658
    %v1860 = vunpack.c.l.b16 %v659
    %v1861 = vunpack.c.h.b16 %v659
    %v1862 = vunpack.c.l.b16 %v660
    %v1863 = vunpack.c.h.b16 %v660
    %v1864 = vunpack.c.l.b16 %v661
    %v1865 = vunpack.c.h.b16 %v661
    %v1866 = vunpack.c.l.b16 %v662
    %v1867 = vunpack.c.h.b16 %v662
    %v1868 = vunpack.c.l.b16 %v663
    %v1869 = vunpack.c.h.b16 %v663
    %v1870 = vunpack.c.l.b16 %v664
    %v1871 = vunpack.c.h.b16 %v664
    %v1872 = vunpack.c.l.b16 %v665
    %v1873 = vunpack.c.h.b16 %v665
    %v1874 = vunpack.c.l.b16 %v666
    %v1875 = vunpack.c.h.b16 %v666
    %v1876 = vunpack.c.l.b16 %v667
    %v1877 = vunpack.c.h.b16 %v667
    %v1878 = vunpack.c.l.b16 %v668
    %v1879 = vunpack.c.h.b16 %v668
    %v1880 = vunpack.c.l.b16 %v669
    %v1881 = vunpack.c.h.b16 %v669
    %v1882 = vunpack.c.l.b16 %v670
    %v1883 = vunpack.c.h.b16 %v670
    %v1884 = vunpack.c.l.b16 %v671
    %v1885 = vunpack.c.h.b16 %v671
    %v1886 = vunpack.c.l.b16 %v672
    %v1887 = vunpack.c.h.b16 %v672
    %v1888 = vunpack.c.l.b16 %v673
    %v1889 = vunpack.c.h.b16 %v673
    %v1890 = vunpack.c.l.b16 %v674
    %v1891 = vunpack.c.h.b16 %v674
    %v1892 = vunpack.c.l.b16 %v675
    %v1893 = vunpack.c.h.b16 %v675
    %v1894 = vunpack.c.l.b16 %v676
    %v1895 = vunpack.c.h.b16 %v676
    %v1896 = vunpack.c.l.b16 %v677
    %v1897 = vunpack.c.h.b16 %v677
    %v1898 = vunpack.c.l.b16 %v678
    %v1899 = vunpack.c.h.b16 %v678
    %v1900 = vunpack.c.l.b16 %v679
    %v1901 = vunpack.c.h.b16 %v679
    %v1902 = vunpack.c.l.b16 %v680
    %v1903 = vunpack.c.h.b16 %v680
    %v1904 = vunpack.c.l.b16 %v681
    %v1905 = vunpack.c.h.b16 %v681
    %v1906 = vunpack.c.l.b16 %v682
    %v1907 = vunpack.c.h.b16 %v682
    %v1908 = vunpack.c.l.b16 %v683
    %v1909 = vunpack.c.h.b16 %v683
    %v1910 = vunpack.c.l.b16 %v684
    %v1911 = vunpack.c.h.b16 %v684
    %v1912 = vunpack.c.l.b16 %v685
    %v1913 = vunpack.c.h.b16 %v685
    %v1914 = vunpack.c.l.b16 %v686
    %v1915 = vunpack.c.h.b16 %v686
    %v1916 = vunpack.c.l.b16 %v687
    %v1917 = vunpack.c.h.b16 %v687
    %v1918 = vunpack.c.l.b16 %v688
    %v1919 = vunpack.c.h.b16 %v688
    %v1920 = vunpack.c.l.b16 %v689
    %v1921 = vunpack.c.h.b16 %v689
    %v1922 = vunpack.c.l.b16 %v690
    %v1923 = vunpack.c.h.b16 %v690
    %v1924 = vunpack.c.l.b16 %v691
    %v1925 = vunpack.c.h.b16 %v691
    %v1926 = vunpack.c.l.b16 %v692
    %v1927 = vunpack.c.h.b16 %v692
    %v1928 = vunpack.c.l.b16 %v693
    %v1929 = vunpack.c.h.b16 %v693
    %v1930 = vunpack.c.l.b16 %v694
    %v1931 = vunpack.c.h.b16 %v694
    %v1932 = vunpack.c.l.b16 %v695
    %v1933 = vunpack.c.h.b16 %v695
    %v1934 = vunpack.c.l.b16 %v696
    %v1935 = vunpack.c.h.b16 %v696
    %v1936 = vunpack.c.l.b16 %v697
    %v1937 = vunpack.c.h.b16 %v697
    %v1938 = vunpack.c.l.b16 %v698
    %v1939 = vunpack.c.h.b16 %v698
    %v1940 = vunpack.c.l.b16 %v699
    %v1941 = vunpack.c.h.b16 %v699
    %v1942 = vunpack.c.l.b16 %v700
    %v1943 = vunpack.c.h.b16 %v700
    %v1944 = vunpack.c.l.b16 %v701
    %v1945 = vunpack.c.h.b16 %v701
    %v1946 = vunpack.c.l.b16 %v702
    %v1947 = vunpack.c.h.b16 %v702
    %v1948 = vunpack.c.l.b16 %v703
    %v1949 = vunpack.c.h.b16 %v703
    %v1950 = vunpack.c.l.b16 %v704
    %v1951 = vunpack.c.h.b16 %v704
    %v1952 = vunpack.c.l.b16 %v705
    %v1953 = vunpack.c.h.b16 %v705
    %v1954 = vunpack.c.l.b16 %v706
    %v1955 = vunpack.c.h.b16 %v706
    %v1956 = vunpack.c.l.b16 %v707
    %v1957 = vunpack.c.h.b16 %v707
    %v1958 = vunpack.c.l.b16 %v708
    %v1959 = vunpack.c.h.b16 %v708
    %v1960 = vunpack.c.l.b16 %v709
    %v1961 = vunpack.c.h.b16 %v709
    %v1962 = vunpack.c.l.b16 %v710
    %v1963 = vunpack.c.h.b16 %v710
    %v1964 = vunpack.c.l.b16 %v711
    %v1965 = vunpack.c.h.b16 %v711
    %v1966 = vunpack.c.l.b16 %v712
    %v1967 = vunpack.c.h.b16 %v712
    %v1968 = vunpack.c.l.b16 %v713
    %v1969 = vunpack.c.h.b16 %v713
    %v1970 = vunpack.c.l.b16 %v714
    %v1971 = vunpack.c.h.b16 %v714
    %v1972 = vunpack.c.l.b16 %v715
    %v1973 = vunpack.c.h.b16 %v715
    %v1974 = vunpack.c.l.b16 %v716
    %v1975 = vunpack.c.h.b16 %v716
    %v1976 = vunpack.c.l.b16 %v717
    %v1977 = vunpack.c.h.b16 %v717
    %v1978 = vunpack.c.l.b16 %v718
    %v1979 = vunpack.c.h.b16 %v718
    %v1980 = vunpack.c.l.b16 %v719
    %v1981 = vunpack.c.h.b16 %v719
    %v1982 = vunpack.c.l.b16 %v720
    %v1983 = vunpack.c.h.b16 %v720
    %v1984 = vunpack.c.l.b16 %v721
    %v1985 = vunpack.c.h.b16 %v721
    %v1986 = vunpack.c.l.b16 %v722
    %v1987 = vunpack.c.h.b16 %v722
    %v1988 = vunpack.c.l.b16 %v723
    %v1989 = vunpack.c.h.b16 %v723
    %v1990 = vunpack.c.l.b16 %v724
    %v1991 = vunpack.c.h.b16 %v724
    %v1992 = vunpack.c.l.b16 %v725
    %v1993 = vunpack.c.h.b16 %v725
    %v1994 = vunpack.c.l.b16 %v726
    %v1995 = vunpack.c.h.b16 %v726
    %v1996 = vunpack.c.l.b16 %v727
    %v1997 = vunpack.c.h.b16 %v727
    %v1998 = vunpack.c.l.b16 %v728
    %v1999 = vunpack.c.h.b16 %v728
    %v2000 = vunpack.c.l.b16 %v729
    %v2001 = vunpack.c.h.b16 %v729
    %v2002 = vunpack.c.l.b16 %v730
    %v2003 = vunpack.c.h.b16 %v730
    %v2004 = vunpack.c.l.b16 %v731
    %v2005 = vunpack.c.h.b16 %v731
    %v2006 = vunpack.c.l.b16 %v732
    %v2007 = vunpack.c.h.b16 %v732
    %v2008 = vunpack.c.l.b16 %v733
    %v2009 = vunpack.c.h.b16 %v733
    %v2010 = vunpack.c.l.b16 %v734
    %v2011 = vunpack.c.h.b16 %v734
    %v2012 = vunpack.c.l.b16 %v735
    %v2013 = vunpack.c.h.b16 %v735
    %v2014 = vunpack.c.l.b16 %v736
    %v2015 = vunpack.c.h.b16 %v736
    %v2016 = vunpack.c.l.b16 %v737
    %v2017 = vunpack.c.h.b16 %v737
    %v2018 = vunpack.c.l.b16 %v738
    %v2019 = vunpack.c.h.b16 %v738
    %v2020 = vunpack.c.l.b16 %v739
    %v2021 = vunpack.c.h.b16 %v739
    %v2022 = vunpack.c.l.b16 %v740
    %v2023 = vunpack.c.h.b16 %v740
    %v2024 = vunpack.c.l.b16 %v741
    %v2025 = vunpack.c.h.b16 %v741
    %v2026 = vunpack.c.l.b16 %v742
    %v2027 = vunpack.c.h.b16 %v742
    %v2028 = vunpack.c.l.b16 %v743
    %v2029 = vunpack.c.h.b16 %v743
    %v2030 = vunpack.c.l.b16 %v744
    %v2031 = vunpack.c.h.b16 %v744
    %v2032 = vunpack.c.l.b16 %v745
    %v2033 = vunpack.c.h.b16 %v745
    %v2034 = vunpack.c.l.b16 %v746
    %v2035 = vunpack.c.h.b16 %v746
    %v2036 = vunpack.c.l.b16 %v747
    %v2037 = vunpack.c.h.b16 %v747
    %v2038 = vunpack.c.l.b16 %v748
    %v2039 = vunpack.c.h.b16 %v748
    %v2040 = vunpack.c.l.b16 %v749
    %v2041 = vunpack.c.h.b16 %v749
    %v2042 = vunpack.c.l.b16 %v750
    %v2043 = vunpack.c.h.b16 %v750
    %v2044 = vunpack.c.l.b16 %v751
    %v2045 = vunpack.c.h.b16 %v751
    %v2046 = vunpack.c.l.b16 %v752
    %v2047 = vunpack.c.h.b16 %v752
    %v2048 = vunpack.c.l.b16 %v753
    %v2049 = vunpack.c.h.b16 %v753
    %v2050 = vunpack.c.l.b16 %v754
    %v2051 = vunpack.c.h.b16 %v754
    %v2052 = vunpack.c.l.b16 %v755
    %v2053 = vunpack.c.h.b16 %v755
    %v2054 = vunpack.c.l.b16 %v756
    %v2055 = vunpack.c.h.b16 %v756
    %v2056 = vunpack.c.l.b16 %v757
    %v2057 = vunpack.c.h.b16 %v757
    %v2058 = vunpack.c.l.b16 %v758
    %v2059 = vunpack.c.h.b16 %v758
    %v2060 = vunpack.c.l.b16 %v759
    %v2061 = vunpack.c.h.b16 %v759
    %v2062 = vunpack.c.l.b16 %v760
    %v2063 = vunpack.c.h.b16 %v760
    %v2064 = vunpack.c.l.b16 %v761
    %v2065 = vunpack.c.h.b16 %v761
    %v2066 = vunpack.c.l.b16 %v762
    %v2067 = vunpack.c.h.b16 %v762
    %v2068 = vunpack.c.l.b16 %v763
    %v2069 = vunpack.c.h.b16 %v763
    %v2070 = vunpack.c.l.b16 %v764
    %v2071 = vunpack.c.h.b16 %v764
    %v2072 = vunpack.c.l.b16 %v765
    %v2073 = vunpack.c.h.b16 %v765
    %v2074 = vunpack.c.l.b16 %v766
    %v2075 = vunpack.c.h.b16 %v766
    %v2076 = vunpack.c.l.b16 %v767
    %v2077 = vunpack.c.h.b16 %v767
    %v2078 = vunpack.c.l.b16 %v768
    %v2079 = vunpack.c.h.b16 %v768
    %v2080 = vunpack.c.l.b16 %v769
    %v2081 = vunpack.c.h.b16 %v769
    %v2082 = vunpack.c.l.b16 %v770
    %v2083 = vunpack.c.h.b16 %v770
    %v2084 = vunpack.c.l.b16 %v771
    %v2085 = vunpack.c.h.b16 %v771
    %v2086 = vunpack.c.l.b16 %v772
    %v2087 = vunpack.c.h.b16 %v772
    %v2088 = vunpack.c.l.b16 %v773
    %v2089 = vunpack.c.h.b16 %v773
    %v2090 = vunpack.c.l.b16 %v774
    %v2091 = vunpack.c.h.b16 %v774
    %v2092 = vunpack.c.l.b16 %v775
    %v2093 = vunpack.c.h.b16 %v775
    %v2094 = vunpack.c.l.b16 %v776
    %v2095 = vunpack.c.h.b16 %v776
    %v2096 = vunpack.c.l.b16 %v777
    %v2097 = vunpack.c.h.b16 %v777
    %v2098 = vunpack.c.l.b16 %v778
    %v2099 = vunpack.c.h.b16 %v778
    %v2100 = vunpack.c.l.b16 %v779
    %v2101 = vunpack.c.h.b16 %v779
    %v2102 = vunpack.c.l.b16 %v780
    %v2103 = vunpack.c.h.b16 %v780
    %v2104 = vunpack.c.l.b16 %v781
    %v2105 = vunpack.c.h.b16 %v781
    %v2106 = vunpack.c.l.b16 %v782
    %v2107 = vunpack.c.h.b16 %v782
    %v2108 = vunpack.c.l.b16 %v783
    %v2109 = vunpack.c.h.b16 %v783
    %v2110 = vunpack.c.l.b16 %v784
    %v2111 = vunpack.c.h.b16 %v784
    %v2112 = vunpack.c.l.b16 %v785
    %v2113 = vunpack.c.h.b16 %v785
    %v2114 = vunpack.c.l.b16 %v786
    %v2115 = vunpack.c.h.b16 %v786
    %v2116 = vunpack.c.l.b16 %v787
    %v2117 = vunpack.c.h.b16 %v787
    %v2118 = vunpack.c.l.b16 %v788
    %v2119 = vunpack.c.h.b16 %v788
    %v2120 = vunpack.c.l.b16 %v789
    %v2121 = vunpack.c.h.b16 %v789
    %v2122 = vunpack.c.l.b16 %v790
    %v2123 = vunpack.c.h.b16 %v790
    %v2124 = vunpack.c.l.b16 %v791
    %v2125 = vunpack.c.h.b16 %v791
    %v2126 = vunpack.c.l.b16 %v792
    %v2127 = vunpack.c.h.b16 %v792
    %v2128 = vunpack.c.l.b16 %v793
    %v2129 = vunpack.c.h.b16 %v793
    %v2130 = vunpack.c.l.b16 %v794
    %v2131 = vunpack.c.h.b16 %v794
    %v2132 = vunpack.c.l.b16 %v795
    %v2133 = vunpack.c.h.b16 %v795
    %v2134 = vunpack.c.l.b16 %v796
    %v2135 = vunpack.c.h.b16 %v796
    %v2136 = vunpack.c.l.b16 %v797
    %v2137 = vunpack.c.h.b16 %v797
    %v2138 = vunpack.c.l.b16 %v798
    %v2139 = vunpack.c.h.b16 %v798
    %v2140 = vunpack.c.l.b16 %v799
    %v2141 = vunpack.c.h.b16 %v799
    %v2142 = vunpack.c.l.b16 %v800
    %v2143 = vunpack.c.h.b16 %v800
    %v2144 = vunpack.c.l.b16 %v801
    %v2145 = vunpack.c.h.b16 %v801
    %v2146 = vunpack.c.l.b16 %v802
    %v2147 = vunpack.c.h.b16 %v802
    %v2148 = vunpack.c.l.b16 %v803
    %v2149 = vunpack.c.h.b16 %v803
    %v2150 = vunpack.c.l.b16 %v804
    %v2151 = vunpack.c.h.b16 %v804
    %v2152 = vunpack.c.l.b16 %v805
    %v2153 = vunpack.c.h.b16 %v805
    %v2154 = vunpack.c.l.b16 %v806
    %v2155 = vunpack.c.h.b16 %v806
    %v2156 = vunpack.c.l.b16 %v807
    %v2157 = vunpack.c.h.b16 %v807
    %v2158 = vunpack.c.l.b16 %v808
    %v2159 = vunpack.c.h.b16 %v808
    %v2160 = vunpack.c.l.b16 %v809
    %v2161 = vunpack.c.h.b16 %v809
    %v2162 = vunpack.c.l.b16 %v810
    %v2163 = vunpack.c.h.b16 %v810
    %v2164 = vunpack.c.l.b16 %v811
    %v2165 = vunpack.c.h.b16 %v811
    %v2166 = vunpack.c.l.b16 %v812
    %v2167 = vunpack.c.h.b16 %v812
    %v2168 = vunpack.c.l.b16 %v813
    %v2169 = vunpack.c.h.b16 %v813
    %v2170 = vunpack.c.l.b16 %v814
    %v2171 = vunpack.c.h.b16 %v814
    %v2172 = vunpack.c.l.b16 %v815
    %v2173 = vunpack.c.h.b16 %v815
    %v2174 = vunpack.c.l.b16 %v816
    %v2175 = vunpack.c.h.b16 %v816
    %v2176 = vunpack.c.l.b16 %v817
    %v2177 = vunpack.c.h.b16 %v817
    %v2178 = vunpack.c.l.b16 %v818
    %v2179 = vunpack.c.h.b16 %v818
    %v2180 = vunpack.c.l.b16 %v819
    %v2181 = vunpack.c.h.b16 %v819
    %v2182 = vunpack.c.l.b16 %v820
    %v2183 = vunpack.c.h.b16 %v820
    %v2184 = vunpack.c.l.b16 %v821
    %v2185 = vunpack.c.h.b16 %v821
    %v2186 = vunpack.c.l.b16 %v822
    %v2187 = vunpack.c.h.b16 %v822
    %v2188 = vunpack.c.l.b16 %v823
    %v2189 = vunpack.c.h.b16 %v823
    %v2190 = vunpack.c.l.b16 %v824
    %v2191 = vunpack.c.h.b16 %v824
    %v2192 = vunpack.c.l.b16 %v825
    %v2193 = vunpack.c.h.b16 %v825
    %v2194 = vunpack.c.l.b16 %v826
    %v2195 = vunpack.c.h.b16 %v826
    %v2196 = vunpack.c.l.b16 %v827
    %v2197 = vunpack.c.h.b16 %v827
    %v2198 = vunpack.c.l.b16 %v828
    %v2199 = vunpack.c.h.b16 %v828
    %v2200 = vunpack.c.l.b16 %v829
    %v2201 = vunpack.c.h.b16 %v829
    %v2202 = vunpack.c.l.b16 %v830
    %v2203 = vunpack.c.h.b16 %v830
    %v2204 = vunpack.c.l.b16 %v831
    %v2205 = vunpack.c.h.b16 %v831
    %v2206 = vunpack.c.l.b16 %v832
    %v2207 = vunpack.c.h.b16 %v832
    %v2208 = vunpack.c.l.b16 %v833
    %v2209 = vunpack.c.h.b16 %v833
    %v2210 = vunpack.c.l.b16 %v834
    %v2211 = vunpack.c.h.b16 %v834
    %v2212 = vunpack.c.l.b16 %v835
    %v2213 = vunpack.c.h.b16 %v835
    %v2214 = vunpack.c.l.b16 %v836
    %v2215 = vunpack.c.h.b16 %v836
    %v2216 = vunpack.c.l.b16 %v837
    %v2217 = vunpack.c.h.b16 %v837
    %v2218 = vunpack.c.l.b16 %v838
    %v2219 = vunpack.c.h.b16 %v838
    %v2220 = vunpack.c.l.b16 %v839
    %v2221 = vunpack.c.h.b16 %v839
    %v2222 = vunpack.c.l.b16 %v840
    %v2223 = vunpack.c.h.b16 %v840
    %v2224 = vunpack.c.l.b16 %v841
    %v2225 = vunpack.c.h.b16 %v841
    %v2226 = vunpack.c.l.b16 %v842
    %v2227 = vunpack.c.h.b16 %v842
    %v2228 = vunpack.c.l.b16 %v843
    %v2229 = vunpack.c.h.b16 %v843
    %v2230 = vunpack.c.l.b16 %v844
    %v2231 = vunpack.c.h.b16 %v844
    %v2232 = vunpack.c.l.b16 %v845
    %v2233 = vunpack.c.h.b16 %v845
    %v2234 = vunpack.c.l.b16 %v846
    %v2235 = vunpack.c.h.b16 %v846
    %v2236 = vunpack.c.l.b16 %v847
    %v2237 = vunpack.c.h.b16 %v847
    %v2238 = vunpack.c.l.b16 %v848
    %v2239 = vunpack.c.h.b16 %v848
    %v2240 = vunpack.c.l.b16 %v849
    %v2241 = vunpack.c.h.b16 %v849
    %v2242 = vunpack.c.l.b16 %v850
    %v2243 = vunpack.c.h.b16 %v850
    %v2244 = vunpack.c.l.b16 %v851
    %v2245 = vunpack.c.h.b16 %v851
    %v2246 = vunpack.c.l.b16 %v852
    %v2247 = vunpack.c.h.b16 %v852
    %v2248 = vunpack.c.l.b16 %v853
    %v2249 = vunpack.c.h.b16 %v853
    %v2250 = vunpack.c.l.b16 %v854
    %v2251 = vunpack.c.h.b16 %v854
    %v2252 = vunpack.c.l.b16 %v855
    %v2253 = vunpack.c.h.b16 %v855
    %v2254 = vunpack.c.l.b16 %v856
    %v2255 = vunpack.c.h.b16 %v856
    %v2256 = vunpack.c.l.b16 %v857
    %v2257 = vunpack.c.h.b16 %v857
    %v2258 = vunpack.c.l.b16 %v858
    %v2259 = vunpack.c.h.b16 %v858
    %v2260 = vunpack.c.l.b16 %v859
    %v2261 = vunpack.c.h.b16 %v859
    %v2262 = vunpack.c.l.b16 %v860
    %v2263 = vunpack.c.h.b16 %v860
    %v2264 = vunpack.c.l.b16 %v861
    %v2265 = vunpack.c.h.b16 %v861
    %v2266 = vunpack.c.l.b16 %v862
    %v2267 = vunpack.c.h.b16 %v862
    %v2268 = vunpack.c.l.b16 %v863
    %v2269 = vunpack.c.h.b16 %v863
    %v2270 = vunpack.c.l.b16 %v864
    %v2271 = vunpack.c.h.b16 %v864
    %v2272 = vunpack.c.l.b16 %v865
    %v2273 = vunpack.c.h.b16 %v865
    %v2274 = vunpack.c.l.b16 %v866
    %v2275 = vunpack.c.h.b16 %v866
    %v2276 = vunpack.c.l.b16 %v867
    %v2277 = vunpack.c.h.b16 %v867
    %v2278 = vunpack.c.l.b16 %v868
    %v2279 = vunpack.c.h.b16 %v868
    %v2280 = vunpack.c.l.b16 %v869
    %v2281 = vunpack.c.h.b16 %v869
    %v2282 = vunpack.c.l.b16 %v870
    %v2283 = vunpack.c.h.b16 %v870
    %v2284 = vunpack.c.l.b16 %v871
    %v2285 = vunpack.c.h.b16 %v871
    %v2286 = vunpack.c.l.b16 %v872
    %v2287 = vunpack.c.h.b16 %v872
    %v2288 = vunpack.c.l.b16 %v873
    %v2289 = vunpack.c.h.b16 %v873
    %v2290 = vunpack.c.l.b16 %v874
    %v2291 = vunpack.c.h.b16 %v874
    %v2292 = vunpack.c.l.b16 %v875
    %v2293 = vunpack.c.h.b16 %v875
    %v2294 = vunpack.c.l.b16 %v876
    %v2295 = vunpack.c.h.b16 %v876
    %v2296 = vunpack.c.l.b16 %v877
    %v2297 = vunpack.c.h.b16 %v877
    %v2298 = vunpack.c.l.b16 %v878
    %v2299 = vunpack.c.h.b16 %v878
    %v2300 = vunpack.c.l.b16 %v879
    %v2301 = vunpack.c.h.b16 %v879
    %v2302 = vunpack.c.l.b16 %v880
    %v2303 = vunpack.c.h.b16 %v880
    %v2304 = vunpack.c.l.b16 %v881
    %v2305 = vunpack.c.h.b16 %v881
    %v2306 = vunpack.c.l.b16 %v882
    %v2307 = vunpack.c.h.b16 %v882
    %v2308 = vunpack.c.l.b16 %v883
    %v2309 = vunpack.c.h.b16 %v883
    %v2310 = vunpack.c.l.b16 %v884
    %v2311 = vunpack.c.h.b16 %v884
    %v2312 = vunpack.c.l.b16 %v885
    %v2313 = vunpack.c.h.b16 %v885
    %v2314 = vunpack.c.l.b16 %v886
    %v2315 = vunpack.c.h.b16 %v886
    %v2316 = vunpack.c.l.b16 %v887
    %v2317 = vunpack.c.h.b16 %v887
    %v2318 = vunpack.c.l.b16 %v888
    %v2319 = vunpack.c.h.b16 %v888
    %v2320 = vunpack.c.l.b16 %v889
    %v2321 = vunpack.c.h.b16 %v889
    %v2322 = vunpack.c.l.b16 %v890
    %v2323 = vunpack.c.h.b16 %v890
    %v2324 = vunpack.c.l.b16 %v891
    %v2325 = vunpack.c.h.b16 %v891
    %v2326 = vunpack.c.l.b16 %v892
    %v2327 = vunpack.c.h.b16 %v892
    %v2328 = vunpack.c.l.b16 %v893
    %v2329 = vunpack.c.h.b16 %v893
    %v2330 = vunpack.c.l.b16 %v894
    %v2331 = vunpack.c.h.b16 %v894
    %v2332 = vunpack.c.l.b16 %v895
    %v2333 = vunpack.c.h.b16 %v895
    %v2334 = vunpack.c.l.b16 %v896
    %v2335 = vunpack.c.h.b16 %v896
    %v2336 = vunpack.c.l.b16 %v897
    %v2337 = vunpack.c.h.b16 %v897
    %v2338 = vunpack.c.l.b16 %v898
    %v2339 = vunpack.c.h.b16 %v898
    %v2340 = vunpack.c.l.b16 %v899
    %v2341 = vunpack.c.h.b16 %v899
    %v2342 = vunpack.c.l.b16 %v900
    %v2343 = vunpack.c.h.b16 %v900
    %v2344 = vunpack.c.l.b16 %v901
    %v2345 = vunpack.c.h.b16 %v901
    %v2346 = vunpack.c.l.b16 %v902
    %v2347 = vunpack.c.h.b16 %v902
    %v2348 = vunpack.c.l.b16 %v903
    %v2349 = vunpack.c.h.b16 %v903
    %v2350 = vunpack.c.l.b16 %v904
    %v2351 = vunpack.c.h.b16 %v904
    %v2352 = vunpack.c.l.b16 %v905
    %v2353 = vunpack.c.h.b16 %v905
    %v2354 = vunpack.c.l.b16 %v906
    %v2355 = vunpack.c.h.b16 %v906
    %v2356 = vunpack.c.l.b16 %v907
    %v2357 = vunpack.c.h.b16 %v907
    %v2358 = vunpack.c.l.b16 %v908
    %v2359 = vunpack.c.h.b16 %v908
    %v2360 = vunpack.c.l.b16 %v909
    %v2361 = vunpack.c.h.b16 %v909
    %v2362 = vunpack.c.l.b16 %v910
    %v2363 = vunpack.c.h.b16 %v910
    %v2364 = vunpack.c.l.b16 %v911
    %v2365 = vunpack.c.h.b16 %v911
    %v2366 = vunpack.c.l.b16 %v912
    %v2367 = vunpack.c.h.b16 %v912
    %v2368 = vunpack.c.l.b16 %v913
    %v2369 = vunpack.c.h.b16 %v913
    %v2370 = vunpack.c.l.b16 %v914
    %v2371 = vunpack.c.h.b16 %v914
    %v2372 = vunpack.c.l.b16 %v915
    %v2373 = vunpack.c.h.b16 %v915
    %v2374 = vunpack.c.l.b16 %v916
    %v2375 = vunpack.c.h.b16 %v916
    %v2376 = vunpack.c.l.b16 %v917
    %v2377 = vunpack.c.h.b16 %v917
    %v2378 = vunpack.c.l.b16 %v918
    %v2379 = vunpack.c.h.b16 %v918
    %v2380 = vunpack.c.l.b16 %v919
    %v2381 = vunpack.c.h.b16 %v919
    %v2382 = vunpack.c.l.b16 %v920
    %v2383 = vunpack.c.h.b16 %v920
    %v2384 = vunpack.c.l.b16 %v921
    %v2385 = vunpack.c.h.b16 %v921
    %v2386 = vunpack.c.l.b16 %v922
    %v2387 = vunpack.c.h.b16 %v922
    %v2388 = vunpack.c.l.b16 %v923
    %v2389 = vunpack.c.h.b16 %v923
    %v2390 = vunpack.c.l.b16 %v924
    %v2391 = vunpack.c.h.b16 %v924
    %v2392 = vunpack.c.l.b16 %v925
    %v2393 = vunpack.c.h.b16 %v925
    %v2394 = vunpack.c.l.b16 %v926
    %v2395 = vunpack.c.h.b16 %v926
    %v2396 = vunpack.c.l.b16 %v927
    %v2397 = vunpack.c.h.b16 %v927
    %v2398 = vunpack.c.l.b16 %v928
    %v2399 = vunpack.c.h.b16 %v928
    %v2400 = vunpack.c.l.b16 %v929
    %v2401 = vunpack.c.h.b16 %v929
    %v2402 = vunpack.c.l.b16 %v930
    %v2403 = vunpack.c.h.b16 %v930
    %v2404 = vunpack.c.l.b16 %v931
    %v2405 = vunpack.c.h.b16 %v931
    %v2406 = vunpack.c.l.b16 %v932
    %v2407 = vunpack.c.h.b16 %v932
    %v2408 = vunpack.c.l.b16 %v933
    %v2409 = vunpack.c.h.b16 %v933
    %v2410 = vunpack.c.l.b16 %v934
    %v2411 = vunpack.c.h.b16 %v934
    %v2412 = vunpack.c.l.b16 %v935
    %v2413 = vunpack.c.h.b16 %v935
    %v2414 = vunpack.c.l.b16 %v936
    %v2415 = vunpack.c.h.b16 %v936
    %v2416 = vunpack.c.l.b16 %v937
    %v2417 = vunpack.c.h.b16 %v937
    %v2418 = vunpack.c.l.b16 %v938
    %v2419 = vunpack.c.h.b16 %v938
    %v2420 = vunpack.c.l.b16 %v939
    %v2421 = vunpack.c.h.b16 %v939
    %v2422 = vunpack.c.l.b16 %v940
    %v2423 = vunpack.c.h.b16 %v940
    %v2424 = vunpack.c.l.b16 %v941
    %v2425 = vunpack.c.h.b16 %v941
    %v2426 = vunpack.c.l.b16 %v942
    %v2427 = vunpack.c.h.b16 %v942
    %v2428 = vunpack.c.l.b16 %v943
    %v2429 = vunpack.c.h.b16 %v943
    %v2430 = vunpack.c.l.b16 %v944
    %v2431 = vunpack.c.h.b16 %v944
    %v2432 = vunpack.c.l.b16 %v945
    %v2433 = vunpack.c.h.b16 %v945
    %v2434 = vunpack.c.l.b16 %v946
    %v2435 = vunpack.c.h.b16 %v946
    %v2436 = vunpack.c.l.b16 %v947
    %v2437 = vunpack.c.h.b16 %v947
    %v2438 = vunpack.c.l.b16 %v948
    %v2439 = vunpack.c.h.b16 %v948
    %v2440 = vunpack.c.l.b16 %v949
    %v2441 = vunpack.c.h.b16 %v949
    %v2442 = vunpack.c.l.b16 %v950
    %v2443 = vunpack.c.h.b16 %v950
    %v2444 = vunpack.c.l.b16 %v951
    %v2445 = vunpack.c.h.b16 %v951
    %v2446 = vunpack.c.l.b16 %v952
    %v2447 = vunpack.c.h.b16 %v952
    %v2448 = vunpack.c.l.b16 %v953
    %v2449 = vunpack.c.h.b16 %v953
    %v2450 = vunpack.c.l.b16 %v954
    %v2451 = vunpack.c.h.b16 %v954
    %v2452 = vunpack.c.l.b16 %v955
    %v2453 = vunpack.c.h.b16 %v955
    %v2454 = vunpack.c.l.b16 %v956
    %v2455 = vunpack.c.h.b16 %v956
    %v2456 = vunpack.c.l.b16 %v957
    %v2457 = vunpack.c.h.b16 %v957
    %v2458 = vunpack.c.l.b16 %v958
    %v2459 = vunpack.c.h.b16 %v958
    %v2460 = vunpack.c.l.b16 %v959
    %v2461 = vunpack.c.h.b16 %v959
    %v2462 = vunpack.c.l.b16 %v960
    %v2463 = vunpack.c.h.b16 %v960
    %v2464 = vunpack.c.l.b16 %v961
    %v2465 = vunpack.c.h.b16 %v961
    %v2466 = vunpack.c.l.b16 %v962
    %v2467 = vunpack.c.h.b16 %v962
    %v2468 = vunpack.c.l.b16 %v963
    %v2469 = vunpack.c.h.b16 %v963
    %v2470 = vunpack.c.l.b16 %v964
    %v2471 = vunpack.c.h.b16 %v964
    %v2472 = vunpack.c.l.b16 %v965
    %v2473 = vunpack.c.h.b16 %v965
    %v2474 = vunpack.c.l.b16 %v966
    %v2475 = vunpack.c.h.b16 %v966
    %v2476 = vunpack.c.l.b16 %v967
    %v2477 = vunpack.c.h.b16 %v967
    %v2478 = vunpack.c.l.b16 %v968
    %v2479 = vunpack.c.h.b16 %v968
    %v2480 = vunpack.c.l.b16 %v969
    %v2481 = vunpack.c.h.b16 %v969
    %v2482 = vunpack.c.l.b16 %v970
    %v2483 = vunpack.c.h.b16 %v970
    %v2484 = vunpack.c.l.b16 %v971
    %v2485 = vunpack.c.h.b16 %v971
    %v2486 = vunpack.c.l.b16 %v972
    %v2487 = vunpack.c.h.b16 %v972
    %v2488 = vunpack.c.l.b16 %v973
    %v2489 = vunpack.c.h.b16 %v973
    %v2490 = vunpack.c.l.b16 %v974
    %v2491 = vunpack.c.h.b16 %v974
    %v2492 = vunpack.c.l.b16 %v975
    %v2493 = vunpack.c.h.b16 %v975
    %v2494 = vunpack.c.l.b16 %v976
    %v2495 = vunpack.c.h.b16 %v976
    %v2496 = vunpack.c.l.b16 %v977
    %v2497 = vunpack.c.h.b16 %v977
    %v2498 = vunpack.c.l.b16 %v978
    %v2499 = vunpack.c.h.b16 %v978
    %v2500 = vunpack.c.l.b16 %v979
    %v2501 = vunpack.c.h.b16 %v979
    %v2502 = vunpack.c.l.b16 %v980
    %v2503 = vunpack.c.h.b16 %v980
    %v2504 = vunpack.c.l.b16 %v981
    %v2505 = vunpack.c.h.b16 %v981
    %v2506 = vunpack.c.l.b16 %v982
    %v2507 = vunpack.c.h.b16 %v982
    %v2508 = vunpack.c.l.b16 %v983
    %v2509 = vunpack.c.h.b16 %v983
    %v2510 = vunpack.c.l.b16 %v984
    %v2511 = vunpack.c.h.b16 %v984
    %v2512 = vunpack.c.l.b16 %v985
    %v2513 = vunpack.c.h.b16 %v985
    %v2514 = vunpack.c.l.b16 %v986
    %v2515 = vunpack.c.h.b16 %v986
    %v2516 = vunpack.c.l.b16 %v987
    %v2517 = vunpack.c.h.b16 %v987
    %v2518 = vunpack.c.l.b16 %v988
    %v2519 = vunpack.c.h.b16 %v988
    %v2520 = vunpack.c.l.b16 %v989
    %v2521 = vunpack.c.h.b16 %v989
    %v2522 = vunpack.c.l.b16 %v990
    %v2523 = vunpack.c.h.b16 %v990
    %v2524 = vunpack.c.l.b16 %v991
    %v2525 = vunpack.c.h.b16 %v991
    %v2526 = vunpack.c.l.b16 %v992
    %v2527 = vunpack.c.h.b16 %v992
    %v2528 = vunpack.c.l.b16 %v993
    %v2529 = vunpack.c.h.b16 %v993
    %v2530 = vunpack.c.l.b16 %v994
    %v2531 = vunpack.c.h.b16 %v994
    %v2532 = vunpack.c.l.b16 %v995
    %v2533 = vunpack.c.h.b16 %v995
    %v2534 = vunpack.c.l.b16 %v996
    %v2535 = vunpack.c.h.b16 %v996
    %v2536 = vunpack.c.l.b16 %v997
    %v2537 = vunpack.c.h.b16 %v997
    %v2538 = vunpack.c.l.b16 %v998
    %v2539 = vunpack.c.h.b16 %v998
    %v2540 = vunpack.c.l.b16 %v999
    %v2541 = vunpack.c.h.b16 %v999
    %v2542 = vunpack.c.l.b16 %v1000
    %v2543 = vunpack.c.h.b16 %v1000
    %v2544 = vunpack.c.l.b16 %v1001
    %v2545 = vunpack.c.h.b16 %v1001
    %v2546 = vunpack.c.l.b16 %v1002
    %v2547 = vunpack.c.h.b16 %v1002
    %v2548 = vunpack.c.l.b16 %v1003
    %v2549 = vunpack.c.h.b16 %v1003
    %v2550 = vunpack.c.l.b16 %v1004
    %v2551 = vunpack.c.h.b16 %v1004
    %v2552 = vunpack.c.l.b16 %v1005
    %v2553 = vunpack.c.h.b16 %v1005
    %v2554 = vunpack.c.l.b16 %v1006
    %v2555 = vunpack.c.h.b16 %v1006
    %v2556 = vunpack.c.l.b16 %v1007
    %v2557 = vunpack.c.h.b16 %v1007
    %v2558 = vunpack.c.l.b16 %v1008
    %v2559 = vunpack.c.h.b16 %v1008
    %v2560 = vunpack.c.l.b16 %v1009
    %v2561 = vunpack.c.h.b16 %v1009
    %v2562 = vunpack.c.l.b16 %v1010
    %v2563 = vunpack.c.h.b16 %v1010
    %v2564 = vunpack.c.l.b16 %v1011
    %v2565 = vunpack.c.h.b16 %v1011
    %v2566 = vunpack.c.l.b16 %v1012
    %v2567 = vunpack.c.h.b16 %v1012
    %v2568 = vunpack.c.l.b16 %v1013
    %v2569 = vunpack.c.h.b16 %v1013
    %v2570 = vunpack.c.l.b16 %v1014
    %v2571 = vunpack.c.h.b16 %v1014
    %v2572 = vunpack.c.l.b16 %v1015
    %v2573 = vunpack.c.h.b16 %v1015
    %v2574 = vunpack.c.l.b16 %v1016
    %v2575 = vunpack.c.h.b16 %v1016
    %v2576 = vunpack.c.l.b16 %v1017
    %v2577 = vunpack.c.h.b16 %v1017
    %v2578 = vunpack.c.l.b16 %v1018
    %v2579 = vunpack.c.h.b16 %v1018
    %v2580 = vunpack.c.l.b16 %v1019
    %v2581 = vunpack.c.h.b16 %v1019
    %v2582 = vunpack.c.l.b16 %v1020
    %v2583 = vunpack.c.h.b16 %v1020
    %v2584 = vunpack.c.l.b16 %v1021
    %v2585 = vunpack.c.h.b16 %v1021
    %v2586 = vunpack.c.l.b16 %v1022
    %v2587 = vunpack.c.h.b16 %v1022
    %v2588 = vunpack.c.l.b16 %v1023
    %v2589 = vunpack.c.h.b16 %v1023
    %v2590 = vunpack.c.l.b16 %v1024
    %v2591 = vunpack.c.h.b16 %v1024
    %v2592 = vunpack.c.l.b16 %v1025
    %v2593 = vunpack.c.h.b16 %v1025
    %v2594 = vunpack.c.l.b16 %v1026
    %v2595 = vunpack.c.h.b16 %v1026
    %v2596 = vunpack.c.l.b16 %v1027
    %v2597 = vunpack.c.h.b16 %v1027
    %v2598 = vunpack.c.l.b16 %v1028
    %v2599 = vunpack.c.h.b16 %v1028
    %v2600 = vunpack.c.l.b16 %v1029
    %v2601 = vunpack.c.h.b16 %v1029
    %v2602 = vunpack.c.l.b16 %v1030
    %v2603 = vunpack.c.h.b16 %v1030
    %v2604 = vunpack.c.l.b16 %v1031
    %v2605 = vunpack.c.h.b16 %v1031
    %v2606 = vunpack.c.l.b16 %v1032
    %v2607 = vunpack.c.h.b16 %v1032
    %v2608 = vunpack.c.l.b16 %v1033
    %v2609 = vunpack.c.h.b16 %v1033
    %v2610 = vunpack.c.l.b16 %v1034
    %v2611 = vunpack.c.h.b16 %v1034
    %v2612 = vunpack.c.l.b16 %v1035
    %v2613 = vunpack.c.h.b16 %v1035
    %v2614 = vpack.c.b16 %v1598, %v1590
    %v2615 = vpack.c.b16 %v1599, %v1591
    %v2616 = vpack.c.b16 %v1600, %v1592
    %v2617 = vpack.c.b16 %v1601, %v1593
    %v2618 = vpack.c.b16 %v1602, %v1594
    %v2619 = vpack.c.b16 %v1603, %v1595
    %v2620 = vpack.c.b16 %v1604, %v1596
    %v2621 = vpack.c.b16 %v1605, %v1597
    %v2622 = vpack.c.b16 %v1614, %v1606
    %v2623 = vpack.c.b16 %v1615, %v1607
    %v2624 = vpack.c.b16 %v1616, %v1608
    %v2625 = vpack.c.b16 %v1617, %v1609
    %v2626 = vpack.c.b16 %v1618, %v1610
    %v2627 = vpack.c.b16 %v1619, %v1611
    %v2628 = vpack.c.b16 %v1620, %v1612
    %v2629 = vpack.c.b16 %v1621, %v1613
    %v2630 = vpack.c.b16 %v1630, %v1622
    %v2631 = vpack.c.b16 %v1631, %v1623
    %v2632 = vpack.c.b16 %v1632, %v1624
    %v2633 = vpack.c.b16 %v1633, %v1625
    %v2634 = vpack.c.b16 %v1634, %v1626
    %v2635 = vpack.c.b16 %v1635, %v1627
    %v2636 = vpack.c.b16 %v1636, %v1628
    %v2637 = vpack.c.b16 %v1637, %v1629
    %v2638 = vpack.c.b16 %v1646, %v1638
    %v2639 = vpack.c.b16 %v1647, %v1639
    %v2640 = vpack.c.b16 %v1648, %v1640
    %v2641 = vpack.c.b16 %v1649, %v1641
    %v2642 = vpack.c.b16 %v1650, %v1642
    %v2643 = vpack.c.b16 %v1651, %v1643
    %v2644 = vpack.c.b16 %v1652, %v1644
    %v2645 = vpack.c.b16 %v1653, %v1645
    %v2646 = vpack.c.b16 %v1662, %v1654
    %v2647 = vpack.c.b16 %v1663, %v1655
    %v2648 = vpack.c.b16 %v1664, %v1656
    %v2649 = vpack.c.b16 %v1665, %v1657
    %v2650 = vpack.c.b16 %v1666, %v1658
    %v2651 = vpack.c.b16 %v1667, %v1659
    %v2652 = vpack.c.b16 %v1668, %v1660
    %v2653 = vpack.c.b16 %v1669, %v1661
    %v2654 = vpack.c.b16 %v1678, %v1670
    %v2655 = vpack.c.b16 %v1679, %v1671
    %v2656 = vpack.c.b16 %v1680, %v1672
    %v2657 = vpack.c.b16 %v1681, %v1673
    %v2658 = vpack.c.b16 %v1682, %v1674
    %v2659 = vpack.c.b16 %v1683, %v1675
    %v2660 = vpack.c.b16 %v1684, %v1676
    %v2661 = vpack.c.b16 %v1685, %v1677
    %v2662 = vpack.c.b16 %v1694, %v1686
    %v2663 = vpack.c.b16 %v1695, %v1687
    %v2664 = vpack.c.b16 %v1696, %v1688
    %v2665 = vpack.c.b16 %v1697, %v1689
    %v2666 = vpack.c.b16 %v1698, %v1690
    %v2667 = vpack.c.b16 %v1699, %v1691
    %v2668 = vpack.c.b16 %v1700, %v1692
    %v2669 = vpack.c.b16 %v1701, %v1693
    %v2670 = vpack.c.b16 %v1710, %v1702
    %v2671 = vpack.c.b16 %v1711, %v1703
    %v2672 = vpack.c.b16 %v1712, %v1704
    %v2673 = vpack.c.b16 %v1713, %v1705
    %v2674 = vpack.c.b16 %v1714, %v1706
    %v2675 = vpack.c.b16 %v1715, %v1707
    %v2676 = vpack.c.b16 %v1716, %v1708
    %v2677 = vpack.c.b16 %v1717, %v1709
    %v2678 = vpack.c.b16 %v1726, %v1718
    %v2679 = vpack.c.b16 %v1727, %v1719
    %v2680 = vpack.c.b16 %v1728, %v1720
    %v2681 = vpack.c.b16 %v1729, %v1721
    %v2682 = vpack.c.b16 %v1730, %v1722
    %v2683 = vpack.c.b16 %v1731, %v1723
    %v2684 = vpack.c.b16 %v1732, %v1724
    %v2685 = vpack.c.b16 %v1733, %v1725
    %v2686 = vpack.c.b16 %v1742, %v1734
    %v2687 = vpack.c.b16 %v1743, %v1735
    %v2688 = vpack.c.b16 %v1744, %v1736
    %v2689 = vpack.c.b16 %v1745, %v1737
    %v2690 = vpack.c.b16 %v1746, %v1738
    %v2691 = vpack.c.b16 %v1747, %v1739
    %v2692 = vpack.c.b16 %v1748, %v1740
    %v2693 = vpack.c.b16 %v1749, %v1741
    %v2694 = vpack.c.b16 %v1758, %v1750
    %v2695 = vpack.c.b16 %v1759, %v1751
    %v2696 = vpack.c.b16 %v1760, %v1752
    %v2697 = vpack.c.b16 %v1761, %v1753
    %v2698 = vpack.c.b16 %v1762, %v1754
    %v2699 = vpack.c.b16 %v1763, %v1755
    %v2700 = vpack.c.b16 %v1764, %v1756
    %v2701 = vpack.c.b16 %v1765, %v1757
    %v2702 = vpack.c.b16 %v1774, %v1766
    %v2703 = vpack.c.b16 %v1775, %v1767
    %v2704 = vpack.c.b16 %v1776, %v1768
    %v2705 = vpack.c.b16 %v1777, %v1769
    %v2706 = vpack.c.b16 %v1778, %v1770
    %v2707 = vpack.c.b16 %v1779, %v1771
    %v2708 = vpack.c.b16 %v1780, %v1772
    %v2709 = vpack.c.b16 %v1781, %v1773
    %v2710 = vpack.c.b16 %v1790, %v1782
    %v2711 = vpack.c.b16 %v1791, %v1783
    %v2712 = vpack.c.b16 %v1792, %v1784
    %v2713 = vpack.c.b16 %v1793, %v1785
    %v2714 = vpack.c.b16 %v1794, %v1786
    %v2715 = vpack.c.b16 %v1795, %v1787
    %v2716 = vpack.c.b16 %v1796, %v1788
    %v2717 = vpack.c.b16 %v1797, %v1789
    %v2718 = vpack.c.b16 %v1806, %v1798
    %v2719 = vpack.c.b16 %v1807, %v1799
    %v2720 = vpack.c.b16 %v1808, %v1800
    %v2721 = vpack.c.b16 %v1809, %v1801
    %v2722 = vpack.c.b16 %v1810, %v1802
    %v2723 = vpack.c.b16 %v1811, %v1803
    %v2724 = vpack.c.b16 %v1812, %v1804
    %v2725 = vpack.c.b16 %v1813, %v1805
    %v2726 = vpack.c.b16 %v1822, %v1814
    %v2727 = vpack.c.b16 %v1823, %v1815
    %v2728 = vpack.c.b16 %v1824, %v1816
    %v2729 = vpack.c.b16 %v1825, %v1817
    %v2730 = vpack.c.b16 %v1826, %v1818
    %v2731 = vpack.c.b16 %v1827, %v1819
    %v2732 = vpack.c.b16 %v1828, %v1820
    %v2733 = vpack.c.b16 %v1829, %v1821
    %v2734 = vpack.c.b16 %v1838, %v1830
    %v2735 = vpack.c.b16 %v1839, %v1831
    %v2736 = vpack.c.b16 %v1840, %v1832
    %v2737 = vpack.c.b16 %v1841, %v1833
    %v2738 = vpack.c.b16 %v1842, %v1834
    %v2739 = vpack.c.b16 %v1843, %v1835
    %v2740 = vpack.c.b16 %v1844, %v1836
    %v2741 = vpack.c.b16 %v1845, %v1837
    %v2742 = vpack.c.b16 %v1854, %v1846
    %v2743 = vpack.c.b16 %v1855, %v1847
    %v2744 = vpack.c.b16 %v1856, %v1848
    %v2745 = vpack.c.b16 %v1857, %v1849
    %v2746 = vpack.c.b16 %v1858, %v1850
    %v2747 = vpack.c.b16 %v1859, %v1851
    %v2748 = vpack.c.b16 %v1860, %v1852
    %v2749 = vpack.c.b16 %v1861, %v1853
    %v2750 = vpack.c.b16 %v1870, %v1862
    %v2751 = vpack.c.b16 %v1871, %v1863
    %v2752 = vpack.c.b16 %v1872, %v1864
    %v2753 = vpack.c.b16 %v1873, %v1865
    %v2754 = vpack.c.b16 %v1874, %v1866
    %v2755 = vpack.c.b16 %v1875, %v1867
    %v2756 = vpack.c.b16 %v1876, %v1868
    %v2757 = vpack.c.b16 %v1877, %v1869
    %v2758 = vpack.c.b16 %v1886, %v1878
    %v2759 = vpack.c.b16 %v1887, %v1879
    %v2760 = vpack.c.b16 %v1888, %v1880
    %v2761 = vpack.c.b16 %v1889, %v1881
    %v2762 = vpack.c.b16 %v1890, %v1882
    %v2763 = vpack.c.b16 %v1891, %v1883
    %v2764 = vpack.c.b16 %v1892, %v1884
    %v2765 = vpack.c.b16 %v1893, %v1885
    %v2766 = vpack.c.b16 %v1902, %v1894
    %v2767 = vpack.c.b16 %v1903, %v1895
    %v2768 = vpack.c.b16 %v1904, %v1896
    %v2769 = vpack.c.b16 %v1905, %v1897
    %v2770 = vpack.c.b16 %v1906, %v1898
    %v2771 = vpack.c.b16 %v1907, %v1899
    %v2772 = vpack.c.b16 %v1908, %v1900
    %v2773 = vpack.c.b16 %v1909, %v1901
    %v2774 = vpack.c.b16 %v1918, %v1910
    %v2775 = vpack.c.b16 %v1919, %v1911
    %v2776 = vpack.c.b16 %v1920, %v1912
    %v2777 = vpack.c.b16 %v1921, %v1913
    %v2778 = vpack.c.b16 %v1922, %v1914
    %v2779 = vpack.c.b16 %v1923, %v1915
    %v2780 = vpack.c.b16 %v1924, %v1916
    %v2781 = vpack.c.b16 %v1925, %v1917
    %v2782 = vpack.c.b16 %v1934, %v1926
    %v2783 = vpack.c.b16 %v1935, %v1927
    %v2784 = vpack.c.b16 %v1936, %v1928
    %v2785 = vpack.c.b16 %v1937, %v1929
    %v2786 = vpack.c.b16 %v1938, %v1930
    %v2787 = vpack.c.b16 %v1939, %v1931
    %v2788 = vpack.c.b16 %v1940, %v1932
    %v2789 = vpack.c.b16 %v1941, %v1933
    %v2790 = vpack.c.b16 %v1950, %v1942
    %v2791 = vpack.c.b16 %v1951, %v1943
    %v2792 = vpack.c.b16 %v1952, %v1944
    %v2793 = vpack.c.b16 %v1953, %v1945
    %v2794 = vpack.c.b16 %v1954, %v1946
    %v2795 = vpack.c.b16 %v1955, %v1947
    %v2796 = vpack.c.b16 %v1956, %v1948
    %v2797 = vpack.c.b16 %v1957, %v1949
    %v2798 = vpack.c.b16 %v1966, %v1958
    %v2799 = vpack.c.b16 %v1967, %v1959
    %v2800 = vpack.c.b16 %v1968, %v1960
    %v2801 = vpack.c.b16 %v1969, %v1961
    %v2802 = vpack.c.b16 %v1970, %v1962
    %v2803 = vpack.c.b16 %v1971, %v1963
    %v2804 = vpack.c.b16 %v1972, %v1964
    %v2805 = vpack.c.b16 %v1973, %v1965
    %v2806 = vpack.c.b16 %v1982, %v1974
    %v2807 = vpack.c.b16 %v1983, %v1975
    %v2808 = vpack.c.b16 %v1984, %v1976
    %v2809 = vpack.c.b16 %v1985, %v1977
    %v2810 = vpack.c.b16 %v1986, %v1978
    %v2811 = vpack.c.b16 %v1987, %v1979
    %v2812 = vpack.c.b16 %v1988, %v1980
    %v2813 = vpack.c.b16 %v1989, %v1981
    %v2814 = vpack.c.b16 %v1998, %v1990
    %v2815 = vpack.c.b16 %v1999, %v1991
    %v2816 = vpack.c.b16 %v2000, %v1992
    %v2817 = vpack.c.b16 %v2001, %v1993
    %v2818 = vpack.c.b16 %v2002, %v1994
    %v2819 = vpack.c.b16 %v2003, %v1995
    %v2820 = vpack.c.b16 %v2004, %v1996
    %v2821 = vpack.c.b16 %v2005, %v1997
    %v2822 = vpack.c.b16 %v2014, %v2006
    %v2823 = vpack.c.b16 %v2015, %v2007
    %v2824 = vpack.c.b16 %v2016, %v2008
    %v2825 = vpack.c.b16 %v2017, %v2009
    %v2826 = vpack.c.b16 %v2018, %v2010
    %v2827 = vpack.c.b16 %v2019, %v2011
    %v2828 = vpack.c.b16 %v2020, %v2012
    %v2829 = vpack.c.b16 %v2021, %v2013
    %v2830 = vpack.c.b16 %v2030, %v2022
    %v2831 = vpack.c.b16 %v2031, %v2023
    %v2832 = vpack.c.b16 %v2032, %v2024
    %v2833 = vpack.c.b16 %v2033, %v2025
    %v2834 = vpack.c.b16 %v2034, %v2026
    %v2835 = vpack.c.b16 %v2035, %v2027
    %v2836 = vpack.c.b16 %v2036, %v2028
    %v2837 = vpack.c.b16 %v2037, %v2029
    %v2838 = vpack.c.b16 %v2046, %v2038
    %v2839 = vpack.c.b16 %v2047, %v2039
    %v2840 = vpack.c.b16 %v2048, %v2040
    %v2841 = vpack.c.b16 %v2049, %v2041
    %v2842 = vpack.c.b16 %v2050, %v2042
    %v2843 = vpack.c.b16 %v2051, %v2043
    %v2844 = vpack.c.b16 %v2052, %v2044
    %v2845 = vpack.c.b16 %v2053, %v2045
    %v2846 = vpack.c.b16 %v2062, %v2054
    %v2847 = vpack.c.b16 %v2063, %v2055
    %v2848 = vpack.c.b16 %v2064, %v2056
    %v2849 = vpack.c.b16 %v2065, %v2057
    %v2850 = vpack.c.b16 %v2066, %v2058
    %v2851 = vpack.c.b16 %v2067, %v2059
    %v2852 = vpack.c.b16 %v2068, %v2060
    %v2853 = vpack.c.b16 %v2069, %v2061
    %v2854 = vpack.c.b16 %v2078, %v2070
    %v2855 = vpack.c.b16 %v2079, %v2071
    %v2856 = vpack.c.b16 %v2080, %v2072
    %v2857 = vpack.c.b16 %v2081, %v2073
    %v2858 = vpack.c.b16 %v2082, %v2074
    %v2859 = vpack.c.b16 %v2083, %v2075
    %v2860 = vpack.c.b16 %v2084, %v2076
    %v2861 = vpack.c.b16 %v2085, %v2077
    %v2862 = vpack.c.b16 %v2094, %v2086
    %v2863 = vpack.c.b16 %v2095, %v2087
    %v2864 = vpack.c.b16 %v2096, %v2088
    %v2865 = vpack.c.b16 %v2097, %v2089
    %v2866 = vpack.c.b16 %v2098, %v2090
    %v2867 = vpack.c.b16 %v2099, %v2091
    %v2868 = vpack.c.b16 %v2100, %v2092
    %v2869 = vpack.c.b16 %v2101, %v2093
    %v2870 = vpack.c.b16 %v2110, %v2102
    %v2871 = vpack.c.b16 %v2111, %v2103
    %v2872 = vpack.c.b16 %v2112, %v2104
    %v2873 = vpack.c.b16 %v2113, %v2105
    %v2874 = vpack.c.b16 %v2114, %v2106
    %v2875 = vpack.c.b16 %v2115, %v2107
    %v2876 = vpack.c.b16 %v2116, %v2108
    %v2877 = vpack.c.b16 %v2117, %v2109
    %v2878 = vpack.c.b16 %v2126, %v2118
    %v2879 = vpack.c.b16 %v2127, %v2119
    %v2880 = vpack.c.b16 %v2128, %v2120
    %v2881 = vpack.c.b16 %v2129, %v2121
    %v2882 = vpack.c.b16 %v2130, %v2122
    %v2883 = vpack.c.b16 %v2131, %v2123
    %v2884 = vpack.c.b16 %v2132, %v2124
    %v2885 = vpack.c.b16 %v2133, %v2125
    %v2886 = vpack.c.b16 %v2142, %v2134
    %v2887 = vpack.c.b16 %v2143, %v2135
    %v2888 = vpack.c.b16 %v2144, %v2136
    %v2889 = vpack.c.b16 %v2145, %v2137
    %v2890 = vpack.c.b16 %v2146, %v2138
    %v2891 = vpack.c.b16 %v2147, %v2139
    %v2892 = vpack.c.b16 %v2148, %v2140
    %v2893 = vpack.c.b16 %v2149, %v2141
    %v2894 = vpack.c.b16 %v2158, %v2150
    %v2895 = vpack.c.b16 %v2159, %v2151
    %v2896 = vpack.c.b16 %v2160, %v2152
    %v2897 = vpack.c.b16 %v2161, %v2153
    %v2898 = vpack.c.b16 %v2162, %v2154
    %v2899 = vpack.c.b16 %v2163, %v2155
    %v2900 = vpack.c.b16 %v2164, %v2156
    %v2901 = vpack.c.b16 %v2165, %v2157
    %v2902 = vpack.c.b16 %v2174, %v2166
    %v2903 = vpack.c.b16 %v2175, %v2167
    %v2904 = vpack.c.b16 %v2176, %v2168
    %v2905 = vpack.c.b16 %v2177, %v2169
    %v2906 = vpack.c.b16 %v2178, %v2170
    %v2907 = vpack.c.b16 %v2179, %v2171
    %v2908 = vpack.c.b16 %v2180, %v2172
    %v2909 = vpack.c.b16 %v2181, %v2173
    %v2910 = vpack.c.b16 %v2190, %v2182
    %v2911 = vpack.c.b16 %v2191, %v2183
    %v2912 = vpack.c.b16 %v2192, %v2184
    %v2913 = vpack.c.b16 %v2193, %v2185
    %v2914 = vpack.c.b16 %v2194, %v2186
    %v2915 = vpack.c.b16 %v2195, %v2187
    %v2916 = vpack.c.b16 %v2196, %v2188
    %v2917 = vpack.c.b16 %v2197, %v2189
    %v2918 = vpack.c.b16 %v2206, %v2198
    %v2919 = vpack.c.b16 %v2207, %v2199
    %v2920 = vpack.c.b16 %v2208, %v2200
    %v2921 = vpack.c.b16 %v2209, %v2201
    %v2922 = vpack.c.b16 %v2210, %v2202
    %v2923 = vpack.c.b16 %v2211, %v2203
    %v2924 = vpack.c.b16 %v2212, %v2204
    %v2925 = vpack.c.b16 %v2213, %v2205
    %v2926 = vpack.c.b16 %v2222, %v2214
    %v2927 = vpack.c.b16 %v2223, %v2215
    %v2928 = vpack.c.b16 %v2224, %v2216
    %v2929 = vpack.c.b16 %v2225, %v2217
    %v2930 = vpack.c.b16 %v2226, %v2218
    %v2931 = vpack.c.b16 %v2227, %v2219
    %v2932 = vpack.c.b16 %v2228, %v2220
    %v2933 = vpack.c.b16 %v2229, %v2221
    %v2934 = vpack.c.b16 %v2238, %v2230
    %v2935 = vpack.c.b16 %v2239, %v2231
    %v2936 = vpack.c.b16 %v2240, %v2232
    %v2937 = vpack.c.b16 %v2241, %v2233
    %v2938 = vpack.c.b16 %v2242, %v2234
    %v2939 = vpack.c.b16 %v2243, %v2235
    %v2940 = vpack.c.b16 %v2244, %v2236
    %v2941 = vpack.c.b16 %v2245, %v2237
    %v2942 = vpack.c.b16 %v2254, %v2246
    %v2943 = vpack.c.b16 %v2255, %v2247
    %v2944 = vpack.c.b16 %v2256, %v2248
    %v2945 = vpack.c.b16 %v2257, %v2249
    %v2946 = vpack.c.b16 %v2258, %v2250
    %v2947 = vpack.c.b16 %v2259, %v2251
    %v2948 = vpack.c.b16 %v2260, %v2252
    %v2949 = vpack.c.b16 %v2261, %v2253
    %v2950 = vpack.c.b16 %v2270, %v2262
    %v2951 = vpack.c.b16 %v2271, %v2263
    %v2952 = vpack.c.b16 %v2272, %v2264
    %v2953 = vpack.c.b16 %v2273, %v2265
    %v2954 = vpack.c.b16 %v2274, %v2266
    %v2955 = vpack.c.b16 %v2275, %v2267
    %v2956 = vpack.c.b16 %v2276, %v2268
    %v2957 = vpack.c.b16 %v2277, %v2269
    %v2958 = vpack.c.b16 %v2286, %v2278
    %v2959 = vpack.c.b16 %v2287, %v2279
    %v2960 = vpack.c.b16 %v2288, %v2280
    %v2961 = vpack.c.b16 %v2289, %v2281
    %v2962 = vpack.c.b16 %v2290, %v2282
    %v2963 = vpack.c.b16 %v2291, %v2283
    %v2964 = vpack.c.b16 %v2292, %v2284
    %v2965 = vpack.c.b16 %v2293, %v2285
    %v2966 = vpack.c.b16 %v2302, %v2294
    %v2967 = vpack.c.b16 %v2303, %v2295
    %v2968 = vpack.c.b16 %v2304, %v2296
    %v2969 = vpack.c.b16 %v2305, %v2297
    %v2970 = vpack.c.b16 %v2306, %v2298
    %v2971 = vpack.c.b16 %v2307, %v2299
    %v2972 = vpack.c.b16 %v2308, %v2300
    %v2973 = vpack.c.b16 %v2309, %v2301
    %v2974 = vpack.c.b16 %v2318, %v2310
    %v2975 = vpack.c.b16 %v2319, %v2311
    %v2976 = vpack.c.b16 %v2320, %v2312
    %v2977 = vpack.c.b16 %v2321, %v2313
    %v2978 = vpack.c.b16 %v2322, %v2314
    %v2979 = vpack.c.b16 %v2323, %v2315
    %v2980 = vpack.c.b16 %v2324, %v2316
    %v2981 = vpack.c.b16 %v2325, %v2317
    %v2982 = vpack.c.b16 %v2334, %v2326
    %v2983 = vpack.c.b16 %v2335, %v2327
    %v2984 = vpack.c.b16 %v2336, %v2328
    %v2985 = vpack.c.b16 %v2337, %v2329
    %v2986 = vpack.c.b16 %v2338, %v2330
    %v2987 = vpack.c.b16 %v2339, %v2331
    %v2988 = vpack.c.b16 %v2340, %v2332
    %v2989 = vpack.c.b16 %v2341, %v2333
    %v2990 = vpack.c.b16 %v2350, %v2342
    %v2991 = vpack.c.b16 %v2351, %v2343
    %v2992 = vpack.c.b16 %v2352, %v2344
    %v2993 = vpack.c.b16 %v2353, %v2345
    %v2994 = vpack.c.b16 %v2354, %v2346
    %v2995 = vpack.c.b16 %v2355, %v2347
    %v2996 = vpack.c.b16 %v2356, %v2348
    %v2997 = vpack.c.b16 %v2357, %v2349
    %v2998 = vpack.c.b16 %v2366, %v2358
    %v2999 = vpack.c.b16 %v2367, %v2359
    %v3000 = vpack.c.b16 %v2368, %v2360
    %v3001 = vpack.c.b16 %v2369, %v2361
    %v3002 = vpack.c.b16 %v2370, %v2362
    %v3003 = vpack.c.b16 %v2371, %v2363
    %v3004 = vpack.c.b16 %v2372, %v2364
    %v3005 = vpack.c.b16 %v2373, %v2365
    %v3006 = vpack.c.b16 %v2382, %v2374
    %v3007 = vpack.c.b16 %v2383, %v2375
    %v3008 = vpack.c.b16 %v2384, %v2376
    %v3009 = vpack.c.b16 %v2385, %v2377
    %v3010 = vpack.c.b16 %v2386, %v2378
    %v3011 = vpack.c.b16 %v2387, %v2379
    %v3012 = vpack.c.b16 %v2388, %v2380
    %v3013 = vpack.c.b16 %v2389, %v2381
    %v3014 = vpack.c.b16 %v2398, %v2390
    %v3015 = vpack.c.b16 %v2399, %v2391
    %v3016 = vpack.c.b16 %v2400, %v2392
    %v3017 = vpack.c.b16 %v2401, %v2393
    %v3018 = vpack.c.b16 %v2402, %v2394
    %v3019 = vpack.c.b16 %v2403, %v2395
    %v3020 = vpack.c.b16 %v2404, %v2396
    %v3021 = vpack.c.b16 %v2405, %v2397
    %v3022 = vpack.c.b16 %v2414, %v2406
    %v3023 = vpack.c.b16 %v2415, %v2407
    %v3024 = vpack.c.b16 %v2416, %v2408
    %v3025 = vpack.c.b16 %v2417, %v2409
    %v3026 = vpack.c.b16 %v2418, %v2410
    %v3027 = vpack.c.b16 %v2419, %v2411
    %v3028 = vpack.c.b16 %v2420, %v2412
    %v3029 = vpack.c.b16 %v2421, %v2413
    %v3030 = vpack.c.b16 %v2430, %v2422
    %v3031 = vpack.c.b16 %v2431, %v2423
    %v3032 = vpack.c.b16 %v2432, %v2424
    %v3033 = vpack.c.b16 %v2433, %v2425
    %v3034 = vpack.c.b16 %v2434, %v2426
    %v3035 = vpack.c.b16 %v2435, %v2427
    %v3036 = vpack.c.b16 %v2436, %v2428
    %v3037 = vpack.c.b16 %v2437, %v2429
    %v3038 = vpack.c.b16 %v2446, %v2438
    %v3039 = vpack.c.b16 %v2447, %v2439
    %v3040 = vpack.c.b16 %v2448, %v2440
    %v3041 = vpack.c.b16 %v2449, %v2441
    %v3042 = vpack.c.b16 %v2450, %v2442
    %v3043 = vpack.c.b16 %v2451, %v2443
    %v3044 = vpack.c.b16 %v2452, %v2444
    %v3045 = vpack.c.b16 %v2453, %v2445
    %v3046 = vpack.c.b16 %v2462, %v2454
    %v3047 = vpack.c.b16 %v2463, %v2455
    %v3048 = vpack.c.b16 %v2464, %v2456
    %v3049 = vpack.c.b16 %v2465, %v2457
    %v3050 = vpack.c.b16 %v2466, %v2458
    %v3051 = vpack.c.b16 %v2467, %v2459
    %v3052 = vpack.c.b16 %v2468, %v2460
    %v3053 = vpack.c.b16 %v2469, %v2461
    %v3054 = vpack.c.b16 %v2478, %v2470
    %v3055 = vpack.c.b16 %v2479, %v2471
    %v3056 = vpack.c.b16 %v2480, %v2472
    %v3057 = vpack.c.b16 %v2481, %v2473
    %v3058 = vpack.c.b16 %v2482, %v2474
    %v3059 = vpack.c.b16 %v2483, %v2475
    %v3060 = vpack.c.b16 %v2484, %v2476
    %v3061 = vpack.c.b16 %v2485, %v2477
    %v3062 = vpack.c.b16 %v2494, %v2486
    %v3063 = vpack.c.b16 %v2495, %v2487
    %v3064 = vpack.c.b16 %v2496, %v2488
    %v3065 = vpack.c.b16 %v2497, %v2489
    %v3066 = vpack.c.b16 %v2498, %v2490
    %v3067 = vpack.c.b16 %v2499, %v2491
    %v3068 = vpack.c.b16 %v2500, %v2492
    %v3069 = vpack.c.b16 %v2501, %v2493
    %v3070 = vpack.c.b16 %v2510, %v2502
    %v3071 = vpack.c.b16 %v2511, %v2503
    %v3072 = vpack.c.b16 %v2512, %v2504
    %v3073 = vpack.c.b16 %v2513, %v2505
    %v3074 = vpack.c.b16 %v2514, %v2506
    %v3075 = vpack.c.b16 %v2515, %v2507
    %v3076 = vpack.c.b16 %v2516, %v2508
    %v3077 = vpack.c.b16 %v2517, %v2509
    %v3078 = vpack.c.b16 %v2526, %v2518
    %v3079 = vpack.c.b16 %v2527, %v2519
    %v3080 = vpack.c.b16 %v2528, %v2520
    %v3081 = vpack.c.b16 %v2529, %v2521
    %v3082 = vpack.c.b16 %v2530, %v2522
    %v3083 = vpack.c.b16 %v2531, %v2523
    %v3084 = vpack.c.b16 %v2532, %v2524
    %v3085 = vpack.c.b16 %v2533, %v2525
    %v3086 = vpack.c.b16 %v2542, %v2534
    %v3087 = vpack.c.b16 %v2543, %v2535
    %v3088 = vpack.c.b16 %v2544, %v2536
    %v3089 = vpack.c.b16 %v2545, %v2537
    %v3090 = vpack.c.b16 %v2546, %v2538
    %v3091 = vpack.c.b16 %v2547, %v2539
    %v3092 = vpack.c.b16 %v2548, %v2540
    %v3093 = vpack.c.b16 %v2549, %v2541
    %v3094 = vpack.c.b16 %v2558, %v2550
    %v3095 = vpack.c.b16 %v2559, %v2551
    %v3096 = vpack.c.b16 %v2560, %v2552
    %v3097 = vpack.c.b16 %v2561, %v2553
    %v3098 = vpack.c.b16 %v2562, %v2554
    %v3099 = vpack.c.b16 %v2563, %v2555
    %v3100 = vpack.c.b16 %v2564, %v2556
    %v3101 = vpack.c.b16 %v2565, %v2557
    %v3102 = vpack.c.b16 %v2574, %v2566
    %v3103 = vpack.c.b16 %v2575, %v2567
    %v3104 = vpack.c.b16 %v2576, %v2568
    %v3105 = vpack.c.b16 %v2577, %v2569
    %v3106 = vpack.c.b16 %v2578, %v2570
    %v3107 = vpack.c.b16 %v2579, %v2571
    %v3108 = vpack.c.b16 %v2580, %v2572
    %v3109 = vpack.c.b16 %v2581, %v2573
    %v3110 = vpack.c.b16 %v2590, %v2582
    %v3111 = vpack.c.b16 %v2591, %v2583
    %v3112 = vpack.c.b16 %v2592, %v2584
    %v3113 = vpack.c.b16 %v2593, %v2585
    %v3114 = vpack.c.b16 %v2594, %v2586
    %v3115 = vpack.c.b16 %v2595, %v2587
    %v3116 = vpack.c.b16 %v2596, %v2588
    %v3117 = vpack.c.b16 %v2597, %v2589
    %v3118 = vpack.c.b16 %v2606, %v2598
    %v3119 = vpack.c.b16 %v2607, %v2599
    %v3120 = vpack.c.b16 %v2608, %v2600
    %v3121 = vpack.c.b16 %v2609, %v2601
    %v3122 = vpack.c.b16 %v2610, %v2602
    %v3123 = vpack.c.b16 %v2611, %v2603
    %v3124 = vpack.c.b16 %v2612, %v2604
    %v3125 = vpack.c.b16 %v2613, %v2605
    %3638 = vmatprep.subr.bf16.mxu0 %v2671
    %3639 = vmatpush1.bf16.msra.mxu0 %v2670
    %3640 = vmatprep.subr.bf16.mxu0 %v2663
    %3641 = vmatpush1.bf16.msra.mxu0 %v2662
    %3642 = vmatprep.subr.bf16.mxu0 %v2655
    %3643 = vmatpush1.bf16.msra.mxu0 %v2654
    %3644 = vmatprep.subr.bf16.mxu0 %v2647
    %3645 = vmatpush1.bf16.msra.mxu0 %v2646
    %3646 = vmatprep.subr.bf16.mxu0 %v2639
    %3647 = vmatpush1.bf16.msra.mxu0 %v2638
    %3648 = vmatprep.subr.bf16.mxu0 %v2631
    %3649 = vmatpush1.bf16.msra.mxu0 %v2630
    %3650 = vmatprep.subr.bf16.mxu0 %v2623
    %3651 = vmatpush1.bf16.msra.mxu0 %v2622
    %3652 = vmatprep.subr.bf16.mxu0 %v2615
    %3653 = vmatpush1.bf16.msra.mxu0 %v2614
    %3654 = vmatprep.subr.bf16.mxu0 %v2735
    %3655 = vmatpush2.bf16.msra.mxu0 %v2734
    %3656 = vmatprep.subr.bf16.mxu0 %v2727
    %3657 = vmatpush2.bf16.msra.mxu0 %v2726
    %3658 = vmatprep.subr.bf16.mxu0 %v2719
    %3659 = vmatpush2.bf16.msra.mxu0 %v2718
    %3660 = vmatprep.subr.bf16.mxu0 %v2711
    %3661 = vmatpush2.bf16.msra.mxu0 %v2710
    %3662 = vmatprep.subr.bf16.mxu0 %v2703
    %3663 = vmatpush2.bf16.msra.mxu0 %v2702
    %3664 = vmatprep.subr.bf16.mxu0 %v2695
    %3665 = vmatpush2.bf16.msra.mxu0 %v2694
    %3666 = vmatprep.subr.bf16.mxu0 %v2687
    %3667 = vmatpush2.bf16.msra.mxu0 %v2686
    %3668 = vmatprep.subr.bf16.mxu0 %v2679
    %3669 = vmatpush2.bf16.msra.mxu0 %v2678
    %3670 = vmatprep.mubr.bf16.mxu0 %v517
    %3671 = vmatmul.mubr.bf16.gmra.mxu0 %v516
    %v3672 = vpop.f32.mrf.mxu0
    %v3673 = vadd.f32 %v1041, %v3672
    %v3674 = vpop.f32.mrf.mxu0
    %v3675 = vadd.f32 %v1045, %v3674
    %v3676 = vpop.f32.mrf.mxu0
    %v3677 = vpop.f32.mrf.mxu0
    %3678 = vdwg.mxu0
    %3679 = vmatprep.subr.bf16.mxu0 %v2799
    %3680 = vmatpush1.bf16.msra.mxu0 %v2798
    %3681 = vmatprep.subr.bf16.mxu0 %v2791
    %3682 = vmatpush1.bf16.msra.mxu0 %v2790
    %3683 = vmatprep.subr.bf16.mxu0 %v2783
    %3684 = vmatpush1.bf16.msra.mxu0 %v2782
    %3685 = vmatprep.subr.bf16.mxu0 %v2775
    %3686 = vmatpush1.bf16.msra.mxu0 %v2774
    %3687 = vmatprep.subr.bf16.mxu0 %v2767
    %3688 = vmatpush1.bf16.msra.mxu0 %v2766
    %3689 = vmatprep.subr.bf16.mxu0 %v2759
    %3690 = vmatpush1.bf16.msra.mxu0 %v2758
    %3691 = vmatprep.subr.bf16.mxu0 %v2751
    %3692 = vmatpush1.bf16.msra.mxu0 %v2750
    %3693 = vmatprep.subr.bf16.mxu0 %v2743
    %3694 = vmatpush1.bf16.msra.mxu0 %v2742
    %3695 = vmatprep.subr.bf16.mxu0 %v2863
    %3696 = vmatpush2.bf16.msra.mxu0 %v2862
    %3697 = vmatprep.subr.bf16.mxu0 %v2855
    %3698 = vmatpush2.bf16.msra.mxu0 %v2854
    %3699 = vmatprep.subr.bf16.mxu0 %v2847
    %3700 = vmatpush2.bf16.msra.mxu0 %v2846
    %3701 = vmatprep.subr.bf16.mxu0 %v2839
    %3702 = vmatpush2.bf16.msra.mxu0 %v2838
    %3703 = vmatprep.subr.bf16.mxu0 %v2831
    %3704 = vmatpush2.bf16.msra.mxu0 %v2830
    %3705 = vmatprep.subr.bf16.mxu0 %v2823
    %3706 = vmatpush2.bf16.msra.mxu0 %v2822
    %3707 = vmatprep.subr.bf16.mxu0 %v2815
    %3708 = vmatpush2.bf16.msra.mxu0 %v2814
    %3709 = vmatprep.subr.bf16.mxu0 %v2807
    %3710 = vmatpush2.bf16.msra.mxu0 %v2806
    %3711 = vmatprep.mubr.bf16.mxu0 %v519
    %3712 = vmatmul.mubr.bf16.gmra.mxu0 %v518
    %v3713 = vpop.f32.mrf.mxu0
    %v3714 = vadd.f32 %v3673, %v3713
    %v3715 = vpop.f32.mrf.mxu0
    %v3716 = vadd.f32 %v3675, %v3715
    %v3717 = vpop.f32.mrf.mxu0
    %v3718 = vpop.f32.mrf.mxu0
    %3719 = vdwg.mxu0
    %3720 = vmatprep.subr.bf16.mxu0 %v2927
    %3721 = vmatpush1.bf16.msra.mxu0 %v2926
    %3722 = vmatprep.subr.bf16.mxu0 %v2919
    %3723 = vmatpush1.bf16.msra.mxu0 %v2918
    %3724 = vmatprep.subr.bf16.mxu0 %v2911
    %3725 = vmatpush1.bf16.msra.mxu0 %v2910
    %3726 = vmatprep.subr.bf16.mxu0 %v2903
    %3727 = vmatpush1.bf16.msra.mxu0 %v2902
    %3728 = vmatprep.subr.bf16.mxu0 %v2895
    %3729 = vmatpush1.bf16.msra.mxu0 %v2894
    %3730 = vmatprep.subr.bf16.mxu0 %v2887
    %3731 = vmatpush1.bf16.msra.mxu0 %v2886
    %3732 = vmatprep.subr.bf16.mxu0 %v2879
    %3733 = vmatpush1.bf16.msra.mxu0 %v2878
    %3734 = vmatprep.subr.bf16.mxu0 %v2871
    %3735 = vmatpush1.bf16.msra.mxu0 %v2870
    %3736 = vmatprep.subr.bf16.mxu0 %v2991
    %3737 = vmatpush2.bf16.msra.mxu0 %v2990
    %3738 = vmatprep.subr.bf16.mxu0 %v2983
    %3739 = vmatpush2.bf16.msra.mxu0 %v2982
    %3740 = vmatprep.subr.bf16.mxu0 %v2975
    %3741 = vmatpush2.bf16.msra.mxu0 %v2974
    %3742 = vmatprep.subr.bf16.mxu0 %v2967
    %3743 = vmatpush2.bf16.msra.mxu0 %v2966
    %3744 = vmatprep.subr.bf16.mxu0 %v2959
    %3745 = vmatpush2.bf16.msra.mxu0 %v2958
    %3746 = vmatprep.subr.bf16.mxu0 %v2951
    %3747 = vmatpush2.bf16.msra.mxu0 %v2950
    %3748 = vmatprep.subr.bf16.mxu0 %v2943
    %3749 = vmatpush2.bf16.msra.mxu0 %v2942
    %3750 = vmatprep.subr.bf16.mxu0 %v2935
    %3751 = vmatpush2.bf16.msra.mxu0 %v2934
    %3752 = vmatprep.mubr.bf16.mxu0 %v521
    %3753 = vmatmul.mubr.bf16.gmra.mxu0 %v520
    %v3754 = vpop.f32.mrf.mxu0
    %v3755 = vadd.f32 %v3714, %v3754
    %v3756 = vpop.f32.mrf.mxu0
    %v3757 = vadd.f32 %v3716, %v3756
    %v3758 = vpop.f32.mrf.mxu0
    %v3759 = vpop.f32.mrf.mxu0
    %3760 = vdwg.mxu0
    %3761 = vmatprep.subr.bf16.mxu0 %v3055
    %3762 = vmatpush1.bf16.msra.mxu0 %v3054
    %3763 = vmatprep.subr.bf16.mxu0 %v3047
    %3764 = vmatpush1.bf16.msra.mxu0 %v3046
    %3765 = vmatprep.subr.bf16.mxu0 %v3039
    %3766 = vmatpush1.bf16.msra.mxu0 %v3038
    %3767 = vmatprep.subr.bf16.mxu0 %v3031
    %3768 = vmatpush1.bf16.msra.mxu0 %v3030
    %3769 = vmatprep.subr.bf16.mxu0 %v3023
    %3770 = vmatpush1.bf16.msra.mxu0 %v3022
    %3771 = vmatprep.subr.bf16.mxu0 %v3015
    %3772 = vmatpush1.bf16.msra.mxu0 %v3014
    %3773 = vmatprep.subr.bf16.mxu0 %v3007
    %3774 = vmatpush1.bf16.msra.mxu0 %v3006
    %3775 = vmatprep.subr.bf16.mxu0 %v2999
    %3776 = vmatpush1.bf16.msra.mxu0 %v2998
    %3777 = vmatprep.subr.bf16.mxu0 %v3119
    %3778 = vmatpush2.bf16.msra.mxu0 %v3118
    %3779 = vmatprep.subr.bf16.mxu0 %v3111
    %3780 = vmatpush2.bf16.msra.mxu0 %v3110
    %3781 = vmatprep.subr.bf16.mxu0 %v3103
    %3782 = vmatpush2.bf16.msra.mxu0 %v3102
    %3783 = vmatprep.subr.bf16.mxu0 %v3095
    %3784 = vmatpush2.bf16.msra.mxu0 %v3094
    %3785 = vmatprep.subr.bf16.mxu0 %v3087
    %3786 = vmatpush2.bf16.msra.mxu0 %v3086
    %3787 = vmatprep.subr.bf16.mxu0 %v3079
    %3788 = vmatpush2.bf16.msra.mxu0 %v3078
    %3789 = vmatprep.subr.bf16.mxu0 %v3071
    %3790 = vmatpush2.bf16.msra.mxu0 %v3070
    %3791 = vmatprep.subr.bf16.mxu0 %v3063
    %3792 = vmatpush2.bf16.msra.mxu0 %v3062
    %3793 = vmatprep.mubr.bf16.mxu0 %v523
    %3794 = vmatmul.mubr.bf16.gmra.mxu0 %v522
    %v3795 = vpop.f32.mrf.mxu0
    %v3796 = vadd.f32 %v3755, %v3795
    %v3797 = vpop.f32.mrf.mxu0
    %v3798 = vadd.f32 %v3757, %v3797
    %v3799 = vpop.f32.mrf.mxu0
    %v3800 = vpop.f32.mrf.mxu0
    %3801 = vdwg.mxu0
    %3802 = vmatprep.subr.bf16.mxu0 %v2673
    %3803 = vmatpush1.bf16.msra.mxu0 %v2672
    %3804 = vmatprep.subr.bf16.mxu0 %v2665
    %3805 = vmatpush1.bf16.msra.mxu0 %v2664
    %3806 = vmatprep.subr.bf16.mxu0 %v2657
    %3807 = vmatpush1.bf16.msra.mxu0 %v2656
    %3808 = vmatprep.subr.bf16.mxu0 %v2649
    %3809 = vmatpush1.bf16.msra.mxu0 %v2648
    %3810 = vmatprep.subr.bf16.mxu0 %v2641
    %3811 = vmatpush1.bf16.msra.mxu0 %v2640
    %3812 = vmatprep.subr.bf16.mxu0 %v2633
    %3813 = vmatpush1.bf16.msra.mxu0 %v2632
    %3814 = vmatprep.subr.bf16.mxu0 %v2625
    %3815 = vmatpush1.bf16.msra.mxu0 %v2624
    %3816 = vmatprep.subr.bf16.mxu0 %v2617
    %3817 = vmatpush1.bf16.msra.mxu0 %v2616
    %3818 = vmatprep.subr.bf16.mxu0 %v2737
    %3819 = vmatpush2.bf16.msra.mxu0 %v2736
    %3820 = vmatprep.subr.bf16.mxu0 %v2729
    %3821 = vmatpush2.bf16.msra.mxu0 %v2728
    %3822 = vmatprep.subr.bf16.mxu0 %v2721
    %3823 = vmatpush2.bf16.msra.mxu0 %v2720
    %3824 = vmatprep.subr.bf16.mxu0 %v2713
    %3825 = vmatpush2.bf16.msra.mxu0 %v2712
    %3826 = vmatprep.subr.bf16.mxu0 %v2705
    %3827 = vmatpush2.bf16.msra.mxu0 %v2704
    %3828 = vmatprep.subr.bf16.mxu0 %v2697
    %3829 = vmatpush2.bf16.msra.mxu0 %v2696
    %3830 = vmatprep.subr.bf16.mxu0 %v2689
    %3831 = vmatpush2.bf16.msra.mxu0 %v2688
    %3832 = vmatprep.subr.bf16.mxu0 %v2681
    %3833 = vmatpush2.bf16.msra.mxu0 %v2680
    %3834 = vmatprep.mubr.bf16.mxu0 %v517
    %3835 = vmatmul.mubr.bf16.gmra.mxu0 %v516
    %v3836 = vpop.f32.mrf.mxu0
    %v3837 = vadd.f32 %v1049, %v3836
    %v3838 = vpop.f32.mrf.mxu0
    %v3839 = vadd.f32 %v1053, %v3838
    %v3840 = vpop.f32.mrf.mxu0
    %v3841 = vpop.f32.mrf.mxu0
    %3842 = vdwg.mxu0
    %3843 = vmatprep.subr.bf16.mxu0 %v2801
    %3844 = vmatpush1.bf16.msra.mxu0 %v2800
    %3845 = vmatprep.subr.bf16.mxu0 %v2793
    %3846 = vmatpush1.bf16.msra.mxu0 %v2792
    %3847 = vmatprep.subr.bf16.mxu0 %v2785
    %3848 = vmatpush1.bf16.msra.mxu0 %v2784
    %3849 = vmatprep.subr.bf16.mxu0 %v2777
    %3850 = vmatpush1.bf16.msra.mxu0 %v2776
    %3851 = vmatprep.subr.bf16.mxu0 %v2769
    %3852 = vmatpush1.bf16.msra.mxu0 %v2768
    %3853 = vmatprep.subr.bf16.mxu0 %v2761
    %3854 = vmatpush1.bf16.msra.mxu0 %v2760
    %3855 = vmatprep.subr.bf16.mxu0 %v2753
    %3856 = vmatpush1.bf16.msra.mxu0 %v2752
    %3857 = vmatprep.subr.bf16.mxu0 %v2745
    %3858 = vmatpush1.bf16.msra.mxu0 %v2744
    %3859 = vmatprep.subr.bf16.mxu0 %v2865
    %3860 = vmatpush2.bf16.msra.mxu0 %v2864
    %3861 = vmatprep.subr.bf16.mxu0 %v2857
    %3862 = vmatpush2.bf16.msra.mxu0 %v2856
    %3863 = vmatprep.subr.bf16.mxu0 %v2849
    %3864 = vmatpush2.bf16.msra.mxu0 %v2848
    %3865 = vmatprep.subr.bf16.mxu0 %v2841
    %3866 = vmatpush2.bf16.msra.mxu0 %v2840
    %3867 = vmatprep.subr.bf16.mxu0 %v2833
    %3868 = vmatpush2.bf16.msra.mxu0 %v2832
    %3869 = vmatprep.subr.bf16.mxu0 %v2825
    %3870 = vmatpush2.bf16.msra.mxu0 %v2824
    %3871 = vmatprep.subr.bf16.mxu0 %v2817
    %3872 = vmatpush2.bf16.msra.mxu0 %v2816
    %3873 = vmatprep.subr.bf16.mxu0 %v2809
    %3874 = vmatpush2.bf16.msra.mxu0 %v2808
    %3875 = vmatprep.mubr.bf16.mxu0 %v519
    %3876 = vmatmul.mubr.bf16.gmra.mxu0 %v518
    %v3877 = vpop.f32.mrf.mxu0
    %v3878 = vadd.f32 %v3837, %v3877
    %v3879 = vpop.f32.mrf.mxu0
    %v3880 = vadd.f32 %v3839, %v3879
    %v3881 = vpop.f32.mrf.mxu0
    %v3882 = vpop.f32.mrf.mxu0
    %3883 = vdwg.mxu0
    %3884 = vmatprep.subr.bf16.mxu0 %v2929
    %3885 = vmatpush1.bf16.msra.mxu0 %v2928
    %3886 = vmatprep.subr.bf16.mxu0 %v2921
    %3887 = vmatpush1.bf16.msra.mxu0 %v2920
    %3888 = vmatprep.subr.bf16.mxu0 %v2913
    %3889 = vmatpush1.bf16.msra.mxu0 %v2912
    %3890 = vmatprep.subr.bf16.mxu0 %v2905
    %3891 = vmatpush1.bf16.msra.mxu0 %v2904
    %3892 = vmatprep.subr.bf16.mxu0 %v2897
    %3893 = vmatpush1.bf16.msra.mxu0 %v2896
    %3894 = vmatprep.subr.bf16.mxu0 %v2889
    %3895 = vmatpush1.bf16.msra.mxu0 %v2888
    %3896 = vmatprep.subr.bf16.mxu0 %v2881
    %3897 = vmatpush1.bf16.msra.mxu0 %v2880
    %3898 = vmatprep.subr.bf16.mxu0 %v2873
    %3899 = vmatpush1.bf16.msra.mxu0 %v2872
    %3900 = vmatprep.subr.bf16.mxu0 %v2993
    %3901 = vmatpush2.bf16.msra.mxu0 %v2992
    %3902 = vmatprep.subr.bf16.mxu0 %v2985
    %3903 = vmatpush2.bf16.msra.mxu0 %v2984
    %3904 = vmatprep.subr.bf16.mxu0 %v2977
    %3905 = vmatpush2.bf16.msra.mxu0 %v2976
    %3906 = vmatprep.subr.bf16.mxu0 %v2969
    %3907 = vmatpush2.bf16.msra.mxu0 %v2968
    %3908 = vmatprep.subr.bf16.mxu0 %v2961
    %3909 = vmatpush2.bf16.msra.mxu0 %v2960
    %3910 = vmatprep.subr.bf16.mxu0 %v2953
    %3911 = vmatpush2.bf16.msra.mxu0 %v2952
    %3912 = vmatprep.subr.bf16.mxu0 %v2945
    %3913 = vmatpush2.bf16.msra.mxu0 %v2944
    %3914 = vmatprep.subr.bf16.mxu0 %v2937
    %3915 = vmatpush2.bf16.msra.mxu0 %v2936
    %3916 = vmatprep.mubr.bf16.mxu0 %v521
    %3917 = vmatmul.mubr.bf16.gmra.mxu0 %v520
    %v3918 = vpop.f32.mrf.mxu0
    %v3919 = vadd.f32 %v3878, %v3918
    %v3920 = vpop.f32.mrf.mxu0
    %v3921 = vadd.f32 %v3880, %v3920
    %v3922 = vpop.f32.mrf.mxu0
    %v3923 = vpop.f32.mrf.mxu0
    %3924 = vdwg.mxu0
    %3925 = vmatprep.subr.bf16.mxu0 %v3057
    %3926 = vmatpush1.bf16.msra.mxu0 %v3056
    %3927 = vmatprep.subr.bf16.mxu0 %v3049
    %3928 = vmatpush1.bf16.msra.mxu0 %v3048
    %3929 = vmatprep.subr.bf16.mxu0 %v3041
    %3930 = vmatpush1.bf16.msra.mxu0 %v3040
    %3931 = vmatprep.subr.bf16.mxu0 %v3033
    %3932 = vmatpush1.bf16.msra.mxu0 %v3032
    %3933 = vmatprep.subr.bf16.mxu0 %v3025
    %3934 = vmatpush1.bf16.msra.mxu0 %v3024
    %3935 = vmatprep.subr.bf16.mxu0 %v3017
    %3936 = vmatpush1.bf16.msra.mxu0 %v3016
    %3937 = vmatprep.subr.bf16.mxu0 %v3009
    %3938 = vmatpush1.bf16.msra.mxu0 %v3008
    %3939 = vmatprep.subr.bf16.mxu0 %v3001
    %3940 = vmatpush1.bf16.msra.mxu0 %v3000
    %3941 = vmatprep.subr.bf16.mxu0 %v3121
    %3942 = vmatpush2.bf16.msra.mxu0 %v3120
    %3943 = vmatprep.subr.bf16.mxu0 %v3113
    %3944 = vmatpush2.bf16.msra.mxu0 %v3112
    %3945 = vmatprep.subr.bf16.mxu0 %v3105
    %3946 = vmatpush2.bf16.msra.mxu0 %v3104
    %3947 = vmatprep.subr.bf16.mxu0 %v3097
    %3948 = vmatpush2.bf16.msra.mxu0 %v3096
    %3949 = vmatprep.subr.bf16.mxu0 %v3089
    %3950 = vmatpush2.bf16.msra.mxu0 %v3088
    %3951 = vmatprep.subr.bf16.mxu0 %v3081
    %3952 = vmatpush2.bf16.msra.mxu0 %v3080
    %3953 = vmatprep.subr.bf16.mxu0 %v3073
    %3954 = vmatpush2.bf16.msra.mxu0 %v3072
    %3955 = vmatprep.subr.bf16.mxu0 %v3065
    %3956 = vmatpush2.bf16.msra.mxu0 %v3064
    %3957 = vmatprep.mubr.bf16.mxu0 %v523
    %3958 = vmatmul.mubr.bf16.gmra.mxu0 %v522
    %v3959 = vpop.f32.mrf.mxu0
    %v3960 = vadd.f32 %v3919, %v3959
    %v3961 = vpop.f32.mrf.mxu0
    %v3962 = vadd.f32 %v3921, %v3961
    %v3963 = vpop.f32.mrf.mxu0
    %v3964 = vpop.f32.mrf.mxu0
    %3965 = vdwg.mxu0
    %3966 = vmatprep.subr.bf16.mxu0 %v2675
    %3967 = vmatpush1.bf16.msra.mxu0 %v2674
    %3968 = vmatprep.subr.bf16.mxu0 %v2667
    %3969 = vmatpush1.bf16.msra.mxu0 %v2666
    %3970 = vmatprep.subr.bf16.mxu0 %v2659
    %3971 = vmatpush1.bf16.msra.mxu0 %v2658
    %3972 = vmatprep.subr.bf16.mxu0 %v2651
    %3973 = vmatpush1.bf16.msra.mxu0 %v2650
    %3974 = vmatprep.subr.bf16.mxu0 %v2643
    %3975 = vmatpush1.bf16.msra.mxu0 %v2642
    %3976 = vmatprep.subr.bf16.mxu0 %v2635
    %3977 = vmatpush1.bf16.msra.mxu0 %v2634
    %3978 = vmatprep.subr.bf16.mxu0 %v2627
    %3979 = vmatpush1.bf16.msra.mxu0 %v2626
    %3980 = vmatprep.subr.bf16.mxu0 %v2619
    %3981 = vmatpush1.bf16.msra.mxu0 %v2618
    %3982 = vmatprep.subr.bf16.mxu0 %v2739
    %3983 = vmatpush2.bf16.msra.mxu0 %v2738
    %3984 = vmatprep.subr.bf16.mxu0 %v2731
    %3985 = vmatpush2.bf16.msra.mxu0 %v2730
    %3986 = vmatprep.subr.bf16.mxu0 %v2723
    %3987 = vmatpush2.bf16.msra.mxu0 %v2722
    %3988 = vmatprep.subr.bf16.mxu0 %v2715
    %3989 = vmatpush2.bf16.msra.mxu0 %v2714
    %3990 = vmatprep.subr.bf16.mxu0 %v2707
    %3991 = vmatpush2.bf16.msra.mxu0 %v2706
    %3992 = vmatprep.subr.bf16.mxu0 %v2699
    %3993 = vmatpush2.bf16.msra.mxu0 %v2698
    %3994 = vmatprep.subr.bf16.mxu0 %v2691
    %3995 = vmatpush2.bf16.msra.mxu0 %v2690
    %3996 = vmatprep.subr.bf16.mxu0 %v2683
    %3997 = vmatpush2.bf16.msra.mxu0 %v2682
    %3998 = vmatprep.mubr.bf16.mxu0 %v517
    %3999 = vmatmul.mubr.bf16.gmra.mxu0 %v516
    %v4000 = vpop.f32.mrf.mxu0
    %v4001 = vadd.f32 %v1057, %v4000
    %v4002 = vpop.f32.mrf.mxu0
    %v4003 = vadd.f32 %v1061, %v4002
    %v4004 = vpop.f32.mrf.mxu0
    %v4005 = vpop.f32.mrf.mxu0
    %4006 = vdwg.mxu0
    %4007 = vmatprep.subr.bf16.mxu0 %v2803
    %4008 = vmatpush1.bf16.msra.mxu0 %v2802
    %4009 = vmatprep.subr.bf16.mxu0 %v2795
    %4010 = vmatpush1.bf16.msra.mxu0 %v2794
    %4011 = vmatprep.subr.bf16.mxu0 %v2787
    %4012 = vmatpush1.bf16.msra.mxu0 %v2786
    %4013 = vmatprep.subr.bf16.mxu0 %v2779
    %4014 = vmatpush1.bf16.msra.mxu0 %v2778
    %4015 = vmatprep.subr.bf16.mxu0 %v2771
    %4016 = vmatpush1.bf16.msra.mxu0 %v2770
    %4017 = vmatprep.subr.bf16.mxu0 %v2763
    %4018 = vmatpush1.bf16.msra.mxu0 %v2762
    %4019 = vmatprep.subr.bf16.mxu0 %v2755
    %4020 = vmatpush1.bf16.msra.mxu0 %v2754
    %4021 = vmatprep.subr.bf16.mxu0 %v2747
    %4022 = vmatpush1.bf16.msra.mxu0 %v2746
    %4023 = vmatprep.subr.bf16.mxu0 %v2867
    %4024 = vmatpush2.bf16.msra.mxu0 %v2866
    %4025 = vmatprep.subr.bf16.mxu0 %v2859
    %4026 = vmatpush2.bf16.msra.mxu0 %v2858
    %4027 = vmatprep.subr.bf16.mxu0 %v2851
    %4028 = vmatpush2.bf16.msra.mxu0 %v2850
    %4029 = vmatprep.subr.bf16.mxu0 %v2843
    %4030 = vmatpush2.bf16.msra.mxu0 %v2842
    %4031 = vmatprep.subr.bf16.mxu0 %v2835
    %4032 = vmatpush2.bf16.msra.mxu0 %v2834
    %4033 = vmatprep.subr.bf16.mxu0 %v2827
    %4034 = vmatpush2.bf16.msra.mxu0 %v2826
    %4035 = vmatprep.subr.bf16.mxu0 %v2819
    %4036 = vmatpush2.bf16.msra.mxu0 %v2818
    %4037 = vmatprep.subr.bf16.mxu0 %v2811
    %4038 = vmatpush2.bf16.msra.mxu0 %v2810
    %4039 = vmatprep.mubr.bf16.mxu0 %v519
    %4040 = vmatmul.mubr.bf16.gmra.mxu0 %v518
    %v4041 = vpop.f32.mrf.mxu0
    %v4042 = vadd.f32 %v4001, %v4041
    %v4043 = vpop.f32.mrf.mxu0
    %v4044 = vadd.f32 %v4003, %v4043
    %v4045 = vpop.f32.mrf.mxu0
    %v4046 = vpop.f32.mrf.mxu0
    %4047 = vdwg.mxu0
    %4048 = vmatprep.subr.bf16.mxu0 %v2931
    %4049 = vmatpush1.bf16.msra.mxu0 %v2930
    %4050 = vmatprep.subr.bf16.mxu0 %v2923
    %4051 = vmatpush1.bf16.msra.mxu0 %v2922
    %4052 = vmatprep.subr.bf16.mxu0 %v2915
    %4053 = vmatpush1.bf16.msra.mxu0 %v2914
    %4054 = vmatprep.subr.bf16.mxu0 %v2907
    %4055 = vmatpush1.bf16.msra.mxu0 %v2906
    %4056 = vmatprep.subr.bf16.mxu0 %v2899
    %4057 = vmatpush1.bf16.msra.mxu0 %v2898
    %4058 = vmatprep.subr.bf16.mxu0 %v2891
    %4059 = vmatpush1.bf16.msra.mxu0 %v2890
    %4060 = vmatprep.subr.bf16.mxu0 %v2883
    %4061 = vmatpush1.bf16.msra.mxu0 %v2882
    %4062 = vmatprep.subr.bf16.mxu0 %v2875
    %4063 = vmatpush1.bf16.msra.mxu0 %v2874
    %4064 = vmatprep.subr.bf16.mxu0 %v2995
    %4065 = vmatpush2.bf16.msra.mxu0 %v2994
    %4066 = vmatprep.subr.bf16.mxu0 %v2987
    %4067 = vmatpush2.bf16.msra.mxu0 %v2986
    %4068 = vmatprep.subr.bf16.mxu0 %v2979
    %4069 = vmatpush2.bf16.msra.mxu0 %v2978
    %4070 = vmatprep.subr.bf16.mxu0 %v2971
    %4071 = vmatpush2.bf16.msra.mxu0 %v2970
    %4072 = vmatprep.subr.bf16.mxu0 %v2963
    %4073 = vmatpush2.bf16.msra.mxu0 %v2962
    %4074 = vmatprep.subr.bf16.mxu0 %v2955
    %4075 = vmatpush2.bf16.msra.mxu0 %v2954
    %4076 = vmatprep.subr.bf16.mxu0 %v2947
    %4077 = vmatpush2.bf16.msra.mxu0 %v2946
    %4078 = vmatprep.subr.bf16.mxu0 %v2939
    %4079 = vmatpush2.bf16.msra.mxu0 %v2938
    %4080 = vmatprep.mubr.bf16.mxu0 %v521
    %4081 = vmatmul.mubr.bf16.gmra.mxu0 %v520
    %v4082 = vpop.f32.mrf.mxu0
    %v4083 = vadd.f32 %v4042, %v4082
    %v4084 = vpop.f32.mrf.mxu0
    %v4085 = vadd.f32 %v4044, %v4084
    %v4086 = vpop.f32.mrf.mxu0
    %v4087 = vpop.f32.mrf.mxu0
    %4088 = vdwg.mxu0
    %4089 = vmatprep.subr.bf16.mxu0 %v3059
    %4090 = vmatpush1.bf16.msra.mxu0 %v3058
    %4091 = vmatprep.subr.bf16.mxu0 %v3051
    %4092 = vmatpush1.bf16.msra.mxu0 %v3050
    %4093 = vmatprep.subr.bf16.mxu0 %v3043
    %4094 = vmatpush1.bf16.msra.mxu0 %v3042
    %4095 = vmatprep.subr.bf16.mxu0 %v3035
    %4096 = vmatpush1.bf16.msra.mxu0 %v3034
    %4097 = vmatprep.subr.bf16.mxu0 %v3027
    %4098 = vmatpush1.bf16.msra.mxu0 %v3026
    %4099 = vmatprep.subr.bf16.mxu0 %v3019
    %4100 = vmatpush1.bf16.msra.mxu0 %v3018
    %4101 = vmatprep.subr.bf16.mxu0 %v3011
    %4102 = vmatpush1.bf16.msra.mxu0 %v3010
    %4103 = vmatprep.subr.bf16.mxu0 %v3003
    %4104 = vmatpush1.bf16.msra.mxu0 %v3002
    %4105 = vmatprep.subr.bf16.mxu0 %v3123
    %4106 = vmatpush2.bf16.msra.mxu0 %v3122
    %4107 = vmatprep.subr.bf16.mxu0 %v3115
    %4108 = vmatpush2.bf16.msra.mxu0 %v3114
    %4109 = vmatprep.subr.bf16.mxu0 %v3107
    %4110 = vmatpush2.bf16.msra.mxu0 %v3106
    %4111 = vmatprep.subr.bf16.mxu0 %v3099
    %4112 = vmatpush2.bf16.msra.mxu0 %v3098
    %4113 = vmatprep.subr.bf16.mxu0 %v3091
    %4114 = vmatpush2.bf16.msra.mxu0 %v3090
    %4115 = vmatprep.subr.bf16.mxu0 %v3083
    %4116 = vmatpush2.bf16.msra.mxu0 %v3082
    %4117 = vmatprep.subr.bf16.mxu0 %v3075
    %4118 = vmatpush2.bf16.msra.mxu0 %v3074
    %4119 = vmatprep.subr.bf16.mxu0 %v3067
    %4120 = vmatpush2.bf16.msra.mxu0 %v3066
    %4121 = vmatprep.mubr.bf16.mxu0 %v523
    %4122 = vmatmul.mubr.bf16.gmra.mxu0 %v522
    %v4123 = vpop.f32.mrf.mxu0
    %v4124 = vadd.f32 %v4083, %v4123
    %v4125 = vpop.f32.mrf.mxu0
    %v4126 = vadd.f32 %v4085, %v4125
    %v4127 = vpop.f32.mrf.mxu0
    %v4128 = vpop.f32.mrf.mxu0
    %4129 = vdwg.mxu0
    %4130 = vmatprep.subr.bf16.mxu0 %v2677
    %4131 = vmatpush1.bf16.msra.mxu0 %v2676
    %4132 = vmatprep.subr.bf16.mxu0 %v2669
    %4133 = vmatpush1.bf16.msra.mxu0 %v2668
    %4134 = vmatprep.subr.bf16.mxu0 %v2661
    %4135 = vmatpush1.bf16.msra.mxu0 %v2660
    %4136 = vmatprep.subr.bf16.mxu0 %v2653
    %4137 = vmatpush1.bf16.msra.mxu0 %v2652
    %4138 = vmatprep.subr.bf16.mxu0 %v2645
    %4139 = vmatpush1.bf16.msra.mxu0 %v2644
    %4140 = vmatprep.subr.bf16.mxu0 %v2637
    %4141 = vmatpush1.bf16.msra.mxu0 %v2636
    %4142 = vmatprep.subr.bf16.mxu0 %v2629
    %4143 = vmatpush1.bf16.msra.mxu0 %v2628
    %4144 = vmatprep.subr.bf16.mxu0 %v2621
    %4145 = vmatpush1.bf16.msra.mxu0 %v2620
    %4146 = vmatprep.subr.bf16.mxu0 %v2741
    %4147 = vmatpush2.bf16.msra.mxu0 %v2740
    %4148 = vmatprep.subr.bf16.mxu0 %v2733
    %4149 = vmatpush2.bf16.msra.mxu0 %v2732
    %4150 = vmatprep.subr.bf16.mxu0 %v2725
    %4151 = vmatpush2.bf16.msra.mxu0 %v2724
    %4152 = vmatprep.subr.bf16.mxu0 %v2717
    %4153 = vmatpush2.bf16.msra.mxu0 %v2716
    %4154 = vmatprep.subr.bf16.mxu0 %v2709
    %4155 = vmatpush2.bf16.msra.mxu0 %v2708
    %4156 = vmatprep.subr.bf16.mxu0 %v2701
    %4157 = vmatpush2.bf16.msra.mxu0 %v2700
    %4158 = vmatprep.subr.bf16.mxu0 %v2693
    %4159 = vmatpush2.bf16.msra.mxu0 %v2692
    %4160 = vmatprep.subr.bf16.mxu0 %v2685
    %4161 = vmatpush2.bf16.msra.mxu0 %v2684
    %4162 = vmatprep.mubr.bf16.mxu0 %v517
    %4163 = vmatmul.mubr.bf16.gmra.mxu0 %v516
    %v4164 = vpop.f32.mrf.mxu0
    %v4165 = vadd.f32 %v1065, %v4164
    %v4166 = vpop.f32.mrf.mxu0
    %v4167 = vadd.f32 %v1069, %v4166
    %v4168 = vpop.f32.mrf.mxu0
    %v4169 = vpop.f32.mrf.mxu0
    %4170 = vdwg.mxu0
    %4171 = vmatprep.subr.bf16.mxu0 %v2805
    %4172 = vmatpush1.bf16.msra.mxu0 %v2804
    %4173 = vmatprep.subr.bf16.mxu0 %v2797
    %4174 = vmatpush1.bf16.msra.mxu0 %v2796
    %4175 = vmatprep.subr.bf16.mxu0 %v2789
    %4176 = vmatpush1.bf16.msra.mxu0 %v2788
    %4177 = vmatprep.subr.bf16.mxu0 %v2781
    %4178 = vmatpush1.bf16.msra.mxu0 %v2780
    %4179 = vmatprep.subr.bf16.mxu0 %v2773
    %4180 = vmatpush1.bf16.msra.mxu0 %v2772
    %4181 = vmatprep.subr.bf16.mxu0 %v2765
    %4182 = vmatpush1.bf16.msra.mxu0 %v2764
    %4183 = vmatprep.subr.bf16.mxu0 %v2757
    %4184 = vmatpush1.bf16.msra.mxu0 %v2756
    %4185 = vmatprep.subr.bf16.mxu0 %v2749
    %4186 = vmatpush1.bf16.msra.mxu0 %v2748
    %4187 = vmatprep.subr.bf16.mxu0 %v2869
    %4188 = vmatpush2.bf16.msra.mxu0 %v2868
    %4189 = vmatprep.subr.bf16.mxu0 %v2861
    %4190 = vmatpush2.bf16.msra.mxu0 %v2860
    %4191 = vmatprep.subr.bf16.mxu0 %v2853
    %4192 = vmatpush2.bf16.msra.mxu0 %v2852
    %4193 = vmatprep.subr.bf16.mxu0 %v2845
    %4194 = vmatpush2.bf16.msra.mxu0 %v2844
    %4195 = vmatprep.subr.bf16.mxu0 %v2837
    %4196 = vmatpush2.bf16.msra.mxu0 %v2836
    %4197 = vmatprep.subr.bf16.mxu0 %v2829
    %4198 = vmatpush2.bf16.msra.mxu0 %v2828
    %4199 = vmatprep.subr.bf16.mxu0 %v2821
    %4200 = vmatpush2.bf16.msra.mxu0 %v2820
    %4201 = vmatprep.subr.bf16.mxu0 %v2813
    %4202 = vmatpush2.bf16.msra.mxu0 %v2812
    %4203 = vmatprep.mubr.bf16.mxu0 %v519
    %4204 = vmatmul.mubr.bf16.gmra.mxu0 %v518
    %v4205 = vpop.f32.mrf.mxu0
    %v4206 = vadd.f32 %v4165, %v4205
    %v4207 = vpop.f32.mrf.mxu0
    %v4208 = vadd.f32 %v4167, %v4207
    %v4209 = vpop.f32.mrf.mxu0
    %v4210 = vpop.f32.mrf.mxu0
    %4211 = vdwg.mxu0
    %4212 = vmatprep.subr.bf16.mxu0 %v2933
    %4213 = vmatpush1.bf16.msra.mxu0 %v2932
    %4214 = vmatprep.subr.bf16.mxu0 %v2925
    %4215 = vmatpush1.bf16.msra.mxu0 %v2924
    %4216 = vmatprep.subr.bf16.mxu0 %v2917
    %4217 = vmatpush1.bf16.msra.mxu0 %v2916
    %4218 = vmatprep.subr.bf16.mxu0 %v2909
    %4219 = vmatpush1.bf16.msra.mxu0 %v2908
    %4220 = vmatprep.subr.bf16.mxu0 %v2901
    %4221 = vmatpush1.bf16.msra.mxu0 %v2900
    %4222 = vmatprep.subr.bf16.mxu0 %v2893
    %4223 = vmatpush1.bf16.msra.mxu0 %v2892
    %4224 = vmatprep.subr.bf16.mxu0 %v2885
    %4225 = vmatpush1.bf16.msra.mxu0 %v2884
    %4226 = vmatprep.subr.bf16.mxu0 %v2877
    %4227 = vmatpush1.bf16.msra.mxu0 %v2876
    %4228 = vmatprep.subr.bf16.mxu0 %v2997
    %4229 = vmatpush2.bf16.msra.mxu0 %v2996
    %4230 = vmatprep.subr.bf16.mxu0 %v2989
    %4231 = vmatpush2.bf16.msra.mxu0 %v2988
    %4232 = vmatprep.subr.bf16.mxu0 %v2981
    %4233 = vmatpush2.bf16.msra.mxu0 %v2980
    %4234 = vmatprep.subr.bf16.mxu0 %v2973
    %4235 = vmatpush2.bf16.msra.mxu0 %v2972
    %4236 = vmatprep.subr.bf16.mxu0 %v2965
    %4237 = vmatpush2.bf16.msra.mxu0 %v2964
    %4238 = vmatprep.subr.bf16.mxu0 %v2957
    %4239 = vmatpush2.bf16.msra.mxu0 %v2956
    %4240 = vmatprep.subr.bf16.mxu0 %v2949
    %4241 = vmatpush2.bf16.msra.mxu0 %v2948
    %4242 = vmatprep.subr.bf16.mxu0 %v2941
    %4243 = vmatpush2.bf16.msra.mxu0 %v2940
    %4244 = vmatprep.mubr.bf16.mxu0 %v521
    %4245 = vmatmul.mubr.bf16.gmra.mxu0 %v520
    %v4246 = vpop.f32.mrf.mxu0
    %v4247 = vadd.f32 %v4206, %v4246
    %v4248 = vpop.f32.mrf.mxu0
    %v4249 = vadd.f32 %v4208, %v4248
    %v4250 = vpop.f32.mrf.mxu0
    %v4251 = vpop.f32.mrf.mxu0
    %4252 = vdwg.mxu0
    %4253 = vmatprep.subr.bf16.mxu0 %v3061
    %4254 = vmatpush1.bf16.msra.mxu0 %v3060
    %4255 = vmatprep.subr.bf16.mxu0 %v3053
    %4256 = vmatpush1.bf16.msra.mxu0 %v3052
    %4257 = vmatprep.subr.bf16.mxu0 %v3045
    %4258 = vmatpush1.bf16.msra.mxu0 %v3044
    %4259 = vmatprep.subr.bf16.mxu0 %v3037
    %4260 = vmatpush1.bf16.msra.mxu0 %v3036
    %4261 = vmatprep.subr.bf16.mxu0 %v3029
    %4262 = vmatpush1.bf16.msra.mxu0 %v3028
    %4263 = vmatprep.subr.bf16.mxu0 %v3021
    %4264 = vmatpush1.bf16.msra.mxu0 %v3020
    %4265 = vmatprep.subr.bf16.mxu0 %v3013
    %4266 = vmatpush1.bf16.msra.mxu0 %v3012
    %4267 = vmatprep.subr.bf16.mxu0 %v3005
    %4268 = vmatpush1.bf16.msra.mxu0 %v3004
    %4269 = vmatprep.subr.bf16.mxu0 %v3125
    %4270 = vmatpush2.bf16.msra.mxu0 %v3124
    %4271 = vmatprep.subr.bf16.mxu0 %v3117
    %4272 = vmatpush2.bf16.msra.mxu0 %v3116
    %4273 = vmatprep.subr.bf16.mxu0 %v3109
    %4274 = vmatpush2.bf16.msra.mxu0 %v3108
    %4275 = vmatprep.subr.bf16.mxu0 %v3101
    %4276 = vmatpush2.bf16.msra.mxu0 %v3100
    %4277 = vmatprep.subr.bf16.mxu0 %v3093
    %4278 = vmatpush2.bf16.msra.mxu0 %v3092
    %4279 = vmatprep.subr.bf16.mxu0 %v3085
    %4280 = vmatpush2.bf16.msra.mxu0 %v3084
    %4281 = vmatprep.subr.bf16.mxu0 %v3077
    %4282 = vmatpush2.bf16.msra.mxu0 %v3076
    %4283 = vmatprep.subr.bf16.mxu0 %v3069
    %4284 = vmatpush2.bf16.msra.mxu0 %v3068
    %4285 = vmatprep.mubr.bf16.mxu0 %v523
    %4286 = vmatmul.mubr.bf16.gmra.mxu0 %v522
    %v4287 = vpop.f32.mrf.mxu0
    %v4288 = vadd.f32 %v4247, %v4287
    %v4289 = vpop.f32.mrf.mxu0
    %v4290 = vadd.f32 %v4249, %v4289
    %v4291 = vpop.f32.mrf.mxu0
    %v4292 = vpop.f32.mrf.mxu0
    %4293 = vdwg.mxu0
    %v4294 = vrot.slane %v3796, 4
    %v4295 = vadd.f32 %v3796, %v4294
    %v4296 = vrot.slane %v4295, 2
    %v4297 = vadd.f32 %v4295, %v4296
    %v4298 = vrot.slane %v4297, 1
    %v4299 = vadd.f32 %v4297, %v4298
    %v4300 = vrot.slane %v3798, 4
    %v4301 = vadd.f32 %v3798, %v4300
    %v4302 = vrot.slane %v4301, 2
    %v4303 = vadd.f32 %v4301, %v4302
    %v4304 = vrot.slane %v4303, 1
    %v4305 = vadd.f32 %v4303, %v4304
    %v4306 = vrot.slane %v3960, 4
    %v4307 = vadd.f32 %v3960, %v4306
    %v4308 = vrot.slane %v4307, 2
    %v4309 = vadd.f32 %v4307, %v4308
    %v4310 = vrot.slane %v4309, 1
    %v4311 = vadd.f32 %v4309, %v4310
    %v4312 = vrot.slane %v3962, 4
    %v4313 = vadd.f32 %v3962, %v4312
    %v4314 = vrot.slane %v4313, 2
    %v4315 = vadd.f32 %v4313, %v4314
    %v4316 = vrot.slane %v4315, 1
    %v4317 = vadd.f32 %v4315, %v4316
    %v4318 = vrot.slane %v4124, 4
    %v4319 = vadd.f32 %v4124, %v4318
    %v4320 = vrot.slane %v4319, 2
    %v4321 = vadd.f32 %v4319, %v4320
    %v4322 = vrot.slane %v4321, 1
    %v4323 = vadd.f32 %v4321, %v4322
    %v4324 = vrot.slane %v4126, 4
    %v4325 = vadd.f32 %v4126, %v4324
    %v4326 = vrot.slane %v4325, 2
    %v4327 = vadd.f32 %v4325, %v4326
    %v4328 = vrot.slane %v4327, 1
    %v4329 = vadd.f32 %v4327, %v4328
    %v4330 = vrot.slane %v4288, 4
    %v4331 = vadd.f32 %v4288, %v4330
    %v4332 = vrot.slane %v4331, 2
    %v4333 = vadd.f32 %v4331, %v4332
    %v4334 = vrot.slane %v4333, 1
    %v4335 = vadd.f32 %v4333, %v4334
    %v4336 = vrot.slane %v4290, 4
    %v4337 = vadd.f32 %v4290, %v4336
    %v4338 = vrot.slane %v4337, 2
    %v4339 = vadd.f32 %v4337, %v4338
    %v4340 = vrot.slane %v4339, 1
    %v4341 = vadd.f32 %v4339, %v4340
    %v4342 = vrcp.pop 8.0
    %v4343 = vmul.f32 %v4299, %v4342
    %v4344 = vmul.f32 %v4305, %v4342
    %v4345 = vmul.f32 %v4311, %v4342
    %v4346 = vmul.f32 %v4317, %v4342
    %v4347 = vmul.f32 %v4323, %v4342
    %v4348 = vmul.f32 %v4329, %v4342
    %v4349 = vmul.f32 %v4335, %v4342
    %v4350 = vmul.f32 %v4341, %v4342
    %v4351 = vmul.f32 %v3796, %v3796
    %v4352 = vmul.f32 %v3798, %v3798
    %v4353 = vmul.f32 %v3960, %v3960
    %v4354 = vmul.f32 %v3962, %v3962
    %v4355 = vmul.f32 %v4124, %v4124
    %v4356 = vmul.f32 %v4126, %v4126
    %v4357 = vmul.f32 %v4288, %v4288
    %v4358 = vmul.f32 %v4290, %v4290
    %v4359 = vrot.slane %v4351, 4
    %v4360 = vadd.f32 %v4351, %v4359
    %v4361 = vrot.slane %v4360, 2
    %v4362 = vadd.f32 %v4360, %v4361
    %v4363 = vrot.slane %v4362, 1
    %v4364 = vadd.f32 %v4362, %v4363
    %v4365 = vrot.slane %v4352, 4
    %v4366 = vadd.f32 %v4352, %v4365
    %v4367 = vrot.slane %v4366, 2
    %v4368 = vadd.f32 %v4366, %v4367
    %v4369 = vrot.slane %v4368, 1
    %v4370 = vadd.f32 %v4368, %v4369
    %v4371 = vrot.slane %v4353, 4
    %v4372 = vadd.f32 %v4353, %v4371
    %v4373 = vrot.slane %v4372, 2
    %v4374 = vadd.f32 %v4372, %v4373
    %v4375 = vrot.slane %v4374, 1
    %v4376 = vadd.f32 %v4374, %v4375
    %v4377 = vrot.slane %v4354, 4
    %v4378 = vadd.f32 %v4354, %v4377
    %v4379 = vrot.slane %v4378, 2
    %v4380 = vadd.f32 %v4378, %v4379
    %v4381 = vrot.slane %v4380, 1
    %v4382 = vadd.f32 %v4380, %v4381
    %v4383 = vrot.slane %v4355, 4
    %v4384 = vadd.f32 %v4355, %v4383
    %v4385 = vrot.slane %v4384, 2
    %v4386 = vadd.f32 %v4384, %v4385
    %v4387 = vrot.slane %v4386, 1
    %v4388 = vadd.f32 %v4386, %v4387
    %v4389 = vrot.slane %v4356, 4
    %v4390 = vadd.f32 %v4356, %v4389
    %v4391 = vrot.slane %v4390, 2
    %v4392 = vadd.f32 %v4390, %v4391
    %v4393 = vrot.slane %v4392, 1
    %v4394 = vadd.f32 %v4392, %v4393
    %v4395 = vrot.slane %v4357, 4
    %v4396 = vadd.f32 %v4357, %v4395
    %v4397 = vrot.slane %v4396, 2
    %v4398 = vadd.f32 %v4396, %v4397
    %v4399 = vrot.slane %v4398, 1
    %v4400 = vadd.f32 %v4398, %v4399
    %v4401 = vrot.slane %v4358, 4
    %v4402 = vadd.f32 %v4358, %v4401
    %v4403 = vrot.slane %v4402, 2
    %v4404 = vadd.f32 %v4402, %v4403
    %v4405 = vrot.slane %v4404, 1
    %v4406 = vadd.f32 %v4404, %v4405
    %v4407 = vmul.f32 %v4364, %v4342
    %v4408 = vmul.f32 %v4370, %v4342
    %v4409 = vmul.f32 %v4376, %v4342
    %v4410 = vmul.f32 %v4382, %v4342
    %v4411 = vmul.f32 %v4388, %v4342
    %v4412 = vmul.f32 %v4394, %v4342
    %v4413 = vmul.f32 %v4400, %v4342
    %v4414 = vmul.f32 %v4406, %v4342
    %v4415 = vmul.f32 %v4343, %v4343
    %v4416 = vmul.f32 %v4344, %v4344
    %v4417 = vmul.f32 %v4345, %v4345
    %v4418 = vmul.f32 %v4346, %v4346
    %v4419 = vmul.f32 %v4347, %v4347
    %v4420 = vmul.f32 %v4348, %v4348
    %v4421 = vmul.f32 %v4349, %v4349
    %v4422 = vmul.f32 %v4350, %v4350
    %v4423 = vsub.f32 %v4407, %v4415
    %v4424 = vsub.f32 %v4408, %v4416
    %v4425 = vsub.f32 %v4409, %v4417
    %v4426 = vsub.f32 %v4410, %v4418
    %v4427 = vsub.f32 %v4411, %v4419
    %v4428 = vsub.f32 %v4412, %v4420
    %v4429 = vsub.f32 %v4413, %v4421
    %v4430 = vsub.f32 %v4414, %v4422
    %v4431 = vmax.f32 %v4423, 0.0
    %v4432 = vmax.f32 %v4424, 0.0
    %v4433 = vmax.f32 %v4425, 0.0
    %v4434 = vmax.f32 %v4426, 0.0
    %v4435 = vmax.f32 %v4427, 0.0
    %v4436 = vmax.f32 %v4428, 0.0
    %v4437 = vmax.f32 %v4429, 0.0
    %v4438 = vmax.f32 %v4430, 0.0
    %v4439 = vsub.f32 %v3796, %v4343
    %v4440 = vsub.f32 %v3798, %v4344
    %v4441 = vsub.f32 %v3960, %v4345
    %v4442 = vsub.f32 %v3962, %v4346
    %v4443 = vsub.f32 %v4124, %v4347
    %v4444 = vsub.f32 %v4126, %v4348
    %v4445 = vsub.f32 %v4288, %v4349
    %v4446 = vsub.f32 %v4290, %v4350
    %v4447 = vadd.f32 %v4431, 1e-05
    %v4448 = vadd.f32 %v4432, 1e-05
    %v4449 = vadd.f32 %v4433, 1e-05
    %v4450 = vadd.f32 %v4434, 1e-05
    %v4451 = vadd.f32 %v4435, 1e-05
    %v4452 = vadd.f32 %v4436, 1e-05
    %v4453 = vadd.f32 %v4437, 1e-05
    %v4454 = vadd.f32 %v4438, 1e-05
    %v4455 = vrsqrt.pop %v4447
    %v4456 = vrsqrt.pop %v4448
    %v4457 = vrsqrt.pop %v4449
    %v4458 = vrsqrt.pop %v4450
    %v4459 = vrsqrt.pop %v4451
    %v4460 = vrsqrt.pop %v4452
    %v4461 = vrsqrt.pop %v4453
    %v4462 = vrsqrt.pop %v4454
    %v4463 = vmul.f32 %v4439, %v4455
    %v4464 = vmul.f32 %v4440, %v4456
    %v4465 = vmul.f32 %v4441, %v4457
    %v4466 = vmul.f32 %v4442, %v4458
    %v4467 = vmul.f32 %v4443, %v4459
    %v4468 = vmul.f32 %v4444, %v4460
    %v4469 = vmul.f32 %v4445, %v4461
    %v4470 = vmul.f32 %v4446, %v4462
    %v4471 = vmax.f32 %v4463, 0.0
    %v4472 = vmax.f32 %v4464, 0.0
    %v4473 = vmax.f32 %v4465, 0.0
    %v4474 = vmax.f32 %v4466, 0.0
    %v4475 = vmax.f32 %v4467, 0.0
    %v4476 = vmax.f32 %v4468, 0.0
    %v4477 = vmax.f32 %v4469, 0.0
    %v4478 = vmax.f32 %v4470, 0.0
    %v4479 = vpack.c.bf16 %v4471, %v4471
    %v4480 = vpack.c.bf16 %v4472, %v4472
    %v4481 = vpack.c.bf16 %v4473, %v4473
    %v4482 = vpack.c.bf16 %v4474, %v4474
    %v4483 = vpack.c.bf16 %v4475, %v4475
    %v4484 = vpack.c.bf16 %v4476, %v4476
    %v4485 = vpack.c.bf16 %v4477, %v4477
    %v4486 = vpack.c.bf16 %v4478, %v4478
    %v4487 = vld [vmem:[#allocation10] sm:$0xff]
    %v4488 = vld [vmem:[#allocation10 + $0x8] sm:$0xff]
    %v4489 = vld [vmem:[#allocation10 + $0x10] sm:$0xff]
    %v4490 = vld [vmem:[#allocation10 + $0x18] sm:$0xf]
    %v4491 = vld [vmem:[#allocation10 + $0x1c] sm:$0xff]
    %v4492 = vld [vmem:[#allocation10 + $0x24] sm:$0xff]
    %v4493 = vld [vmem:[#allocation10 + $0x2c] sm:$0xff]
    %v4494 = vld [vmem:[#allocation10 + $0x34] sm:$0xf]
    %v4495 = vld [vmem:[#allocation10 + $0x38] sm:$0xff]
    %v4496 = vld [vmem:[#allocation10 + $0x40] sm:$0xff]
    %v4497 = vld [vmem:[#allocation10 + $0x48] sm:$0xff]
    %v4498 = vld [vmem:[#allocation10 + $0x50] sm:$0xf]
    %v4499 = vld [vmem:[#allocation10 + $0x54] sm:$0xff]
    %v4500 = vld [vmem:[#allocation10 + $0x5c] sm:$0xff]
    %v4501 = vld [vmem:[#allocation10 + $0x64] sm:$0xff]
    %v4502 = vld [vmem:[#allocation10 + $0x6c] sm:$0xf]
    %v4503 = vld [vmem:[#allocation10 + $0x70] sm:$0xff]
    %v4504 = vld [vmem:[#allocation10 + $0x78] sm:$0xff]
    %v4505 = vld [vmem:[#allocation10 + $0x80] sm:$0xff]
    %v4506 = vld [vmem:[#allocation10 + $0x88] sm:$0xf]
    %v4507 = vld [vmem:[#allocation10 + $0x8c] sm:$0xff]
    %v4508 = vld [vmem:[#allocation10 + $0x94] sm:$0xff]
    %v4509 = vld [vmem:[#allocation10 + $0x9c] sm:$0xff]
    %v4510 = vld [vmem:[#allocation10 + $0xa4] sm:$0xf]
    %v4511 = vld [vmem:[#allocation10 + $0xa8] sm:$0xff]
    %v4512 = vld [vmem:[#allocation10 + $0xb0] sm:$0xff]
    %v4513 = vld [vmem:[#allocation10 + $0xb8] sm:$0xff]
    %v4514 = vld [vmem:[#allocation10 + $0xc0] sm:$0xf]
    %v4515 = vld [vmem:[#allocation10 + $0xc4] sm:$0xff]
    %v4516 = vld [vmem:[#allocation10 + $0xcc] sm:$0xff]
    %v4517 = vld [vmem:[#allocation10 + $0xd4] sm:$0xff]
    %v4518 = vld [vmem:[#allocation10 + $0xdc] sm:$0xf]
    %v4519 = vld [vmem:[#allocation10 + $0xe0] sm:$0xff]
    %v4520 = vld [vmem:[#allocation10 + $0xe8] sm:$0xff]
    %v4521 = vld [vmem:[#allocation10 + $0xf0] sm:$0xff]
    %v4522 = vld [vmem:[#allocation10 + $0xf8] sm:$0xf]
    %v4523 = vld [vmem:[#allocation10 + $0xfc] sm:$0xff]
    %v4524 = vld [vmem:[#allocation10 + $0x104] sm:$0xff]
    %v4525 = vld [vmem:[#allocation10 + $0x10c] sm:$0xff]
    %v4526 = vld [vmem:[#allocation10 + $0x114] sm:$0xf]
    %v4527 = vld [vmem:[#allocation10 + $0x118] sm:$0xff]
    %v4528 = vld [vmem:[#allocation10 + $0x120] sm:$0xff]
    %v4529 = vld [vmem:[#allocation10 + $0x128] sm:$0xff]
    %v4530 = vld [vmem:[#allocation10 + $0x130] sm:$0xf]
    %v4531 = vld [vmem:[#allocation10 + $0x134] sm:$0xff]
    %v4532 = vld [vmem:[#allocation10 + $0x13c] sm:$0xff]
    %v4533 = vld [vmem:[#allocation10 + $0x144] sm:$0xff]
    %v4534 = vld [vmem:[#allocation10 + $0x14c] sm:$0xf]
    %v4535 = vld [vmem:[#allocation10 + $0x150] sm:$0xff]
    %v4536 = vld [vmem:[#allocation10 + $0x158] sm:$0xff]
    %v4537 = vld [vmem:[#allocation10 + $0x160] sm:$0xff]
    %v4538 = vld [vmem:[#allocation10 + $0x168] sm:$0xf]
    %v4539 = vld [vmem:[#allocation10 + $0x16c] sm:$0xff]
    %v4540 = vld [vmem:[#allocation10 + $0x174] sm:$0xff]
    %v4541 = vld [vmem:[#allocation10 + $0x17c] sm:$0xff]
    %v4542 = vld [vmem:[#allocation10 + $0x184] sm:$0xf]
    %v4543 = vld [vmem:[#allocation10 + $0x188] sm:$0xff]
    %v4544 = vld [vmem:[#allocation10 + $0x190] sm:$0xff]
    %v4545 = vld [vmem:[#allocation10 + $0x198] sm:$0xff]
    %v4546 = vld [vmem:[#allocation10 + $0x1a0] sm:$0xf]
    %v4547 = vld [vmem:[#allocation10 + $0x1a4] sm:$0xff]
    %v4548 = vld [vmem:[#allocation10 + $0x1ac] sm:$0xff]
    %v4549 = vld [vmem:[#allocation10 + $0x1b4] sm:$0xff]
    %v4550 = vld [vmem:[#allocation10 + $0x1bc] sm:$0xf]
    %v4551 = vld [vmem:[#allocation10 + $0x1c0] sm:$0xff]
    %v4552 = vld [vmem:[#allocation10 + $0x1c8] sm:$0xff]
    %v4553 = vld [vmem:[#allocation10 + $0x1d0] sm:$0xff]
    %v4554 = vld [vmem:[#allocation10 + $0x1d8] sm:$0xf]
    %v4555 = vld [vmem:[#allocation10 + $0x1dc] sm:$0xff]
    %v4556 = vld [vmem:[#allocation10 + $0x1e4] sm:$0xff]
    %v4557 = vld [vmem:[#allocation10 + $0x1ec] sm:$0xff]
    %v4558 = vld [vmem:[#allocation10 + $0x1f4] sm:$0xf]
    %v4559 = vld [vmem:[#allocation10 + $0x1f8] sm:$0xff]
    %v4560 = vld [vmem:[#allocation10 + $0x200] sm:$0xff]
    %v4561 = vld [vmem:[#allocation10 + $0x208] sm:$0xff]
    %v4562 = vld [vmem:[#allocation10 + $0x210] sm:$0xf]
    %v4563 = vld [vmem:[#allocation10 + $0x214] sm:$0xff]
    %v4564 = vld [vmem:[#allocation10 + $0x21c] sm:$0xff]
    %v4565 = vld [vmem:[#allocation10 + $0x224] sm:$0xff]
    %v4566 = vld [vmem:[#allocation10 + $0x22c] sm:$0xf]
    %v4567 = vld [vmem:[#allocation10 + $0x230] sm:$0xff]
    %v4568 = vld [vmem:[#allocation10 + $0x238] sm:$0xff]
    %v4569 = vld [vmem:[#allocation10 + $0x240] sm:$0xff]
    %v4570 = vld [vmem:[#allocation10 + $0x248] sm:$0xf]
    %v4571 = vld [vmem:[#allocation10 + $0x24c] sm:$0xff]
    %v4572 = vld [vmem:[#allocation10 + $0x254] sm:$0xff]
    %v4573 = vld [vmem:[#allocation10 + $0x25c] sm:$0xff]
    %v4574 = vld [vmem:[#allocation10 + $0x264] sm:$0xf]
    %v4575 = vld [vmem:[#allocation10 + $0x268] sm:$0xff]
    %v4576 = vld [vmem:[#allocation10 + $0x270] sm:$0xff]
    %v4577 = vld [vmem:[#allocation10 + $0x278] sm:$0xff]
    %v4578 = vld [vmem:[#allocation10 + $0x280] sm:$0xf]
    %v4579 = vld [vmem:[#allocation10 + $0x284] sm:$0xff]
    %v4580 = vld [vmem:[#allocation10 + $0x28c] sm:$0xff]
    %v4581 = vld [vmem:[#allocation10 + $0x294] sm:$0xff]
    %v4582 = vld [vmem:[#allocation10 + $0x29c] sm:$0xf]
    %v4583 = vld [vmem:[#allocation10 + $0x2a0] sm:$0xff]
    %v4584 = vld [vmem:[#allocation10 + $0x2a8] sm:$0xff]
    %v4585 = vld [vmem:[#allocation10 + $0x2b0] sm:$0xff]
    %v4586 = vld [vmem:[#allocation10 + $0x2b8] sm:$0xf]
    %v4587 = vld [vmem:[#allocation10 + $0x2bc] sm:$0xff]
    %v4588 = vld [vmem:[#allocation10 + $0x2c4] sm:$0xff]
    %v4589 = vld [vmem:[#allocation10 + $0x2cc] sm:$0xff]
    %v4590 = vld [vmem:[#allocation10 + $0x2d4] sm:$0xf]
    %v4591 = vld [vmem:[#allocation10 + $0x2d8] sm:$0xff]
    %v4592 = vld [vmem:[#allocation10 + $0x2e0] sm:$0xff]
    %v4593 = vld [vmem:[#allocation10 + $0x2e8] sm:$0xff]
    %v4594 = vld [vmem:[#allocation10 + $0x2f0] sm:$0xf]
    %v4595 = vld [vmem:[#allocation10 + $0x2f4] sm:$0xff]
    %v4596 = vld [vmem:[#allocation10 + $0x2fc] sm:$0xff]
    %v4597 = vld [vmem:[#allocation10 + $0x304] sm:$0xff]
    %v4598 = vld [vmem:[#allocation10 + $0x30c] sm:$0xf]
    %v4599 = vld [vmem:[#allocation10 + $0x310] sm:$0xff]
    %v4600 = vld [vmem:[#allocation10 + $0x318] sm:$0xff]
    %v4601 = vld [vmem:[#allocation10 + $0x320] sm:$0xff]
    %v4602 = vld [vmem:[#allocation10 + $0x328] sm:$0xf]
    %v4603 = vld [vmem:[#allocation10 + $0x32c] sm:$0xff]
    %v4604 = vld [vmem:[#allocation10 + $0x334] sm:$0xff]
    %v4605 = vld [vmem:[#allocation10 + $0x33c] sm:$0xff]
    %v4606 = vld [vmem:[#allocation10 + $0x344] sm:$0xf]
    %v4607 = vld [vmem:[#allocation10 + $0x348] sm:$0xff]
    %v4608 = vld [vmem:[#allocation10 + $0x350] sm:$0xff]
    %v4609 = vld [vmem:[#allocation10 + $0x358] sm:$0xff]
    %v4610 = vld [vmem:[#allocation10 + $0x360] sm:$0xf]
    %v4611 = vld [vmem:[#allocation10 + $0x364] sm:$0xff]
    %v4612 = vld [vmem:[#allocation10 + $0x36c] sm:$0xff]
    %v4613 = vld [vmem:[#allocation10 + $0x374] sm:$0xff]
    %v4614 = vld [vmem:[#allocation10 + $0x37c] sm:$0xf]
    %v4615 = vld [vmem:[#allocation10 + $0x380] sm:$0xff]
    %v4616 = vld [vmem:[#allocation10 + $0x388] sm:$0xff]
    %v4617 = vld [vmem:[#allocation10 + $0x390] sm:$0xff]
    %v4618 = vld [vmem:[#allocation10 + $0x398] sm:$0xf]
    %v4619 = vld [vmem:[#allocation10 + $0x39c] sm:$0xff]
    %v4620 = vld [vmem:[#allocation10 + $0x3a4] sm:$0xff]
    %v4621 = vld [vmem:[#allocation10 + $0x3ac] sm:$0xff]
    %v4622 = vld [vmem:[#allocation10 + $0x3b4] sm:$0xf]
    %v4623 = vld [vmem:[#allocation10 + $0x3b8] sm:$0xff]
    %v4624 = vld [vmem:[#allocation10 + $0x3c0] sm:$0xff]
    %v4625 = vld [vmem:[#allocation10 + $0x3c8] sm:$0xff]
    %v4626 = vld [vmem:[#allocation10 + $0x3d0] sm:$0xf]
    %v4627 = vld [vmem:[#allocation10 + $0x3d4] sm:$0xff]
    %v4628 = vld [vmem:[#allocation10 + $0x3dc] sm:$0xff]
    %v4629 = vld [vmem:[#allocation10 + $0x3e4] sm:$0xff]
    %v4630 = vld [vmem:[#allocation10 + $0x3ec] sm:$0xf]
    %v4631 = vld [vmem:[#allocation10 + $0x3f0] sm:$0xff]
    %v4632 = vld [vmem:[#allocation10 + $0x3f8] sm:$0xff]
    %v4633 = vld [vmem:[#allocation10 + $0x400] sm:$0xff]
    %v4634 = vld [vmem:[#allocation10 + $0x408] sm:$0xf]
    %v4635 = vld [vmem:[#allocation10 + $0x40c] sm:$0xff]
    %v4636 = vld [vmem:[#allocation10 + $0x414] sm:$0xff]
    %v4637 = vld [vmem:[#allocation10 + $0x41c] sm:$0xff]
    %v4638 = vld [vmem:[#allocation10 + $0x424] sm:$0xf]
    %v4639 = vld [vmem:[#allocation10 + $0x428] sm:$0xff]
    %v4640 = vld [vmem:[#allocation10 + $0x430] sm:$0xff]
    %v4641 = vld [vmem:[#allocation10 + $0x438] sm:$0xff]
    %v4642 = vld [vmem:[#allocation10 + $0x440] sm:$0xf]
    %v4643 = vld [vmem:[#allocation10 + $0x444] sm:$0xff]
    %v4644 = vld [vmem:[#allocation10 + $0x44c] sm:$0xff]
    %v4645 = vld [vmem:[#allocation10 + $0x454] sm:$0xff]
    %v4646 = vld [vmem:[#allocation10 + $0x45c] sm:$0xf]
    %v4647 = vld [vmem:[#allocation10 + $0x460] sm:$0xff]
    %v4648 = vld [vmem:[#allocation10 + $0x468] sm:$0xff]
    %v4649 = vld [vmem:[#allocation10 + $0x470] sm:$0xff]
    %v4650 = vld [vmem:[#allocation10 + $0x478] sm:$0xf]
    %v4651 = vld [vmem:[#allocation10 + $0x47c] sm:$0xff]
    %v4652 = vld [vmem:[#allocation10 + $0x484] sm:$0xff]
    %v4653 = vld [vmem:[#allocation10 + $0x48c] sm:$0xff]
    %v4654 = vld [vmem:[#allocation10 + $0x494] sm:$0xf]
    %v4655 = vld [vmem:[#allocation10 + $0x498] sm:$0xff]
    %v4656 = vld [vmem:[#allocation10 + $0x4a0] sm:$0xff]
    %v4657 = vld [vmem:[#allocation10 + $0x4a8] sm:$0xff]
    %v4658 = vld [vmem:[#allocation10 + $0x4b0] sm:$0xf]
    %v4659 = vld [vmem:[#allocation10 + $0x4b4] sm:$0xff]
    %v4660 = vld [vmem:[#allocation10 + $0x4bc] sm:$0xff]
    %v4661 = vld [vmem:[#allocation10 + $0x4c4] sm:$0xff]
    %v4662 = vld [vmem:[#allocation10 + $0x4cc] sm:$0xf]
    %v4663 = vld [vmem:[#allocation10 + $0x4d0] sm:$0xff]
    %v4664 = vld [vmem:[#allocation10 + $0x4d8] sm:$0xff]
    %v4665 = vld [vmem:[#allocation10 + $0x4e0] sm:$0xff]
    %v4666 = vld [vmem:[#allocation10 + $0x4e8] sm:$0xf]
    %v4667 = vld [vmem:[#allocation10 + $0x4ec] sm:$0xff]
    %v4668 = vld [vmem:[#allocation10 + $0x4f4] sm:$0xff]
    %v4669 = vld [vmem:[#allocation10 + $0x4fc] sm:$0xff]
    %v4670 = vld [vmem:[#allocation10 + $0x504] sm:$0xf]
    %v4671 = vld [vmem:[#allocation10 + $0x508] sm:$0xff]
    %v4672 = vld [vmem:[#allocation10 + $0x510] sm:$0xff]
    %v4673 = vld [vmem:[#allocation10 + $0x518] sm:$0xff]
    %v4674 = vld [vmem:[#allocation10 + $0x520] sm:$0xf]
    %v4675 = vld [vmem:[#allocation10 + $0x524] sm:$0xff]
    %v4676 = vld [vmem:[#allocation10 + $0x52c] sm:$0xff]
    %v4677 = vld [vmem:[#allocation10 + $0x534] sm:$0xff]
    %v4678 = vld [vmem:[#allocation10 + $0x53c] sm:$0xf]
    %v4679 = vld [vmem:[#allocation10 + $0x540] sm:$0xff]
    %v4680 = vld [vmem:[#allocation10 + $0x548] sm:$0xff]
    %v4681 = vld [vmem:[#allocation10 + $0x550] sm:$0xff]
    %v4682 = vld [vmem:[#allocation10 + $0x558] sm:$0xf]
    %v4683 = vld [vmem:[#allocation10 + $0x55c] sm:$0xff]
    %v4684 = vld [vmem:[#allocation10 + $0x564] sm:$0xff]
    %v4685 = vld [vmem:[#allocation10 + $0x56c] sm:$0xff]
    %v4686 = vld [vmem:[#allocation10 + $0x574] sm:$0xf]
    %v4687 = vld [vmem:[#allocation10 + $0x578] sm:$0xff]
    %v4688 = vld [vmem:[#allocation10 + $0x580] sm:$0xff]
    %v4689 = vld [vmem:[#allocation10 + $0x588] sm:$0xff]
    %v4690 = vld [vmem:[#allocation10 + $0x590] sm:$0xf]
    %v4691 = vld [vmem:[#allocation10 + $0x594] sm:$0xff]
    %v4692 = vld [vmem:[#allocation10 + $0x59c] sm:$0xff]
    %v4693 = vld [vmem:[#allocation10 + $0x5a4] sm:$0xff]
    %v4694 = vld [vmem:[#allocation10 + $0x5ac] sm:$0xf]
    %v4695 = vld [vmem:[#allocation10 + $0x5b0] sm:$0xff]
    %v4696 = vld [vmem:[#allocation10 + $0x5b8] sm:$0xff]
    %v4697 = vld [vmem:[#allocation10 + $0x5c0] sm:$0xff]
    %v4698 = vld [vmem:[#allocation10 + $0x5c8] sm:$0xf]
    %v4699 = vld [vmem:[#allocation10 + $0x5cc] sm:$0xff]
    %v4700 = vld [vmem:[#allocation10 + $0x5d4] sm:$0xff]
    %v4701 = vld [vmem:[#allocation10 + $0x5dc] sm:$0xff]
    %v4702 = vld [vmem:[#allocation10 + $0x5e4] sm:$0xf]
    %v4703 = vld [vmem:[#allocation10 + $0x5e8] sm:$0xff]
    %v4704 = vld [vmem:[#allocation10 + $0x5f0] sm:$0xff]
    %v4705 = vld [vmem:[#allocation10 + $0x5f8] sm:$0xff]
    %v4706 = vld [vmem:[#allocation10 + $0x600] sm:$0xf]
    %v4707 = vld [vmem:[#allocation10 + $0x604] sm:$0xff]
    %v4708 = vld [vmem:[#allocation10 + $0x60c] sm:$0xff]
    %v4709 = vld [vmem:[#allocation10 + $0x614] sm:$0xff]
    %v4710 = vld [vmem:[#allocation10 + $0x61c] sm:$0xf]
    %v4711 = vld [vmem:[#allocation10 + $0x620] sm:$0xff]
    %v4712 = vld [vmem:[#allocation10 + $0x628] sm:$0xff]
    %v4713 = vld [vmem:[#allocation10 + $0x630] sm:$0xff]
    %v4714 = vld [vmem:[#allocation10 + $0x638] sm:$0xf]
    %v4715 = vld [vmem:[#allocation10 + $0x63c] sm:$0xff]
    %v4716 = vld [vmem:[#allocation10 + $0x644] sm:$0xff]
    %v4717 = vld [vmem:[#allocation10 + $0x64c] sm:$0xff]
    %v4718 = vld [vmem:[#allocation10 + $0x654] sm:$0xf]
    %v4719 = vld [vmem:[#allocation10 + $0x658] sm:$0xff]
    %v4720 = vld [vmem:[#allocation10 + $0x660] sm:$0xff]
    %v4721 = vld [vmem:[#allocation10 + $0x668] sm:$0xff]
    %v4722 = vld [vmem:[#allocation10 + $0x670] sm:$0xf]
    %v4723 = vld [vmem:[#allocation10 + $0x674] sm:$0xff]
    %v4724 = vld [vmem:[#allocation10 + $0x67c] sm:$0xff]
    %v4725 = vld [vmem:[#allocation10 + $0x684] sm:$0xff]
    %v4726 = vld [vmem:[#allocation10 + $0x68c] sm:$0xf]
    %v4727 = vld [vmem:[#allocation10 + $0x690] sm:$0xff]
    %v4728 = vld [vmem:[#allocation10 + $0x698] sm:$0xff]
    %v4729 = vld [vmem:[#allocation10 + $0x6a0] sm:$0xff]
    %v4730 = vld [vmem:[#allocation10 + $0x6a8] sm:$0xf]
    %v4731 = vld [vmem:[#allocation10 + $0x6ac] sm:$0xff]
    %v4732 = vld [vmem:[#allocation10 + $0x6b4] sm:$0xff]
    %v4733 = vld [vmem:[#allocation10 + $0x6bc] sm:$0xff]
    %v4734 = vld [vmem:[#allocation10 + $0x6c4] sm:$0xf]
    %v4735 = vld [vmem:[#allocation10 + $0x6c8] sm:$0xff]
    %v4736 = vld [vmem:[#allocation10 + $0x6d0] sm:$0xff]
    %v4737 = vld [vmem:[#allocation10 + $0x6d8] sm:$0xff]
    %v4738 = vld [vmem:[#allocation10 + $0x6e0] sm:$0xf]
    %v4739 = vld [vmem:[#allocation10 + $0x6e4] sm:$0xff]
    %v4740 = vld [vmem:[#allocation10 + $0x6ec] sm:$0xff]
    %v4741 = vld [vmem:[#allocation10 + $0x6f4] sm:$0xff]
    %v4742 = vld [vmem:[#allocation10 + $0x6fc] sm:$0xf]
    %v4743 = vld [vmem:[#allocation10 + $0x700] sm:$0xff]
    %v4744 = vld [vmem:[#allocation10 + $0x708] sm:$0xff]
    %v4745 = vld [vmem:[#allocation10 + $0x710] sm:$0xff]
    %v4746 = vld [vmem:[#allocation10 + $0x718] sm:$0xf]
    %v4747 = vld [vmem:[#allocation10 + $0x71c] sm:$0xff]
    %v4748 = vld [vmem:[#allocation10 + $0x724] sm:$0xff]
    %v4749 = vld [vmem:[#allocation10 + $0x72c] sm:$0xff]
    %v4750 = vld [vmem:[#allocation10 + $0x734] sm:$0xf]
    %v4751 = vld [vmem:[#allocation10 + $0x738] sm:$0xff]
    %v4752 = vld [vmem:[#allocation10 + $0x740] sm:$0xff]
    %v4753 = vld [vmem:[#allocation10 + $0x748] sm:$0xff]
    %v4754 = vld [vmem:[#allocation10 + $0x750] sm:$0xf]
    %v4755 = vld [vmem:[#allocation10 + $0x754] sm:$0xff]
    %v4756 = vld [vmem:[#allocation10 + $0x75c] sm:$0xff]
    %v4757 = vld [vmem:[#allocation10 + $0x764] sm:$0xff]
    %v4758 = vld [vmem:[#allocation10 + $0x76c] sm:$0xf]
    %v4759 = vld [vmem:[#allocation10 + $0x770] sm:$0xff]
    %v4760 = vld [vmem:[#allocation10 + $0x778] sm:$0xff]
    %v4761 = vld [vmem:[#allocation10 + $0x780] sm:$0xff]
    %v4762 = vld [vmem:[#allocation10 + $0x788] sm:$0xf]
    %v4763 = vld [vmem:[#allocation10 + $0x78c] sm:$0xff]
    %v4764 = vld [vmem:[#allocation10 + $0x794] sm:$0xff]
    %v4765 = vld [vmem:[#allocation10 + $0x79c] sm:$0xff]
    %v4766 = vld [vmem:[#allocation10 + $0x7a4] sm:$0xf]
    %v4767 = vld [vmem:[#allocation10 + $0x7a8] sm:$0xff]
    %v4768 = vld [vmem:[#allocation10 + $0x7b0] sm:$0xff]
    %v4769 = vld [vmem:[#allocation10 + $0x7b8] sm:$0xff]
    %v4770 = vld [vmem:[#allocation10 + $0x7c0] sm:$0xf]
    %v4771 = vld [vmem:[#allocation10 + $0x7c4] sm:$0xff]
    %v4772 = vld [vmem:[#allocation10 + $0x7cc] sm:$0xff]
    %v4773 = vld [vmem:[#allocation10 + $0x7d4] sm:$0xff]
    %v4774 = vld [vmem:[#allocation10 + $0x7dc] sm:$0xf]
    %v4775 = vld [vmem:[#allocation10 + $0x7e0] sm:$0xff]
    %v4776 = vld [vmem:[#allocation10 + $0x7e8] sm:$0xff]
    %v4777 = vld [vmem:[#allocation10 + $0x7f0] sm:$0xff]
    %v4778 = vld [vmem:[#allocation10 + $0x7f8] sm:$0xf]
    %v4779 = vld [vmem:[#allocation10 + $0x7fc] sm:$0xff]
    %v4780 = vld [vmem:[#allocation10 + $0x804] sm:$0xff]
    %v4781 = vld [vmem:[#allocation10 + $0x80c] sm:$0xff]
    %v4782 = vld [vmem:[#allocation10 + $0x814] sm:$0xf]
    %v4783 = vld [vmem:[#allocation10 + $0x818] sm:$0xff]
    %v4784 = vld [vmem:[#allocation10 + $0x820] sm:$0xff]
    %v4785 = vld [vmem:[#allocation10 + $0x828] sm:$0xff]
    %v4786 = vld [vmem:[#allocation10 + $0x830] sm:$0xf]
    %v4787 = vld [vmem:[#allocation10 + $0x834] sm:$0xff]
    %v4788 = vld [vmem:[#allocation10 + $0x83c] sm:$0xff]
    %v4789 = vld [vmem:[#allocation10 + $0x844] sm:$0xff]
    %v4790 = vld [vmem:[#allocation10 + $0x84c] sm:$0xf]
    %v4791 = vld [vmem:[#allocation10 + $0x850] sm:$0xff]
    %v4792 = vld [vmem:[#allocation10 + $0x858] sm:$0xff]
    %v4793 = vld [vmem:[#allocation10 + $0x860] sm:$0xff]
    %v4794 = vld [vmem:[#allocation10 + $0x868] sm:$0xf]
    %v4795 = vld [vmem:[#allocation10 + $0x86c] sm:$0xff]
    %v4796 = vld [vmem:[#allocation10 + $0x874] sm:$0xff]
    %v4797 = vld [vmem:[#allocation10 + $0x87c] sm:$0xff]
    %v4798 = vld [vmem:[#allocation10 + $0x884] sm:$0xf]
    %v4799 = vld [vmem:[#allocation10 + $0x888] sm:$0xff]
    %v4800 = vld [vmem:[#allocation10 + $0x890] sm:$0xff]
    %v4801 = vld [vmem:[#allocation10 + $0x898] sm:$0xff]
    %v4802 = vld [vmem:[#allocation10 + $0x8a0] sm:$0xf]
    %v4803 = vld [vmem:[#allocation10 + $0x8a4] sm:$0xff]
    %v4804 = vld [vmem:[#allocation10 + $0x8ac] sm:$0xff]
    %v4805 = vld [vmem:[#allocation10 + $0x8b4] sm:$0xff]
    %v4806 = vld [vmem:[#allocation10 + $0x8bc] sm:$0xf]
    %v4807 = vld [vmem:[#allocation10 + $0x8c0] sm:$0xff]
    %v4808 = vld [vmem:[#allocation10 + $0x8c8] sm:$0xff]
    %v4809 = vld [vmem:[#allocation10 + $0x8d0] sm:$0xff]
    %v4810 = vld [vmem:[#allocation10 + $0x8d8] sm:$0xf]
    %v4811 = vld [vmem:[#allocation10 + $0x8dc] sm:$0xff]
    %v4812 = vld [vmem:[#allocation10 + $0x8e4] sm:$0xff]
    %v4813 = vld [vmem:[#allocation10 + $0x8ec] sm:$0xff]
    %v4814 = vld [vmem:[#allocation10 + $0x8f4] sm:$0xf]
    %v4815 = vld [vmem:[#allocation10 + $0x8f8] sm:$0xff]
    %v4816 = vld [vmem:[#allocation10 + $0x900] sm:$0xff]
    %v4817 = vld [vmem:[#allocation10 + $0x908] sm:$0xff]
    %v4818 = vld [vmem:[#allocation10 + $0x910] sm:$0xf]
    %v4819 = vld [vmem:[#allocation10 + $0x914] sm:$0xff]
    %v4820 = vld [vmem:[#allocation10 + $0x91c] sm:$0xff]
    %v4821 = vld [vmem:[#allocation10 + $0x924] sm:$0xff]
    %v4822 = vld [vmem:[#allocation10 + $0x92c] sm:$0xf]
    %v4823 = vld [vmem:[#allocation10 + $0x930] sm:$0xff]
    %v4824 = vld [vmem:[#allocation10 + $0x938] sm:$0xff]
    %v4825 = vld [vmem:[#allocation10 + $0x940] sm:$0xff]
    %v4826 = vld [vmem:[#allocation10 + $0x948] sm:$0xf]
    %v4827 = vld [vmem:[#allocation10 + $0x94c] sm:$0xff]
    %v4828 = vld [vmem:[#allocation10 + $0x954] sm:$0xff]
    %v4829 = vld [vmem:[#allocation10 + $0x95c] sm:$0xff]
    %v4830 = vld [vmem:[#allocation10 + $0x964] sm:$0xf]
    %v4831 = vld [vmem:[#allocation10 + $0x968] sm:$0xff]
    %v4832 = vld [vmem:[#allocation10 + $0x970] sm:$0xff]
    %v4833 = vld [vmem:[#allocation10 + $0x978] sm:$0xff]
    %v4834 = vld [vmem:[#allocation10 + $0x980] sm:$0xf]
    %v4835 = vld [vmem:[#allocation10 + $0x984] sm:$0xff]
    %v4836 = vld [vmem:[#allocation10 + $0x98c] sm:$0xff]
    %v4837 = vld [vmem:[#allocation10 + $0x994] sm:$0xff]
    %v4838 = vld [vmem:[#allocation10 + $0x99c] sm:$0xf]
    %v4839 = vld [vmem:[#allocation10 + $0x9a0] sm:$0xff]
    %v4840 = vld [vmem:[#allocation10 + $0x9a8] sm:$0xff]
    %v4841 = vld [vmem:[#allocation10 + $0x9b0] sm:$0xff]
    %v4842 = vld [vmem:[#allocation10 + $0x9b8] sm:$0xf]
    %v4843 = vld [vmem:[#allocation10 + $0x9bc] sm:$0xff]
    %v4844 = vld [vmem:[#allocation10 + $0x9c4] sm:$0xff]
    %v4845 = vld [vmem:[#allocation10 + $0x9cc] sm:$0xff]
    %v4846 = vld [vmem:[#allocation10 + $0x9d4] sm:$0xf]
    %v4847 = vld [vmem:[#allocation10 + $0x9d8] sm:$0xff]
    %v4848 = vld [vmem:[#allocation10 + $0x9e0] sm:$0xff]
    %v4849 = vld [vmem:[#allocation10 + $0x9e8] sm:$0xff]
    %v4850 = vld [vmem:[#allocation10 + $0x9f0] sm:$0xf]
    %v4851 = vld [vmem:[#allocation10 + $0x9f4] sm:$0xff]
    %v4852 = vld [vmem:[#allocation10 + $0x9fc] sm:$0xff]
    %v4853 = vld [vmem:[#allocation10 + $0xa04] sm:$0xff]
    %v4854 = vld [vmem:[#allocation10 + $0xa0c] sm:$0xf]
    %v4855 = vld [vmem:[#allocation10 + $0xa10] sm:$0xff]
    %v4856 = vld [vmem:[#allocation10 + $0xa18] sm:$0xff]
    %v4857 = vld [vmem:[#allocation10 + $0xa20] sm:$0xff]
    %v4858 = vld [vmem:[#allocation10 + $0xa28] sm:$0xf]
    %v4859 = vld [vmem:[#allocation10 + $0xa2c] sm:$0xff]
    %v4860 = vld [vmem:[#allocation10 + $0xa34] sm:$0xff]
    %v4861 = vld [vmem:[#allocation10 + $0xa3c] sm:$0xff]
    %v4862 = vld [vmem:[#allocation10 + $0xa44] sm:$0xf]
    %v4863 = vld [vmem:[#allocation10 + $0xa48] sm:$0xff]
    %v4864 = vld [vmem:[#allocation10 + $0xa50] sm:$0xff]
    %v4865 = vld [vmem:[#allocation10 + $0xa58] sm:$0xff]
    %v4866 = vld [vmem:[#allocation10 + $0xa60] sm:$0xf]
    %v4867 = vld [vmem:[#allocation10 + $0xa64] sm:$0xff]
    %v4868 = vld [vmem:[#allocation10 + $0xa6c] sm:$0xff]
    %v4869 = vld [vmem:[#allocation10 + $0xa74] sm:$0xff]
    %v4870 = vld [vmem:[#allocation10 + $0xa7c] sm:$0xf]
    %v4871 = vld [vmem:[#allocation10 + $0xa80] sm:$0xff]
    %v4872 = vld [vmem:[#allocation10 + $0xa88] sm:$0xff]
    %v4873 = vld [vmem:[#allocation10 + $0xa90] sm:$0xff]
    %v4874 = vld [vmem:[#allocation10 + $0xa98] sm:$0xf]
    %v4875 = vld [vmem:[#allocation10 + $0xa9c] sm:$0xff]
    %v4876 = vld [vmem:[#allocation10 + $0xaa4] sm:$0xff]
    %v4877 = vld [vmem:[#allocation10 + $0xaac] sm:$0xff]
    %v4878 = vld [vmem:[#allocation10 + $0xab4] sm:$0xf]
    %v4879 = vld [vmem:[#allocation10 + $0xab8] sm:$0xff]
    %v4880 = vld [vmem:[#allocation10 + $0xac0] sm:$0xff]
    %v4881 = vld [vmem:[#allocation10 + $0xac8] sm:$0xff]
    %v4882 = vld [vmem:[#allocation10 + $0xad0] sm:$0xf]
    %v4883 = vld [vmem:[#allocation10 + $0xad4] sm:$0xff]
    %v4884 = vld [vmem:[#allocation10 + $0xadc] sm:$0xff]
    %v4885 = vld [vmem:[#allocation10 + $0xae4] sm:$0xff]
    %v4886 = vld [vmem:[#allocation10 + $0xaec] sm:$0xf]
    %v4887 = vld [vmem:[#allocation10 + $0xaf0] sm:$0xff]
    %v4888 = vld [vmem:[#allocation10 + $0xaf8] sm:$0xff]
    %v4889 = vld [vmem:[#allocation10 + $0xb00] sm:$0xff]
    %v4890 = vld [vmem:[#allocation10 + $0xb08] sm:$0xf]
    %v4891 = vld [vmem:[#allocation10 + $0xb0c] sm:$0xff]
    %v4892 = vld [vmem:[#allocation10 + $0xb14] sm:$0xff]
    %v4893 = vld [vmem:[#allocation10 + $0xb1c] sm:$0xff]
    %v4894 = vld [vmem:[#allocation10 + $0xb24] sm:$0xf]
    %v4895 = vld [vmem:[#allocation10 + $0xb28] sm:$0xff]
    %v4896 = vld [vmem:[#allocation10 + $0xb30] sm:$0xff]
    %v4897 = vld [vmem:[#allocation10 + $0xb38] sm:$0xff]
    %v4898 = vld [vmem:[#allocation10 + $0xb40] sm:$0xf]
    %v4899 = vld [vmem:[#allocation10 + $0xb44] sm:$0xff]
    %v4900 = vld [vmem:[#allocation10 + $0xb4c] sm:$0xff]
    %v4901 = vld [vmem:[#allocation10 + $0xb54] sm:$0xff]
    %v4902 = vld [vmem:[#allocation10 + $0xb5c] sm:$0xf]
    %v4903 = vld [vmem:[#allocation10 + $0xb60] sm:$0xff]
    %v4904 = vld [vmem:[#allocation10 + $0xb68] sm:$0xff]
    %v4905 = vld [vmem:[#allocation10 + $0xb70] sm:$0xff]
    %v4906 = vld [vmem:[#allocation10 + $0xb78] sm:$0xf]
    %v4907 = vld [vmem:[#allocation10 + $0xb7c] sm:$0xff]
    %v4908 = vld [vmem:[#allocation10 + $0xb84] sm:$0xff]
    %v4909 = vld [vmem:[#allocation10 + $0xb8c] sm:$0xff]
    %v4910 = vld [vmem:[#allocation10 + $0xb94] sm:$0xf]
    %v4911 = vld [vmem:[#allocation10 + $0xb98] sm:$0xff]
    %v4912 = vld [vmem:[#allocation10 + $0xba0] sm:$0xff]
    %v4913 = vld [vmem:[#allocation10 + $0xba8] sm:$0xff]
    %v4914 = vld [vmem:[#allocation10 + $0xbb0] sm:$0xf]
    %v4915 = vld [vmem:[#allocation10 + $0xbb4] sm:$0xff]
    %v4916 = vld [vmem:[#allocation10 + $0xbbc] sm:$0xff]
    %v4917 = vld [vmem:[#allocation10 + $0xbc4] sm:$0xff]
    %v4918 = vld [vmem:[#allocation10 + $0xbcc] sm:$0xf]
    %v4919 = vld [vmem:[#allocation10 + $0xbd0] sm:$0xff]
    %v4920 = vld [vmem:[#allocation10 + $0xbd8] sm:$0xff]
    %v4921 = vld [vmem:[#allocation10 + $0xbe0] sm:$0xff]
    %v4922 = vld [vmem:[#allocation10 + $0xbe8] sm:$0xf]
    %v4923 = vld [vmem:[#allocation10 + $0xbec] sm:$0xff]
    %v4924 = vld [vmem:[#allocation10 + $0xbf4] sm:$0xff]
    %v4925 = vld [vmem:[#allocation10 + $0xbfc] sm:$0xff]
    %v4926 = vld [vmem:[#allocation10 + $0xc04] sm:$0xf]
    %v4927 = vld [vmem:[#allocation10 + $0xc08] sm:$0xff]
    %v4928 = vld [vmem:[#allocation10 + $0xc10] sm:$0xff]
    %v4929 = vld [vmem:[#allocation10 + $0xc18] sm:$0xff]
    %v4930 = vld [vmem:[#allocation10 + $0xc20] sm:$0xf]
    %v4931 = vld [vmem:[#allocation10 + $0xc24] sm:$0xff]
    %v4932 = vld [vmem:[#allocation10 + $0xc2c] sm:$0xff]
    %v4933 = vld [vmem:[#allocation10 + $0xc34] sm:$0xff]
    %v4934 = vld [vmem:[#allocation10 + $0xc3c] sm:$0xf]
    %v4935 = vld [vmem:[#allocation10 + $0xc40] sm:$0xff]
    %v4936 = vld [vmem:[#allocation10 + $0xc48] sm:$0xff]
    %v4937 = vld [vmem:[#allocation10 + $0xc50] sm:$0xff]
    %v4938 = vld [vmem:[#allocation10 + $0xc58] sm:$0xf]
    %v4939 = vld [vmem:[#allocation10 + $0xc5c] sm:$0xff]
    %v4940 = vld [vmem:[#allocation10 + $0xc64] sm:$0xff]
    %v4941 = vld [vmem:[#allocation10 + $0xc6c] sm:$0xff]
    %v4942 = vld [vmem:[#allocation10 + $0xc74] sm:$0xf]
    %v4943 = vld [vmem:[#allocation10 + $0xc78] sm:$0xff]
    %v4944 = vld [vmem:[#allocation10 + $0xc80] sm:$0xff]
    %v4945 = vld [vmem:[#allocation10 + $0xc88] sm:$0xff]
    %v4946 = vld [vmem:[#allocation10 + $0xc90] sm:$0xf]
    %v4947 = vld [vmem:[#allocation10 + $0xc94] sm:$0xff]
    %v4948 = vld [vmem:[#allocation10 + $0xc9c] sm:$0xff]
    %v4949 = vld [vmem:[#allocation10 + $0xca4] sm:$0xff]
    %v4950 = vld [vmem:[#allocation10 + $0xcac] sm:$0xf]
    %v4951 = vld [vmem:[#allocation10 + $0xcb0] sm:$0xff]
    %v4952 = vld [vmem:[#allocation10 + $0xcb8] sm:$0xff]
    %v4953 = vld [vmem:[#allocation10 + $0xcc0] sm:$0xff]
    %v4954 = vld [vmem:[#allocation10 + $0xcc8] sm:$0xf]
    %v4955 = vld [vmem:[#allocation10 + $0xccc] sm:$0xff]
    %v4956 = vld [vmem:[#allocation10 + $0xcd4] sm:$0xff]
    %v4957 = vld [vmem:[#allocation10 + $0xcdc] sm:$0xff]
    %v4958 = vld [vmem:[#allocation10 + $0xce4] sm:$0xf]
    %v4959 = vld [vmem:[#allocation10 + $0xce8] sm:$0xff]
    %v4960 = vld [vmem:[#allocation10 + $0xcf0] sm:$0xff]
    %v4961 = vld [vmem:[#allocation10 + $0xcf8] sm:$0xff]
    %v4962 = vld [vmem:[#allocation10 + $0xd00] sm:$0xf]
    %v4963 = vld [vmem:[#allocation10 + $0xd04] sm:$0xff]
    %v4964 = vld [vmem:[#allocation10 + $0xd0c] sm:$0xff]
    %v4965 = vld [vmem:[#allocation10 + $0xd14] sm:$0xff]
    %v4966 = vld [vmem:[#allocation10 + $0xd1c] sm:$0xf]
    %v4967 = vld [vmem:[#allocation10 + $0xd20] sm:$0xff]
    %v4968 = vld [vmem:[#allocation10 + $0xd28] sm:$0xff]
    %v4969 = vld [vmem:[#allocation10 + $0xd30] sm:$0xff]
    %v4970 = vld [vmem:[#allocation10 + $0xd38] sm:$0xf]
    %v4971 = vld [vmem:[#allocation10 + $0xd3c] sm:$0xff]
    %v4972 = vld [vmem:[#allocation10 + $0xd44] sm:$0xff]
    %v4973 = vld [vmem:[#allocation10 + $0xd4c] sm:$0xff]
    %v4974 = vld [vmem:[#allocation10 + $0xd54] sm:$0xf]
    %v4975 = vld [vmem:[#allocation10 + $0xd58] sm:$0xff]
    %v4976 = vld [vmem:[#allocation10 + $0xd60] sm:$0xff]
    %v4977 = vld [vmem:[#allocation10 + $0xd68] sm:$0xff]
    %v4978 = vld [vmem:[#allocation10 + $0xd70] sm:$0xf]
    %v4979 = vld [vmem:[#allocation10 + $0xd74] sm:$0xff]
    %v4980 = vld [vmem:[#allocation10 + $0xd7c] sm:$0xff]
    %v4981 = vld [vmem:[#allocation10 + $0xd84] sm:$0xff]
    %v4982 = vld [vmem:[#allocation10 + $0xd8c] sm:$0xf]
    %v4983 = vld [vmem:[#allocation10 + $0xd90] sm:$0xff]
    %v4984 = vld [vmem:[#allocation10 + $0xd98] sm:$0xff]
    %v4985 = vld [vmem:[#allocation10 + $0xda0] sm:$0xff]
    %v4986 = vld [vmem:[#allocation10 + $0xda8] sm:$0xf]
    %v4987 = vld [vmem:[#allocation10 + $0xdac] sm:$0xff]
    %v4988 = vld [vmem:[#allocation10 + $0xdb4] sm:$0xff]
    %v4989 = vld [vmem:[#allocation10 + $0xdbc] sm:$0xff]
    %v4990 = vld [vmem:[#allocation10 + $0xdc4] sm:$0xf]
    %v4991 = vld [vmem:[#allocation10 + $0xdc8] sm:$0xff]
    %v4992 = vld [vmem:[#allocation10 + $0xdd0] sm:$0xff]
    %v4993 = vld [vmem:[#allocation10 + $0xdd8] sm:$0xff]
    %v4994 = vld [vmem:[#allocation10 + $0xde0] sm:$0xf]
    %v4995 = vld [vmem:[#allocation10 + $0xde4] sm:$0xff]
    %v4996 = vld [vmem:[#allocation10 + $0xdec] sm:$0xff]
    %v4997 = vld [vmem:[#allocation10 + $0xdf4] sm:$0xff]
    %v4998 = vld [vmem:[#allocation10 + $0xdfc] sm:$0xf]
    %v4999 = vld [vmem:[#allocation11] sm:$0xff]
    %v5001 = vlaneseq
    %v5002 = vshrl.u32 %v5001, 7
    %v5003 = vsub.s32 0, %v5002
    %v5004 = vrot.slane %v4999, %v5003
    %v5005 = vlaneseq
    %v5006 = vshrl.u32 %v5005, 7
    %v5007 = vsub.s32 1, %v5006
    %v5008 = vrot.slane %v4999, %v5007
    %v5009 = vlaneseq
    %v5010 = vshrl.u32 %v5009, 7
    %v5011 = vsub.s32 2, %v5010
    %v5012 = vrot.slane %v4999, %v5011
    %v5013 = vlaneseq
    %v5014 = vshrl.u32 %v5013, 7
    %v5015 = vsub.s32 3, %v5014
    %v5016 = vrot.slane %v4999, %v5015
    %v5017 = vlaneseq
    %v5018 = vshrl.u32 %v5017, 7
    %v5019 = vsub.s32 4, %v5018
    %v5020 = vrot.slane %v4999, %v5019
    %v5021 = vlaneseq
    %v5022 = vshrl.u32 %v5021, 7
    %v5023 = vsub.s32 5, %v5022
    %v5024 = vrot.slane %v4999, %v5023
    %v5025 = vlaneseq
    %v5026 = vshrl.u32 %v5025, 7
    %v5027 = vsub.s32 6, %v5026
    %v5028 = vrot.slane %v4999, %v5027
    %v5548 = vunpack.c.l.b16 %v4487
    %v5549 = vunpack.c.h.b16 %v4487
    %v5550 = vunpack.c.l.b16 %v4488
    %v5551 = vunpack.c.h.b16 %v4488
    %v5552 = vunpack.c.l.b16 %v4489
    %v5553 = vunpack.c.h.b16 %v4489
    %v5554 = vunpack.c.l.b16 %v4490
    %v5555 = vunpack.c.l.b16 %v4491
    %v5556 = vunpack.c.h.b16 %v4491
    %v5557 = vunpack.c.l.b16 %v4492
    %v5558 = vunpack.c.h.b16 %v4492
    %v5559 = vunpack.c.l.b16 %v4493
    %v5560 = vunpack.c.h.b16 %v4493
    %v5561 = vunpack.c.l.b16 %v4494
    %v5562 = vunpack.c.l.b16 %v4495
    %v5563 = vunpack.c.h.b16 %v4495
    %v5564 = vunpack.c.l.b16 %v4496
    %v5565 = vunpack.c.h.b16 %v4496
    %v5566 = vunpack.c.l.b16 %v4497
    %v5567 = vunpack.c.h.b16 %v4497
    %v5568 = vunpack.c.l.b16 %v4498
    %v5569 = vunpack.c.l.b16 %v4499
    %v5570 = vunpack.c.h.b16 %v4499
    %v5571 = vunpack.c.l.b16 %v4500
    %v5572 = vunpack.c.h.b16 %v4500
    %v5573 = vunpack.c.l.b16 %v4501
    %v5574 = vunpack.c.h.b16 %v4501
    %v5575 = vunpack.c.l.b16 %v4502
    %v5576 = vunpack.c.l.b16 %v4503
    %v5577 = vunpack.c.h.b16 %v4503
    %v5578 = vunpack.c.l.b16 %v4504
    %v5579 = vunpack.c.h.b16 %v4504
    %v5580 = vunpack.c.l.b16 %v4505
    %v5581 = vunpack.c.h.b16 %v4505
    %v5582 = vunpack.c.l.b16 %v4506
    %v5583 = vunpack.c.l.b16 %v4507
    %v5584 = vunpack.c.h.b16 %v4507
    %v5585 = vunpack.c.l.b16 %v4508
    %v5586 = vunpack.c.h.b16 %v4508
    %v5587 = vunpack.c.l.b16 %v4509
    %v5588 = vunpack.c.h.b16 %v4509
    %v5589 = vunpack.c.l.b16 %v4510
    %v5590 = vunpack.c.l.b16 %v4511
    %v5591 = vunpack.c.h.b16 %v4511
    %v5592 = vunpack.c.l.b16 %v4512
    %v5593 = vunpack.c.h.b16 %v4512
    %v5594 = vunpack.c.l.b16 %v4513
    %v5595 = vunpack.c.h.b16 %v4513
    %v5596 = vunpack.c.l.b16 %v4514
    %v5597 = vunpack.c.l.b16 %v4515
    %v5598 = vunpack.c.h.b16 %v4515
    %v5599 = vunpack.c.l.b16 %v4516
    %v5600 = vunpack.c.h.b16 %v4516
    %v5601 = vunpack.c.l.b16 %v4517
    %v5602 = vunpack.c.h.b16 %v4517
    %v5603 = vunpack.c.l.b16 %v4518
    %v5604 = vunpack.c.l.b16 %v4519
    %v5605 = vunpack.c.h.b16 %v4519
    %v5606 = vunpack.c.l.b16 %v4520
    %v5607 = vunpack.c.h.b16 %v4520
    %v5608 = vunpack.c.l.b16 %v4521
    %v5609 = vunpack.c.h.b16 %v4521
    %v5610 = vunpack.c.l.b16 %v4522
    %v5611 = vunpack.c.l.b16 %v4523
    %v5612 = vunpack.c.h.b16 %v4523
    %v5613 = vunpack.c.l.b16 %v4524
    %v5614 = vunpack.c.h.b16 %v4524
    %v5615 = vunpack.c.l.b16 %v4525
    %v5616 = vunpack.c.h.b16 %v4525
    %v5617 = vunpack.c.l.b16 %v4526
    %v5618 = vunpack.c.l.b16 %v4527
    %v5619 = vunpack.c.h.b16 %v4527
    %v5620 = vunpack.c.l.b16 %v4528
    %v5621 = vunpack.c.h.b16 %v4528
    %v5622 = vunpack.c.l.b16 %v4529
    %v5623 = vunpack.c.h.b16 %v4529
    %v5624 = vunpack.c.l.b16 %v4530
    %v5625 = vunpack.c.l.b16 %v4531
    %v5626 = vunpack.c.h.b16 %v4531
    %v5627 = vunpack.c.l.b16 %v4532
    %v5628 = vunpack.c.h.b16 %v4532
    %v5629 = vunpack.c.l.b16 %v4533
    %v5630 = vunpack.c.h.b16 %v4533
    %v5631 = vunpack.c.l.b16 %v4534
    %v5632 = vunpack.c.l.b16 %v4535
    %v5633 = vunpack.c.h.b16 %v4535
    %v5634 = vunpack.c.l.b16 %v4536
    %v5635 = vunpack.c.h.b16 %v4536
    %v5636 = vunpack.c.l.b16 %v4537
    %v5637 = vunpack.c.h.b16 %v4537
    %v5638 = vunpack.c.l.b16 %v4538
    %v5639 = vunpack.c.l.b16 %v4539
    %v5640 = vunpack.c.h.b16 %v4539
    %v5641 = vunpack.c.l.b16 %v4540
    %v5642 = vunpack.c.h.b16 %v4540
    %v5643 = vunpack.c.l.b16 %v4541
    %v5644 = vunpack.c.h.b16 %v4541
    %v5645 = vunpack.c.l.b16 %v4542
    %v5646 = vunpack.c.l.b16 %v4543
    %v5647 = vunpack.c.h.b16 %v4543
    %v5648 = vunpack.c.l.b16 %v4544
    %v5649 = vunpack.c.h.b16 %v4544
    %v5650 = vunpack.c.l.b16 %v4545
    %v5651 = vunpack.c.h.b16 %v4545
    %v5652 = vunpack.c.l.b16 %v4546
    %v5653 = vunpack.c.l.b16 %v4547
    %v5654 = vunpack.c.h.b16 %v4547
    %v5655 = vunpack.c.l.b16 %v4548
    %v5656 = vunpack.c.h.b16 %v4548
    %v5657 = vunpack.c.l.b16 %v4549
    %v5658 = vunpack.c.h.b16 %v4549
    %v5659 = vunpack.c.l.b16 %v4550
    %v5660 = vunpack.c.l.b16 %v4551
    %v5661 = vunpack.c.h.b16 %v4551
    %v5662 = vunpack.c.l.b16 %v4552
    %v5663 = vunpack.c.h.b16 %v4552
    %v5664 = vunpack.c.l.b16 %v4553
    %v5665 = vunpack.c.h.b16 %v4553
    %v5666 = vunpack.c.l.b16 %v4554
    %v5667 = vunpack.c.l.b16 %v4555
    %v5668 = vunpack.c.h.b16 %v4555
    %v5669 = vunpack.c.l.b16 %v4556
    %v5670 = vunpack.c.h.b16 %v4556
    %v5671 = vunpack.c.l.b16 %v4557
    %v5672 = vunpack.c.h.b16 %v4557
    %v5673 = vunpack.c.l.b16 %v4558
    %v5674 = vunpack.c.l.b16 %v4559
    %v5675 = vunpack.c.h.b16 %v4559
    %v5676 = vunpack.c.l.b16 %v4560
    %v5677 = vunpack.c.h.b16 %v4560
    %v5678 = vunpack.c.l.b16 %v4561
    %v5679 = vunpack.c.h.b16 %v4561
    %v5680 = vunpack.c.l.b16 %v4562
    %v5681 = vunpack.c.l.b16 %v4563
    %v5682 = vunpack.c.h.b16 %v4563
    %v5683 = vunpack.c.l.b16 %v4564
    %v5684 = vunpack.c.h.b16 %v4564
    %v5685 = vunpack.c.l.b16 %v4565
    %v5686 = vunpack.c.h.b16 %v4565
    %v5687 = vunpack.c.l.b16 %v4566
    %v5688 = vunpack.c.l.b16 %v4567
    %v5689 = vunpack.c.h.b16 %v4567
    %v5690 = vunpack.c.l.b16 %v4568
    %v5691 = vunpack.c.h.b16 %v4568
    %v5692 = vunpack.c.l.b16 %v4569
    %v5693 = vunpack.c.h.b16 %v4569
    %v5694 = vunpack.c.l.b16 %v4570
    %v5695 = vunpack.c.l.b16 %v4571
    %v5696 = vunpack.c.h.b16 %v4571
    %v5697 = vunpack.c.l.b16 %v4572
    %v5698 = vunpack.c.h.b16 %v4572
    %v5699 = vunpack.c.l.b16 %v4573
    %v5700 = vunpack.c.h.b16 %v4573
    %v5701 = vunpack.c.l.b16 %v4574
    %v5702 = vunpack.c.l.b16 %v4575
    %v5703 = vunpack.c.h.b16 %v4575
    %v5704 = vunpack.c.l.b16 %v4576
    %v5705 = vunpack.c.h.b16 %v4576
    %v5706 = vunpack.c.l.b16 %v4577
    %v5707 = vunpack.c.h.b16 %v4577
    %v5708 = vunpack.c.l.b16 %v4578
    %v5709 = vunpack.c.l.b16 %v4579
    %v5710 = vunpack.c.h.b16 %v4579
    %v5711 = vunpack.c.l.b16 %v4580
    %v5712 = vunpack.c.h.b16 %v4580
    %v5713 = vunpack.c.l.b16 %v4581
    %v5714 = vunpack.c.h.b16 %v4581
    %v5715 = vunpack.c.l.b16 %v4582
    %v5716 = vunpack.c.l.b16 %v4583
    %v5717 = vunpack.c.h.b16 %v4583
    %v5718 = vunpack.c.l.b16 %v4584
    %v5719 = vunpack.c.h.b16 %v4584
    %v5720 = vunpack.c.l.b16 %v4585
    %v5721 = vunpack.c.h.b16 %v4585
    %v5722 = vunpack.c.l.b16 %v4586
    %v5723 = vunpack.c.l.b16 %v4587
    %v5724 = vunpack.c.h.b16 %v4587
    %v5725 = vunpack.c.l.b16 %v4588
    %v5726 = vunpack.c.h.b16 %v4588
    %v5727 = vunpack.c.l.b16 %v4589
    %v5728 = vunpack.c.h.b16 %v4589
    %v5729 = vunpack.c.l.b16 %v4590
    %v5730 = vunpack.c.l.b16 %v4591
    %v5731 = vunpack.c.h.b16 %v4591
    %v5732 = vunpack.c.l.b16 %v4592
    %v5733 = vunpack.c.h.b16 %v4592
    %v5734 = vunpack.c.l.b16 %v4593
    %v5735 = vunpack.c.h.b16 %v4593
    %v5736 = vunpack.c.l.b16 %v4594
    %v5737 = vunpack.c.l.b16 %v4595
    %v5738 = vunpack.c.h.b16 %v4595
    %v5739 = vunpack.c.l.b16 %v4596
    %v5740 = vunpack.c.h.b16 %v4596
    %v5741 = vunpack.c.l.b16 %v4597
    %v5742 = vunpack.c.h.b16 %v4597
    %v5743 = vunpack.c.l.b16 %v4598
    %v5744 = vunpack.c.l.b16 %v4599
    %v5745 = vunpack.c.h.b16 %v4599
    %v5746 = vunpack.c.l.b16 %v4600
    %v5747 = vunpack.c.h.b16 %v4600
    %v5748 = vunpack.c.l.b16 %v4601
    %v5749 = vunpack.c.h.b16 %v4601
    %v5750 = vunpack.c.l.b16 %v4602
    %v5751 = vunpack.c.l.b16 %v4603
    %v5752 = vunpack.c.h.b16 %v4603
    %v5753 = vunpack.c.l.b16 %v4604
    %v5754 = vunpack.c.h.b16 %v4604
    %v5755 = vunpack.c.l.b16 %v4605
    %v5756 = vunpack.c.h.b16 %v4605
    %v5757 = vunpack.c.l.b16 %v4606
    %v5758 = vunpack.c.l.b16 %v4607
    %v5759 = vunpack.c.h.b16 %v4607
    %v5760 = vunpack.c.l.b16 %v4608
    %v5761 = vunpack.c.h.b16 %v4608
    %v5762 = vunpack.c.l.b16 %v4609
    %v5763 = vunpack.c.h.b16 %v4609
    %v5764 = vunpack.c.l.b16 %v4610
    %v5765 = vunpack.c.l.b16 %v4611
    %v5766 = vunpack.c.h.b16 %v4611
    %v5767 = vunpack.c.l.b16 %v4612
    %v5768 = vunpack.c.h.b16 %v4612
    %v5769 = vunpack.c.l.b16 %v4613
    %v5770 = vunpack.c.h.b16 %v4613
    %v5771 = vunpack.c.l.b16 %v4614
    %v5772 = vunpack.c.l.b16 %v4615
    %v5773 = vunpack.c.h.b16 %v4615
    %v5774 = vunpack.c.l.b16 %v4616
    %v5775 = vunpack.c.h.b16 %v4616
    %v5776 = vunpack.c.l.b16 %v4617
    %v5777 = vunpack.c.h.b16 %v4617
    %v5778 = vunpack.c.l.b16 %v4618
    %v5779 = vunpack.c.l.b16 %v4619
    %v5780 = vunpack.c.h.b16 %v4619
    %v5781 = vunpack.c.l.b16 %v4620
    %v5782 = vunpack.c.h.b16 %v4620
    %v5783 = vunpack.c.l.b16 %v4621
    %v5784 = vunpack.c.h.b16 %v4621
    %v5785 = vunpack.c.l.b16 %v4622
    %v5786 = vunpack.c.l.b16 %v4623
    %v5787 = vunpack.c.h.b16 %v4623
    %v5788 = vunpack.c.l.b16 %v4624
    %v5789 = vunpack.c.h.b16 %v4624
    %v5790 = vunpack.c.l.b16 %v4625
    %v5791 = vunpack.c.h.b16 %v4625
    %v5792 = vunpack.c.l.b16 %v4626
    %v5793 = vunpack.c.l.b16 %v4627
    %v5794 = vunpack.c.h.b16 %v4627
    %v5795 = vunpack.c.l.b16 %v4628
    %v5796 = vunpack.c.h.b16 %v4628
    %v5797 = vunpack.c.l.b16 %v4629
    %v5798 = vunpack.c.h.b16 %v4629
    %v5799 = vunpack.c.l.b16 %v4630
    %v5800 = vunpack.c.l.b16 %v4631
    %v5801 = vunpack.c.h.b16 %v4631
    %v5802 = vunpack.c.l.b16 %v4632
    %v5803 = vunpack.c.h.b16 %v4632
    %v5804 = vunpack.c.l.b16 %v4633
    %v5805 = vunpack.c.h.b16 %v4633
    %v5806 = vunpack.c.l.b16 %v4634
    %v5807 = vunpack.c.l.b16 %v4635
    %v5808 = vunpack.c.h.b16 %v4635
    %v5809 = vunpack.c.l.b16 %v4636
    %v5810 = vunpack.c.h.b16 %v4636
    %v5811 = vunpack.c.l.b16 %v4637
    %v5812 = vunpack.c.h.b16 %v4637
    %v5813 = vunpack.c.l.b16 %v4638
    %v5814 = vunpack.c.l.b16 %v4639
    %v5815 = vunpack.c.h.b16 %v4639
    %v5816 = vunpack.c.l.b16 %v4640
    %v5817 = vunpack.c.h.b16 %v4640
    %v5818 = vunpack.c.l.b16 %v4641
    %v5819 = vunpack.c.h.b16 %v4641
    %v5820 = vunpack.c.l.b16 %v4642
    %v5821 = vunpack.c.l.b16 %v4643
    %v5822 = vunpack.c.h.b16 %v4643
    %v5823 = vunpack.c.l.b16 %v4644
    %v5824 = vunpack.c.h.b16 %v4644
    %v5825 = vunpack.c.l.b16 %v4645
    %v5826 = vunpack.c.h.b16 %v4645
    %v5827 = vunpack.c.l.b16 %v4646
    %v5828 = vunpack.c.l.b16 %v4647
    %v5829 = vunpack.c.h.b16 %v4647
    %v5830 = vunpack.c.l.b16 %v4648
    %v5831 = vunpack.c.h.b16 %v4648
    %v5832 = vunpack.c.l.b16 %v4649
    %v5833 = vunpack.c.h.b16 %v4649
    %v5834 = vunpack.c.l.b16 %v4650
    %v5835 = vunpack.c.l.b16 %v4651
    %v5836 = vunpack.c.h.b16 %v4651
    %v5837 = vunpack.c.l.b16 %v4652
    %v5838 = vunpack.c.h.b16 %v4652
    %v5839 = vunpack.c.l.b16 %v4653
    %v5840 = vunpack.c.h.b16 %v4653
    %v5841 = vunpack.c.l.b16 %v4654
    %v5842 = vunpack.c.l.b16 %v4655
    %v5843 = vunpack.c.h.b16 %v4655
    %v5844 = vunpack.c.l.b16 %v4656
    %v5845 = vunpack.c.h.b16 %v4656
    %v5846 = vunpack.c.l.b16 %v4657
    %v5847 = vunpack.c.h.b16 %v4657
    %v5848 = vunpack.c.l.b16 %v4658
    %v5849 = vunpack.c.l.b16 %v4659
    %v5850 = vunpack.c.h.b16 %v4659
    %v5851 = vunpack.c.l.b16 %v4660
    %v5852 = vunpack.c.h.b16 %v4660
    %v5853 = vunpack.c.l.b16 %v4661
    %v5854 = vunpack.c.h.b16 %v4661
    %v5855 = vunpack.c.l.b16 %v4662
    %v5856 = vunpack.c.l.b16 %v4663
    %v5857 = vunpack.c.h.b16 %v4663
    %v5858 = vunpack.c.l.b16 %v4664
    %v5859 = vunpack.c.h.b16 %v4664
    %v5860 = vunpack.c.l.b16 %v4665
    %v5861 = vunpack.c.h.b16 %v4665
    %v5862 = vunpack.c.l.b16 %v4666
    %v5863 = vunpack.c.l.b16 %v4667
    %v5864 = vunpack.c.h.b16 %v4667
    %v5865 = vunpack.c.l.b16 %v4668
    %v5866 = vunpack.c.h.b16 %v4668
    %v5867 = vunpack.c.l.b16 %v4669
    %v5868 = vunpack.c.h.b16 %v4669
    %v5869 = vunpack.c.l.b16 %v4670
    %v5870 = vunpack.c.l.b16 %v4671
    %v5871 = vunpack.c.h.b16 %v4671
    %v5872 = vunpack.c.l.b16 %v4672
    %v5873 = vunpack.c.h.b16 %v4672
    %v5874 = vunpack.c.l.b16 %v4673
    %v5875 = vunpack.c.h.b16 %v4673
    %v5876 = vunpack.c.l.b16 %v4674
    %v5877 = vunpack.c.l.b16 %v4675
    %v5878 = vunpack.c.h.b16 %v4675
    %v5879 = vunpack.c.l.b16 %v4676
    %v5880 = vunpack.c.h.b16 %v4676
    %v5881 = vunpack.c.l.b16 %v4677
    %v5882 = vunpack.c.h.b16 %v4677
    %v5883 = vunpack.c.l.b16 %v4678
    %v5884 = vunpack.c.l.b16 %v4679
    %v5885 = vunpack.c.h.b16 %v4679
    %v5886 = vunpack.c.l.b16 %v4680
    %v5887 = vunpack.c.h.b16 %v4680
    %v5888 = vunpack.c.l.b16 %v4681
    %v5889 = vunpack.c.h.b16 %v4681
    %v5890 = vunpack.c.l.b16 %v4682
    %v5891 = vunpack.c.l.b16 %v4683
    %v5892 = vunpack.c.h.b16 %v4683
    %v5893 = vunpack.c.l.b16 %v4684
    %v5894 = vunpack.c.h.b16 %v4684
    %v5895 = vunpack.c.l.b16 %v4685
    %v5896 = vunpack.c.h.b16 %v4685
    %v5897 = vunpack.c.l.b16 %v4686
    %v5898 = vunpack.c.l.b16 %v4687
    %v5899 = vunpack.c.h.b16 %v4687
    %v5900 = vunpack.c.l.b16 %v4688
    %v5901 = vunpack.c.h.b16 %v4688
    %v5902 = vunpack.c.l.b16 %v4689
    %v5903 = vunpack.c.h.b16 %v4689
    %v5904 = vunpack.c.l.b16 %v4690
    %v5905 = vunpack.c.l.b16 %v4691
    %v5906 = vunpack.c.h.b16 %v4691
    %v5907 = vunpack.c.l.b16 %v4692
    %v5908 = vunpack.c.h.b16 %v4692
    %v5909 = vunpack.c.l.b16 %v4693
    %v5910 = vunpack.c.h.b16 %v4693
    %v5911 = vunpack.c.l.b16 %v4694
    %v5912 = vunpack.c.l.b16 %v4695
    %v5913 = vunpack.c.h.b16 %v4695
    %v5914 = vunpack.c.l.b16 %v4696
    %v5915 = vunpack.c.h.b16 %v4696
    %v5916 = vunpack.c.l.b16 %v4697
    %v5917 = vunpack.c.h.b16 %v4697
    %v5918 = vunpack.c.l.b16 %v4698
    %v5919 = vunpack.c.l.b16 %v4699
    %v5920 = vunpack.c.h.b16 %v4699
    %v5921 = vunpack.c.l.b16 %v4700
    %v5922 = vunpack.c.h.b16 %v4700
    %v5923 = vunpack.c.l.b16 %v4701
    %v5924 = vunpack.c.h.b16 %v4701
    %v5925 = vunpack.c.l.b16 %v4702
    %v5926 = vunpack.c.l.b16 %v4703
    %v5927 = vunpack.c.h.b16 %v4703
    %v5928 = vunpack.c.l.b16 %v4704
    %v5929 = vunpack.c.h.b16 %v4704
    %v5930 = vunpack.c.l.b16 %v4705
    %v5931 = vunpack.c.h.b16 %v4705
    %v5932 = vunpack.c.l.b16 %v4706
    %v5933 = vunpack.c.l.b16 %v4707
    %v5934 = vunpack.c.h.b16 %v4707
    %v5935 = vunpack.c.l.b16 %v4708
    %v5936 = vunpack.c.h.b16 %v4708
    %v5937 = vunpack.c.l.b16 %v4709
    %v5938 = vunpack.c.h.b16 %v4709
    %v5939 = vunpack.c.l.b16 %v4710
    %v5940 = vunpack.c.l.b16 %v4711
    %v5941 = vunpack.c.h.b16 %v4711
    %v5942 = vunpack.c.l.b16 %v4712
    %v5943 = vunpack.c.h.b16 %v4712
    %v5944 = vunpack.c.l.b16 %v4713
    %v5945 = vunpack.c.h.b16 %v4713
    %v5946 = vunpack.c.l.b16 %v4714
    %v5947 = vunpack.c.l.b16 %v4715
    %v5948 = vunpack.c.h.b16 %v4715
    %v5949 = vunpack.c.l.b16 %v4716
    %v5950 = vunpack.c.h.b16 %v4716
    %v5951 = vunpack.c.l.b16 %v4717
    %v5952 = vunpack.c.h.b16 %v4717
    %v5953 = vunpack.c.l.b16 %v4718
    %v5954 = vunpack.c.l.b16 %v4719
    %v5955 = vunpack.c.h.b16 %v4719
    %v5956 = vunpack.c.l.b16 %v4720
    %v5957 = vunpack.c.h.b16 %v4720
    %v5958 = vunpack.c.l.b16 %v4721
    %v5959 = vunpack.c.h.b16 %v4721
    %v5960 = vunpack.c.l.b16 %v4722
    %v5961 = vunpack.c.l.b16 %v4723
    %v5962 = vunpack.c.h.b16 %v4723
    %v5963 = vunpack.c.l.b16 %v4724
    %v5964 = vunpack.c.h.b16 %v4724
    %v5965 = vunpack.c.l.b16 %v4725
    %v5966 = vunpack.c.h.b16 %v4725
    %v5967 = vunpack.c.l.b16 %v4726
    %v5968 = vunpack.c.l.b16 %v4727
    %v5969 = vunpack.c.h.b16 %v4727
    %v5970 = vunpack.c.l.b16 %v4728
    %v5971 = vunpack.c.h.b16 %v4728
    %v5972 = vunpack.c.l.b16 %v4729
    %v5973 = vunpack.c.h.b16 %v4729
    %v5974 = vunpack.c.l.b16 %v4730
    %v5975 = vunpack.c.l.b16 %v4731
    %v5976 = vunpack.c.h.b16 %v4731
    %v5977 = vunpack.c.l.b16 %v4732
    %v5978 = vunpack.c.h.b16 %v4732
    %v5979 = vunpack.c.l.b16 %v4733
    %v5980 = vunpack.c.h.b16 %v4733
    %v5981 = vunpack.c.l.b16 %v4734
    %v5982 = vunpack.c.l.b16 %v4735
    %v5983 = vunpack.c.h.b16 %v4735
    %v5984 = vunpack.c.l.b16 %v4736
    %v5985 = vunpack.c.h.b16 %v4736
    %v5986 = vunpack.c.l.b16 %v4737
    %v5987 = vunpack.c.h.b16 %v4737
    %v5988 = vunpack.c.l.b16 %v4738
    %v5989 = vunpack.c.l.b16 %v4739
    %v5990 = vunpack.c.h.b16 %v4739
    %v5991 = vunpack.c.l.b16 %v4740
    %v5992 = vunpack.c.h.b16 %v4740
    %v5993 = vunpack.c.l.b16 %v4741
    %v5994 = vunpack.c.h.b16 %v4741
    %v5995 = vunpack.c.l.b16 %v4742
    %v5996 = vunpack.c.l.b16 %v4743
    %v5997 = vunpack.c.h.b16 %v4743
    %v5998 = vunpack.c.l.b16 %v4744
    %v5999 = vunpack.c.h.b16 %v4744
    %v6000 = vunpack.c.l.b16 %v4745
    %v6001 = vunpack.c.h.b16 %v4745
    %v6002 = vunpack.c.l.b16 %v4746
    %v6003 = vunpack.c.l.b16 %v4747
    %v6004 = vunpack.c.h.b16 %v4747
    %v6005 = vunpack.c.l.b16 %v4748
    %v6006 = vunpack.c.h.b16 %v4748
    %v6007 = vunpack.c.l.b16 %v4749
    %v6008 = vunpack.c.h.b16 %v4749
    %v6009 = vunpack.c.l.b16 %v4750
    %v6010 = vunpack.c.l.b16 %v4751
    %v6011 = vunpack.c.h.b16 %v4751
    %v6012 = vunpack.c.l.b16 %v4752
    %v6013 = vunpack.c.h.b16 %v4752
    %v6014 = vunpack.c.l.b16 %v4753
    %v6015 = vunpack.c.h.b16 %v4753
    %v6016 = vunpack.c.l.b16 %v4754
    %v6017 = vunpack.c.l.b16 %v4755
    %v6018 = vunpack.c.h.b16 %v4755
    %v6019 = vunpack.c.l.b16 %v4756
    %v6020 = vunpack.c.h.b16 %v4756
    %v6021 = vunpack.c.l.b16 %v4757
    %v6022 = vunpack.c.h.b16 %v4757
    %v6023 = vunpack.c.l.b16 %v4758
    %v6024 = vunpack.c.l.b16 %v4759
    %v6025 = vunpack.c.h.b16 %v4759
    %v6026 = vunpack.c.l.b16 %v4760
    %v6027 = vunpack.c.h.b16 %v4760
    %v6028 = vunpack.c.l.b16 %v4761
    %v6029 = vunpack.c.h.b16 %v4761
    %v6030 = vunpack.c.l.b16 %v4762
    %v6031 = vunpack.c.l.b16 %v4763
    %v6032 = vunpack.c.h.b16 %v4763
    %v6033 = vunpack.c.l.b16 %v4764
    %v6034 = vunpack.c.h.b16 %v4764
    %v6035 = vunpack.c.l.b16 %v4765
    %v6036 = vunpack.c.h.b16 %v4765
    %v6037 = vunpack.c.l.b16 %v4766
    %v6038 = vunpack.c.l.b16 %v4767
    %v6039 = vunpack.c.h.b16 %v4767
    %v6040 = vunpack.c.l.b16 %v4768
    %v6041 = vunpack.c.h.b16 %v4768
    %v6042 = vunpack.c.l.b16 %v4769
    %v6043 = vunpack.c.h.b16 %v4769
    %v6044 = vunpack.c.l.b16 %v4770
    %v6045 = vunpack.c.l.b16 %v4771
    %v6046 = vunpack.c.h.b16 %v4771
    %v6047 = vunpack.c.l.b16 %v4772
    %v6048 = vunpack.c.h.b16 %v4772
    %v6049 = vunpack.c.l.b16 %v4773
    %v6050 = vunpack.c.h.b16 %v4773
    %v6051 = vunpack.c.l.b16 %v4774
    %v6052 = vunpack.c.l.b16 %v4775
    %v6053 = vunpack.c.h.b16 %v4775
    %v6054 = vunpack.c.l.b16 %v4776
    %v6055 = vunpack.c.h.b16 %v4776
    %v6056 = vunpack.c.l.b16 %v4777
    %v6057 = vunpack.c.h.b16 %v4777
    %v6058 = vunpack.c.l.b16 %v4778
    %v6059 = vunpack.c.l.b16 %v4779
    %v6060 = vunpack.c.h.b16 %v4779
    %v6061 = vunpack.c.l.b16 %v4780
    %v6062 = vunpack.c.h.b16 %v4780
    %v6063 = vunpack.c.l.b16 %v4781
    %v6064 = vunpack.c.h.b16 %v4781
    %v6065 = vunpack.c.l.b16 %v4782
    %v6066 = vunpack.c.l.b16 %v4783
    %v6067 = vunpack.c.h.b16 %v4783
    %v6068 = vunpack.c.l.b16 %v4784
    %v6069 = vunpack.c.h.b16 %v4784
    %v6070 = vunpack.c.l.b16 %v4785
    %v6071 = vunpack.c.h.b16 %v4785
    %v6072 = vunpack.c.l.b16 %v4786
    %v6073 = vunpack.c.l.b16 %v4787
    %v6074 = vunpack.c.h.b16 %v4787
    %v6075 = vunpack.c.l.b16 %v4788
    %v6076 = vunpack.c.h.b16 %v4788
    %v6077 = vunpack.c.l.b16 %v4789
    %v6078 = vunpack.c.h.b16 %v4789
    %v6079 = vunpack.c.l.b16 %v4790
    %v6080 = vunpack.c.l.b16 %v4791
    %v6081 = vunpack.c.h.b16 %v4791
    %v6082 = vunpack.c.l.b16 %v4792
    %v6083 = vunpack.c.h.b16 %v4792
    %v6084 = vunpack.c.l.b16 %v4793
    %v6085 = vunpack.c.h.b16 %v4793
    %v6086 = vunpack.c.l.b16 %v4794
    %v6087 = vunpack.c.l.b16 %v4795
    %v6088 = vunpack.c.h.b16 %v4795
    %v6089 = vunpack.c.l.b16 %v4796
    %v6090 = vunpack.c.h.b16 %v4796
    %v6091 = vunpack.c.l.b16 %v4797
    %v6092 = vunpack.c.h.b16 %v4797
    %v6093 = vunpack.c.l.b16 %v4798
    %v6094 = vunpack.c.l.b16 %v4799
    %v6095 = vunpack.c.h.b16 %v4799
    %v6096 = vunpack.c.l.b16 %v4800
    %v6097 = vunpack.c.h.b16 %v4800
    %v6098 = vunpack.c.l.b16 %v4801
    %v6099 = vunpack.c.h.b16 %v4801
    %v6100 = vunpack.c.l.b16 %v4802
    %v6101 = vunpack.c.l.b16 %v4803
    %v6102 = vunpack.c.h.b16 %v4803
    %v6103 = vunpack.c.l.b16 %v4804
    %v6104 = vunpack.c.h.b16 %v4804
    %v6105 = vunpack.c.l.b16 %v4805
    %v6106 = vunpack.c.h.b16 %v4805
    %v6107 = vunpack.c.l.b16 %v4806
    %v6108 = vunpack.c.l.b16 %v4807
    %v6109 = vunpack.c.h.b16 %v4807
    %v6110 = vunpack.c.l.b16 %v4808
    %v6111 = vunpack.c.h.b16 %v4808
    %v6112 = vunpack.c.l.b16 %v4809
    %v6113 = vunpack.c.h.b16 %v4809
    %v6114 = vunpack.c.l.b16 %v4810
    %v6115 = vunpack.c.l.b16 %v4811
    %v6116 = vunpack.c.h.b16 %v4811
    %v6117 = vunpack.c.l.b16 %v4812
    %v6118 = vunpack.c.h.b16 %v4812
    %v6119 = vunpack.c.l.b16 %v4813
    %v6120 = vunpack.c.h.b16 %v4813
    %v6121 = vunpack.c.l.b16 %v4814
    %v6122 = vunpack.c.l.b16 %v4815
    %v6123 = vunpack.c.h.b16 %v4815
    %v6124 = vunpack.c.l.b16 %v4816
    %v6125 = vunpack.c.h.b16 %v4816
    %v6126 = vunpack.c.l.b16 %v4817
    %v6127 = vunpack.c.h.b16 %v4817
    %v6128 = vunpack.c.l.b16 %v4818
    %v6129 = vunpack.c.l.b16 %v4819
    %v6130 = vunpack.c.h.b16 %v4819
    %v6131 = vunpack.c.l.b16 %v4820
    %v6132 = vunpack.c.h.b16 %v4820
    %v6133 = vunpack.c.l.b16 %v4821
    %v6134 = vunpack.c.h.b16 %v4821
    %v6135 = vunpack.c.l.b16 %v4822
    %v6136 = vunpack.c.l.b16 %v4823
    %v6137 = vunpack.c.h.b16 %v4823
    %v6138 = vunpack.c.l.b16 %v4824
    %v6139 = vunpack.c.h.b16 %v4824
    %v6140 = vunpack.c.l.b16 %v4825
    %v6141 = vunpack.c.h.b16 %v4825
    %v6142 = vunpack.c.l.b16 %v4826
    %v6143 = vunpack.c.l.b16 %v4827
    %v6144 = vunpack.c.h.b16 %v4827
    %v6145 = vunpack.c.l.b16 %v4828
    %v6146 = vunpack.c.h.b16 %v4828
    %v6147 = vunpack.c.l.b16 %v4829
    %v6148 = vunpack.c.h.b16 %v4829
    %v6149 = vunpack.c.l.b16 %v4830
    %v6150 = vunpack.c.l.b16 %v4831
    %v6151 = vunpack.c.h.b16 %v4831
    %v6152 = vunpack.c.l.b16 %v4832
    %v6153 = vunpack.c.h.b16 %v4832
    %v6154 = vunpack.c.l.b16 %v4833
    %v6155 = vunpack.c.h.b16 %v4833
    %v6156 = vunpack.c.l.b16 %v4834
    %v6157 = vunpack.c.l.b16 %v4835
    %v6158 = vunpack.c.h.b16 %v4835
    %v6159 = vunpack.c.l.b16 %v4836
    %v6160 = vunpack.c.h.b16 %v4836
    %v6161 = vunpack.c.l.b16 %v4837
    %v6162 = vunpack.c.h.b16 %v4837
    %v6163 = vunpack.c.l.b16 %v4838
    %v6164 = vunpack.c.l.b16 %v4839
    %v6165 = vunpack.c.h.b16 %v4839
    %v6166 = vunpack.c.l.b16 %v4840
    %v6167 = vunpack.c.h.b16 %v4840
    %v6168 = vunpack.c.l.b16 %v4841
    %v6169 = vunpack.c.h.b16 %v4841
    %v6170 = vunpack.c.l.b16 %v4842
    %v6171 = vunpack.c.l.b16 %v4843
    %v6172 = vunpack.c.h.b16 %v4843
    %v6173 = vunpack.c.l.b16 %v4844
    %v6174 = vunpack.c.h.b16 %v4844
    %v6175 = vunpack.c.l.b16 %v4845
    %v6176 = vunpack.c.h.b16 %v4845
    %v6177 = vunpack.c.l.b16 %v4846
    %v6178 = vunpack.c.l.b16 %v4847
    %v6179 = vunpack.c.h.b16 %v4847
    %v6180 = vunpack.c.l.b16 %v4848
    %v6181 = vunpack.c.h.b16 %v4848
    %v6182 = vunpack.c.l.b16 %v4849
    %v6183 = vunpack.c.h.b16 %v4849
    %v6184 = vunpack.c.l.b16 %v4850
    %v6185 = vunpack.c.l.b16 %v4851
    %v6186 = vunpack.c.h.b16 %v4851
    %v6187 = vunpack.c.l.b16 %v4852
    %v6188 = vunpack.c.h.b16 %v4852
    %v6189 = vunpack.c.l.b16 %v4853
    %v6190 = vunpack.c.h.b16 %v4853
    %v6191 = vunpack.c.l.b16 %v4854
    %v6192 = vunpack.c.l.b16 %v4855
    %v6193 = vunpack.c.h.b16 %v4855
    %v6194 = vunpack.c.l.b16 %v4856
    %v6195 = vunpack.c.h.b16 %v4856
    %v6196 = vunpack.c.l.b16 %v4857
    %v6197 = vunpack.c.h.b16 %v4857
    %v6198 = vunpack.c.l.b16 %v4858
    %v6199 = vunpack.c.l.b16 %v4859
    %v6200 = vunpack.c.h.b16 %v4859
    %v6201 = vunpack.c.l.b16 %v4860
    %v6202 = vunpack.c.h.b16 %v4860
    %v6203 = vunpack.c.l.b16 %v4861
    %v6204 = vunpack.c.h.b16 %v4861
    %v6205 = vunpack.c.l.b16 %v4862
    %v6206 = vunpack.c.l.b16 %v4863
    %v6207 = vunpack.c.h.b16 %v4863
    %v6208 = vunpack.c.l.b16 %v4864
    %v6209 = vunpack.c.h.b16 %v4864
    %v6210 = vunpack.c.l.b16 %v4865
    %v6211 = vunpack.c.h.b16 %v4865
    %v6212 = vunpack.c.l.b16 %v4866
    %v6213 = vunpack.c.l.b16 %v4867
    %v6214 = vunpack.c.h.b16 %v4867
    %v6215 = vunpack.c.l.b16 %v4868
    %v6216 = vunpack.c.h.b16 %v4868
    %v6217 = vunpack.c.l.b16 %v4869
    %v6218 = vunpack.c.h.b16 %v4869
    %v6219 = vunpack.c.l.b16 %v4870
    %v6220 = vunpack.c.l.b16 %v4871
    %v6221 = vunpack.c.h.b16 %v4871
    %v6222 = vunpack.c.l.b16 %v4872
    %v6223 = vunpack.c.h.b16 %v4872
    %v6224 = vunpack.c.l.b16 %v4873
    %v6225 = vunpack.c.h.b16 %v4873
    %v6226 = vunpack.c.l.b16 %v4874
    %v6227 = vunpack.c.l.b16 %v4875
    %v6228 = vunpack.c.h.b16 %v4875
    %v6229 = vunpack.c.l.b16 %v4876
    %v6230 = vunpack.c.h.b16 %v4876
    %v6231 = vunpack.c.l.b16 %v4877
    %v6232 = vunpack.c.h.b16 %v4877
    %v6233 = vunpack.c.l.b16 %v4878
    %v6234 = vunpack.c.l.b16 %v4879
    %v6235 = vunpack.c.h.b16 %v4879
    %v6236 = vunpack.c.l.b16 %v4880
    %v6237 = vunpack.c.h.b16 %v4880
    %v6238 = vunpack.c.l.b16 %v4881
    %v6239 = vunpack.c.h.b16 %v4881
    %v6240 = vunpack.c.l.b16 %v4882
    %v6241 = vunpack.c.l.b16 %v4883
    %v6242 = vunpack.c.h.b16 %v4883
    %v6243 = vunpack.c.l.b16 %v4884
    %v6244 = vunpack.c.h.b16 %v4884
    %v6245 = vunpack.c.l.b16 %v4885
    %v6246 = vunpack.c.h.b16 %v4885
    %v6247 = vunpack.c.l.b16 %v4886
    %v6248 = vunpack.c.l.b16 %v4887
    %v6249 = vunpack.c.h.b16 %v4887
    %v6250 = vunpack.c.l.b16 %v4888
    %v6251 = vunpack.c.h.b16 %v4888
    %v6252 = vunpack.c.l.b16 %v4889
    %v6253 = vunpack.c.h.b16 %v4889
    %v6254 = vunpack.c.l.b16 %v4890
    %v6255 = vunpack.c.l.b16 %v4891
    %v6256 = vunpack.c.h.b16 %v4891
    %v6257 = vunpack.c.l.b16 %v4892
    %v6258 = vunpack.c.h.b16 %v4892
    %v6259 = vunpack.c.l.b16 %v4893
    %v6260 = vunpack.c.h.b16 %v4893
    %v6261 = vunpack.c.l.b16 %v4894
    %v6262 = vunpack.c.l.b16 %v4895
    %v6263 = vunpack.c.h.b16 %v4895
    %v6264 = vunpack.c.l.b16 %v4896
    %v6265 = vunpack.c.h.b16 %v4896
    %v6266 = vunpack.c.l.b16 %v4897
    %v6267 = vunpack.c.h.b16 %v4897
    %v6268 = vunpack.c.l.b16 %v4898
    %v6269 = vunpack.c.l.b16 %v4899
    %v6270 = vunpack.c.h.b16 %v4899
    %v6271 = vunpack.c.l.b16 %v4900
    %v6272 = vunpack.c.h.b16 %v4900
    %v6273 = vunpack.c.l.b16 %v4901
    %v6274 = vunpack.c.h.b16 %v4901
    %v6275 = vunpack.c.l.b16 %v4902
    %v6276 = vunpack.c.l.b16 %v4903
    %v6277 = vunpack.c.h.b16 %v4903
    %v6278 = vunpack.c.l.b16 %v4904
    %v6279 = vunpack.c.h.b16 %v4904
    %v6280 = vunpack.c.l.b16 %v4905
    %v6281 = vunpack.c.h.b16 %v4905
    %v6282 = vunpack.c.l.b16 %v4906
    %v6283 = vunpack.c.l.b16 %v4907
    %v6284 = vunpack.c.h.b16 %v4907
    %v6285 = vunpack.c.l.b16 %v4908
    %v6286 = vunpack.c.h.b16 %v4908
    %v6287 = vunpack.c.l.b16 %v4909
    %v6288 = vunpack.c.h.b16 %v4909
    %v6289 = vunpack.c.l.b16 %v4910
    %v6290 = vunpack.c.l.b16 %v4911
    %v6291 = vunpack.c.h.b16 %v4911
    %v6292 = vunpack.c.l.b16 %v4912
    %v6293 = vunpack.c.h.b16 %v4912
    %v6294 = vunpack.c.l.b16 %v4913
    %v6295 = vunpack.c.h.b16 %v4913
    %v6296 = vunpack.c.l.b16 %v4914
    %v6297 = vunpack.c.l.b16 %v4915
    %v6298 = vunpack.c.h.b16 %v4915
    %v6299 = vunpack.c.l.b16 %v4916
    %v6300 = vunpack.c.h.b16 %v4916
    %v6301 = vunpack.c.l.b16 %v4917
    %v6302 = vunpack.c.h.b16 %v4917
    %v6303 = vunpack.c.l.b16 %v4918
    %v6304 = vunpack.c.l.b16 %v4919
    %v6305 = vunpack.c.h.b16 %v4919
    %v6306 = vunpack.c.l.b16 %v4920
    %v6307 = vunpack.c.h.b16 %v4920
    %v6308 = vunpack.c.l.b16 %v4921
    %v6309 = vunpack.c.h.b16 %v4921
    %v6310 = vunpack.c.l.b16 %v4922
    %v6311 = vunpack.c.l.b16 %v4923
    %v6312 = vunpack.c.h.b16 %v4923
    %v6313 = vunpack.c.l.b16 %v4924
    %v6314 = vunpack.c.h.b16 %v4924
    %v6315 = vunpack.c.l.b16 %v4925
    %v6316 = vunpack.c.h.b16 %v4925
    %v6317 = vunpack.c.l.b16 %v4926
    %v6318 = vunpack.c.l.b16 %v4927
    %v6319 = vunpack.c.h.b16 %v4927
    %v6320 = vunpack.c.l.b16 %v4928
    %v6321 = vunpack.c.h.b16 %v4928
    %v6322 = vunpack.c.l.b16 %v4929
    %v6323 = vunpack.c.h.b16 %v4929
    %v6324 = vunpack.c.l.b16 %v4930
    %v6325 = vunpack.c.l.b16 %v4931
    %v6326 = vunpack.c.h.b16 %v4931
    %v6327 = vunpack.c.l.b16 %v4932
    %v6328 = vunpack.c.h.b16 %v4932
    %v6329 = vunpack.c.l.b16 %v4933
    %v6330 = vunpack.c.h.b16 %v4933
    %v6331 = vunpack.c.l.b16 %v4934
    %v6332 = vunpack.c.l.b16 %v4935
    %v6333 = vunpack.c.h.b16 %v4935
    %v6334 = vunpack.c.l.b16 %v4936
    %v6335 = vunpack.c.h.b16 %v4936
    %v6336 = vunpack.c.l.b16 %v4937
    %v6337 = vunpack.c.h.b16 %v4937
    %v6338 = vunpack.c.l.b16 %v4938
    %v6339 = vunpack.c.l.b16 %v4939
    %v6340 = vunpack.c.h.b16 %v4939
    %v6341 = vunpack.c.l.b16 %v4940
    %v6342 = vunpack.c.h.b16 %v4940
    %v6343 = vunpack.c.l.b16 %v4941
    %v6344 = vunpack.c.h.b16 %v4941
    %v6345 = vunpack.c.l.b16 %v4942
    %v6346 = vunpack.c.l.b16 %v4943
    %v6347 = vunpack.c.h.b16 %v4943
    %v6348 = vunpack.c.l.b16 %v4944
    %v6349 = vunpack.c.h.b16 %v4944
    %v6350 = vunpack.c.l.b16 %v4945
    %v6351 = vunpack.c.h.b16 %v4945
    %v6352 = vunpack.c.l.b16 %v4946
    %v6353 = vunpack.c.l.b16 %v4947
    %v6354 = vunpack.c.h.b16 %v4947
    %v6355 = vunpack.c.l.b16 %v4948
    %v6356 = vunpack.c.h.b16 %v4948
    %v6357 = vunpack.c.l.b16 %v4949
    %v6358 = vunpack.c.h.b16 %v4949
    %v6359 = vunpack.c.l.b16 %v4950
    %v6360 = vunpack.c.l.b16 %v4951
    %v6361 = vunpack.c.h.b16 %v4951
    %v6362 = vunpack.c.l.b16 %v4952
    %v6363 = vunpack.c.h.b16 %v4952
    %v6364 = vunpack.c.l.b16 %v4953
    %v6365 = vunpack.c.h.b16 %v4953
    %v6366 = vunpack.c.l.b16 %v4954
    %v6367 = vunpack.c.l.b16 %v4955
    %v6368 = vunpack.c.h.b16 %v4955
    %v6369 = vunpack.c.l.b16 %v4956
    %v6370 = vunpack.c.h.b16 %v4956
    %v6371 = vunpack.c.l.b16 %v4957
    %v6372 = vunpack.c.h.b16 %v4957
    %v6373 = vunpack.c.l.b16 %v4958
    %v6374 = vunpack.c.l.b16 %v4959
    %v6375 = vunpack.c.h.b16 %v4959
    %v6376 = vunpack.c.l.b16 %v4960
    %v6377 = vunpack.c.h.b16 %v4960
    %v6378 = vunpack.c.l.b16 %v4961
    %v6379 = vunpack.c.h.b16 %v4961
    %v6380 = vunpack.c.l.b16 %v4962
    %v6381 = vunpack.c.l.b16 %v4963
    %v6382 = vunpack.c.h.b16 %v4963
    %v6383 = vunpack.c.l.b16 %v4964
    %v6384 = vunpack.c.h.b16 %v4964
    %v6385 = vunpack.c.l.b16 %v4965
    %v6386 = vunpack.c.h.b16 %v4965
    %v6387 = vunpack.c.l.b16 %v4966
    %v6388 = vunpack.c.l.b16 %v4967
    %v6389 = vunpack.c.h.b16 %v4967
    %v6390 = vunpack.c.l.b16 %v4968
    %v6391 = vunpack.c.h.b16 %v4968
    %v6392 = vunpack.c.l.b16 %v4969
    %v6393 = vunpack.c.h.b16 %v4969
    %v6394 = vunpack.c.l.b16 %v4970
    %v6395 = vunpack.c.l.b16 %v4971
    %v6396 = vunpack.c.h.b16 %v4971
    %v6397 = vunpack.c.l.b16 %v4972
    %v6398 = vunpack.c.h.b16 %v4972
    %v6399 = vunpack.c.l.b16 %v4973
    %v6400 = vunpack.c.h.b16 %v4973
    %v6401 = vunpack.c.l.b16 %v4974
    %v6402 = vunpack.c.l.b16 %v4975
    %v6403 = vunpack.c.h.b16 %v4975
    %v6404 = vunpack.c.l.b16 %v4976
    %v6405 = vunpack.c.h.b16 %v4976
    %v6406 = vunpack.c.l.b16 %v4977
    %v6407 = vunpack.c.h.b16 %v4977
    %v6408 = vunpack.c.l.b16 %v4978
    %v6409 = vunpack.c.l.b16 %v4979
    %v6410 = vunpack.c.h.b16 %v4979
    %v6411 = vunpack.c.l.b16 %v4980
    %v6412 = vunpack.c.h.b16 %v4980
    %v6413 = vunpack.c.l.b16 %v4981
    %v6414 = vunpack.c.h.b16 %v4981
    %v6415 = vunpack.c.l.b16 %v4982
    %v6416 = vunpack.c.l.b16 %v4983
    %v6417 = vunpack.c.h.b16 %v4983
    %v6418 = vunpack.c.l.b16 %v4984
    %v6419 = vunpack.c.h.b16 %v4984
    %v6420 = vunpack.c.l.b16 %v4985
    %v6421 = vunpack.c.h.b16 %v4985
    %v6422 = vunpack.c.l.b16 %v4986
    %v6423 = vunpack.c.l.b16 %v4987
    %v6424 = vunpack.c.h.b16 %v4987
    %v6425 = vunpack.c.l.b16 %v4988
    %v6426 = vunpack.c.h.b16 %v4988
    %v6427 = vunpack.c.l.b16 %v4989
    %v6428 = vunpack.c.h.b16 %v4989
    %v6429 = vunpack.c.l.b16 %v4990
    %v6430 = vunpack.c.l.b16 %v4991
    %v6431 = vunpack.c.h.b16 %v4991
    %v6432 = vunpack.c.l.b16 %v4992
    %v6433 = vunpack.c.h.b16 %v4992
    %v6434 = vunpack.c.l.b16 %v4993
    %v6435 = vunpack.c.h.b16 %v4993
    %v6436 = vunpack.c.l.b16 %v4994
    %v6437 = vunpack.c.l.b16 %v4995
    %v6438 = vunpack.c.h.b16 %v4995
    %v6439 = vunpack.c.l.b16 %v4996
    %v6440 = vunpack.c.h.b16 %v4996
    %v6441 = vunpack.c.l.b16 %v4997
    %v6442 = vunpack.c.h.b16 %v4997
    %v6443 = vunpack.c.l.b16 %v4998
    %v6444 = vpack.c.b16 %v5555, %v5548
    %v6445 = vpack.c.b16 %v5556, %v5549
    %v6446 = vpack.c.b16 %v5557, %v5550
    %v6447 = vpack.c.b16 %v5558, %v5551
    %v6448 = vpack.c.b16 %v5559, %v5552
    %v6449 = vpack.c.b16 %v5560, %v5553
    %v6450 = vpack.c.b16 %v5561, %v5554
    %v6451 = vpack.c.b16 %v5569, %v5562
    %v6452 = vpack.c.b16 %v5570, %v5563
    %v6453 = vpack.c.b16 %v5571, %v5564
    %v6454 = vpack.c.b16 %v5572, %v5565
    %v6455 = vpack.c.b16 %v5573, %v5566
    %v6456 = vpack.c.b16 %v5574, %v5567
    %v6457 = vpack.c.b16 %v5575, %v5568
    %v6458 = vpack.c.b16 %v5583, %v5576
    %v6459 = vpack.c.b16 %v5584, %v5577
    %v6460 = vpack.c.b16 %v5585, %v5578
    %v6461 = vpack.c.b16 %v5586, %v5579
    %v6462 = vpack.c.b16 %v5587, %v5580
    %v6463 = vpack.c.b16 %v5588, %v5581
    %v6464 = vpack.c.b16 %v5589, %v5582
    %v6465 = vpack.c.b16 %v5597, %v5590
    %v6466 = vpack.c.b16 %v5598, %v5591
    %v6467 = vpack.c.b16 %v5599, %v5592
    %v6468 = vpack.c.b16 %v5600, %v5593
    %v6469 = vpack.c.b16 %v5601, %v5594
    %v6470 = vpack.c.b16 %v5602, %v5595
    %v6471 = vpack.c.b16 %v5603, %v5596
    %v6472 = vpack.c.b16 %v5611, %v5604
    %v6473 = vpack.c.b16 %v5612, %v5605
    %v6474 = vpack.c.b16 %v5613, %v5606
    %v6475 = vpack.c.b16 %v5614, %v5607
    %v6476 = vpack.c.b16 %v5615, %v5608
    %v6477 = vpack.c.b16 %v5616, %v5609
    %v6478 = vpack.c.b16 %v5617, %v5610
    %v6479 = vpack.c.b16 %v5625, %v5618
    %v6480 = vpack.c.b16 %v5626, %v5619
    %v6481 = vpack.c.b16 %v5627, %v5620
    %v6482 = vpack.c.b16 %v5628, %v5621
    %v6483 = vpack.c.b16 %v5629, %v5622
    %v6484 = vpack.c.b16 %v5630, %v5623
    %v6485 = vpack.c.b16 %v5631, %v5624
    %v6486 = vpack.c.b16 %v5639, %v5632
    %v6487 = vpack.c.b16 %v5640, %v5633
    %v6488 = vpack.c.b16 %v5641, %v5634
    %v6489 = vpack.c.b16 %v5642, %v5635
    %v6490 = vpack.c.b16 %v5643, %v5636
    %v6491 = vpack.c.b16 %v5644, %v5637
    %v6492 = vpack.c.b16 %v5645, %v5638
    %v6493 = vpack.c.b16 %v5653, %v5646
    %v6494 = vpack.c.b16 %v5654, %v5647
    %v6495 = vpack.c.b16 %v5655, %v5648
    %v6496 = vpack.c.b16 %v5656, %v5649
    %v6497 = vpack.c.b16 %v5657, %v5650
    %v6498 = vpack.c.b16 %v5658, %v5651
    %v6499 = vpack.c.b16 %v5659, %v5652
    %v6500 = vpack.c.b16 %v5667, %v5660
    %v6501 = vpack.c.b16 %v5668, %v5661
    %v6502 = vpack.c.b16 %v5669, %v5662
    %v6503 = vpack.c.b16 %v5670, %v5663
    %v6504 = vpack.c.b16 %v5671, %v5664
    %v6505 = vpack.c.b16 %v5672, %v5665
    %v6506 = vpack.c.b16 %v5673, %v5666
    %v6507 = vpack.c.b16 %v5681, %v5674
    %v6508 = vpack.c.b16 %v5682, %v5675
    %v6509 = vpack.c.b16 %v5683, %v5676
    %v6510 = vpack.c.b16 %v5684, %v5677
    %v6511 = vpack.c.b16 %v5685, %v5678
    %v6512 = vpack.c.b16 %v5686, %v5679
    %v6513 = vpack.c.b16 %v5687, %v5680
    %v6514 = vpack.c.b16 %v5695, %v5688
    %v6515 = vpack.c.b16 %v5696, %v5689
    %v6516 = vpack.c.b16 %v5697, %v5690
    %v6517 = vpack.c.b16 %v5698, %v5691
    %v6518 = vpack.c.b16 %v5699, %v5692
    %v6519 = vpack.c.b16 %v5700, %v5693
    %v6520 = vpack.c.b16 %v5701, %v5694
    %v6521 = vpack.c.b16 %v5709, %v5702
    %v6522 = vpack.c.b16 %v5710, %v5703
    %v6523 = vpack.c.b16 %v5711, %v5704
    %v6524 = vpack.c.b16 %v5712, %v5705
    %v6525 = vpack.c.b16 %v5713, %v5706
    %v6526 = vpack.c.b16 %v5714, %v5707
    %v6527 = vpack.c.b16 %v5715, %v5708
    %v6528 = vpack.c.b16 %v5723, %v5716
    %v6529 = vpack.c.b16 %v5724, %v5717
    %v6530 = vpack.c.b16 %v5725, %v5718
    %v6531 = vpack.c.b16 %v5726, %v5719
    %v6532 = vpack.c.b16 %v5727, %v5720
    %v6533 = vpack.c.b16 %v5728, %v5721
    %v6534 = vpack.c.b16 %v5729, %v5722
    %v6535 = vpack.c.b16 %v5737, %v5730
    %v6536 = vpack.c.b16 %v5738, %v5731
    %v6537 = vpack.c.b16 %v5739, %v5732
    %v6538 = vpack.c.b16 %v5740, %v5733
    %v6539 = vpack.c.b16 %v5741, %v5734
    %v6540 = vpack.c.b16 %v5742, %v5735
    %v6541 = vpack.c.b16 %v5743, %v5736
    %v6542 = vpack.c.b16 %v5751, %v5744
    %v6543 = vpack.c.b16 %v5752, %v5745
    %v6544 = vpack.c.b16 %v5753, %v5746
    %v6545 = vpack.c.b16 %v5754, %v5747
    %v6546 = vpack.c.b16 %v5755, %v5748
    %v6547 = vpack.c.b16 %v5756, %v5749
    %v6548 = vpack.c.b16 %v5757, %v5750
    %v6549 = vpack.c.b16 %v5765, %v5758
    %v6550 = vpack.c.b16 %v5766, %v5759
    %v6551 = vpack.c.b16 %v5767, %v5760
    %v6552 = vpack.c.b16 %v5768, %v5761
    %v6553 = vpack.c.b16 %v5769, %v5762
    %v6554 = vpack.c.b16 %v5770, %v5763
    %v6555 = vpack.c.b16 %v5771, %v5764
    %v6556 = vpack.c.b16 %v5779, %v5772
    %v6557 = vpack.c.b16 %v5780, %v5773
    %v6558 = vpack.c.b16 %v5781, %v5774
    %v6559 = vpack.c.b16 %v5782, %v5775
    %v6560 = vpack.c.b16 %v5783, %v5776
    %v6561 = vpack.c.b16 %v5784, %v5777
    %v6562 = vpack.c.b16 %v5785, %v5778
    %v6563 = vpack.c.b16 %v5793, %v5786
    %v6564 = vpack.c.b16 %v5794, %v5787
    %v6565 = vpack.c.b16 %v5795, %v5788
    %v6566 = vpack.c.b16 %v5796, %v5789
    %v6567 = vpack.c.b16 %v5797, %v5790
    %v6568 = vpack.c.b16 %v5798, %v5791
    %v6569 = vpack.c.b16 %v5799, %v5792
    %v6570 = vpack.c.b16 %v5807, %v5800
    %v6571 = vpack.c.b16 %v5808, %v5801
    %v6572 = vpack.c.b16 %v5809, %v5802
    %v6573 = vpack.c.b16 %v5810, %v5803
    %v6574 = vpack.c.b16 %v5811, %v5804
    %v6575 = vpack.c.b16 %v5812, %v5805
    %v6576 = vpack.c.b16 %v5813, %v5806
    %v6577 = vpack.c.b16 %v5821, %v5814
    %v6578 = vpack.c.b16 %v5822, %v5815
    %v6579 = vpack.c.b16 %v5823, %v5816
    %v6580 = vpack.c.b16 %v5824, %v5817
    %v6581 = vpack.c.b16 %v5825, %v5818
    %v6582 = vpack.c.b16 %v5826, %v5819
    %v6583 = vpack.c.b16 %v5827, %v5820
    %v6584 = vpack.c.b16 %v5835, %v5828
    %v6585 = vpack.c.b16 %v5836, %v5829
    %v6586 = vpack.c.b16 %v5837, %v5830
    %v6587 = vpack.c.b16 %v5838, %v5831
    %v6588 = vpack.c.b16 %v5839, %v5832
    %v6589 = vpack.c.b16 %v5840, %v5833
    %v6590 = vpack.c.b16 %v5841, %v5834
    %v6591 = vpack.c.b16 %v5849, %v5842
    %v6592 = vpack.c.b16 %v5850, %v5843
    %v6593 = vpack.c.b16 %v5851, %v5844
    %v6594 = vpack.c.b16 %v5852, %v5845
    %v6595 = vpack.c.b16 %v5853, %v5846
    %v6596 = vpack.c.b16 %v5854, %v5847
    %v6597 = vpack.c.b16 %v5855, %v5848
    %v6598 = vpack.c.b16 %v5863, %v5856
    %v6599 = vpack.c.b16 %v5864, %v5857
    %v6600 = vpack.c.b16 %v5865, %v5858
    %v6601 = vpack.c.b16 %v5866, %v5859
    %v6602 = vpack.c.b16 %v5867, %v5860
    %v6603 = vpack.c.b16 %v5868, %v5861
    %v6604 = vpack.c.b16 %v5869, %v5862
    %v6605 = vpack.c.b16 %v5877, %v5870
    %v6606 = vpack.c.b16 %v5878, %v5871
    %v6607 = vpack.c.b16 %v5879, %v5872
    %v6608 = vpack.c.b16 %v5880, %v5873
    %v6609 = vpack.c.b16 %v5881, %v5874
    %v6610 = vpack.c.b16 %v5882, %v5875
    %v6611 = vpack.c.b16 %v5883, %v5876
    %v6612 = vpack.c.b16 %v5891, %v5884
    %v6613 = vpack.c.b16 %v5892, %v5885
    %v6614 = vpack.c.b16 %v5893, %v5886
    %v6615 = vpack.c.b16 %v5894, %v5887
    %v6616 = vpack.c.b16 %v5895, %v5888
    %v6617 = vpack.c.b16 %v5896, %v5889
    %v6618 = vpack.c.b16 %v5897, %v5890
    %v6619 = vpack.c.b16 %v5905, %v5898
    %v6620 = vpack.c.b16 %v5906, %v5899
    %v6621 = vpack.c.b16 %v5907, %v5900
    %v6622 = vpack.c.b16 %v5908, %v5901
    %v6623 = vpack.c.b16 %v5909, %v5902
    %v6624 = vpack.c.b16 %v5910, %v5903
    %v6625 = vpack.c.b16 %v5911, %v5904
    %v6626 = vpack.c.b16 %v5919, %v5912
    %v6627 = vpack.c.b16 %v5920, %v5913
    %v6628 = vpack.c.b16 %v5921, %v5914
    %v6629 = vpack.c.b16 %v5922, %v5915
    %v6630 = vpack.c.b16 %v5923, %v5916
    %v6631 = vpack.c.b16 %v5924, %v5917
    %v6632 = vpack.c.b16 %v5925, %v5918
    %v6633 = vpack.c.b16 %v5933, %v5926
    %v6634 = vpack.c.b16 %v5934, %v5927
    %v6635 = vpack.c.b16 %v5935, %v5928
    %v6636 = vpack.c.b16 %v5936, %v5929
    %v6637 = vpack.c.b16 %v5937, %v5930
    %v6638 = vpack.c.b16 %v5938, %v5931
    %v6639 = vpack.c.b16 %v5939, %v5932
    %v6640 = vpack.c.b16 %v5947, %v5940
    %v6641 = vpack.c.b16 %v5948, %v5941
    %v6642 = vpack.c.b16 %v5949, %v5942
    %v6643 = vpack.c.b16 %v5950, %v5943
    %v6644 = vpack.c.b16 %v5951, %v5944
    %v6645 = vpack.c.b16 %v5952, %v5945
    %v6646 = vpack.c.b16 %v5953, %v5946
    %v6647 = vpack.c.b16 %v5961, %v5954
    %v6648 = vpack.c.b16 %v5962, %v5955
    %v6649 = vpack.c.b16 %v5963, %v5956
    %v6650 = vpack.c.b16 %v5964, %v5957
    %v6651 = vpack.c.b16 %v5965, %v5958
    %v6652 = vpack.c.b16 %v5966, %v5959
    %v6653 = vpack.c.b16 %v5967, %v5960
    %v6654 = vpack.c.b16 %v5975, %v5968
    %v6655 = vpack.c.b16 %v5976, %v5969
    %v6656 = vpack.c.b16 %v5977, %v5970
    %v6657 = vpack.c.b16 %v5978, %v5971
    %v6658 = vpack.c.b16 %v5979, %v5972
    %v6659 = vpack.c.b16 %v5980, %v5973
    %v6660 = vpack.c.b16 %v5981, %v5974
    %v6661 = vpack.c.b16 %v5989, %v5982
    %v6662 = vpack.c.b16 %v5990, %v5983
    %v6663 = vpack.c.b16 %v5991, %v5984
    %v6664 = vpack.c.b16 %v5992, %v5985
    %v6665 = vpack.c.b16 %v5993, %v5986
    %v6666 = vpack.c.b16 %v5994, %v5987
    %v6667 = vpack.c.b16 %v5995, %v5988
    %v6668 = vpack.c.b16 %v6003, %v5996
    %v6669 = vpack.c.b16 %v6004, %v5997
    %v6670 = vpack.c.b16 %v6005, %v5998
    %v6671 = vpack.c.b16 %v6006, %v5999
    %v6672 = vpack.c.b16 %v6007, %v6000
    %v6673 = vpack.c.b16 %v6008, %v6001
    %v6674 = vpack.c.b16 %v6009, %v6002
    %v6675 = vpack.c.b16 %v6017, %v6010
    %v6676 = vpack.c.b16 %v6018, %v6011
    %v6677 = vpack.c.b16 %v6019, %v6012
    %v6678 = vpack.c.b16 %v6020, %v6013
    %v6679 = vpack.c.b16 %v6021, %v6014
    %v6680 = vpack.c.b16 %v6022, %v6015
    %v6681 = vpack.c.b16 %v6023, %v6016
    %v6682 = vpack.c.b16 %v6031, %v6024
    %v6683 = vpack.c.b16 %v6032, %v6025
    %v6684 = vpack.c.b16 %v6033, %v6026
    %v6685 = vpack.c.b16 %v6034, %v6027
    %v6686 = vpack.c.b16 %v6035, %v6028
    %v6687 = vpack.c.b16 %v6036, %v6029
    %v6688 = vpack.c.b16 %v6037, %v6030
    %v6689 = vpack.c.b16 %v6045, %v6038
    %v6690 = vpack.c.b16 %v6046, %v6039
    %v6691 = vpack.c.b16 %v6047, %v6040
    %v6692 = vpack.c.b16 %v6048, %v6041
    %v6693 = vpack.c.b16 %v6049, %v6042
    %v6694 = vpack.c.b16 %v6050, %v6043
    %v6695 = vpack.c.b16 %v6051, %v6044
    %v6696 = vpack.c.b16 %v6059, %v6052
    %v6697 = vpack.c.b16 %v6060, %v6053
    %v6698 = vpack.c.b16 %v6061, %v6054
    %v6699 = vpack.c.b16 %v6062, %v6055
    %v6700 = vpack.c.b16 %v6063, %v6056
    %v6701 = vpack.c.b16 %v6064, %v6057
    %v6702 = vpack.c.b16 %v6065, %v6058
    %v6703 = vpack.c.b16 %v6073, %v6066
    %v6704 = vpack.c.b16 %v6074, %v6067
    %v6705 = vpack.c.b16 %v6075, %v6068
    %v6706 = vpack.c.b16 %v6076, %v6069
    %v6707 = vpack.c.b16 %v6077, %v6070
    %v6708 = vpack.c.b16 %v6078, %v6071
    %v6709 = vpack.c.b16 %v6079, %v6072
    %v6710 = vpack.c.b16 %v6087, %v6080
    %v6711 = vpack.c.b16 %v6088, %v6081
    %v6712 = vpack.c.b16 %v6089, %v6082
    %v6713 = vpack.c.b16 %v6090, %v6083
    %v6714 = vpack.c.b16 %v6091, %v6084
    %v6715 = vpack.c.b16 %v6092, %v6085
    %v6716 = vpack.c.b16 %v6093, %v6086
    %v6717 = vpack.c.b16 %v6101, %v6094
    %v6718 = vpack.c.b16 %v6102, %v6095
    %v6719 = vpack.c.b16 %v6103, %v6096
    %v6720 = vpack.c.b16 %v6104, %v6097
    %v6721 = vpack.c.b16 %v6105, %v6098
    %v6722 = vpack.c.b16 %v6106, %v6099
    %v6723 = vpack.c.b16 %v6107, %v6100
    %v6724 = vpack.c.b16 %v6115, %v6108
    %v6725 = vpack.c.b16 %v6116, %v6109
    %v6726 = vpack.c.b16 %v6117, %v6110
    %v6727 = vpack.c.b16 %v6118, %v6111
    %v6728 = vpack.c.b16 %v6119, %v6112
    %v6729 = vpack.c.b16 %v6120, %v6113
    %v6730 = vpack.c.b16 %v6121, %v6114
    %v6731 = vpack.c.b16 %v6129, %v6122
    %v6732 = vpack.c.b16 %v6130, %v6123
    %v6733 = vpack.c.b16 %v6131, %v6124
    %v6734 = vpack.c.b16 %v6132, %v6125
    %v6735 = vpack.c.b16 %v6133, %v6126
    %v6736 = vpack.c.b16 %v6134, %v6127
    %v6737 = vpack.c.b16 %v6135, %v6128
    %v6738 = vpack.c.b16 %v6143, %v6136
    %v6739 = vpack.c.b16 %v6144, %v6137
    %v6740 = vpack.c.b16 %v6145, %v6138
    %v6741 = vpack.c.b16 %v6146, %v6139
    %v6742 = vpack.c.b16 %v6147, %v6140
    %v6743 = vpack.c.b16 %v6148, %v6141
    %v6744 = vpack.c.b16 %v6149, %v6142
    %v6745 = vpack.c.b16 %v6157, %v6150
    %v6746 = vpack.c.b16 %v6158, %v6151
    %v6747 = vpack.c.b16 %v6159, %v6152
    %v6748 = vpack.c.b16 %v6160, %v6153
    %v6749 = vpack.c.b16 %v6161, %v6154
    %v6750 = vpack.c.b16 %v6162, %v6155
    %v6751 = vpack.c.b16 %v6163, %v6156
    %v6752 = vpack.c.b16 %v6171, %v6164
    %v6753 = vpack.c.b16 %v6172, %v6165
    %v6754 = vpack.c.b16 %v6173, %v6166
    %v6755 = vpack.c.b16 %v6174, %v6167
    %v6756 = vpack.c.b16 %v6175, %v6168
    %v6757 = vpack.c.b16 %v6176, %v6169
    %v6758 = vpack.c.b16 %v6177, %v6170
    %v6759 = vpack.c.b16 %v6185, %v6178
    %v6760 = vpack.c.b16 %v6186, %v6179
    %v6761 = vpack.c.b16 %v6187, %v6180
    %v6762 = vpack.c.b16 %v6188, %v6181
    %v6763 = vpack.c.b16 %v6189, %v6182
    %v6764 = vpack.c.b16 %v6190, %v6183
    %v6765 = vpack.c.b16 %v6191, %v6184
    %v6766 = vpack.c.b16 %v6199, %v6192
    %v6767 = vpack.c.b16 %v6200, %v6193
    %v6768 = vpack.c.b16 %v6201, %v6194
    %v6769 = vpack.c.b16 %v6202, %v6195
    %v6770 = vpack.c.b16 %v6203, %v6196
    %v6771 = vpack.c.b16 %v6204, %v6197
    %v6772 = vpack.c.b16 %v6205, %v6198
    %v6773 = vpack.c.b16 %v6213, %v6206
    %v6774 = vpack.c.b16 %v6214, %v6207
    %v6775 = vpack.c.b16 %v6215, %v6208
    %v6776 = vpack.c.b16 %v6216, %v6209
    %v6777 = vpack.c.b16 %v6217, %v6210
    %v6778 = vpack.c.b16 %v6218, %v6211
    %v6779 = vpack.c.b16 %v6219, %v6212
    %v6780 = vpack.c.b16 %v6227, %v6220
    %v6781 = vpack.c.b16 %v6228, %v6221
    %v6782 = vpack.c.b16 %v6229, %v6222
    %v6783 = vpack.c.b16 %v6230, %v6223
    %v6784 = vpack.c.b16 %v6231, %v6224
    %v6785 = vpack.c.b16 %v6232, %v6225
    %v6786 = vpack.c.b16 %v6233, %v6226
    %v6787 = vpack.c.b16 %v6241, %v6234
    %v6788 = vpack.c.b16 %v6242, %v6235
    %v6789 = vpack.c.b16 %v6243, %v6236
    %v6790 = vpack.c.b16 %v6244, %v6237
    %v6791 = vpack.c.b16 %v6245, %v6238
    %v6792 = vpack.c.b16 %v6246, %v6239
    %v6793 = vpack.c.b16 %v6247, %v6240
    %v6794 = vpack.c.b16 %v6255, %v6248
    %v6795 = vpack.c.b16 %v6256, %v6249
    %v6796 = vpack.c.b16 %v6257, %v6250
    %v6797 = vpack.c.b16 %v6258, %v6251
    %v6798 = vpack.c.b16 %v6259, %v6252
    %v6799 = vpack.c.b16 %v6260, %v6253
    %v6800 = vpack.c.b16 %v6261, %v6254
    %v6801 = vpack.c.b16 %v6269, %v6262
    %v6802 = vpack.c.b16 %v6270, %v6263
    %v6803 = vpack.c.b16 %v6271, %v6264
    %v6804 = vpack.c.b16 %v6272, %v6265
    %v6805 = vpack.c.b16 %v6273, %v6266
    %v6806 = vpack.c.b16 %v6274, %v6267
    %v6807 = vpack.c.b16 %v6275, %v6268
    %v6808 = vpack.c.b16 %v6283, %v6276
    %v6809 = vpack.c.b16 %v6284, %v6277
    %v6810 = vpack.c.b16 %v6285, %v6278
    %v6811 = vpack.c.b16 %v6286, %v6279
    %v6812 = vpack.c.b16 %v6287, %v6280
    %v6813 = vpack.c.b16 %v6288, %v6281
    %v6814 = vpack.c.b16 %v6289, %v6282
    %v6815 = vpack.c.b16 %v6297, %v6290
    %v6816 = vpack.c.b16 %v6298, %v6291
    %v6817 = vpack.c.b16 %v6299, %v6292
    %v6818 = vpack.c.b16 %v6300, %v6293
    %v6819 = vpack.c.b16 %v6301, %v6294
    %v6820 = vpack.c.b16 %v6302, %v6295
    %v6821 = vpack.c.b16 %v6303, %v6296
    %v6822 = vpack.c.b16 %v6311, %v6304
    %v6823 = vpack.c.b16 %v6312, %v6305
    %v6824 = vpack.c.b16 %v6313, %v6306
    %v6825 = vpack.c.b16 %v6314, %v6307
    %v6826 = vpack.c.b16 %v6315, %v6308
    %v6827 = vpack.c.b16 %v6316, %v6309
    %v6828 = vpack.c.b16 %v6317, %v6310
    %v6829 = vpack.c.b16 %v6325, %v6318
    %v6830 = vpack.c.b16 %v6326, %v6319
    %v6831 = vpack.c.b16 %v6327, %v6320
    %v6832 = vpack.c.b16 %v6328, %v6321
    %v6833 = vpack.c.b16 %v6329, %v6322
    %v6834 = vpack.c.b16 %v6330, %v6323
    %v6835 = vpack.c.b16 %v6331, %v6324
    %v6836 = vpack.c.b16 %v6339, %v6332
    %v6837 = vpack.c.b16 %v6340, %v6333
    %v6838 = vpack.c.b16 %v6341, %v6334
    %v6839 = vpack.c.b16 %v6342, %v6335
    %v6840 = vpack.c.b16 %v6343, %v6336
    %v6841 = vpack.c.b16 %v6344, %v6337
    %v6842 = vpack.c.b16 %v6345, %v6338
    %v6843 = vpack.c.b16 %v6353, %v6346
    %v6844 = vpack.c.b16 %v6354, %v6347
    %v6845 = vpack.c.b16 %v6355, %v6348
    %v6846 = vpack.c.b16 %v6356, %v6349
    %v6847 = vpack.c.b16 %v6357, %v6350
    %v6848 = vpack.c.b16 %v6358, %v6351
    %v6849 = vpack.c.b16 %v6359, %v6352
    %v6850 = vpack.c.b16 %v6367, %v6360
    %v6851 = vpack.c.b16 %v6368, %v6361
    %v6852 = vpack.c.b16 %v6369, %v6362
    %v6853 = vpack.c.b16 %v6370, %v6363
    %v6854 = vpack.c.b16 %v6371, %v6364
    %v6855 = vpack.c.b16 %v6372, %v6365
    %v6856 = vpack.c.b16 %v6373, %v6366
    %v6857 = vpack.c.b16 %v6381, %v6374
    %v6858 = vpack.c.b16 %v6382, %v6375
    %v6859 = vpack.c.b16 %v6383, %v6376
    %v6860 = vpack.c.b16 %v6384, %v6377
    %v6861 = vpack.c.b16 %v6385, %v6378
    %v6862 = vpack.c.b16 %v6386, %v6379
    %v6863 = vpack.c.b16 %v6387, %v6380
    %v6864 = vpack.c.b16 %v6395, %v6388
    %v6865 = vpack.c.b16 %v6396, %v6389
    %v6866 = vpack.c.b16 %v6397, %v6390
    %v6867 = vpack.c.b16 %v6398, %v6391
    %v6868 = vpack.c.b16 %v6399, %v6392
    %v6869 = vpack.c.b16 %v6400, %v6393
    %v6870 = vpack.c.b16 %v6401, %v6394
    %v6871 = vpack.c.b16 %v6409, %v6402
    %v6872 = vpack.c.b16 %v6410, %v6403
    %v6873 = vpack.c.b16 %v6411, %v6404
    %v6874 = vpack.c.b16 %v6412, %v6405
    %v6875 = vpack.c.b16 %v6413, %v6406
    %v6876 = vpack.c.b16 %v6414, %v6407
    %v6877 = vpack.c.b16 %v6415, %v6408
    %v6878 = vpack.c.b16 %v6423, %v6416
    %v6879 = vpack.c.b16 %v6424, %v6417
    %v6880 = vpack.c.b16 %v6425, %v6418
    %v6881 = vpack.c.b16 %v6426, %v6419
    %v6882 = vpack.c.b16 %v6427, %v6420
    %v6883 = vpack.c.b16 %v6428, %v6421
    %v6884 = vpack.c.b16 %v6429, %v6422
    %v6885 = vpack.c.b16 %v6437, %v6430
    %v6886 = vpack.c.b16 %v6438, %v6431
    %v6887 = vpack.c.b16 %v6439, %v6432
    %v6888 = vpack.c.b16 %v6440, %v6433
    %v6889 = vpack.c.b16 %v6441, %v6434
    %v6890 = vpack.c.b16 %v6442, %v6435
    %v6891 = vpack.c.b16 %v6443, %v6436
    %7340 = vmatprep.subr.bf16.mxu0 %v6494
    %7341 = vmatpush1.bf16.msra.mxu0 %v6493
    %7342 = vmatprep.subr.bf16.mxu0 %v6487
    %7343 = vmatpush1.bf16.msra.mxu0 %v6486
    %7344 = vmatprep.subr.bf16.mxu0 %v6480
    %7345 = vmatpush1.bf16.msra.mxu0 %v6479
    %7346 = vmatprep.subr.bf16.mxu0 %v6473
    %7347 = vmatpush1.bf16.msra.mxu0 %v6472
    %7348 = vmatprep.subr.bf16.mxu0 %v6466
    %7349 = vmatpush1.bf16.msra.mxu0 %v6465
    %7350 = vmatprep.subr.bf16.mxu0 %v6459
    %7351 = vmatpush1.bf16.msra.mxu0 %v6458
    %7352 = vmatprep.subr.bf16.mxu0 %v6452
    %7353 = vmatpush1.bf16.msra.mxu0 %v6451
    %7354 = vmatprep.subr.bf16.mxu0 %v6445
    %7355 = vmatpush1.bf16.msra.mxu0 %v6444
    %7356 = vmatprep.subr.bf16.mxu0 %v6550
    %7357 = vmatpush2.bf16.msra.mxu0 %v6549
    %7358 = vmatprep.subr.bf16.mxu0 %v6543
    %7359 = vmatpush2.bf16.msra.mxu0 %v6542
    %7360 = vmatprep.subr.bf16.mxu0 %v6536
    %7361 = vmatpush2.bf16.msra.mxu0 %v6535
    %7362 = vmatprep.subr.bf16.mxu0 %v6529
    %7363 = vmatpush2.bf16.msra.mxu0 %v6528
    %7364 = vmatprep.subr.bf16.mxu0 %v6522
    %7365 = vmatpush2.bf16.msra.mxu0 %v6521
    %7366 = vmatprep.subr.bf16.mxu0 %v6515
    %7367 = vmatpush2.bf16.msra.mxu0 %v6514
    %7368 = vmatprep.subr.bf16.mxu0 %v6508
    %7369 = vmatpush2.bf16.msra.mxu0 %v6507
    %7370 = vmatprep.subr.bf16.mxu0 %v6501
    %7371 = vmatpush2.bf16.msra.mxu0 %v6500
    %7372 = vmatprep.mubr.bf16.mxu0 %v4480
    %7373 = vmatmul.mubr.bf16.gmra.mxu0 %v4479
    %v7374 = vpop.f32.mrf.mxu0
    %v7375 = vadd.f32 %v5004, %v7374
    %v7376 = vpop.f32.mrf.mxu0
    %v7377 = vadd.f32 %v5008, %v7376
    %v7378 = vpop.f32.mrf.mxu0
    %v7379 = vpop.f32.mrf.mxu0
    %7380 = vdwg.mxu0
    %7381 = vmatprep.subr.bf16.mxu0 %v6606
    %7382 = vmatpush1.bf16.msra.mxu0 %v6605
    %7383 = vmatprep.subr.bf16.mxu0 %v6599
    %7384 = vmatpush1.bf16.msra.mxu0 %v6598
    %7385 = vmatprep.subr.bf16.mxu0 %v6592
    %7386 = vmatpush1.bf16.msra.mxu0 %v6591
    %7387 = vmatprep.subr.bf16.mxu0 %v6585
    %7388 = vmatpush1.bf16.msra.mxu0 %v6584
    %7389 = vmatprep.subr.bf16.mxu0 %v6578
    %7390 = vmatpush1.bf16.msra.mxu0 %v6577
    %7391 = vmatprep.subr.bf16.mxu0 %v6571
    %7392 = vmatpush1.bf16.msra.mxu0 %v6570
    %7393 = vmatprep.subr.bf16.mxu0 %v6564
    %7394 = vmatpush1.bf16.msra.mxu0 %v6563
    %7395 = vmatprep.subr.bf16.mxu0 %v6557
    %7396 = vmatpush1.bf16.msra.mxu0 %v6556
    %7397 = vmatprep.subr.bf16.mxu0 %v6662
    %7398 = vmatpush2.bf16.msra.mxu0 %v6661
    %7399 = vmatprep.subr.bf16.mxu0 %v6655
    %7400 = vmatpush2.bf16.msra.mxu0 %v6654
    %7401 = vmatprep.subr.bf16.mxu0 %v6648
    %7402 = vmatpush2.bf16.msra.mxu0 %v6647
    %7403 = vmatprep.subr.bf16.mxu0 %v6641
    %7404 = vmatpush2.bf16.msra.mxu0 %v6640
    %7405 = vmatprep.subr.bf16.mxu0 %v6634
    %7406 = vmatpush2.bf16.msra.mxu0 %v6633
    %7407 = vmatprep.subr.bf16.mxu0 %v6627
    %7408 = vmatpush2.bf16.msra.mxu0 %v6626
    %7409 = vmatprep.subr.bf16.mxu0 %v6620
    %7410 = vmatpush2.bf16.msra.mxu0 %v6619
    %7411 = vmatprep.subr.bf16.mxu0 %v6613
    %7412 = vmatpush2.bf16.msra.mxu0 %v6612
    %7413 = vmatprep.mubr.bf16.mxu0 %v4482
    %7414 = vmatmul.mubr.bf16.gmra.mxu0 %v4481
    %v7415 = vpop.f32.mrf.mxu0
    %v7416 = vadd.f32 %v7375, %v7415
    %v7417 = vpop.f32.mrf.mxu0
    %v7418 = vadd.f32 %v7377, %v7417
    %v7419 = vpop.f32.mrf.mxu0
    %v7420 = vpop.f32.mrf.mxu0
    %7421 = vdwg.mxu0
    %7422 = vmatprep.subr.bf16.mxu0 %v6718
    %7423 = vmatpush1.bf16.msra.mxu0 %v6717
    %7424 = vmatprep.subr.bf16.mxu0 %v6711
    %7425 = vmatpush1.bf16.msra.mxu0 %v6710
    %7426 = vmatprep.subr.bf16.mxu0 %v6704
    %7427 = vmatpush1.bf16.msra.mxu0 %v6703
    %7428 = vmatprep.subr.bf16.mxu0 %v6697
    %7429 = vmatpush1.bf16.msra.mxu0 %v6696
    %7430 = vmatprep.subr.bf16.mxu0 %v6690
    %7431 = vmatpush1.bf16.msra.mxu0 %v6689
    %7432 = vmatprep.subr.bf16.mxu0 %v6683
    %7433 = vmatpush1.bf16.msra.mxu0 %v6682
    %7434 = vmatprep.subr.bf16.mxu0 %v6676
    %7435 = vmatpush1.bf16.msra.mxu0 %v6675
    %7436 = vmatprep.subr.bf16.mxu0 %v6669
    %7437 = vmatpush1.bf16.msra.mxu0 %v6668
    %7438 = vmatprep.subr.bf16.mxu0 %v6774
    %7439 = vmatpush2.bf16.msra.mxu0 %v6773
    %7440 = vmatprep.subr.bf16.mxu0 %v6767
    %7441 = vmatpush2.bf16.msra.mxu0 %v6766
    %7442 = vmatprep.subr.bf16.mxu0 %v6760
    %7443 = vmatpush2.bf16.msra.mxu0 %v6759
    %7444 = vmatprep.subr.bf16.mxu0 %v6753
    %7445 = vmatpush2.bf16.msra.mxu0 %v6752
    %7446 = vmatprep.subr.bf16.mxu0 %v6746
    %7447 = vmatpush2.bf16.msra.mxu0 %v6745
    %7448 = vmatprep.subr.bf16.mxu0 %v6739
    %7449 = vmatpush2.bf16.msra.mxu0 %v6738
    %7450 = vmatprep.subr.bf16.mxu0 %v6732
    %7451 = vmatpush2.bf16.msra.mxu0 %v6731
    %7452 = vmatprep.subr.bf16.mxu0 %v6725
    %7453 = vmatpush2.bf16.msra.mxu0 %v6724
    %7454 = vmatprep.mubr.bf16.mxu0 %v4484
    %7455 = vmatmul.mubr.bf16.gmra.mxu0 %v4483
    %v7456 = vpop.f32.mrf.mxu0
    %v7457 = vadd.f32 %v7416, %v7456
    %v7458 = vpop.f32.mrf.mxu0
    %v7459 = vadd.f32 %v7418, %v7458
    %v7460 = vpop.f32.mrf.mxu0
    %v7461 = vpop.f32.mrf.mxu0
    %7462 = vdwg.mxu0
    %7463 = vmatprep.subr.bf16.mxu0 %v6830
    %7464 = vmatpush1.bf16.msra.mxu0 %v6829
    %7465 = vmatprep.subr.bf16.mxu0 %v6823
    %7466 = vmatpush1.bf16.msra.mxu0 %v6822
    %7467 = vmatprep.subr.bf16.mxu0 %v6816
    %7468 = vmatpush1.bf16.msra.mxu0 %v6815
    %7469 = vmatprep.subr.bf16.mxu0 %v6809
    %7470 = vmatpush1.bf16.msra.mxu0 %v6808
    %7471 = vmatprep.subr.bf16.mxu0 %v6802
    %7472 = vmatpush1.bf16.msra.mxu0 %v6801
    %7473 = vmatprep.subr.bf16.mxu0 %v6795
    %7474 = vmatpush1.bf16.msra.mxu0 %v6794
    %7475 = vmatprep.subr.bf16.mxu0 %v6788
    %7476 = vmatpush1.bf16.msra.mxu0 %v6787
    %7477 = vmatprep.subr.bf16.mxu0 %v6781
    %7478 = vmatpush1.bf16.msra.mxu0 %v6780
    %7479 = vmatprep.subr.bf16.mxu0 %v6886
    %7480 = vmatpush2.bf16.msra.mxu0 %v6885
    %7481 = vmatprep.subr.bf16.mxu0 %v6879
    %7482 = vmatpush2.bf16.msra.mxu0 %v6878
    %7483 = vmatprep.subr.bf16.mxu0 %v6872
    %7484 = vmatpush2.bf16.msra.mxu0 %v6871
    %7485 = vmatprep.subr.bf16.mxu0 %v6865
    %7486 = vmatpush2.bf16.msra.mxu0 %v6864
    %7487 = vmatprep.subr.bf16.mxu0 %v6858
    %7488 = vmatpush2.bf16.msra.mxu0 %v6857
    %7489 = vmatprep.subr.bf16.mxu0 %v6851
    %7490 = vmatpush2.bf16.msra.mxu0 %v6850
    %7491 = vmatprep.subr.bf16.mxu0 %v6844
    %7492 = vmatpush2.bf16.msra.mxu0 %v6843
    %7493 = vmatprep.subr.bf16.mxu0 %v6837
    %7494 = vmatpush2.bf16.msra.mxu0 %v6836
    %7495 = vmatprep.mubr.bf16.mxu0 %v4486
    %7496 = vmatmul.mubr.bf16.gmra.mxu0 %v4485
    %v7497 = vpop.f32.mrf.mxu0
    %v7498 = vadd.f32 %v7457, %v7497
    %v7499 = vpop.f32.mrf.mxu0
    %v7500 = vadd.f32 %v7459, %v7499
    %v7501 = vpop.f32.mrf.mxu0
    %v7502 = vpop.f32.mrf.mxu0
    %7503 = vdwg.mxu0
    %7504 = vmatprep.subr.bf16.mxu0 %v6496
    %7505 = vmatpush1.bf16.msra.mxu0 %v6495
    %7506 = vmatprep.subr.bf16.mxu0 %v6489
    %7507 = vmatpush1.bf16.msra.mxu0 %v6488
    %7508 = vmatprep.subr.bf16.mxu0 %v6482
    %7509 = vmatpush1.bf16.msra.mxu0 %v6481
    %7510 = vmatprep.subr.bf16.mxu0 %v6475
    %7511 = vmatpush1.bf16.msra.mxu0 %v6474
    %7512 = vmatprep.subr.bf16.mxu0 %v6468
    %7513 = vmatpush1.bf16.msra.mxu0 %v6467
    %7514 = vmatprep.subr.bf16.mxu0 %v6461
    %7515 = vmatpush1.bf16.msra.mxu0 %v6460
    %7516 = vmatprep.subr.bf16.mxu0 %v6454
    %7517 = vmatpush1.bf16.msra.mxu0 %v6453
    %7518 = vmatprep.subr.bf16.mxu0 %v6447
    %7519 = vmatpush1.bf16.msra.mxu0 %v6446
    %7520 = vmatprep.subr.bf16.mxu0 %v6552
    %7521 = vmatpush2.bf16.msra.mxu0 %v6551
    %7522 = vmatprep.subr.bf16.mxu0 %v6545
    %7523 = vmatpush2.bf16.msra.mxu0 %v6544
    %7524 = vmatprep.subr.bf16.mxu0 %v6538
    %7525 = vmatpush2.bf16.msra.mxu0 %v6537
    %7526 = vmatprep.subr.bf16.mxu0 %v6531
    %7527 = vmatpush2.bf16.msra.mxu0 %v6530
    %7528 = vmatprep.subr.bf16.mxu0 %v6524
    %7529 = vmatpush2.bf16.msra.mxu0 %v6523
    %7530 = vmatprep.subr.bf16.mxu0 %v6517
    %7531 = vmatpush2.bf16.msra.mxu0 %v6516
    %7532 = vmatprep.subr.bf16.mxu0 %v6510
    %7533 = vmatpush2.bf16.msra.mxu0 %v6509
    %7534 = vmatprep.subr.bf16.mxu0 %v6503
    %7535 = vmatpush2.bf16.msra.mxu0 %v6502
    %7536 = vmatprep.mubr.bf16.mxu0 %v4480
    %7537 = vmatmul.mubr.bf16.gmra.mxu0 %v4479
    %v7538 = vpop.f32.mrf.mxu0
    %v7539 = vadd.f32 %v5012, %v7538
    %v7540 = vpop.f32.mrf.mxu0
    %v7541 = vadd.f32 %v5016, %v7540
    %v7542 = vpop.f32.mrf.mxu0
    %v7543 = vpop.f32.mrf.mxu0
    %7544 = vdwg.mxu0
    %7545 = vmatprep.subr.bf16.mxu0 %v6608
    %7546 = vmatpush1.bf16.msra.mxu0 %v6607
    %7547 = vmatprep.subr.bf16.mxu0 %v6601
    %7548 = vmatpush1.bf16.msra.mxu0 %v6600
    %7549 = vmatprep.subr.bf16.mxu0 %v6594
    %7550 = vmatpush1.bf16.msra.mxu0 %v6593
    %7551 = vmatprep.subr.bf16.mxu0 %v6587
    %7552 = vmatpush1.bf16.msra.mxu0 %v6586
    %7553 = vmatprep.subr.bf16.mxu0 %v6580
    %7554 = vmatpush1.bf16.msra.mxu0 %v6579
    %7555 = vmatprep.subr.bf16.mxu0 %v6573
    %7556 = vmatpush1.bf16.msra.mxu0 %v6572
    %7557 = vmatprep.subr.bf16.mxu0 %v6566
    %7558 = vmatpush1.bf16.msra.mxu0 %v6565
    %7559 = vmatprep.subr.bf16.mxu0 %v6559
    %7560 = vmatpush1.bf16.msra.mxu0 %v6558
    %7561 = vmatprep.subr.bf16.mxu0 %v6664
    %7562 = vmatpush2.bf16.msra.mxu0 %v6663
    %7563 = vmatprep.subr.bf16.mxu0 %v6657
    %7564 = vmatpush2.bf16.msra.mxu0 %v6656
    %7565 = vmatprep.subr.bf16.mxu0 %v6650
    %7566 = vmatpush2.bf16.msra.mxu0 %v6649
    %7567 = vmatprep.subr.bf16.mxu0 %v6643
    %7568 = vmatpush2.bf16.msra.mxu0 %v6642
    %7569 = vmatprep.subr.bf16.mxu0 %v6636
    %7570 = vmatpush2.bf16.msra.mxu0 %v6635
    %7571 = vmatprep.subr.bf16.mxu0 %v6629
    %7572 = vmatpush2.bf16.msra.mxu0 %v6628
    %7573 = vmatprep.subr.bf16.mxu0 %v6622
    %7574 = vmatpush2.bf16.msra.mxu0 %v6621
    %7575 = vmatprep.subr.bf16.mxu0 %v6615
    %7576 = vmatpush2.bf16.msra.mxu0 %v6614
    %7577 = vmatprep.mubr.bf16.mxu0 %v4482
    %7578 = vmatmul.mubr.bf16.gmra.mxu0 %v4481
    %v7579 = vpop.f32.mrf.mxu0
    %v7580 = vadd.f32 %v7539, %v7579
    %v7581 = vpop.f32.mrf.mxu0
    %v7582 = vadd.f32 %v7541, %v7581
    %v7583 = vpop.f32.mrf.mxu0
    %v7584 = vpop.f32.mrf.mxu0
    %7585 = vdwg.mxu0
    %7586 = vmatprep.subr.bf16.mxu0 %v6720
    %7587 = vmatpush1.bf16.msra.mxu0 %v6719
    %7588 = vmatprep.subr.bf16.mxu0 %v6713
    %7589 = vmatpush1.bf16.msra.mxu0 %v6712
    %7590 = vmatprep.subr.bf16.mxu0 %v6706
    %7591 = vmatpush1.bf16.msra.mxu0 %v6705
    %7592 = vmatprep.subr.bf16.mxu0 %v6699
    %7593 = vmatpush1.bf16.msra.mxu0 %v6698
    %7594 = vmatprep.subr.bf16.mxu0 %v6692
    %7595 = vmatpush1.bf16.msra.mxu0 %v6691
    %7596 = vmatprep.subr.bf16.mxu0 %v6685
    %7597 = vmatpush1.bf16.msra.mxu0 %v6684
    %7598 = vmatprep.subr.bf16.mxu0 %v6678
    %7599 = vmatpush1.bf16.msra.mxu0 %v6677
    %7600 = vmatprep.subr.bf16.mxu0 %v6671
    %7601 = vmatpush1.bf16.msra.mxu0 %v6670
    %7602 = vmatprep.subr.bf16.mxu0 %v6776
    %7603 = vmatpush2.bf16.msra.mxu0 %v6775
    %7604 = vmatprep.subr.bf16.mxu0 %v6769
    %7605 = vmatpush2.bf16.msra.mxu0 %v6768
    %7606 = vmatprep.subr.bf16.mxu0 %v6762
    %7607 = vmatpush2.bf16.msra.mxu0 %v6761
    %7608 = vmatprep.subr.bf16.mxu0 %v6755
    %7609 = vmatpush2.bf16.msra.mxu0 %v6754
    %7610 = vmatprep.subr.bf16.mxu0 %v6748
    %7611 = vmatpush2.bf16.msra.mxu0 %v6747
    %7612 = vmatprep.subr.bf16.mxu0 %v6741
    %7613 = vmatpush2.bf16.msra.mxu0 %v6740
    %7614 = vmatprep.subr.bf16.mxu0 %v6734
    %7615 = vmatpush2.bf16.msra.mxu0 %v6733
    %7616 = vmatprep.subr.bf16.mxu0 %v6727
    %7617 = vmatpush2.bf16.msra.mxu0 %v6726
    %7618 = vmatprep.mubr.bf16.mxu0 %v4484
    %7619 = vmatmul.mubr.bf16.gmra.mxu0 %v4483
    %v7620 = vpop.f32.mrf.mxu0
    %v7621 = vadd.f32 %v7580, %v7620
    %v7622 = vpop.f32.mrf.mxu0
    %v7623 = vadd.f32 %v7582, %v7622
    %v7624 = vpop.f32.mrf.mxu0
    %v7625 = vpop.f32.mrf.mxu0
    %7626 = vdwg.mxu0
    %7627 = vmatprep.subr.bf16.mxu0 %v6832
    %7628 = vmatpush1.bf16.msra.mxu0 %v6831
    %7629 = vmatprep.subr.bf16.mxu0 %v6825
    %7630 = vmatpush1.bf16.msra.mxu0 %v6824
    %7631 = vmatprep.subr.bf16.mxu0 %v6818
    %7632 = vmatpush1.bf16.msra.mxu0 %v6817
    %7633 = vmatprep.subr.bf16.mxu0 %v6811
    %7634 = vmatpush1.bf16.msra.mxu0 %v6810
    %7635 = vmatprep.subr.bf16.mxu0 %v6804
    %7636 = vmatpush1.bf16.msra.mxu0 %v6803
    %7637 = vmatprep.subr.bf16.mxu0 %v6797
    %7638 = vmatpush1.bf16.msra.mxu0 %v6796
    %7639 = vmatprep.subr.bf16.mxu0 %v6790
    %7640 = vmatpush1.bf16.msra.mxu0 %v6789
    %7641 = vmatprep.subr.bf16.mxu0 %v6783
    %7642 = vmatpush1.bf16.msra.mxu0 %v6782
    %7643 = vmatprep.subr.bf16.mxu0 %v6888
    %7644 = vmatpush2.bf16.msra.mxu0 %v6887
    %7645 = vmatprep.subr.bf16.mxu0 %v6881
    %7646 = vmatpush2.bf16.msra.mxu0 %v6880
    %7647 = vmatprep.subr.bf16.mxu0 %v6874
    %7648 = vmatpush2.bf16.msra.mxu0 %v6873
    %7649 = vmatprep.subr.bf16.mxu0 %v6867
    %7650 = vmatpush2.bf16.msra.mxu0 %v6866
    %7651 = vmatprep.subr.bf16.mxu0 %v6860
    %7652 = vmatpush2.bf16.msra.mxu0 %v6859
    %7653 = vmatprep.subr.bf16.mxu0 %v6853
    %7654 = vmatpush2.bf16.msra.mxu0 %v6852
    %7655 = vmatprep.subr.bf16.mxu0 %v6846
    %7656 = vmatpush2.bf16.msra.mxu0 %v6845
    %7657 = vmatprep.subr.bf16.mxu0 %v6839
    %7658 = vmatpush2.bf16.msra.mxu0 %v6838
    %7659 = vmatprep.mubr.bf16.mxu0 %v4486
    %7660 = vmatmul.mubr.bf16.gmra.mxu0 %v4485
    %v7661 = vpop.f32.mrf.mxu0
    %v7662 = vadd.f32 %v7621, %v7661
    %v7663 = vpop.f32.mrf.mxu0
    %v7664 = vadd.f32 %v7623, %v7663
    %v7665 = vpop.f32.mrf.mxu0
    %v7666 = vpop.f32.mrf.mxu0
    %7667 = vdwg.mxu0
    %7668 = vmatprep.subr.bf16.mxu0 %v6498
    %7669 = vmatpush1.bf16.msra.mxu0 %v6497
    %7670 = vmatprep.subr.bf16.mxu0 %v6491
    %7671 = vmatpush1.bf16.msra.mxu0 %v6490
    %7672 = vmatprep.subr.bf16.mxu0 %v6484
    %7673 = vmatpush1.bf16.msra.mxu0 %v6483
    %7674 = vmatprep.subr.bf16.mxu0 %v6477
    %7675 = vmatpush1.bf16.msra.mxu0 %v6476
    %7676 = vmatprep.subr.bf16.mxu0 %v6470
    %7677 = vmatpush1.bf16.msra.mxu0 %v6469
    %7678 = vmatprep.subr.bf16.mxu0 %v6463
    %7679 = vmatpush1.bf16.msra.mxu0 %v6462
    %7680 = vmatprep.subr.bf16.mxu0 %v6456
    %7681 = vmatpush1.bf16.msra.mxu0 %v6455
    %7682 = vmatprep.subr.bf16.mxu0 %v6449
    %7683 = vmatpush1.bf16.msra.mxu0 %v6448
    %7684 = vmatprep.subr.bf16.mxu0 %v6554
    %7685 = vmatpush2.bf16.msra.mxu0 %v6553
    %7686 = vmatprep.subr.bf16.mxu0 %v6547
    %7687 = vmatpush2.bf16.msra.mxu0 %v6546
    %7688 = vmatprep.subr.bf16.mxu0 %v6540
    %7689 = vmatpush2.bf16.msra.mxu0 %v6539
    %7690 = vmatprep.subr.bf16.mxu0 %v6533
    %7691 = vmatpush2.bf16.msra.mxu0 %v6532
    %7692 = vmatprep.subr.bf16.mxu0 %v6526
    %7693 = vmatpush2.bf16.msra.mxu0 %v6525
    %7694 = vmatprep.subr.bf16.mxu0 %v6519
    %7695 = vmatpush2.bf16.msra.mxu0 %v6518
    %7696 = vmatprep.subr.bf16.mxu0 %v6512
    %7697 = vmatpush2.bf16.msra.mxu0 %v6511
    %7698 = vmatprep.subr.bf16.mxu0 %v6505
    %7699 = vmatpush2.bf16.msra.mxu0 %v6504
    %7700 = vmatprep.mubr.bf16.mxu0 %v4480
    %7701 = vmatmul.mubr.bf16.gmra.mxu0 %v4479
    %v7702 = vpop.f32.mrf.mxu0
    %v7703 = vadd.f32 %v5020, %v7702
    %v7704 = vpop.f32.mrf.mxu0
    %v7705 = vadd.f32 %v5024, %v7704
    %v7706 = vpop.f32.mrf.mxu0
    %v7707 = vpop.f32.mrf.mxu0
    %7708 = vdwg.mxu0
    %7709 = vmatprep.subr.bf16.mxu0 %v6610
    %7710 = vmatpush1.bf16.msra.mxu0 %v6609
    %7711 = vmatprep.subr.bf16.mxu0 %v6603
    %7712 = vmatpush1.bf16.msra.mxu0 %v6602
    %7713 = vmatprep.subr.bf16.mxu0 %v6596
    %7714 = vmatpush1.bf16.msra.mxu0 %v6595
    %7715 = vmatprep.subr.bf16.mxu0 %v6589
    %7716 = vmatpush1.bf16.msra.mxu0 %v6588
    %7717 = vmatprep.subr.bf16.mxu0 %v6582
    %7718 = vmatpush1.bf16.msra.mxu0 %v6581
    %7719 = vmatprep.subr.bf16.mxu0 %v6575
    %7720 = vmatpush1.bf16.msra.mxu0 %v6574
    %7721 = vmatprep.subr.bf16.mxu0 %v6568
    %7722 = vmatpush1.bf16.msra.mxu0 %v6567
    %7723 = vmatprep.subr.bf16.mxu0 %v6561
    %7724 = vmatpush1.bf16.msra.mxu0 %v6560
    %7725 = vmatprep.subr.bf16.mxu0 %v6666
    %7726 = vmatpush2.bf16.msra.mxu0 %v6665
    %7727 = vmatprep.subr.bf16.mxu0 %v6659
    %7728 = vmatpush2.bf16.msra.mxu0 %v6658
    %7729 = vmatprep.subr.bf16.mxu0 %v6652
    %7730 = vmatpush2.bf16.msra.mxu0 %v6651
    %7731 = vmatprep.subr.bf16.mxu0 %v6645
    %7732 = vmatpush2.bf16.msra.mxu0 %v6644
    %7733 = vmatprep.subr.bf16.mxu0 %v6638
    %7734 = vmatpush2.bf16.msra.mxu0 %v6637
    %7735 = vmatprep.subr.bf16.mxu0 %v6631
    %7736 = vmatpush2.bf16.msra.mxu0 %v6630
    %7737 = vmatprep.subr.bf16.mxu0 %v6624
    %7738 = vmatpush2.bf16.msra.mxu0 %v6623
    %7739 = vmatprep.subr.bf16.mxu0 %v6617
    %7740 = vmatpush2.bf16.msra.mxu0 %v6616
    %7741 = vmatprep.mubr.bf16.mxu0 %v4482
    %7742 = vmatmul.mubr.bf16.gmra.mxu0 %v4481
    %v7743 = vpop.f32.mrf.mxu0
    %v7744 = vadd.f32 %v7703, %v7743
    %v7745 = vpop.f32.mrf.mxu0
    %v7746 = vadd.f32 %v7705, %v7745
    %v7747 = vpop.f32.mrf.mxu0
    %v7748 = vpop.f32.mrf.mxu0
    %7749 = vdwg.mxu0
    %7750 = vmatprep.subr.bf16.mxu0 %v6722
    %7751 = vmatpush1.bf16.msra.mxu0 %v6721
    %7752 = vmatprep.subr.bf16.mxu0 %v6715
    %7753 = vmatpush1.bf16.msra.mxu0 %v6714
    %7754 = vmatprep.subr.bf16.mxu0 %v6708
    %7755 = vmatpush1.bf16.msra.mxu0 %v6707
    %7756 = vmatprep.subr.bf16.mxu0 %v6701
    %7757 = vmatpush1.bf16.msra.mxu0 %v6700
    %7758 = vmatprep.subr.bf16.mxu0 %v6694
    %7759 = vmatpush1.bf16.msra.mxu0 %v6693
    %7760 = vmatprep.subr.bf16.mxu0 %v6687
    %7761 = vmatpush1.bf16.msra.mxu0 %v6686
    %7762 = vmatprep.subr.bf16.mxu0 %v6680
    %7763 = vmatpush1.bf16.msra.mxu0 %v6679
    %7764 = vmatprep.subr.bf16.mxu0 %v6673
    %7765 = vmatpush1.bf16.msra.mxu0 %v6672
    %7766 = vmatprep.subr.bf16.mxu0 %v6778
    %7767 = vmatpush2.bf16.msra.mxu0 %v6777
    %7768 = vmatprep.subr.bf16.mxu0 %v6771
    %7769 = vmatpush2.bf16.msra.mxu0 %v6770
    %7770 = vmatprep.subr.bf16.mxu0 %v6764
    %7771 = vmatpush2.bf16.msra.mxu0 %v6763
    %7772 = vmatprep.subr.bf16.mxu0 %v6757
    %7773 = vmatpush2.bf16.msra.mxu0 %v6756
    %7774 = vmatprep.subr.bf16.mxu0 %v6750
    %7775 = vmatpush2.bf16.msra.mxu0 %v6749
    %7776 = vmatprep.subr.bf16.mxu0 %v6743
    %7777 = vmatpush2.bf16.msra.mxu0 %v6742
    %7778 = vmatprep.subr.bf16.mxu0 %v6736
    %7779 = vmatpush2.bf16.msra.mxu0 %v6735
    %7780 = vmatprep.subr.bf16.mxu0 %v6729
    %7781 = vmatpush2.bf16.msra.mxu0 %v6728
    %7782 = vmatprep.mubr.bf16.mxu0 %v4484
    %7783 = vmatmul.mubr.bf16.gmra.mxu0 %v4483
    %v7784 = vpop.f32.mrf.mxu0
    %v7785 = vadd.f32 %v7744, %v7784
    %v7786 = vpop.f32.mrf.mxu0
    %v7787 = vadd.f32 %v7746, %v7786
    %v7788 = vpop.f32.mrf.mxu0
    %v7789 = vpop.f32.mrf.mxu0
    %7790 = vdwg.mxu0
    %7791 = vmatprep.subr.bf16.mxu0 %v6834
    %7792 = vmatpush1.bf16.msra.mxu0 %v6833
    %7793 = vmatprep.subr.bf16.mxu0 %v6827
    %7794 = vmatpush1.bf16.msra.mxu0 %v6826
    %7795 = vmatprep.subr.bf16.mxu0 %v6820
    %7796 = vmatpush1.bf16.msra.mxu0 %v6819
    %7797 = vmatprep.subr.bf16.mxu0 %v6813
    %7798 = vmatpush1.bf16.msra.mxu0 %v6812
    %7799 = vmatprep.subr.bf16.mxu0 %v6806
    %7800 = vmatpush1.bf16.msra.mxu0 %v6805
    %7801 = vmatprep.subr.bf16.mxu0 %v6799
    %7802 = vmatpush1.bf16.msra.mxu0 %v6798
    %7803 = vmatprep.subr.bf16.mxu0 %v6792
    %7804 = vmatpush1.bf16.msra.mxu0 %v6791
    %7805 = vmatprep.subr.bf16.mxu0 %v6785
    %7806 = vmatpush1.bf16.msra.mxu0 %v6784
    %7807 = vmatprep.subr.bf16.mxu0 %v6890
    %7808 = vmatpush2.bf16.msra.mxu0 %v6889
    %7809 = vmatprep.subr.bf16.mxu0 %v6883
    %7810 = vmatpush2.bf16.msra.mxu0 %v6882
    %7811 = vmatprep.subr.bf16.mxu0 %v6876
    %7812 = vmatpush2.bf16.msra.mxu0 %v6875
    %7813 = vmatprep.subr.bf16.mxu0 %v6869
    %7814 = vmatpush2.bf16.msra.mxu0 %v6868
    %7815 = vmatprep.subr.bf16.mxu0 %v6862
    %7816 = vmatpush2.bf16.msra.mxu0 %v6861
    %7817 = vmatprep.subr.bf16.mxu0 %v6855
    %7818 = vmatpush2.bf16.msra.mxu0 %v6854
    %7819 = vmatprep.subr.bf16.mxu0 %v6848
    %7820 = vmatpush2.bf16.msra.mxu0 %v6847
    %7821 = vmatprep.subr.bf16.mxu0 %v6841
    %7822 = vmatpush2.bf16.msra.mxu0 %v6840
    %7823 = vmatprep.mubr.bf16.mxu0 %v4486
    %7824 = vmatmul.mubr.bf16.gmra.mxu0 %v4485
    %v7825 = vpop.f32.mrf.mxu0
    %v7826 = vadd.f32 %v7785, %v7825
    %v7827 = vpop.f32.mrf.mxu0
    %v7828 = vadd.f32 %v7787, %v7827
    %v7829 = vpop.f32.mrf.mxu0
    %v7830 = vpop.f32.mrf.mxu0
    %7831 = vdwg.mxu0
    %7832 = vmatprep.subr.bf16.mxu0 0
    %7833 = vmatpush1.bf16.msra.mxu0 %v6499
    %7834 = vmatprep.subr.bf16.mxu0 0
    %7835 = vmatpush1.bf16.msra.mxu0 %v6492
    %7836 = vmatprep.subr.bf16.mxu0 0
    %7837 = vmatpush1.bf16.msra.mxu0 %v6485
    %7838 = vmatprep.subr.bf16.mxu0 0
    %7839 = vmatpush1.bf16.msra.mxu0 %v6478
    %7840 = vmatprep.subr.bf16.mxu0 0
    %7841 = vmatpush1.bf16.msra.mxu0 %v6471
    %7842 = vmatprep.subr.bf16.mxu0 0
    %7843 = vmatpush1.bf16.msra.mxu0 %v6464
    %7844 = vmatprep.subr.bf16.mxu0 0
    %7845 = vmatpush1.bf16.msra.mxu0 %v6457
    %7846 = vmatprep.subr.bf16.mxu0 0
    %7847 = vmatpush1.bf16.msra.mxu0 %v6450
    %7848 = vmatprep.subr.bf16.mxu0 0
    %7849 = vmatpush2.bf16.msra.mxu0 %v6555
    %7850 = vmatprep.subr.bf16.mxu0 0
    %7851 = vmatpush2.bf16.msra.mxu0 %v6548
    %7852 = vmatprep.subr.bf16.mxu0 0
    %7853 = vmatpush2.bf16.msra.mxu0 %v6541
    %7854 = vmatprep.subr.bf16.mxu0 0
    %7855 = vmatpush2.bf16.msra.mxu0 %v6534
    %7856 = vmatprep.subr.bf16.mxu0 0
    %7857 = vmatpush2.bf16.msra.mxu0 %v6527
    %7858 = vmatprep.subr.bf16.mxu0 0
    %7859 = vmatpush2.bf16.msra.mxu0 %v6520
    %7860 = vmatprep.subr.bf16.mxu0 0
    %7861 = vmatpush2.bf16.msra.mxu0 %v6513
    %7862 = vmatprep.subr.bf16.mxu0 0
    %7863 = vmatpush2.bf16.msra.mxu0 %v6506
    %7864 = vmatprep.mubr.bf16.mxu0 %v4480
    %7865 = vmatmul.mubr.bf16.gmra.mxu0 %v4479
    %v7866 = vpop.f32.mrf.mxu0
    %v7867 = vadd.f32 %v5028, %v7866
    %v7868 = vpop.f32.mrf.mxu0
    %v7869 = vpop.f32.mrf.mxu0
    %v7870 = vpop.f32.mrf.mxu0
    %7871 = vdwg.mxu0
    %7872 = vmatprep.subr.bf16.mxu0 0
    %7873 = vmatpush1.bf16.msra.mxu0 %v6611
    %7874 = vmatprep.subr.bf16.mxu0 0
    %7875 = vmatpush1.bf16.msra.mxu0 %v6604
    %7876 = vmatprep.subr.bf16.mxu0 0
    %7877 = vmatpush1.bf16.msra.mxu0 %v6597
    %7878 = vmatprep.subr.bf16.mxu0 0
    %7879 = vmatpush1.bf16.msra.mxu0 %v6590
    %7880 = vmatprep.subr.bf16.mxu0 0
    %7881 = vmatpush1.bf16.msra.mxu0 %v6583
    %7882 = vmatprep.subr.bf16.mxu0 0
    %7883 = vmatpush1.bf16.msra.mxu0 %v6576
    %7884 = vmatprep.subr.bf16.mxu0 0
    %7885 = vmatpush1.bf16.msra.mxu0 %v6569
    %7886 = vmatprep.subr.bf16.mxu0 0
    %7887 = vmatpush1.bf16.msra.mxu0 %v6562
    %7888 = vmatprep.subr.bf16.mxu0 0
    %7889 = vmatpush2.bf16.msra.mxu0 %v6667
    %7890 = vmatprep.subr.bf16.mxu0 0
    %7891 = vmatpush2.bf16.msra.mxu0 %v6660
    %7892 = vmatprep.subr.bf16.mxu0 0
    %7893 = vmatpush2.bf16.msra.mxu0 %v6653
    %7894 = vmatprep.subr.bf16.mxu0 0
    %7895 = vmatpush2.bf16.msra.mxu0 %v6646
    %7896 = vmatprep.subr.bf16.mxu0 0
    %7897 = vmatpush2.bf16.msra.mxu0 %v6639
    %7898 = vmatprep.subr.bf16.mxu0 0
    %7899 = vmatpush2.bf16.msra.mxu0 %v6632
    %7900 = vmatprep.subr.bf16.mxu0 0
    %7901 = vmatpush2.bf16.msra.mxu0 %v6625
    %7902 = vmatprep.subr.bf16.mxu0 0
    %7903 = vmatpush2.bf16.msra.mxu0 %v6618
    %7904 = vmatprep.mubr.bf16.mxu0 %v4482
    %7905 = vmatmul.mubr.bf16.gmra.mxu0 %v4481
    %v7906 = vpop.f32.mrf.mxu0
    %v7907 = vadd.f32 %v7867, %v7906
    %v7908 = vpop.f32.mrf.mxu0
    %v7909 = vpop.f32.mrf.mxu0
    %v7910 = vpop.f32.mrf.mxu0
    %7911 = vdwg.mxu0
    %7912 = vmatprep.subr.bf16.mxu0 0
    %7913 = vmatpush1.bf16.msra.mxu0 %v6723
    %7914 = vmatprep.subr.bf16.mxu0 0
    %7915 = vmatpush1.bf16.msra.mxu0 %v6716
    %7916 = vmatprep.subr.bf16.mxu0 0
    %7917 = vmatpush1.bf16.msra.mxu0 %v6709
    %7918 = vmatprep.subr.bf16.mxu0 0
    %7919 = vmatpush1.bf16.msra.mxu0 %v6702
    %7920 = vmatprep.subr.bf16.mxu0 0
    %7921 = vmatpush1.bf16.msra.mxu0 %v6695
    %7922 = vmatprep.subr.bf16.mxu0 0
    %7923 = vmatpush1.bf16.msra.mxu0 %v6688
    %7924 = vmatprep.subr.bf16.mxu0 0
    %7925 = vmatpush1.bf16.msra.mxu0 %v6681
    %7926 = vmatprep.subr.bf16.mxu0 0
    %7927 = vmatpush1.bf16.msra.mxu0 %v6674
    %7928 = vmatprep.subr.bf16.mxu0 0
    %7929 = vmatpush2.bf16.msra.mxu0 %v6779
    %7930 = vmatprep.subr.bf16.mxu0 0
    %7931 = vmatpush2.bf16.msra.mxu0 %v6772
    %7932 = vmatprep.subr.bf16.mxu0 0
    %7933 = vmatpush2.bf16.msra.mxu0 %v6765
    %7934 = vmatprep.subr.bf16.mxu0 0
    %7935 = vmatpush2.bf16.msra.mxu0 %v6758
    %7936 = vmatprep.subr.bf16.mxu0 0
    %7937 = vmatpush2.bf16.msra.mxu0 %v6751
    %7938 = vmatprep.subr.bf16.mxu0 0
    %7939 = vmatpush2.bf16.msra.mxu0 %v6744
    %7940 = vmatprep.subr.bf16.mxu0 0
    %7941 = vmatpush2.bf16.msra.mxu0 %v6737
    %7942 = vmatprep.subr.bf16.mxu0 0
    %7943 = vmatpush2.bf16.msra.mxu0 %v6730
    %7944 = vmatprep.mubr.bf16.mxu0 %v4484
    %7945 = vmatmul.mubr.bf16.gmra.mxu0 %v4483
    %v7946 = vpop.f32.mrf.mxu0
    %v7947 = vadd.f32 %v7907, %v7946
    %v7948 = vpop.f32.mrf.mxu0
    %v7949 = vpop.f32.mrf.mxu0
    %v7950 = vpop.f32.mrf.mxu0
    %7951 = vdwg.mxu0
    %7952 = vmatprep.subr.bf16.mxu0 0
    %7953 = vmatpush1.bf16.msra.mxu0 %v6835
    %7954 = vmatprep.subr.bf16.mxu0 0
    %7955 = vmatpush1.bf16.msra.mxu0 %v6828
    %7956 = vmatprep.subr.bf16.mxu0 0
    %7957 = vmatpush1.bf16.msra.mxu0 %v6821
    %7958 = vmatprep.subr.bf16.mxu0 0
    %7959 = vmatpush1.bf16.msra.mxu0 %v6814
    %7960 = vmatprep.subr.bf16.mxu0 0
    %7961 = vmatpush1.bf16.msra.mxu0 %v6807
    %7962 = vmatprep.subr.bf16.mxu0 0
    %7963 = vmatpush1.bf16.msra.mxu0 %v6800
    %7964 = vmatprep.subr.bf16.mxu0 0
    %7965 = vmatpush1.bf16.msra.mxu0 %v6793
    %7966 = vmatprep.subr.bf16.mxu0 0
    %7967 = vmatpush1.bf16.msra.mxu0 %v6786
    %7968 = vmatprep.subr.bf16.mxu0 0
    %7969 = vmatpush2.bf16.msra.mxu0 %v6891
    %7970 = vmatprep.subr.bf16.mxu0 0
    %7971 = vmatpush2.bf16.msra.mxu0 %v6884
    %7972 = vmatprep.subr.bf16.mxu0 0
    %7973 = vmatpush2.bf16.msra.mxu0 %v6877
    %7974 = vmatprep.subr.bf16.mxu0 0
    %7975 = vmatpush2.bf16.msra.mxu0 %v6870
    %7976 = vmatprep.subr.bf16.mxu0 0
    %7977 = vmatpush2.bf16.msra.mxu0 %v6863
    %7978 = vmatprep.subr.bf16.mxu0 0
    %7979 = vmatpush2.bf16.msra.mxu0 %v6856
    %7980 = vmatprep.subr.bf16.mxu0 0
    %7981 = vmatpush2.bf16.msra.mxu0 %v6849
    %7982 = vmatprep.subr.bf16.mxu0 0
    %7983 = vmatpush2.bf16.msra.mxu0 %v6842
    %7984 = vmatprep.mubr.bf16.mxu0 %v4486
    %7985 = vmatmul.mubr.bf16.gmra.mxu0 %v4485
    %v7986 = vpop.f32.mrf.mxu0
    %v7987 = vadd.f32 %v7947, %v7986
    %v7988 = vpop.f32.mrf.mxu0
    %v7989 = vpop.f32.mrf.mxu0
    %v7990 = vpop.f32.mrf.mxu0
    %7991 = vdwg.mxu0
    %v7992 = vxor.u32 %v7498, 2147483648
    %v7993 = vxor.u32 %v7500, 2147483648
    %v7994 = vxor.u32 %v7662, 2147483648
    %v7995 = vxor.u32 %v7664, 2147483648
    %v7996 = vxor.u32 %v7826, 2147483648
    %v7997 = vxor.u32 %v7828, 2147483648
    %v7998 = vxor.u32 %v7987, 2147483648
    %v7999 = vmul.f32 %v7992, 1.442695
    %v8000 = vpow.pop %v7999
    %v8001 = vmul.f32 %v7993, 1.442695
    %v8002 = vpow.pop %v8001
    %v8003 = vmul.f32 %v7994, 1.442695
    %v8004 = vpow.pop %v8003
    %v8005 = vmul.f32 %v7995, 1.442695
    %v8006 = vpow.pop %v8005
    %v8007 = vmul.f32 %v7996, 1.442695
    %v8008 = vpow.pop %v8007
    %v8009 = vmul.f32 %v7997, 1.442695
    %v8010 = vpow.pop %v8009
    %v8011 = vmul.f32 %v7998, 1.442695
    %v8012 = vpow.pop %v8011
    %v8013 = vadd.f32 %v8000, 1.0
    %v8014 = vadd.f32 %v8002, 1.0
    %v8015 = vadd.f32 %v8004, 1.0
    %v8016 = vadd.f32 %v8006, 1.0
    %v8017 = vadd.f32 %v8008, 1.0
    %v8018 = vadd.f32 %v8010, 1.0
    %v8019 = vadd.f32 %v8012, 1.0
    %v8020 = vrcp.pop %v8013
    %v8021 = vmul.f32 1.0, %v8020
    %v8022 = vrcp.pop %v8014
    %v8023 = vmul.f32 1.0, %v8022
    %v8024 = vrcp.pop %v8015
    %v8025 = vmul.f32 1.0, %v8024
    %v8026 = vrcp.pop %v8016
    %v8027 = vmul.f32 1.0, %v8026
    %v8028 = vrcp.pop %v8017
    %v8029 = vmul.f32 1.0, %v8028
    %v8030 = vrcp.pop %v8018
    %v8031 = vmul.f32 1.0, %v8030
    %v8032 = vrcp.pop %v8019
    %v8033 = vmul.f32 1.0, %v8032
    %8034 = vst [vmem:[#allocation13] sm:$0xff] %v8021
    %8035 = vst [vmem:[#allocation13 + $0x8] sm:$0xff] %v8023
    %8036 = vst [vmem:[#allocation13 + $0x10] sm:$0xff] %v8025
    %8037 = vst [vmem:[#allocation13 + $0x18] sm:$0xff] %v8027
    %8038 = vst [vmem:[#allocation13 + $0x20] sm:$0xff] %v8029
    %8039 = vst [vmem:[#allocation13 + $0x28] sm:$0xff] %v8031
    %8040 = vst [vmem:[#allocation13 + $0x30] sm:$0xff] %v8033
    // Predicated region
    $region54: #{_forward_groups_padded.1} parent=1 // pred_check
      _
    $region55: #{_forward_groups_padded.1} parent=1 // pred_check_branch
      %8042 = sbr.rel (0) target = $region57
    $region56: #{_forward_groups_padded.1} parent=1 // pred_region
      %s8044 = ssub.s32 896, 896
      %8045 = vsyncadd [#allocation4], %s8044
      %s8047 = sshll.u32 [#allocation13], 4
      %s8048 = int_to_ptr.vmem [resolvable:$true] %s8047
      %8050 = dma.vmem_to_hbm [thread:$0]  %s8048, 896, %s7, [#allocation4]
    $region57: #{_forward_groups_padded.1} parent=1 // pred_fallthru
      _
    // Predicated region
    $region58: #{_forward_groups_padded.1} parent=1 // pred_check
      _
    $region59: #{_forward_groups_padded.1} parent=1 // pred_check_branch
      %8052 = sbr.rel (0) target = $region61
    $region60: #{_forward_groups_padded.1} parent=1 // pred_region
      %8053 = dma.done [#allocation4], 896
    $region61: #{_forward_groups_padded.1} parent=1 // pred_fallthru
      _
    %8054 = vsyncpa [#allocation3], 1
    %8055 = vsyncpa [#allocation6], 1
    %8056 = vsyncpa [#allocation9], 1
    %8057 = vsyncpa [#allocation12], 1
    %8058 = vsyncpa [#allocation4], 1

</llo_original>
